<compile_context>
chip_gen: v7x
topology: tpu7x:2x2x1
jax: 0.10.0
libtpu: 0.0.40
codegen_flags: <defaults>
</compile_context>

<pallas_src>
import numpy as np
import jax
import jax.numpy as jnp
from jax.experimental import pallas as pl
from jax.experimental.pallas import tpu as pltpu

H = W = 28
HW = H * W                              # 784
COUT = 16
KDIM = 3
NTAP = KDIM * KDIM                      # 9
HALO = (KDIM // 2) * W + (KDIM // 2)    # 29: flat halo -> every tap is a static slice
XW = HW + 2 * HALO                      # 842: padded flat row width
FC_IN = COUT * HW                       # 12544 (PyTorch Linear in_features)
FC_OUT = 10
NOUT_PAD = 128                          # lane-dense output / FC-N padding
MAX_TB = 16                             # batch-tile cap: conv acc is (TB,784) -> <=14 vregs


def _col_masks():
    # Vertical out-of-image reads land in the zero halo, so only horizontal
    # wraparound needs masking: kw==0 taps read w-1 (invalid at w==0),
    # kw==2 taps read w+1 (invalid at w==W-1).  kw==1 taps need no mask.
    m = np.ones((2, H, W), np.float32)
    m[0, :, 0] = 0.0
    m[1, :, W - 1] = 0.0
    return m.reshape(2, HW)


_COL_MASKS = _col_masks()


# ------------------------------ fused kernel ----------------------------------
def fused_kernel(x_ref, wc_ref, bc_ref, m_ref, wf_ref, bf_ref, o_ref, p_ref):
    # x_ref : (TB, XW)              VMEM  flat image rows + zero halo (batch tile)
    # wc_ref: (COUT*NTAP,)          SMEM  conv weights, index c*9 + kh*3 + kw
    # bc_ref: (COUT,)               SMEM  conv bias
    # m_ref : (2, HW)               VMEM  column-validity masks (kw==0 / kw==2)
    # wf_ref: (COUT, HW, NOUT_PAD)  VMEM  fc weight, per-channel (784,128) slabs
    # bf_ref: (1, NOUT_PAD)         VMEM  fc bias, zero-padded 10 -> 128
    # o_ref : (TB, NOUT_PAD)        VMEM  output tile (lane-dense)
    # p_ref : (NTAP, TB, HW)        VMEM scratch: the 9 shifted+masked patches

    # Phase 1: build the nine shifted patches once; shared by all 16 channels.
    for kh in range(KDIM):
        for kw in range(KDIM):
            k = kh * KDIM + kw
            s = (kh - 1) * W + (kw - 1)
            patch = x_ref[:, HALO + s: HALO + s + HW]          # (TB, HW)
            if kw == 0:
                patch = patch * m_ref[0:1, :]
            elif kw == 2:
                patch = patch * m_ref[1:2, :]
            p_ref[k] = patch

    # Phase 2: per output channel, conv + bias + ReLU on the VPU, then one
    # (TB,784) x (784,128) MXU matmul against that channel's FC-weight slab,
    # accumulated in f32.  No flatten, no scratch zeroing, no narrow stores.
    out = jnp.zeros(o_ref.shape, jnp.float32)
    for c in range(COUT):
        acc = wc_ref[c * NTAP] * p_ref[0]
        for k in range(1, NTAP):
            acc = acc + wc_ref[c * NTAP + k] * p_ref[k]
        act = jnp.maximum(acc + bc_ref[c], 0.0)                # (TB, HW)
        out = out + jnp.dot(act, wf_ref[c],
                            preferred_element_type=jnp.float32)
    o_ref[...] = out + bf_ref[...]


# --------------------------------- wrapper ------------------------------------
@jax.jit
def simple_net(x, conv_w, conv_b, fc_w, fc_b):
    # x: (B, 1, 28, 28) float32
    B = x.shape[0]
    TB = min(B, MAX_TB)
    nb = -(-B // TB)                      # ceil-div
    B_pad = nb * TB

    # Flat image rows with zero halo; pad batch up to a multiple of TB.
    x_flat = jnp.pad(x.reshape(B, HW), ((0, B_pad - B), (HALO, HALO)))   # (B_pad, 842)

    wc = conv_w.reshape(COUT * NTAP)                                     # (144,) SMEM
    bc = conv_b.reshape(COUT)                                            # (16,)  SMEM
    # fc_w (10, 12544) -> per-channel K-major slabs (16, 784, 10), out-padded to 128.
    wf = jnp.pad(fc_w.reshape(FC_OUT, COUT, HW).transpose(1, 2, 0),
                 ((0, 0), (0, 0), (0, NOUT_PAD - FC_OUT)))               # (16,784,128)
    bf = jnp.pad(fc_b.reshape(1, FC_OUT), ((0, 0), (0, NOUT_PAD - FC_OUT)))
    masks = jnp.asarray(_COL_MASKS)

    out = pl.pallas_call(
        fused_kernel,
        out_shape=jax.ShapeDtypeStruct((B_pad, NOUT_PAD), jnp.float32),
        grid=(nb,),
        in_specs=[
            pl.BlockSpec((TB, XW), lambda b: (b, 0)),                    # x tile
            pl.BlockSpec(memory_space=pltpu.MemorySpace.SMEM),           # conv w (scalars)
            pl.BlockSpec(memory_space=pltpu.MemorySpace.SMEM),           # conv b (scalars)
            pl.BlockSpec((2, HW), lambda b: (0, 0)),                     # column masks
            pl.BlockSpec((COUT, HW, NOUT_PAD), lambda b: (0, 0, 0)),     # fc w (resident)
            pl.BlockSpec((1, NOUT_PAD), lambda b: (0, 0)),               # fc b
        ],
        out_specs=pl.BlockSpec((TB, NOUT_PAD), lambda b: (b, 0)),
        scratch_shapes=[pltpu.VMEM((NTAP, TB, HW), jnp.float32)],
        compiler_params=pltpu.CompilerParams(
            dimension_semantics=("parallel",),
            vmem_limit_bytes=32 * 1024 * 1024),
    )(x_flat, wc, bc, masks, wf, bf)

    return out[:B, :FC_OUT]


def reference(x, conv_w, conv_b, fc_w, fc_b):
    y = jax.lax.conv_general_dilated(
        x, conv_w, window_strides=(1, 1), padding="SAME",
        dimension_numbers=("NCHW", "OIHW", "NCHW"))
    y = jnp.maximum(y + conv_b.reshape(1, COUT, 1, 1), 0.0)
    y = y.reshape(y.shape[0], -1)
    return y @ fc_w.T + fc_b


if __name__ == "__main__":
    key = jax.random.PRNGKey(0)
    k1, k2, k3, k4, k5 = jax.random.split(key, 5)

    # parameter shapes per nn.Conv2d(1,16,3,p=1) / nn.Linear(16*28*28, 10)
    conv_w = jax.random.normal(k1, (COUT, 1, KDIM, KDIM), jnp.float32) * 0.1
    conv_b = jax.random.normal(k2, (COUT,), jnp.float32) * 0.1
    fc_w = jax.random.normal(k3, (FC_OUT, FC_IN), jnp.float32) * 0.01
    fc_b = jax.random.normal(k4, (FC_OUT,), jnp.float32) * 0.01

    # input: batch=2, NCHW 28x28 (required by the 16*28*28 Linear layer)
    x = jax.random.normal(k5, (2, 1, H, W), jnp.float32)

    out = jax.block_until_ready(simple_net(x, conv_w, conv_b, fc_w, fc_b))
    ref = jax.block_until_ready(reference(x, conv_w, conv_b, fc_w, fc_b))

    assert out.shape == (2, FC_OUT)
    assert jnp.allclose(out, ref, atol=2e-3, rtol=2e-3), "mismatch vs JAX reference"

    print("KERNEL_OK")
</pallas_src>

<mosaic_0001>
module attributes {stable_mosaic.version = 11 : i64} {
  func.func @fused_kernel(%arg0: i32, %arg1: memref<2x842xf32, #tpu.memory_space<vmem>>, %arg2: memref<144xf32, #tpu.memory_space<smem>>, %arg3: memref<16xf32, #tpu.memory_space<smem>>, %arg4: memref<2x784xf32, #tpu.memory_space<vmem>>, %arg5: memref<16x784x128xf32, #tpu.memory_space<vmem>>, %arg6: memref<1x128xf32, #tpu.memory_space<vmem>>, %arg7: memref<2x128xf32, #tpu.memory_space<vmem>>, %arg8: memref<9x2x784xf32, #tpu.memory_space<vmem>>) attributes {dimension_semantics = [#tpu.dimension_semantics<parallel>], iteration_bounds = array<i64: 1>, scalar_prefetch = 0 : i64, scratch_operands = 1 : i64, tpu.core_type = #tpu.core_type<tc>, window_params = [{transform_indices = @transform_0, window_bounds = array<i64: 2, 842>}, {transform_indices = @transform_1, window_bounds = array<i64: 144>}, {transform_indices = @transform_2, window_bounds = array<i64: 16>}, {pipeline_mode = #tpu.pipeline_mode<synchronous>, transform_indices = @transform_3, window_bounds = array<i64: 2, 784>}, {pipeline_mode = #tpu.pipeline_mode<synchronous>, transform_indices = @transform_4, window_bounds = array<i64: 16, 784, 128>}, {pipeline_mode = #tpu.pipeline_mode<synchronous>, transform_indices = @transform_5, window_bounds = array<i64: 1, 128>}, {transform_indices = @transform_6, window_bounds = array<i64: 2, 128>}]} {
    %c0 = arith.constant 0 : index
    %c0_0 = arith.constant 0 : index
    %0 = vector.load %arg1[%c0, %c0_0] : memref<2x842xf32, #tpu.memory_space<vmem>>, vector<2x784xf32>
    %c0_1 = arith.constant 0 : index
    %c0_2 = arith.constant 0 : index
    %1 = vector.load %arg4[%c0_1, %c0_2] : memref<2x784xf32, #tpu.memory_space<vmem>>, vector<1x784xf32>
    %2 = vector.broadcast %1 : vector<1x784xf32> to vector<2x784xf32>
    %3 = arith.mulf %0, %2 : vector<2x784xf32>
    %c0_3 = arith.constant 0 : index
    %c0_4 = arith.constant 0 : index
    %c0_5 = arith.constant 0 : index
    %4 = vector.load %arg8[%c0_3, %c0_4, %c0_5] : memref<9x2x784xf32, #tpu.memory_space<vmem>>, vector<1x2x784xf32>
    %5 = vector.shape_cast %4 : vector<1x2x784xf32> to vector<2x784xf32>
    %6 = vector.shape_cast %3 : vector<2x784xf32> to vector<1x2x784xf32>
    tpu.vector_store %arg8[%c0_3, %c0_4, %c0_5], %6 {strides = array<i32>} : memref<9x2x784xf32, #tpu.memory_space<vmem>>, vector<1x2x784xf32>,
    %c0_6 = arith.constant 0 : index
    %c1 = arith.constant 1 : index
    %7 = vector.load %arg1[%c0_6, %c1] : memref<2x842xf32, #tpu.memory_space<vmem>>, vector<2x784xf32>
    %c1_7 = arith.constant 1 : index
    %c0_8 = arith.constant 0 : index
    %c0_9 = arith.constant 0 : index
    %8 = vector.load %arg8[%c1_7, %c0_8, %c0_9] : memref<9x2x784xf32, #tpu.memory_space<vmem>>, vector<1x2x784xf32>
    %9 = vector.shape_cast %8 : vector<1x2x784xf32> to vector<2x784xf32>
    %10 = vector.shape_cast %7 : vector<2x784xf32> to vector<1x2x784xf32>
    tpu.vector_store %arg8[%c1_7, %c0_8, %c0_9], %10 {strides = array<i32>} : memref<9x2x784xf32, #tpu.memory_space<vmem>>, vector<1x2x784xf32>,
    %c0_10 = arith.constant 0 : index
    %c2 = arith.constant 2 : index
    %11 = vector.load %arg1[%c0_10, %c2] : memref<2x842xf32, #tpu.memory_space<vmem>>, vector<2x784xf32>
    %c1_11 = arith.constant 1 : index
    %c0_12 = arith.constant 0 : index
    %12 = vector.load %arg4[%c1_11, %c0_12] : memref<2x784xf32, #tpu.memory_space<vmem>>, vector<1x784xf32>
    %13 = vector.broadcast %12 : vector<1x784xf32> to vector<2x784xf32>
    %14 = arith.mulf %11, %13 : vector<2x784xf32>
    %c2_13 = arith.constant 2 : index
    %c0_14 = arith.constant 0 : index
    %c0_15 = arith.constant 0 : index
    %15 = vector.load %arg8[%c2_13, %c0_14, %c0_15] : memref<9x2x784xf32, #tpu.memory_space<vmem>>, vector<1x2x784xf32>
    %16 = vector.shape_cast %15 : vector<1x2x784xf32> to vector<2x784xf32>
    %17 = vector.shape_cast %14 : vector<2x784xf32> to vector<1x2x784xf32>
    tpu.vector_store %arg8[%c2_13, %c0_14, %c0_15], %17 {strides = array<i32>} : memref<9x2x784xf32, #tpu.memory_space<vmem>>, vector<1x2x784xf32>,
    %c0_16 = arith.constant 0 : index
    %c28 = arith.constant 28 : index
    %18 = vector.load %arg1[%c0_16, %c28] : memref<2x842xf32, #tpu.memory_space<vmem>>, vector<2x784xf32>
    %c0_17 = arith.constant 0 : index
    %c0_18 = arith.constant 0 : index
    %19 = vector.load %arg4[%c0_17, %c0_18] : memref<2x784xf32, #tpu.memory_space<vmem>>, vector<1x784xf32>
    %20 = vector.broadcast %19 : vector<1x784xf32> to vector<2x784xf32>
    %21 = arith.mulf %18, %20 : vector<2x784xf32>
    %c3 = arith.constant 3 : index
    %c0_19 = arith.constant 0 : index
    %c0_20 = arith.constant 0 : index
    %22 = vector.load %arg8[%c3, %c0_19, %c0_20] : memref<9x2x784xf32, #tpu.memory_space<vmem>>, vector<1x2x784xf32>
    %23 = vector.shape_cast %22 : vector<1x2x784xf32> to vector<2x784xf32>
    %24 = vector.shape_cast %21 : vector<2x784xf32> to vector<1x2x784xf32>
    tpu.vector_store %arg8[%c3, %c0_19, %c0_20], %24 {strides = array<i32>} : memref<9x2x784xf32, #tpu.memory_space<vmem>>, vector<1x2x784xf32>,
    %c0_21 = arith.constant 0 : index
    %c29 = arith.constant 29 : index
    %25 = vector.load %arg1[%c0_21, %c29] : memref<2x842xf32, #tpu.memory_space<vmem>>, vector<2x784xf32>
    %c4 = arith.constant 4 : index
    %c0_22 = arith.constant 0 : index
    %c0_23 = arith.constant 0 : index
    %26 = vector.load %arg8[%c4, %c0_22, %c0_23] : memref<9x2x784xf32, #tpu.memory_space<vmem>>, vector<1x2x784xf32>
    %27 = vector.shape_cast %26 : vector<1x2x784xf32> to vector<2x784xf32>
    %28 = vector.shape_cast %25 : vector<2x784xf32> to vector<1x2x784xf32>
    tpu.vector_store %arg8[%c4, %c0_22, %c0_23], %28 {strides = array<i32>} : memref<9x2x784xf32, #tpu.memory_space<vmem>>, vector<1x2x784xf32>,
    %c0_24 = arith.constant 0 : index
    %c30 = arith.constant 30 : index
    %29 = vector.load %arg1[%c0_24, %c30] : memref<2x842xf32, #tpu.memory_space<vmem>>, vector<2x784xf32>
    %c1_25 = arith.constant 1 : index
    %c0_26 = arith.constant 0 : index
    %30 = vector.load %arg4[%c1_25, %c0_26] : memref<2x784xf32, #tpu.memory_space<vmem>>, vector<1x784xf32>
    %31 = vector.broadcast %30 : vector<1x784xf32> to vector<2x784xf32>
    %32 = arith.mulf %29, %31 : vector<2x784xf32>
    %c5 = arith.constant 5 : index
    %c0_27 = arith.constant 0 : index
    %c0_28 = arith.constant 0 : index
    %33 = vector.load %arg8[%c5, %c0_27, %c0_28] : memref<9x2x784xf32, #tpu.memory_space<vmem>>, vector<1x2x784xf32>
    %34 = vector.shape_cast %33 : vector<1x2x784xf32> to vector<2x784xf32>
    %35 = vector.shape_cast %32 : vector<2x784xf32> to vector<1x2x784xf32>
    tpu.vector_store %arg8[%c5, %c0_27, %c0_28], %35 {strides = array<i32>} : memref<9x2x784xf32, #tpu.memory_space<vmem>>, vector<1x2x784xf32>,
    %c0_29 = arith.constant 0 : index
    %c56 = arith.constant 56 : index
    %36 = vector.load %arg1[%c0_29, %c56] : memref<2x842xf32, #tpu.memory_space<vmem>>, vector<2x784xf32>
    %c0_30 = arith.constant 0 : index
    %c0_31 = arith.constant 0 : index
    %37 = vector.load %arg4[%c0_30, %c0_31] : memref<2x784xf32, #tpu.memory_space<vmem>>, vector<1x784xf32>
    %38 = vector.broadcast %37 : vector<1x784xf32> to vector<2x784xf32>
    %39 = arith.mulf %36, %38 : vector<2x784xf32>
    %c6 = arith.constant 6 : index
    %c0_32 = arith.constant 0 : index
    %c0_33 = arith.constant 0 : index
    %40 = vector.load %arg8[%c6, %c0_32, %c0_33] : memref<9x2x784xf32, #tpu.memory_space<vmem>>, vector<1x2x784xf32>
    %41 = vector.shape_cast %40 : vector<1x2x784xf32> to vector<2x784xf32>
    %42 = vector.shape_cast %39 : vector<2x784xf32> to vector<1x2x784xf32>
    tpu.vector_store %arg8[%c6, %c0_32, %c0_33], %42 {strides = array<i32>} : memref<9x2x784xf32, #tpu.memory_space<vmem>>, vector<1x2x784xf32>,
    %c0_34 = arith.constant 0 : index
    %c57 = arith.constant 57 : index
    %43 = vector.load %arg1[%c0_34, %c57] : memref<2x842xf32, #tpu.memory_space<vmem>>, vector<2x784xf32>
    %c7 = arith.constant 7 : index
    %c0_35 = arith.constant 0 : index
    %c0_36 = arith.constant 0 : index
    %44 = vector.load %arg8[%c7, %c0_35, %c0_36] : memref<9x2x784xf32, #tpu.memory_space<vmem>>, vector<1x2x784xf32>
    %45 = vector.shape_cast %44 : vector<1x2x784xf32> to vector<2x784xf32>
    %46 = vector.shape_cast %43 : vector<2x784xf32> to vector<1x2x784xf32>
    tpu.vector_store %arg8[%c7, %c0_35, %c0_36], %46 {strides = array<i32>} : memref<9x2x784xf32, #tpu.memory_space<vmem>>, vector<1x2x784xf32>,
    %c0_37 = arith.constant 0 : index
    %c58 = arith.constant 58 : index
    %47 = vector.load %arg1[%c0_37, %c58] : memref<2x842xf32, #tpu.memory_space<vmem>>, vector<2x784xf32>
    %c1_38 = arith.constant 1 : index
    %c0_39 = arith.constant 0 : index
    %48 = vector.load %arg4[%c1_38, %c0_39] : memref<2x784xf32, #tpu.memory_space<vmem>>, vector<1x784xf32>
    %49 = vector.broadcast %48 : vector<1x784xf32> to vector<2x784xf32>
    %50 = arith.mulf %47, %49 : vector<2x784xf32>
    %c8 = arith.constant 8 : index
    %c0_40 = arith.constant 0 : index
    %c0_41 = arith.constant 0 : index
    %51 = vector.load %arg8[%c8, %c0_40, %c0_41] : memref<9x2x784xf32, #tpu.memory_space<vmem>>, vector<1x2x784xf32>
    %52 = vector.shape_cast %51 : vector<1x2x784xf32> to vector<2x784xf32>
    %53 = vector.shape_cast %50 : vector<2x784xf32> to vector<1x2x784xf32>
    tpu.vector_store %arg8[%c8, %c0_40, %c0_41], %53 {strides = array<i32>} : memref<9x2x784xf32, #tpu.memory_space<vmem>>, vector<1x2x784xf32>,
    %cst = arith.constant 0.000000e+00 : f32
    %54 = vector.broadcast %cst : f32 to vector<2x128xf32>
    %c0_42 = arith.constant 0 : index
    %55 = memref.load %arg2[%c0_42] : memref<144xf32, #tpu.memory_space<smem>>
    %c0_43 = arith.constant 0 : index
    %c0_44 = arith.constant 0 : index
    %c0_45 = arith.constant 0 : index
    %56 = vector.load %arg8[%c0_43, %c0_44, %c0_45] : memref<9x2x784xf32, #tpu.memory_space<vmem>>, vector<1x2x784xf32>
    %57 = vector.shape_cast %56 : vector<1x2x784xf32> to vector<2x784xf32>
    %58 = vector.broadcast %55 : f32 to vector<2x784xf32>
    %59 = arith.mulf %58, %57 : vector<2x784xf32>
    %c1_46 = arith.constant 1 : index
    %60 = memref.load %arg2[%c1_46] : memref<144xf32, #tpu.memory_space<smem>>
    %c1_47 = arith.constant 1 : index
    %c0_48 = arith.constant 0 : index
    %c0_49 = arith.constant 0 : index
    %61 = vector.load %arg8[%c1_47, %c0_48, %c0_49] : memref<9x2x784xf32, #tpu.memory_space<vmem>>, vector<1x2x784xf32>
    %62 = vector.shape_cast %61 : vector<1x2x784xf32> to vector<2x784xf32>
    %63 = vector.broadcast %60 : f32 to vector<2x784xf32>
    %64 = arith.mulf %63, %62 : vector<2x784xf32>
    %65 = arith.addf %59, %64 : vector<2x784xf32>
    %c2_50 = arith.constant 2 : index
    %66 = memref.load %arg2[%c2_50] : memref<144xf32, #tpu.memory_space<smem>>
    %c2_51 = arith.constant 2 : index
    %c0_52 = arith.constant 0 : index
    %c0_53 = arith.constant 0 : index
    %67 = vector.load %arg8[%c2_51, %c0_52, %c0_53] : memref<9x2x784xf32, #tpu.memory_space<vmem>>, vector<1x2x784xf32>
    %68 = vector.shape_cast %67 : vector<1x2x784xf32> to vector<2x784xf32>
    %69 = vector.broadcast %66 : f32 to vector<2x784xf32>
    %70 = arith.mulf %69, %68 : vector<2x784xf32>
    %71 = arith.addf %65, %70 : vector<2x784xf32>
    %c3_54 = arith.constant 3 : index
    %72 = memref.load %arg2[%c3_54] : memref<144xf32, #tpu.memory_space<smem>>
    %c3_55 = arith.constant 3 : index
    %c0_56 = arith.constant 0 : index
    %c0_57 = arith.constant 0 : index
    %73 = vector.load %arg8[%c3_55, %c0_56, %c0_57] : memref<9x2x784xf32, #tpu.memory_space<vmem>>, vector<1x2x784xf32>
    %74 = vector.shape_cast %73 : vector<1x2x784xf32> to vector<2x784xf32>
    %75 = vector.broadcast %72 : f32 to vector<2x784xf32>
    %76 = arith.mulf %75, %74 : vector<2x784xf32>
    %77 = arith.addf %71, %76 : vector<2x784xf32>
    %c4_58 = arith.constant 4 : index
    %78 = memref.load %arg2[%c4_58] : memref<144xf32, #tpu.memory_space<smem>>
    %c4_59 = arith.constant 4 : index
    %c0_60 = arith.constant 0 : index
    %c0_61 = arith.constant 0 : index
    %79 = vector.load %arg8[%c4_59, %c0_60, %c0_61] : memref<9x2x784xf32, #tpu.memory_space<vmem>>, vector<1x2x784xf32>
    %80 = vector.shape_cast %79 : vector<1x2x784xf32> to vector<2x784xf32>
    %81 = vector.broadcast %78 : f32 to vector<2x784xf32>
    %82 = arith.mulf %81, %80 : vector<2x784xf32>
    %83 = arith.addf %77, %82 : vector<2x784xf32>
    %c5_62 = arith.constant 5 : index
    %84 = memref.load %arg2[%c5_62] : memref<144xf32, #tpu.memory_space<smem>>
    %c5_63 = arith.constant 5 : index
    %c0_64 = arith.constant 0 : index
    %c0_65 = arith.constant 0 : index
    %85 = vector.load %arg8[%c5_63, %c0_64, %c0_65] : memref<9x2x784xf32, #tpu.memory_space<vmem>>, vector<1x2x784xf32>
    %86 = vector.shape_cast %85 : vector<1x2x784xf32> to vector<2x784xf32>
    %87 = vector.broadcast %84 : f32 to vector<2x784xf32>
    %88 = arith.mulf %87, %86 : vector<2x784xf32>
    %89 = arith.addf %83, %88 : vector<2x784xf32>
    %c6_66 = arith.constant 6 : index
    %90 = memref.load %arg2[%c6_66] : memref<144xf32, #tpu.memory_space<smem>>
    %c6_67 = arith.constant 6 : index
    %c0_68 = arith.constant 0 : index
    %c0_69 = arith.constant 0 : index
    %91 = vector.load %arg8[%c6_67, %c0_68, %c0_69] : memref<9x2x784xf32, #tpu.memory_space<vmem>>, vector<1x2x784xf32>
    %92 = vector.shape_cast %91 : vector<1x2x784xf32> to vector<2x784xf32>
    %93 = vector.broadcast %90 : f32 to vector<2x784xf32>
    %94 = arith.mulf %93, %92 : vector<2x784xf32>
    %95 = arith.addf %89, %94 : vector<2x784xf32>
    %c7_70 = arith.constant 7 : index
    %96 = memref.load %arg2[%c7_70] : memref<144xf32, #tpu.memory_space<smem>>
    %c7_71 = arith.constant 7 : index
    %c0_72 = arith.constant 0 : index
    %c0_73 = arith.constant 0 : index
    %97 = vector.load %arg8[%c7_71, %c0_72, %c0_73] : memref<9x2x784xf32, #tpu.memory_space<vmem>>, vector<1x2x784xf32>
    %98 = vector.shape_cast %97 : vector<1x2x784xf32> to vector<2x784xf32>
    %99 = vector.broadcast %96 : f32 to vector<2x784xf32>
    %100 = arith.mulf %99, %98 : vector<2x784xf32>
    %101 = arith.addf %95, %100 : vector<2x784xf32>
    %c8_74 = arith.constant 8 : index
    %102 = memref.load %arg2[%c8_74] : memref<144xf32, #tpu.memory_space<smem>>
    %c8_75 = arith.constant 8 : index
    %c0_76 = arith.constant 0 : index
    %c0_77 = arith.constant 0 : index
    %103 = vector.load %arg8[%c8_75, %c0_76, %c0_77] : memref<9x2x784xf32, #tpu.memory_space<vmem>>, vector<1x2x784xf32>
    %104 = vector.shape_cast %103 : vector<1x2x784xf32> to vector<2x784xf32>
    %105 = vector.broadcast %102 : f32 to vector<2x784xf32>
    %106 = arith.mulf %105, %104 : vector<2x784xf32>
    %107 = arith.addf %101, %106 : vector<2x784xf32>
    %c0_78 = arith.constant 0 : index
    %108 = memref.load %arg3[%c0_78] : memref<16xf32, #tpu.memory_space<smem>>
    %109 = vector.broadcast %108 : f32 to vector<2x784xf32>
    %110 = arith.addf %107, %109 : vector<2x784xf32>
    %cst_79 = arith.constant 0.000000e+00 : f32
    %111 = vector.broadcast %cst_79 : f32 to vector<2x784xf32>
    %112 = arith.maximumf %110, %111 : vector<2x784xf32>
    %c0_80 = arith.constant 0 : index
    %c0_81 = arith.constant 0 : index
    %c0_82 = arith.constant 0 : index
    %113 = vector.load %arg5[%c0_80, %c0_81, %c0_82] : memref<16x784x128xf32, #tpu.memory_space<vmem>>, vector<1x784x128xf32>
    %114 = vector.shape_cast %113 : vector<1x784x128xf32> to vector<784x128xf32>
    %cst_83 = arith.constant dense<0.000000e+00> : vector<2x128xf32>
    %115 = tpu.matmul %112, %114, %cst_83 {dimension_numbers = #tpu.dot_dimension_numbers<[1], [0], [0], [1], [0, 0, 1, 1], [], []>} : vector<2x784xf32>, vector<784x128xf32>, vector<2x128xf32> -> vector<2x128xf32>
    %116 = arith.addf %54, %115 : vector<2x128xf32>
    %c9 = arith.constant 9 : index
    %117 = memref.load %arg2[%c9] : memref<144xf32, #tpu.memory_space<smem>>
    %c0_84 = arith.constant 0 : index
    %c0_85 = arith.constant 0 : index
    %c0_86 = arith.constant 0 : index
    %118 = vector.load %arg8[%c0_84, %c0_85, %c0_86] : memref<9x2x784xf32, #tpu.memory_space<vmem>>, vector<1x2x784xf32>
    %119 = vector.shape_cast %118 : vector<1x2x784xf32> to vector<2x784xf32>
    %120 = vector.broadcast %117 : f32 to vector<2x784xf32>
    %121 = arith.mulf %120, %119 : vector<2x784xf32>
    %c10 = arith.constant 10 : index
    %122 = memref.load %arg2[%c10] : memref<144xf32, #tpu.memory_space<smem>>
    %c1_87 = arith.constant 1 : index
    %c0_88 = arith.constant 0 : index
    %c0_89 = arith.constant 0 : index
    %123 = vector.load %arg8[%c1_87, %c0_88, %c0_89] : memref<9x2x784xf32, #tpu.memory_space<vmem>>, vector<1x2x784xf32>
    %124 = vector.shape_cast %123 : vector<1x2x784xf32> to vector<2x784xf32>
    %125 = vector.broadcast %122 : f32 to vector<2x784xf32>
    %126 = arith.mulf %125, %124 : vector<2x784xf32>
    %127 = arith.addf %121, %126 : vector<2x784xf32>
    %c11 = arith.constant 11 : index
    %128 = memref.load %arg2[%c11] : memref<144xf32, #tpu.memory_space<smem>>
    %c2_90 = arith.constant 2 : index
    %c0_91 = arith.constant 0 : index
    %c0_92 = arith.constant 0 : index
    %129 = vector.load %arg8[%c2_90, %c0_91, %c0_92] : memref<9x2x784xf32, #tpu.memory_space<vmem>>, vector<1x2x784xf32>
    %130 = vector.shape_cast %129 : vector<1x2x784xf32> to vector<2x784xf32>
    %131 = vector.broadcast %128 : f32 to vector<2x784xf32>
    %132 = arith.mulf %131, %130 : vector<2x784xf32>
    %133 = arith.addf %127, %132 : vector<2x784xf32>
    %c12 = arith.constant 12 : index
    %134 = memref.load %arg2[%c12] : memref<144xf32, #tpu.memory_space<smem>>
    %c3_93 = arith.constant 3 : index
    %c0_94 = arith.constant 0 : index
    %c0_95 = arith.constant 0 : index
    %135 = vector.load %arg8[%c3_93, %c0_94, %c0_95] : memref<9x2x784xf32, #tpu.memory_space<vmem>>, vector<1x2x784xf32>
    %136 = vector.shape_cast %135 : vector<1x2x784xf32> to vector<2x784xf32>
    %137 = vector.broadcast %134 : f32 to vector<2x784xf32>
    %138 = arith.mulf %137, %136 : vector<2x784xf32>
    %139 = arith.addf %133, %138 : vector<2x784xf32>
    %c13 = arith.constant 13 : index
    %140 = memref.load %arg2[%c13] : memref<144xf32, #tpu.memory_space<smem>>
    %c4_96 = arith.constant 4 : index
    %c0_97 = arith.constant 0 : index
    %c0_98 = arith.constant 0 : index
    %141 = vector.load %arg8[%c4_96, %c0_97, %c0_98] : memref<9x2x784xf32, #tpu.memory_space<vmem>>, vector<1x2x784xf32>
    %142 = vector.shape_cast %141 : vector<1x2x784xf32> to vector<2x784xf32>
    %143 = vector.broadcast %140 : f32 to vector<2x784xf32>
    %144 = arith.mulf %143, %142 : vector<2x784xf32>
    %145 = arith.addf %139, %144 : vector<2x784xf32>
    %c14 = arith.constant 14 : index
    %146 = memref.load %arg2[%c14] : memref<144xf32, #tpu.memory_space<smem>>
    %c5_99 = arith.constant 5 : index
    %c0_100 = arith.constant 0 : index
    %c0_101 = arith.constant 0 : index
    %147 = vector.load %arg8[%c5_99, %c0_100, %c0_101] : memref<9x2x784xf32, #tpu.memory_space<vmem>>, vector<1x2x784xf32>
    %148 = vector.shape_cast %147 : vector<1x2x784xf32> to vector<2x784xf32>
    %149 = vector.broadcast %146 : f32 to vector<2x784xf32>
    %150 = arith.mulf %149, %148 : vector<2x784xf32>
    %151 = arith.addf %145, %150 : vector<2x784xf32>
    %c15 = arith.constant 15 : index
    %152 = memref.load %arg2[%c15] : memref<144xf32, #tpu.memory_space<smem>>
    %c6_102 = arith.constant 6 : index
    %c0_103 = arith.constant 0 : index
    %c0_104 = arith.constant 0 : index
    %153 = vector.load %arg8[%c6_102, %c0_103, %c0_104] : memref<9x2x784xf32, #tpu.memory_space<vmem>>, vector<1x2x784xf32>
    %154 = vector.shape_cast %153 : vector<1x2x784xf32> to vector<2x784xf32>
    %155 = vector.broadcast %152 : f32 to vector<2x784xf32>
    %156 = arith.mulf %155, %154 : vector<2x784xf32>
    %157 = arith.addf %151, %156 : vector<2x784xf32>
    %c16 = arith.constant 16 : index
    %158 = memref.load %arg2[%c16] : memref<144xf32, #tpu.memory_space<smem>>
    %c7_105 = arith.constant 7 : index
    %c0_106 = arith.constant 0 : index
    %c0_107 = arith.constant 0 : index
    %159 = vector.load %arg8[%c7_105, %c0_106, %c0_107] : memref<9x2x784xf32, #tpu.memory_space<vmem>>, vector<1x2x784xf32>
    %160 = vector.shape_cast %159 : vector<1x2x784xf32> to vector<2x784xf32>
    %161 = vector.broadcast %158 : f32 to vector<2x784xf32>
    %162 = arith.mulf %161, %160 : vector<2x784xf32>
    %163 = arith.addf %157, %162 : vector<2x784xf32>
    %c17 = arith.constant 17 : index
    %164 = memref.load %arg2[%c17] : memref<144xf32, #tpu.memory_space<smem>>
    %c8_108 = arith.constant 8 : index
    %c0_109 = arith.constant 0 : index
    %c0_110 = arith.constant 0 : index
    %165 = vector.load %arg8[%c8_108, %c0_109, %c0_110] : memref<9x2x784xf32, #tpu.memory_space<vmem>>, vector<1x2x784xf32>
    %166 = vector.shape_cast %165 : vector<1x2x784xf32> to vector<2x784xf32>
    %167 = vector.broadcast %164 : f32 to vector<2x784xf32>
    %168 = arith.mulf %167, %166 : vector<2x784xf32>
    %169 = arith.addf %163, %168 : vector<2x784xf32>
    %c1_111 = arith.constant 1 : index
    %170 = memref.load %arg3[%c1_111] : memref<16xf32, #tpu.memory_space<smem>>
    %171 = vector.broadcast %170 : f32 to vector<2x784xf32>
    %172 = arith.addf %169, %171 : vector<2x784xf32>
    %cst_112 = arith.constant 0.000000e+00 : f32
    %173 = vector.broadcast %cst_112 : f32 to vector<2x784xf32>
    %174 = arith.maximumf %172, %173 : vector<2x784xf32>
    %c1_113 = arith.constant 1 : index
    %c0_114 = arith.constant 0 : index
    %c0_115 = arith.constant 0 : index
    %175 = vector.load %arg5[%c1_113, %c0_114, %c0_115] : memref<16x784x128xf32, #tpu.memory_space<vmem>>, vector<1x784x128xf32>
    %176 = vector.shape_cast %175 : vector<1x784x128xf32> to vector<784x128xf32>
    %cst_116 = arith.constant dense<0.000000e+00> : vector<2x128xf32>
    %177 = tpu.matmul %174, %176, %cst_116 {dimension_numbers = #tpu.dot_dimension_numbers<[1], [0], [0], [1], [0, 0, 1, 1], [], []>} : vector<2x784xf32>, vector<784x128xf32>, vector<2x128xf32> -> vector<2x128xf32>
    %178 = arith.addf %116, %177 : vector<2x128xf32>
    %c18 = arith.constant 18 : index
    %179 = memref.load %arg2[%c18] : memref<144xf32, #tpu.memory_space<smem>>
    %c0_117 = arith.constant 0 : index
    %c0_118 = arith.constant 0 : index
    %c0_119 = arith.constant 0 : index
    %180 = vector.load %arg8[%c0_117, %c0_118, %c0_119] : memref<9x2x784xf32, #tpu.memory_space<vmem>>, vector<1x2x784xf32>
    %181 = vector.shape_cast %180 : vector<1x2x784xf32> to vector<2x784xf32>
    %182 = vector.broadcast %179 : f32 to vector<2x784xf32>
    %183 = arith.mulf %182, %181 : vector<2x784xf32>
    %c19 = arith.constant 19 : index
    %184 = memref.load %arg2[%c19] : memref<144xf32, #tpu.memory_space<smem>>
    %c1_120 = arith.constant 1 : index
    %c0_121 = arith.constant 0 : index
    %c0_122 = arith.constant 0 : index
    %185 = vector.load %arg8[%c1_120, %c0_121, %c0_122] : memref<9x2x784xf32, #tpu.memory_space<vmem>>, vector<1x2x784xf32>
    %186 = vector.shape_cast %185 : vector<1x2x784xf32> to vector<2x784xf32>
    %187 = vector.broadcast %184 : f32 to vector<2x784xf32>
    %188 = arith.mulf %187, %186 : vector<2x784xf32>
    %189 = arith.addf %183, %188 : vector<2x784xf32>
    %c20 = arith.constant 20 : index
    %190 = memref.load %arg2[%c20] : memref<144xf32, #tpu.memory_space<smem>>
    %c2_123 = arith.constant 2 : index
    %c0_124 = arith.constant 0 : index
    %c0_125 = arith.constant 0 : index
    %191 = vector.load %arg8[%c2_123, %c0_124, %c0_125] : memref<9x2x784xf32, #tpu.memory_space<vmem>>, vector<1x2x784xf32>
    %192 = vector.shape_cast %191 : vector<1x2x784xf32> to vector<2x784xf32>
    %193 = vector.broadcast %190 : f32 to vector<2x784xf32>
    %194 = arith.mulf %193, %192 : vector<2x784xf32>
    %195 = arith.addf %189, %194 : vector<2x784xf32>
    %c21 = arith.constant 21 : index
    %196 = memref.load %arg2[%c21] : memref<144xf32, #tpu.memory_space<smem>>
    %c3_126 = arith.constant 3 : index
    %c0_127 = arith.constant 0 : index
    %c0_128 = arith.constant 0 : index
    %197 = vector.load %arg8[%c3_126, %c0_127, %c0_128] : memref<9x2x784xf32, #tpu.memory_space<vmem>>, vector<1x2x784xf32>
    %198 = vector.shape_cast %197 : vector<1x2x784xf32> to vector<2x784xf32>
    %199 = vector.broadcast %196 : f32 to vector<2x784xf32>
    %200 = arith.mulf %199, %198 : vector<2x784xf32>
    %201 = arith.addf %195, %200 : vector<2x784xf32>
    %c22 = arith.constant 22 : index
    %202 = memref.load %arg2[%c22] : memref<144xf32, #tpu.memory_space<smem>>
    %c4_129 = arith.constant 4 : index
    %c0_130 = arith.constant 0 : index
    %c0_131 = arith.constant 0 : index
    %203 = vector.load %arg8[%c4_129, %c0_130, %c0_131] : memref<9x2x784xf32, #tpu.memory_space<vmem>>, vector<1x2x784xf32>
    %204 = vector.shape_cast %203 : vector<1x2x784xf32> to vector<2x784xf32>
    %205 = vector.broadcast %202 : f32 to vector<2x784xf32>
    %206 = arith.mulf %205, %204 : vector<2x784xf32>
    %207 = arith.addf %201, %206 : vector<2x784xf32>
    %c23 = arith.constant 23 : index
    %208 = memref.load %arg2[%c23] : memref<144xf32, #tpu.memory_space<smem>>
    %c5_132 = arith.constant 5 : index
    %c0_133 = arith.constant 0 : index
    %c0_134 = arith.constant 0 : index
    %209 = vector.load %arg8[%c5_132, %c0_133, %c0_134] : memref<9x2x784xf32, #tpu.memory_space<vmem>>, vector<1x2x784xf32>
    %210 = vector.shape_cast %209 : vector<1x2x784xf32> to vector<2x784xf32>
    %211 = vector.broadcast %208 : f32 to vector<2x784xf32>
    %212 = arith.mulf %211, %210 : vector<2x784xf32>
    %213 = arith.addf %207, %212 : vector<2x784xf32>
    %c24 = arith.constant 24 : index
    %214 = memref.load %arg2[%c24] : memref<144xf32, #tpu.memory_space<smem>>
    %c6_135 = arith.constant 6 : index
    %c0_136 = arith.constant 0 : index
    %c0_137 = arith.constant 0 : index
    %215 = vector.load %arg8[%c6_135, %c0_136, %c0_137] : memref<9x2x784xf32, #tpu.memory_space<vmem>>, vector<1x2x784xf32>
    %216 = vector.shape_cast %215 : vector<1x2x784xf32> to vector<2x784xf32>
    %217 = vector.broadcast %214 : f32 to vector<2x784xf32>
    %218 = arith.mulf %217, %216 : vector<2x784xf32>
    %219 = arith.addf %213, %218 : vector<2x784xf32>
    %c25 = arith.constant 25 : index
    %220 = memref.load %arg2[%c25] : memref<144xf32, #tpu.memory_space<smem>>
    %c7_138 = arith.constant 7 : index
    %c0_139 = arith.constant 0 : index
    %c0_140 = arith.constant 0 : index
    %221 = vector.load %arg8[%c7_138, %c0_139, %c0_140] : memref<9x2x784xf32, #tpu.memory_space<vmem>>, vector<1x2x784xf32>
    %222 = vector.shape_cast %221 : vector<1x2x784xf32> to vector<2x784xf32>
    %223 = vector.broadcast %220 : f32 to vector<2x784xf32>
    %224 = arith.mulf %223, %222 : vector<2x784xf32>
    %225 = arith.addf %219, %224 : vector<2x784xf32>
    %c26 = arith.constant 26 : index
    %226 = memref.load %arg2[%c26] : memref<144xf32, #tpu.memory_space<smem>>
    %c8_141 = arith.constant 8 : index
    %c0_142 = arith.constant 0 : index
    %c0_143 = arith.constant 0 : index
    %227 = vector.load %arg8[%c8_141, %c0_142, %c0_143] : memref<9x2x784xf32, #tpu.memory_space<vmem>>, vector<1x2x784xf32>
    %228 = vector.shape_cast %227 : vector<1x2x784xf32> to vector<2x784xf32>
    %229 = vector.broadcast %226 : f32 to vector<2x784xf32>
    %230 = arith.mulf %229, %228 : vector<2x784xf32>
    %231 = arith.addf %225, %230 : vector<2x784xf32>
    %c2_144 = arith.constant 2 : index
    %232 = memref.load %arg3[%c2_144] : memref<16xf32, #tpu.memory_space<smem>>
    %233 = vector.broadcast %232 : f32 to vector<2x784xf32>
    %234 = arith.addf %231, %233 : vector<2x784xf32>
    %cst_145 = arith.constant 0.000000e+00 : f32
    %235 = vector.broadcast %cst_145 : f32 to vector<2x784xf32>
    %236 = arith.maximumf %234, %235 : vector<2x784xf32>
    %c2_146 = arith.constant 2 : index
    %c0_147 = arith.constant 0 : index
    %c0_148 = arith.constant 0 : index
    %237 = vector.load %arg5[%c2_146, %c0_147, %c0_148] : memref<16x784x128xf32, #tpu.memory_space<vmem>>, vector<1x784x128xf32>
    %238 = vector.shape_cast %237 : vector<1x784x128xf32> to vector<784x128xf32>
    %cst_149 = arith.constant dense<0.000000e+00> : vector<2x128xf32>
    %239 = tpu.matmul %236, %238, %cst_149 {dimension_numbers = #tpu.dot_dimension_numbers<[1], [0], [0], [1], [0, 0, 1, 1], [], []>} : vector<2x784xf32>, vector<784x128xf32>, vector<2x128xf32> -> vector<2x128xf32>
    %240 = arith.addf %178, %239 : vector<2x128xf32>
    %c27 = arith.constant 27 : index
    %241 = memref.load %arg2[%c27] : memref<144xf32, #tpu.memory_space<smem>>
    %c0_150 = arith.constant 0 : index
    %c0_151 = arith.constant 0 : index
    %c0_152 = arith.constant 0 : index
    %242 = vector.load %arg8[%c0_150, %c0_151, %c0_152] : memref<9x2x784xf32, #tpu.memory_space<vmem>>, vector<1x2x784xf32>
    %243 = vector.shape_cast %242 : vector<1x2x784xf32> to vector<2x784xf32>
    %244 = vector.broadcast %241 : f32 to vector<2x784xf32>
    %245 = arith.mulf %244, %243 : vector<2x784xf32>
    %c28_153 = arith.constant 28 : index
    %246 = memref.load %arg2[%c28_153] : memref<144xf32, #tpu.memory_space<smem>>
    %c1_154 = arith.constant 1 : index
    %c0_155 = arith.constant 0 : index
    %c0_156 = arith.constant 0 : index
    %247 = vector.load %arg8[%c1_154, %c0_155, %c0_156] : memref<9x2x784xf32, #tpu.memory_space<vmem>>, vector<1x2x784xf32>
    %248 = vector.shape_cast %247 : vector<1x2x784xf32> to vector<2x784xf32>
    %249 = vector.broadcast %246 : f32 to vector<2x784xf32>
    %250 = arith.mulf %249, %248 : vector<2x784xf32>
    %251 = arith.addf %245, %250 : vector<2x784xf32>
    %c29_157 = arith.constant 29 : index
    %252 = memref.load %arg2[%c29_157] : memref<144xf32, #tpu.memory_space<smem>>
    %c2_158 = arith.constant 2 : index
    %c0_159 = arith.constant 0 : index
    %c0_160 = arith.constant 0 : index
    %253 = vector.load %arg8[%c2_158, %c0_159, %c0_160] : memref<9x2x784xf32, #tpu.memory_space<vmem>>, vector<1x2x784xf32>
    %254 = vector.shape_cast %253 : vector<1x2x784xf32> to vector<2x784xf32>
    %255 = vector.broadcast %252 : f32 to vector<2x784xf32>
    %256 = arith.mulf %255, %254 : vector<2x784xf32>
    %257 = arith.addf %251, %256 : vector<2x784xf32>
    %c30_161 = arith.constant 30 : index
    %258 = memref.load %arg2[%c30_161] : memref<144xf32, #tpu.memory_space<smem>>
    %c3_162 = arith.constant 3 : index
    %c0_163 = arith.constant 0 : index
    %c0_164 = arith.constant 0 : index
    %259 = vector.load %arg8[%c3_162, %c0_163, %c0_164] : memref<9x2x784xf32, #tpu.memory_space<vmem>>, vector<1x2x784xf32>
    %260 = vector.shape_cast %259 : vector<1x2x784xf32> to vector<2x784xf32>
    %261 = vector.broadcast %258 : f32 to vector<2x784xf32>
    %262 = arith.mulf %261, %260 : vector<2x784xf32>
    %263 = arith.addf %257, %262 : vector<2x784xf32>
    %c31 = arith.constant 31 : index
    %264 = memref.load %arg2[%c31] : memref<144xf32, #tpu.memory_space<smem>>
    %c4_165 = arith.constant 4 : index
    %c0_166 = arith.constant 0 : index
    %c0_167 = arith.constant 0 : index
    %265 = vector.load %arg8[%c4_165, %c0_166, %c0_167] : memref<9x2x784xf32, #tpu.memory_space<vmem>>, vector<1x2x784xf32>
    %266 = vector.shape_cast %265 : vector<1x2x784xf32> to vector<2x784xf32>
    %267 = vector.broadcast %264 : f32 to vector<2x784xf32>
    %268 = arith.mulf %267, %266 : vector<2x784xf32>
    %269 = arith.addf %263, %268 : vector<2x784xf32>
    %c32 = arith.constant 32 : index
    %270 = memref.load %arg2[%c32] : memref<144xf32, #tpu.memory_space<smem>>
    %c5_168 = arith.constant 5 : index
    %c0_169 = arith.constant 0 : index
    %c0_170 = arith.constant 0 : index
    %271 = vector.load %arg8[%c5_168, %c0_169, %c0_170] : memref<9x2x784xf32, #tpu.memory_space<vmem>>, vector<1x2x784xf32>
    %272 = vector.shape_cast %271 : vector<1x2x784xf32> to vector<2x784xf32>
    %273 = vector.broadcast %270 : f32 to vector<2x784xf32>
    %274 = arith.mulf %273, %272 : vector<2x784xf32>
    %275 = arith.addf %269, %274 : vector<2x784xf32>
    %c33 = arith.constant 33 : index
    %276 = memref.load %arg2[%c33] : memref<144xf32, #tpu.memory_space<smem>>
    %c6_171 = arith.constant 6 : index
    %c0_172 = arith.constant 0 : index
    %c0_173 = arith.constant 0 : index
    %277 = vector.load %arg8[%c6_171, %c0_172, %c0_173] : memref<9x2x784xf32, #tpu.memory_space<vmem>>, vector<1x2x784xf32>
    %278 = vector.shape_cast %277 : vector<1x2x784xf32> to vector<2x784xf32>
    %279 = vector.broadcast %276 : f32 to vector<2x784xf32>
    %280 = arith.mulf %279, %278 : vector<2x784xf32>
    %281 = arith.addf %275, %280 : vector<2x784xf32>
    %c34 = arith.constant 34 : index
    %282 = memref.load %arg2[%c34] : memref<144xf32, #tpu.memory_space<smem>>
    %c7_174 = arith.constant 7 : index
    %c0_175 = arith.constant 0 : index
    %c0_176 = arith.constant 0 : index
    %283 = vector.load %arg8[%c7_174, %c0_175, %c0_176] : memref<9x2x784xf32, #tpu.memory_space<vmem>>, vector<1x2x784xf32>
    %284 = vector.shape_cast %283 : vector<1x2x784xf32> to vector<2x784xf32>
    %285 = vector.broadcast %282 : f32 to vector<2x784xf32>
    %286 = arith.mulf %285, %284 : vector<2x784xf32>
    %287 = arith.addf %281, %286 : vector<2x784xf32>
    %c35 = arith.constant 35 : index
    %288 = memref.load %arg2[%c35] : memref<144xf32, #tpu.memory_space<smem>>
    %c8_177 = arith.constant 8 : index
    %c0_178 = arith.constant 0 : index
    %c0_179 = arith.constant 0 : index
    %289 = vector.load %arg8[%c8_177, %c0_178, %c0_179] : memref<9x2x784xf32, #tpu.memory_space<vmem>>, vector<1x2x784xf32>
    %290 = vector.shape_cast %289 : vector<1x2x784xf32> to vector<2x784xf32>
    %291 = vector.broadcast %288 : f32 to vector<2x784xf32>
    %292 = arith.mulf %291, %290 : vector<2x784xf32>
    %293 = arith.addf %287, %292 : vector<2x784xf32>
    %c3_180 = arith.constant 3 : index
    %294 = memref.load %arg3[%c3_180] : memref<16xf32, #tpu.memory_space<smem>>
    %295 = vector.broadcast %294 : f32 to vector<2x784xf32>
    %296 = arith.addf %293, %295 : vector<2x784xf32>
    %cst_181 = arith.constant 0.000000e+00 : f32
    %297 = vector.broadcast %cst_181 : f32 to vector<2x784xf32>
    %298 = arith.maximumf %296, %297 : vector<2x784xf32>
    %c3_182 = arith.constant 3 : index
    %c0_183 = arith.constant 0 : index
    %c0_184 = arith.constant 0 : index
    %299 = vector.load %arg5[%c3_182, %c0_183, %c0_184] : memref<16x784x128xf32, #tpu.memory_space<vmem>>, vector<1x784x128xf32>
    %300 = vector.shape_cast %299 : vector<1x784x128xf32> to vector<784x128xf32>
    %cst_185 = arith.constant dense<0.000000e+00> : vector<2x128xf32>
    %301 = tpu.matmul %298, %300, %cst_185 {dimension_numbers = #tpu.dot_dimension_numbers<[1], [0], [0], [1], [0, 0, 1, 1], [], []>} : vector<2x784xf32>, vector<784x128xf32>, vector<2x128xf32> -> vector<2x128xf32>
    %302 = arith.addf %240, %301 : vector<2x128xf32>
    %c36 = arith.constant 36 : index
    %303 = memref.load %arg2[%c36] : memref<144xf32, #tpu.memory_space<smem>>
    %c0_186 = arith.constant 0 : index
    %c0_187 = arith.constant 0 : index
    %c0_188 = arith.constant 0 : index
    %304 = vector.load %arg8[%c0_186, %c0_187, %c0_188] : memref<9x2x784xf32, #tpu.memory_space<vmem>>, vector<1x2x784xf32>
    %305 = vector.shape_cast %304 : vector<1x2x784xf32> to vector<2x784xf32>
    %306 = vector.broadcast %303 : f32 to vector<2x784xf32>
    %307 = arith.mulf %306, %305 : vector<2x784xf32>
    %c37 = arith.constant 37 : index
    %308 = memref.load %arg2[%c37] : memref<144xf32, #tpu.memory_space<smem>>
    %c1_189 = arith.constant 1 : index
    %c0_190 = arith.constant 0 : index
    %c0_191 = arith.constant 0 : index
    %309 = vector.load %arg8[%c1_189, %c0_190, %c0_191] : memref<9x2x784xf32, #tpu.memory_space<vmem>>, vector<1x2x784xf32>
    %310 = vector.shape_cast %309 : vector<1x2x784xf32> to vector<2x784xf32>
    %311 = vector.broadcast %308 : f32 to vector<2x784xf32>
    %312 = arith.mulf %311, %310 : vector<2x784xf32>
    %313 = arith.addf %307, %312 : vector<2x784xf32>
    %c38 = arith.constant 38 : index
    %314 = memref.load %arg2[%c38] : memref<144xf32, #tpu.memory_space<smem>>
    %c2_192 = arith.constant 2 : index
    %c0_193 = arith.constant 0 : index
    %c0_194 = arith.constant 0 : index
    %315 = vector.load %arg8[%c2_192, %c0_193, %c0_194] : memref<9x2x784xf32, #tpu.memory_space<vmem>>, vector<1x2x784xf32>
    %316 = vector.shape_cast %315 : vector<1x2x784xf32> to vector<2x784xf32>
    %317 = vector.broadcast %314 : f32 to vector<2x784xf32>
    %318 = arith.mulf %317, %316 : vector<2x784xf32>
    %319 = arith.addf %313, %318 : vector<2x784xf32>
    %c39 = arith.constant 39 : index
    %320 = memref.load %arg2[%c39] : memref<144xf32, #tpu.memory_space<smem>>
    %c3_195 = arith.constant 3 : index
    %c0_196 = arith.constant 0 : index
    %c0_197 = arith.constant 0 : index
    %321 = vector.load %arg8[%c3_195, %c0_196, %c0_197] : memref<9x2x784xf32, #tpu.memory_space<vmem>>, vector<1x2x784xf32>
    %322 = vector.shape_cast %321 : vector<1x2x784xf32> to vector<2x784xf32>
    %323 = vector.broadcast %320 : f32 to vector<2x784xf32>
    %324 = arith.mulf %323, %322 : vector<2x784xf32>
    %325 = arith.addf %319, %324 : vector<2x784xf32>
    %c40 = arith.constant 40 : index
    %326 = memref.load %arg2[%c40] : memref<144xf32, #tpu.memory_space<smem>>
    %c4_198 = arith.constant 4 : index
    %c0_199 = arith.constant 0 : index
    %c0_200 = arith.constant 0 : index
    %327 = vector.load %arg8[%c4_198, %c0_199, %c0_200] : memref<9x2x784xf32, #tpu.memory_space<vmem>>, vector<1x2x784xf32>
    %328 = vector.shape_cast %327 : vector<1x2x784xf32> to vector<2x784xf32>
    %329 = vector.broadcast %326 : f32 to vector<2x784xf32>
    %330 = arith.mulf %329, %328 : vector<2x784xf32>
    %331 = arith.addf %325, %330 : vector<2x784xf32>
    %c41 = arith.constant 41 : index
    %332 = memref.load %arg2[%c41] : memref<144xf32, #tpu.memory_space<smem>>
    %c5_201 = arith.constant 5 : index
    %c0_202 = arith.constant 0 : index
    %c0_203 = arith.constant 0 : index
    %333 = vector.load %arg8[%c5_201, %c0_202, %c0_203] : memref<9x2x784xf32, #tpu.memory_space<vmem>>, vector<1x2x784xf32>
    %334 = vector.shape_cast %333 : vector<1x2x784xf32> to vector<2x784xf32>
    %335 = vector.broadcast %332 : f32 to vector<2x784xf32>
    %336 = arith.mulf %335, %334 : vector<2x784xf32>
    %337 = arith.addf %331, %336 : vector<2x784xf32>
    %c42 = arith.constant 42 : index
    %338 = memref.load %arg2[%c42] : memref<144xf32, #tpu.memory_space<smem>>
    %c6_204 = arith.constant 6 : index
    %c0_205 = arith.constant 0 : index
    %c0_206 = arith.constant 0 : index
    %339 = vector.load %arg8[%c6_204, %c0_205, %c0_206] : memref<9x2x784xf32, #tpu.memory_space<vmem>>, vector<1x2x784xf32>
    %340 = vector.shape_cast %339 : vector<1x2x784xf32> to vector<2x784xf32>
    %341 = vector.broadcast %338 : f32 to vector<2x784xf32>
    %342 = arith.mulf %341, %340 : vector<2x784xf32>
    %343 = arith.addf %337, %342 : vector<2x784xf32>
    %c43 = arith.constant 43 : index
    %344 = memref.load %arg2[%c43] : memref<144xf32, #tpu.memory_space<smem>>
    %c7_207 = arith.constant 7 : index
    %c0_208 = arith.constant 0 : index
    %c0_209 = arith.constant 0 : index
    %345 = vector.load %arg8[%c7_207, %c0_208, %c0_209] : memref<9x2x784xf32, #tpu.memory_space<vmem>>, vector<1x2x784xf32>
    %346 = vector.shape_cast %345 : vector<1x2x784xf32> to vector<2x784xf32>
    %347 = vector.broadcast %344 : f32 to vector<2x784xf32>
    %348 = arith.mulf %347, %346 : vector<2x784xf32>
    %349 = arith.addf %343, %348 : vector<2x784xf32>
    %c44 = arith.constant 44 : index
    %350 = memref.load %arg2[%c44] : memref<144xf32, #tpu.memory_space<smem>>
    %c8_210 = arith.constant 8 : index
    %c0_211 = arith.constant 0 : index
    %c0_212 = arith.constant 0 : index
    %351 = vector.load %arg8[%c8_210, %c0_211, %c0_212] : memref<9x2x784xf32, #tpu.memory_space<vmem>>, vector<1x2x784xf32>
    %352 = vector.shape_cast %351 : vector<1x2x784xf32> to vector<2x784xf32>
    %353 = vector.broadcast %350 : f32 to vector<2x784xf32>
    %354 = arith.mulf %353, %352 : vector<2x784xf32>
    %355 = arith.addf %349, %354 : vector<2x784xf32>
    %c4_213 = arith.constant 4 : index
    %356 = memref.load %arg3[%c4_213] : memref<16xf32, #tpu.memory_space<smem>>
    %357 = vector.broadcast %356 : f32 to vector<2x784xf32>
    %358 = arith.addf %355, %357 : vector<2x784xf32>
    %cst_214 = arith.constant 0.000000e+00 : f32
    %359 = vector.broadcast %cst_214 : f32 to vector<2x784xf32>
    %360 = arith.maximumf %358, %359 : vector<2x784xf32>
    %c4_215 = arith.constant 4 : index
    %c0_216 = arith.constant 0 : index
    %c0_217 = arith.constant 0 : index
    %361 = vector.load %arg5[%c4_215, %c0_216, %c0_217] : memref<16x784x128xf32, #tpu.memory_space<vmem>>, vector<1x784x128xf32>
    %362 = vector.shape_cast %361 : vector<1x784x128xf32> to vector<784x128xf32>
    %cst_218 = arith.constant dense<0.000000e+00> : vector<2x128xf32>
    %363 = tpu.matmul %360, %362, %cst_218 {dimension_numbers = #tpu.dot_dimension_numbers<[1], [0], [0], [1], [0, 0, 1, 1], [], []>} : vector<2x784xf32>, vector<784x128xf32>, vector<2x128xf32> -> vector<2x128xf32>
    %364 = arith.addf %302, %363 : vector<2x128xf32>
    %c45 = arith.constant 45 : index
    %365 = memref.load %arg2[%c45] : memref<144xf32, #tpu.memory_space<smem>>
    %c0_219 = arith.constant 0 : index
    %c0_220 = arith.constant 0 : index
    %c0_221 = arith.constant 0 : index
    %366 = vector.load %arg8[%c0_219, %c0_220, %c0_221] : memref<9x2x784xf32, #tpu.memory_space<vmem>>, vector<1x2x784xf32>
    %367 = vector.shape_cast %366 : vector<1x2x784xf32> to vector<2x784xf32>
    %368 = vector.broadcast %365 : f32 to vector<2x784xf32>
    %369 = arith.mulf %368, %367 : vector<2x784xf32>
    %c46 = arith.constant 46 : index
    %370 = memref.load %arg2[%c46] : memref<144xf32, #tpu.memory_space<smem>>
    %c1_222 = arith.constant 1 : index
    %c0_223 = arith.constant 0 : index
    %c0_224 = arith.constant 0 : index
    %371 = vector.load %arg8[%c1_222, %c0_223, %c0_224] : memref<9x2x784xf32, #tpu.memory_space<vmem>>, vector<1x2x784xf32>
    %372 = vector.shape_cast %371 : vector<1x2x784xf32> to vector<2x784xf32>
    %373 = vector.broadcast %370 : f32 to vector<2x784xf32>
    %374 = arith.mulf %373, %372 : vector<2x784xf32>
    %375 = arith.addf %369, %374 : vector<2x784xf32>
    %c47 = arith.constant 47 : index
    %376 = memref.load %arg2[%c47] : memref<144xf32, #tpu.memory_space<smem>>
    %c2_225 = arith.constant 2 : index
    %c0_226 = arith.constant 0 : index
    %c0_227 = arith.constant 0 : index
    %377 = vector.load %arg8[%c2_225, %c0_226, %c0_227] : memref<9x2x784xf32, #tpu.memory_space<vmem>>, vector<1x2x784xf32>
    %378 = vector.shape_cast %377 : vector<1x2x784xf32> to vector<2x784xf32>
    %379 = vector.broadcast %376 : f32 to vector<2x784xf32>
    %380 = arith.mulf %379, %378 : vector<2x784xf32>
    %381 = arith.addf %375, %380 : vector<2x784xf32>
    %c48 = arith.constant 48 : index
    %382 = memref.load %arg2[%c48] : memref<144xf32, #tpu.memory_space<smem>>
    %c3_228 = arith.constant 3 : index
    %c0_229 = arith.constant 0 : index
    %c0_230 = arith.constant 0 : index
    %383 = vector.load %arg8[%c3_228, %c0_229, %c0_230] : memref<9x2x784xf32, #tpu.memory_space<vmem>>, vector<1x2x784xf32>
    %384 = vector.shape_cast %383 : vector<1x2x784xf32> to vector<2x784xf32>
    %385 = vector.broadcast %382 : f32 to vector<2x784xf32>
    %386 = arith.mulf %385, %384 : vector<2x784xf32>
    %387 = arith.addf %381, %386 : vector<2x784xf32>
    %c49 = arith.constant 49 : index
    %388 = memref.load %arg2[%c49] : memref<144xf32, #tpu.memory_space<smem>>
    %c4_231 = arith.constant 4 : index
    %c0_232 = arith.constant 0 : index
    %c0_233 = arith.constant 0 : index
    %389 = vector.load %arg8[%c4_231, %c0_232, %c0_233] : memref<9x2x784xf32, #tpu.memory_space<vmem>>, vector<1x2x784xf32>
    %390 = vector.shape_cast %389 : vector<1x2x784xf32> to vector<2x784xf32>
    %391 = vector.broadcast %388 : f32 to vector<2x784xf32>
    %392 = arith.mulf %391, %390 : vector<2x784xf32>
    %393 = arith.addf %387, %392 : vector<2x784xf32>
    %c50 = arith.constant 50 : index
    %394 = memref.load %arg2[%c50] : memref<144xf32, #tpu.memory_space<smem>>
    %c5_234 = arith.constant 5 : index
    %c0_235 = arith.constant 0 : index
    %c0_236 = arith.constant 0 : index
    %395 = vector.load %arg8[%c5_234, %c0_235, %c0_236] : memref<9x2x784xf32, #tpu.memory_space<vmem>>, vector<1x2x784xf32>
    %396 = vector.shape_cast %395 : vector<1x2x784xf32> to vector<2x784xf32>
    %397 = vector.broadcast %394 : f32 to vector<2x784xf32>
    %398 = arith.mulf %397, %396 : vector<2x784xf32>
    %399 = arith.addf %393, %398 : vector<2x784xf32>
    %c51 = arith.constant 51 : index
    %400 = memref.load %arg2[%c51] : memref<144xf32, #tpu.memory_space<smem>>
    %c6_237 = arith.constant 6 : index
    %c0_238 = arith.constant 0 : index
    %c0_239 = arith.constant 0 : index
    %401 = vector.load %arg8[%c6_237, %c0_238, %c0_239] : memref<9x2x784xf32, #tpu.memory_space<vmem>>, vector<1x2x784xf32>
    %402 = vector.shape_cast %401 : vector<1x2x784xf32> to vector<2x784xf32>
    %403 = vector.broadcast %400 : f32 to vector<2x784xf32>
    %404 = arith.mulf %403, %402 : vector<2x784xf32>
    %405 = arith.addf %399, %404 : vector<2x784xf32>
    %c52 = arith.constant 52 : index
    %406 = memref.load %arg2[%c52] : memref<144xf32, #tpu.memory_space<smem>>
    %c7_240 = arith.constant 7 : index
    %c0_241 = arith.constant 0 : index
    %c0_242 = arith.constant 0 : index
    %407 = vector.load %arg8[%c7_240, %c0_241, %c0_242] : memref<9x2x784xf32, #tpu.memory_space<vmem>>, vector<1x2x784xf32>
    %408 = vector.shape_cast %407 : vector<1x2x784xf32> to vector<2x784xf32>
    %409 = vector.broadcast %406 : f32 to vector<2x784xf32>
    %410 = arith.mulf %409, %408 : vector<2x784xf32>
    %411 = arith.addf %405, %410 : vector<2x784xf32>
    %c53 = arith.constant 53 : index
    %412 = memref.load %arg2[%c53] : memref<144xf32, #tpu.memory_space<smem>>
    %c8_243 = arith.constant 8 : index
    %c0_244 = arith.constant 0 : index
    %c0_245 = arith.constant 0 : index
    %413 = vector.load %arg8[%c8_243, %c0_244, %c0_245] : memref<9x2x784xf32, #tpu.memory_space<vmem>>, vector<1x2x784xf32>
    %414 = vector.shape_cast %413 : vector<1x2x784xf32> to vector<2x784xf32>
    %415 = vector.broadcast %412 : f32 to vector<2x784xf32>
    %416 = arith.mulf %415, %414 : vector<2x784xf32>
    %417 = arith.addf %411, %416 : vector<2x784xf32>
    %c5_246 = arith.constant 5 : index
    %418 = memref.load %arg3[%c5_246] : memref<16xf32, #tpu.memory_space<smem>>
    %419 = vector.broadcast %418 : f32 to vector<2x784xf32>
    %420 = arith.addf %417, %419 : vector<2x784xf32>
    %cst_247 = arith.constant 0.000000e+00 : f32
    %421 = vector.broadcast %cst_247 : f32 to vector<2x784xf32>
    %422 = arith.maximumf %420, %421 : vector<2x784xf32>
    %c5_248 = arith.constant 5 : index
    %c0_249 = arith.constant 0 : index
    %c0_250 = arith.constant 0 : index
    %423 = vector.load %arg5[%c5_248, %c0_249, %c0_250] : memref<16x784x128xf32, #tpu.memory_space<vmem>>, vector<1x784x128xf32>
    %424 = vector.shape_cast %423 : vector<1x784x128xf32> to vector<784x128xf32>
    %cst_251 = arith.constant dense<0.000000e+00> : vector<2x128xf32>
    %425 = tpu.matmul %422, %424, %cst_251 {dimension_numbers = #tpu.dot_dimension_numbers<[1], [0], [0], [1], [0, 0, 1, 1], [], []>} : vector<2x784xf32>, vector<784x128xf32>, vector<2x128xf32> -> vector<2x128xf32>
    %426 = arith.addf %364, %425 : vector<2x128xf32>
    %c54 = arith.constant 54 : index
    %427 = memref.load %arg2[%c54] : memref<144xf32, #tpu.memory_space<smem>>
    %c0_252 = arith.constant 0 : index
    %c0_253 = arith.constant 0 : index
    %c0_254 = arith.constant 0 : index
    %428 = vector.load %arg8[%c0_252, %c0_253, %c0_254] : memref<9x2x784xf32, #tpu.memory_space<vmem>>, vector<1x2x784xf32>
    %429 = vector.shape_cast %428 : vector<1x2x784xf32> to vector<2x784xf32>
    %430 = vector.broadcast %427 : f32 to vector<2x784xf32>
    %431 = arith.mulf %430, %429 : vector<2x784xf32>
    %c55 = arith.constant 55 : index
    %432 = memref.load %arg2[%c55] : memref<144xf32, #tpu.memory_space<smem>>
    %c1_255 = arith.constant 1 : index
    %c0_256 = arith.constant 0 : index
    %c0_257 = arith.constant 0 : index
    %433 = vector.load %arg8[%c1_255, %c0_256, %c0_257] : memref<9x2x784xf32, #tpu.memory_space<vmem>>, vector<1x2x784xf32>
    %434 = vector.shape_cast %433 : vector<1x2x784xf32> to vector<2x784xf32>
    %435 = vector.broadcast %432 : f32 to vector<2x784xf32>
    %436 = arith.mulf %435, %434 : vector<2x784xf32>
    %437 = arith.addf %431, %436 : vector<2x784xf32>
    %c56_258 = arith.constant 56 : index
    %438 = memref.load %arg2[%c56_258] : memref<144xf32, #tpu.memory_space<smem>>
    %c2_259 = arith.constant 2 : index
    %c0_260 = arith.constant 0 : index
    %c0_261 = arith.constant 0 : index
    %439 = vector.load %arg8[%c2_259, %c0_260, %c0_261] : memref<9x2x784xf32, #tpu.memory_space<vmem>>, vector<1x2x784xf32>
    %440 = vector.shape_cast %439 : vector<1x2x784xf32> to vector<2x784xf32>
    %441 = vector.broadcast %438 : f32 to vector<2x784xf32>
    %442 = arith.mulf %441, %440 : vector<2x784xf32>
    %443 = arith.addf %437, %442 : vector<2x784xf32>
    %c57_262 = arith.constant 57 : index
    %444 = memref.load %arg2[%c57_262] : memref<144xf32, #tpu.memory_space<smem>>
    %c3_263 = arith.constant 3 : index
    %c0_264 = arith.constant 0 : index
    %c0_265 = arith.constant 0 : index
    %445 = vector.load %arg8[%c3_263, %c0_264, %c0_265] : memref<9x2x784xf32, #tpu.memory_space<vmem>>, vector<1x2x784xf32>
    %446 = vector.shape_cast %445 : vector<1x2x784xf32> to vector<2x784xf32>
    %447 = vector.broadcast %444 : f32 to vector<2x784xf32>
    %448 = arith.mulf %447, %446 : vector<2x784xf32>
    %449 = arith.addf %443, %448 : vector<2x784xf32>
    %c58_266 = arith.constant 58 : index
    %450 = memref.load %arg2[%c58_266] : memref<144xf32, #tpu.memory_space<smem>>
    %c4_267 = arith.constant 4 : index
    %c0_268 = arith.constant 0 : index
    %c0_269 = arith.constant 0 : index
    %451 = vector.load %arg8[%c4_267, %c0_268, %c0_269] : memref<9x2x784xf32, #tpu.memory_space<vmem>>, vector<1x2x784xf32>
    %452 = vector.shape_cast %451 : vector<1x2x784xf32> to vector<2x784xf32>
    %453 = vector.broadcast %450 : f32 to vector<2x784xf32>
    %454 = arith.mulf %453, %452 : vector<2x784xf32>
    %455 = arith.addf %449, %454 : vector<2x784xf32>
    %c59 = arith.constant 59 : index
    %456 = memref.load %arg2[%c59] : memref<144xf32, #tpu.memory_space<smem>>
    %c5_270 = arith.constant 5 : index
    %c0_271 = arith.constant 0 : index
    %c0_272 = arith.constant 0 : index
    %457 = vector.load %arg8[%c5_270, %c0_271, %c0_272] : memref<9x2x784xf32, #tpu.memory_space<vmem>>, vector<1x2x784xf32>
    %458 = vector.shape_cast %457 : vector<1x2x784xf32> to vector<2x784xf32>
    %459 = vector.broadcast %456 : f32 to vector<2x784xf32>
    %460 = arith.mulf %459, %458 : vector<2x784xf32>
    %461 = arith.addf %455, %460 : vector<2x784xf32>
    %c60 = arith.constant 60 : index
    %462 = memref.load %arg2[%c60] : memref<144xf32, #tpu.memory_space<smem>>
    %c6_273 = arith.constant 6 : index
    %c0_274 = arith.constant 0 : index
    %c0_275 = arith.constant 0 : index
    %463 = vector.load %arg8[%c6_273, %c0_274, %c0_275] : memref<9x2x784xf32, #tpu.memory_space<vmem>>, vector<1x2x784xf32>
    %464 = vector.shape_cast %463 : vector<1x2x784xf32> to vector<2x784xf32>
    %465 = vector.broadcast %462 : f32 to vector<2x784xf32>
    %466 = arith.mulf %465, %464 : vector<2x784xf32>
    %467 = arith.addf %461, %466 : vector<2x784xf32>
    %c61 = arith.constant 61 : index
    %468 = memref.load %arg2[%c61] : memref<144xf32, #tpu.memory_space<smem>>
    %c7_276 = arith.constant 7 : index
    %c0_277 = arith.constant 0 : index
    %c0_278 = arith.constant 0 : index
    %469 = vector.load %arg8[%c7_276, %c0_277, %c0_278] : memref<9x2x784xf32, #tpu.memory_space<vmem>>, vector<1x2x784xf32>
    %470 = vector.shape_cast %469 : vector<1x2x784xf32> to vector<2x784xf32>
    %471 = vector.broadcast %468 : f32 to vector<2x784xf32>
    %472 = arith.mulf %471, %470 : vector<2x784xf32>
    %473 = arith.addf %467, %472 : vector<2x784xf32>
    %c62 = arith.constant 62 : index
    %474 = memref.load %arg2[%c62] : memref<144xf32, #tpu.memory_space<smem>>
    %c8_279 = arith.constant 8 : index
    %c0_280 = arith.constant 0 : index
    %c0_281 = arith.constant 0 : index
    %475 = vector.load %arg8[%c8_279, %c0_280, %c0_281] : memref<9x2x784xf32, #tpu.memory_space<vmem>>, vector<1x2x784xf32>
    %476 = vector.shape_cast %475 : vector<1x2x784xf32> to vector<2x784xf32>
    %477 = vector.broadcast %474 : f32 to vector<2x784xf32>
    %478 = arith.mulf %477, %476 : vector<2x784xf32>
    %479 = arith.addf %473, %478 : vector<2x784xf32>
    %c6_282 = arith.constant 6 : index
    %480 = memref.load %arg3[%c6_282] : memref<16xf32, #tpu.memory_space<smem>>
    %481 = vector.broadcast %480 : f32 to vector<2x784xf32>
    %482 = arith.addf %479, %481 : vector<2x784xf32>
    %cst_283 = arith.constant 0.000000e+00 : f32
    %483 = vector.broadcast %cst_283 : f32 to vector<2x784xf32>
    %484 = arith.maximumf %482, %483 : vector<2x784xf32>
    %c6_284 = arith.constant 6 : index
    %c0_285 = arith.constant 0 : index
    %c0_286 = arith.constant 0 : index
    %485 = vector.load %arg5[%c6_284, %c0_285, %c0_286] : memref<16x784x128xf32, #tpu.memory_space<vmem>>, vector<1x784x128xf32>
    %486 = vector.shape_cast %485 : vector<1x784x128xf32> to vector<784x128xf32>
    %cst_287 = arith.constant dense<0.000000e+00> : vector<2x128xf32>
    %487 = tpu.matmul %484, %486, %cst_287 {dimension_numbers = #tpu.dot_dimension_numbers<[1], [0], [0], [1], [0, 0, 1, 1], [], []>} : vector<2x784xf32>, vector<784x128xf32>, vector<2x128xf32> -> vector<2x128xf32>
    %488 = arith.addf %426, %487 : vector<2x128xf32>
    %c63 = arith.constant 63 : index
    %489 = memref.load %arg2[%c63] : memref<144xf32, #tpu.memory_space<smem>>
    %c0_288 = arith.constant 0 : index
    %c0_289 = arith.constant 0 : index
    %c0_290 = arith.constant 0 : index
    %490 = vector.load %arg8[%c0_288, %c0_289, %c0_290] : memref<9x2x784xf32, #tpu.memory_space<vmem>>, vector<1x2x784xf32>
    %491 = vector.shape_cast %490 : vector<1x2x784xf32> to vector<2x784xf32>
    %492 = vector.broadcast %489 : f32 to vector<2x784xf32>
    %493 = arith.mulf %492, %491 : vector<2x784xf32>
    %c64 = arith.constant 64 : index
    %494 = memref.load %arg2[%c64] : memref<144xf32, #tpu.memory_space<smem>>
    %c1_291 = arith.constant 1 : index
    %c0_292 = arith.constant 0 : index
    %c0_293 = arith.constant 0 : index
    %495 = vector.load %arg8[%c1_291, %c0_292, %c0_293] : memref<9x2x784xf32, #tpu.memory_space<vmem>>, vector<1x2x784xf32>
    %496 = vector.shape_cast %495 : vector<1x2x784xf32> to vector<2x784xf32>
    %497 = vector.broadcast %494 : f32 to vector<2x784xf32>
    %498 = arith.mulf %497, %496 : vector<2x784xf32>
    %499 = arith.addf %493, %498 : vector<2x784xf32>
    %c65 = arith.constant 65 : index
    %500 = memref.load %arg2[%c65] : memref<144xf32, #tpu.memory_space<smem>>
    %c2_294 = arith.constant 2 : index
    %c0_295 = arith.constant 0 : index
    %c0_296 = arith.constant 0 : index
    %501 = vector.load %arg8[%c2_294, %c0_295, %c0_296] : memref<9x2x784xf32, #tpu.memory_space<vmem>>, vector<1x2x784xf32>
    %502 = vector.shape_cast %501 : vector<1x2x784xf32> to vector<2x784xf32>
    %503 = vector.broadcast %500 : f32 to vector<2x784xf32>
    %504 = arith.mulf %503, %502 : vector<2x784xf32>
    %505 = arith.addf %499, %504 : vector<2x784xf32>
    %c66 = arith.constant 66 : index
    %506 = memref.load %arg2[%c66] : memref<144xf32, #tpu.memory_space<smem>>
    %c3_297 = arith.constant 3 : index
    %c0_298 = arith.constant 0 : index
    %c0_299 = arith.constant 0 : index
    %507 = vector.load %arg8[%c3_297, %c0_298, %c0_299] : memref<9x2x784xf32, #tpu.memory_space<vmem>>, vector<1x2x784xf32>
    %508 = vector.shape_cast %507 : vector<1x2x784xf32> to vector<2x784xf32>
    %509 = vector.broadcast %506 : f32 to vector<2x784xf32>
    %510 = arith.mulf %509, %508 : vector<2x784xf32>
    %511 = arith.addf %505, %510 : vector<2x784xf32>
    %c67 = arith.constant 67 : index
    %512 = memref.load %arg2[%c67] : memref<144xf32, #tpu.memory_space<smem>>
    %c4_300 = arith.constant 4 : index
    %c0_301 = arith.constant 0 : index
    %c0_302 = arith.constant 0 : index
    %513 = vector.load %arg8[%c4_300, %c0_301, %c0_302] : memref<9x2x784xf32, #tpu.memory_space<vmem>>, vector<1x2x784xf32>
    %514 = vector.shape_cast %513 : vector<1x2x784xf32> to vector<2x784xf32>
    %515 = vector.broadcast %512 : f32 to vector<2x784xf32>
    %516 = arith.mulf %515, %514 : vector<2x784xf32>
    %517 = arith.addf %511, %516 : vector<2x784xf32>
    %c68 = arith.constant 68 : index
    %518 = memref.load %arg2[%c68] : memref<144xf32, #tpu.memory_space<smem>>
    %c5_303 = arith.constant 5 : index
    %c0_304 = arith.constant 0 : index
    %c0_305 = arith.constant 0 : index
    %519 = vector.load %arg8[%c5_303, %c0_304, %c0_305] : memref<9x2x784xf32, #tpu.memory_space<vmem>>, vector<1x2x784xf32>
    %520 = vector.shape_cast %519 : vector<1x2x784xf32> to vector<2x784xf32>
    %521 = vector.broadcast %518 : f32 to vector<2x784xf32>
    %522 = arith.mulf %521, %520 : vector<2x784xf32>
    %523 = arith.addf %517, %522 : vector<2x784xf32>
    %c69 = arith.constant 69 : index
    %524 = memref.load %arg2[%c69] : memref<144xf32, #tpu.memory_space<smem>>
    %c6_306 = arith.constant 6 : index
    %c0_307 = arith.constant 0 : index
    %c0_308 = arith.constant 0 : index
    %525 = vector.load %arg8[%c6_306, %c0_307, %c0_308] : memref<9x2x784xf32, #tpu.memory_space<vmem>>, vector<1x2x784xf32>
    %526 = vector.shape_cast %525 : vector<1x2x784xf32> to vector<2x784xf32>
    %527 = vector.broadcast %524 : f32 to vector<2x784xf32>
    %528 = arith.mulf %527, %526 : vector<2x784xf32>
    %529 = arith.addf %523, %528 : vector<2x784xf32>
    %c70 = arith.constant 70 : index
    %530 = memref.load %arg2[%c70] : memref<144xf32, #tpu.memory_space<smem>>
    %c7_309 = arith.constant 7 : index
    %c0_310 = arith.constant 0 : index
    %c0_311 = arith.constant 0 : index
    %531 = vector.load %arg8[%c7_309, %c0_310, %c0_311] : memref<9x2x784xf32, #tpu.memory_space<vmem>>, vector<1x2x784xf32>
    %532 = vector.shape_cast %531 : vector<1x2x784xf32> to vector<2x784xf32>
    %533 = vector.broadcast %530 : f32 to vector<2x784xf32>
    %534 = arith.mulf %533, %532 : vector<2x784xf32>
    %535 = arith.addf %529, %534 : vector<2x784xf32>
    %c71 = arith.constant 71 : index
    %536 = memref.load %arg2[%c71] : memref<144xf32, #tpu.memory_space<smem>>
    %c8_312 = arith.constant 8 : index
    %c0_313 = arith.constant 0 : index
    %c0_314 = arith.constant 0 : index
    %537 = vector.load %arg8[%c8_312, %c0_313, %c0_314] : memref<9x2x784xf32, #tpu.memory_space<vmem>>, vector<1x2x784xf32>
    %538 = vector.shape_cast %537 : vector<1x2x784xf32> to vector<2x784xf32>
    %539 = vector.broadcast %536 : f32 to vector<2x784xf32>
    %540 = arith.mulf %539, %538 : vector<2x784xf32>
    %541 = arith.addf %535, %540 : vector<2x784xf32>
    %c7_315 = arith.constant 7 : index
    %542 = memref.load %arg3[%c7_315] : memref<16xf32, #tpu.memory_space<smem>>
    %543 = vector.broadcast %542 : f32 to vector<2x784xf32>
    %544 = arith.addf %541, %543 : vector<2x784xf32>
    %cst_316 = arith.constant 0.000000e+00 : f32
    %545 = vector.broadcast %cst_316 : f32 to vector<2x784xf32>
    %546 = arith.maximumf %544, %545 : vector<2x784xf32>
    %c7_317 = arith.constant 7 : index
    %c0_318 = arith.constant 0 : index
    %c0_319 = arith.constant 0 : index
    %547 = vector.load %arg5[%c7_317, %c0_318, %c0_319] : memref<16x784x128xf32, #tpu.memory_space<vmem>>, vector<1x784x128xf32>
    %548 = vector.shape_cast %547 : vector<1x784x128xf32> to vector<784x128xf32>
    %cst_320 = arith.constant dense<0.000000e+00> : vector<2x128xf32>
    %549 = tpu.matmul %546, %548, %cst_320 {dimension_numbers = #tpu.dot_dimension_numbers<[1], [0], [0], [1], [0, 0, 1, 1], [], []>} : vector<2x784xf32>, vector<784x128xf32>, vector<2x128xf32> -> vector<2x128xf32>
    %550 = arith.addf %488, %549 : vector<2x128xf32>
    %c72 = arith.constant 72 : index
    %551 = memref.load %arg2[%c72] : memref<144xf32, #tpu.memory_space<smem>>
    %c0_321 = arith.constant 0 : index
    %c0_322 = arith.constant 0 : index
    %c0_323 = arith.constant 0 : index
    %552 = vector.load %arg8[%c0_321, %c0_322, %c0_323] : memref<9x2x784xf32, #tpu.memory_space<vmem>>, vector<1x2x784xf32>
    %553 = vector.shape_cast %552 : vector<1x2x784xf32> to vector<2x784xf32>
    %554 = vector.broadcast %551 : f32 to vector<2x784xf32>
    %555 = arith.mulf %554, %553 : vector<2x784xf32>
    %c73 = arith.constant 73 : index
    %556 = memref.load %arg2[%c73] : memref<144xf32, #tpu.memory_space<smem>>
    %c1_324 = arith.constant 1 : index
    %c0_325 = arith.constant 0 : index
    %c0_326 = arith.constant 0 : index
    %557 = vector.load %arg8[%c1_324, %c0_325, %c0_326] : memref<9x2x784xf32, #tpu.memory_space<vmem>>, vector<1x2x784xf32>
    %558 = vector.shape_cast %557 : vector<1x2x784xf32> to vector<2x784xf32>
    %559 = vector.broadcast %556 : f32 to vector<2x784xf32>
    %560 = arith.mulf %559, %558 : vector<2x784xf32>
    %561 = arith.addf %555, %560 : vector<2x784xf32>
    %c74 = arith.constant 74 : index
    %562 = memref.load %arg2[%c74] : memref<144xf32, #tpu.memory_space<smem>>
    %c2_327 = arith.constant 2 : index
    %c0_328 = arith.constant 0 : index
    %c0_329 = arith.constant 0 : index
    %563 = vector.load %arg8[%c2_327, %c0_328, %c0_329] : memref<9x2x784xf32, #tpu.memory_space<vmem>>, vector<1x2x784xf32>
    %564 = vector.shape_cast %563 : vector<1x2x784xf32> to vector<2x784xf32>
    %565 = vector.broadcast %562 : f32 to vector<2x784xf32>
    %566 = arith.mulf %565, %564 : vector<2x784xf32>
    %567 = arith.addf %561, %566 : vector<2x784xf32>
    %c75 = arith.constant 75 : index
    %568 = memref.load %arg2[%c75] : memref<144xf32, #tpu.memory_space<smem>>
    %c3_330 = arith.constant 3 : index
    %c0_331 = arith.constant 0 : index
    %c0_332 = arith.constant 0 : index
    %569 = vector.load %arg8[%c3_330, %c0_331, %c0_332] : memref<9x2x784xf32, #tpu.memory_space<vmem>>, vector<1x2x784xf32>
    %570 = vector.shape_cast %569 : vector<1x2x784xf32> to vector<2x784xf32>
    %571 = vector.broadcast %568 : f32 to vector<2x784xf32>
    %572 = arith.mulf %571, %570 : vector<2x784xf32>
    %573 = arith.addf %567, %572 : vector<2x784xf32>
    %c76 = arith.constant 76 : index
    %574 = memref.load %arg2[%c76] : memref<144xf32, #tpu.memory_space<smem>>
    %c4_333 = arith.constant 4 : index
    %c0_334 = arith.constant 0 : index
    %c0_335 = arith.constant 0 : index
    %575 = vector.load %arg8[%c4_333, %c0_334, %c0_335] : memref<9x2x784xf32, #tpu.memory_space<vmem>>, vector<1x2x784xf32>
    %576 = vector.shape_cast %575 : vector<1x2x784xf32> to vector<2x784xf32>
    %577 = vector.broadcast %574 : f32 to vector<2x784xf32>
    %578 = arith.mulf %577, %576 : vector<2x784xf32>
    %579 = arith.addf %573, %578 : vector<2x784xf32>
    %c77 = arith.constant 77 : index
    %580 = memref.load %arg2[%c77] : memref<144xf32, #tpu.memory_space<smem>>
    %c5_336 = arith.constant 5 : index
    %c0_337 = arith.constant 0 : index
    %c0_338 = arith.constant 0 : index
    %581 = vector.load %arg8[%c5_336, %c0_337, %c0_338] : memref<9x2x784xf32, #tpu.memory_space<vmem>>, vector<1x2x784xf32>
    %582 = vector.shape_cast %581 : vector<1x2x784xf32> to vector<2x784xf32>
    %583 = vector.broadcast %580 : f32 to vector<2x784xf32>
    %584 = arith.mulf %583, %582 : vector<2x784xf32>
    %585 = arith.addf %579, %584 : vector<2x784xf32>
    %c78 = arith.constant 78 : index
    %586 = memref.load %arg2[%c78] : memref<144xf32, #tpu.memory_space<smem>>
    %c6_339 = arith.constant 6 : index
    %c0_340 = arith.constant 0 : index
    %c0_341 = arith.constant 0 : index
    %587 = vector.load %arg8[%c6_339, %c0_340, %c0_341] : memref<9x2x784xf32, #tpu.memory_space<vmem>>, vector<1x2x784xf32>
    %588 = vector.shape_cast %587 : vector<1x2x784xf32> to vector<2x784xf32>
    %589 = vector.broadcast %586 : f32 to vector<2x784xf32>
    %590 = arith.mulf %589, %588 : vector<2x784xf32>
    %591 = arith.addf %585, %590 : vector<2x784xf32>
    %c79 = arith.constant 79 : index
    %592 = memref.load %arg2[%c79] : memref<144xf32, #tpu.memory_space<smem>>
    %c7_342 = arith.constant 7 : index
    %c0_343 = arith.constant 0 : index
    %c0_344 = arith.constant 0 : index
    %593 = vector.load %arg8[%c7_342, %c0_343, %c0_344] : memref<9x2x784xf32, #tpu.memory_space<vmem>>, vector<1x2x784xf32>
    %594 = vector.shape_cast %593 : vector<1x2x784xf32> to vector<2x784xf32>
    %595 = vector.broadcast %592 : f32 to vector<2x784xf32>
    %596 = arith.mulf %595, %594 : vector<2x784xf32>
    %597 = arith.addf %591, %596 : vector<2x784xf32>
    %c80 = arith.constant 80 : index
    %598 = memref.load %arg2[%c80] : memref<144xf32, #tpu.memory_space<smem>>
    %c8_345 = arith.constant 8 : index
    %c0_346 = arith.constant 0 : index
    %c0_347 = arith.constant 0 : index
    %599 = vector.load %arg8[%c8_345, %c0_346, %c0_347] : memref<9x2x784xf32, #tpu.memory_space<vmem>>, vector<1x2x784xf32>
    %600 = vector.shape_cast %599 : vector<1x2x784xf32> to vector<2x784xf32>
    %601 = vector.broadcast %598 : f32 to vector<2x784xf32>
    %602 = arith.mulf %601, %600 : vector<2x784xf32>
    %603 = arith.addf %597, %602 : vector<2x784xf32>
    %c8_348 = arith.constant 8 : index
    %604 = memref.load %arg3[%c8_348] : memref<16xf32, #tpu.memory_space<smem>>
    %605 = vector.broadcast %604 : f32 to vector<2x784xf32>
    %606 = arith.addf %603, %605 : vector<2x784xf32>
    %cst_349 = arith.constant 0.000000e+00 : f32
    %607 = vector.broadcast %cst_349 : f32 to vector<2x784xf32>
    %608 = arith.maximumf %606, %607 : vector<2x784xf32>
    %c8_350 = arith.constant 8 : index
    %c0_351 = arith.constant 0 : index
    %c0_352 = arith.constant 0 : index
    %609 = vector.load %arg5[%c8_350, %c0_351, %c0_352] : memref<16x784x128xf32, #tpu.memory_space<vmem>>, vector<1x784x128xf32>
    %610 = vector.shape_cast %609 : vector<1x784x128xf32> to vector<784x128xf32>
    %cst_353 = arith.constant dense<0.000000e+00> : vector<2x128xf32>
    %611 = tpu.matmul %608, %610, %cst_353 {dimension_numbers = #tpu.dot_dimension_numbers<[1], [0], [0], [1], [0, 0, 1, 1], [], []>} : vector<2x784xf32>, vector<784x128xf32>, vector<2x128xf32> -> vector<2x128xf32>
    %612 = arith.addf %550, %611 : vector<2x128xf32>
    %c81 = arith.constant 81 : index
    %613 = memref.load %arg2[%c81] : memref<144xf32, #tpu.memory_space<smem>>
    %c0_354 = arith.constant 0 : index
    %c0_355 = arith.constant 0 : index
    %c0_356 = arith.constant 0 : index
    %614 = vector.load %arg8[%c0_354, %c0_355, %c0_356] : memref<9x2x784xf32, #tpu.memory_space<vmem>>, vector<1x2x784xf32>
    %615 = vector.shape_cast %614 : vector<1x2x784xf32> to vector<2x784xf32>
    %616 = vector.broadcast %613 : f32 to vector<2x784xf32>
    %617 = arith.mulf %616, %615 : vector<2x784xf32>
    %c82 = arith.constant 82 : index
    %618 = memref.load %arg2[%c82] : memref<144xf32, #tpu.memory_space<smem>>
    %c1_357 = arith.constant 1 : index
    %c0_358 = arith.constant 0 : index
    %c0_359 = arith.constant 0 : index
    %619 = vector.load %arg8[%c1_357, %c0_358, %c0_359] : memref<9x2x784xf32, #tpu.memory_space<vmem>>, vector<1x2x784xf32>
    %620 = vector.shape_cast %619 : vector<1x2x784xf32> to vector<2x784xf32>
    %621 = vector.broadcast %618 : f32 to vector<2x784xf32>
    %622 = arith.mulf %621, %620 : vector<2x784xf32>
    %623 = arith.addf %617, %622 : vector<2x784xf32>
    %c83 = arith.constant 83 : index
    %624 = memref.load %arg2[%c83] : memref<144xf32, #tpu.memory_space<smem>>
    %c2_360 = arith.constant 2 : index
    %c0_361 = arith.constant 0 : index
    %c0_362 = arith.constant 0 : index
    %625 = vector.load %arg8[%c2_360, %c0_361, %c0_362] : memref<9x2x784xf32, #tpu.memory_space<vmem>>, vector<1x2x784xf32>
    %626 = vector.shape_cast %625 : vector<1x2x784xf32> to vector<2x784xf32>
    %627 = vector.broadcast %624 : f32 to vector<2x784xf32>
    %628 = arith.mulf %627, %626 : vector<2x784xf32>
    %629 = arith.addf %623, %628 : vector<2x784xf32>
    %c84 = arith.constant 84 : index
    %630 = memref.load %arg2[%c84] : memref<144xf32, #tpu.memory_space<smem>>
    %c3_363 = arith.constant 3 : index
    %c0_364 = arith.constant 0 : index
    %c0_365 = arith.constant 0 : index
    %631 = vector.load %arg8[%c3_363, %c0_364, %c0_365] : memref<9x2x784xf32, #tpu.memory_space<vmem>>, vector<1x2x784xf32>
    %632 = vector.shape_cast %631 : vector<1x2x784xf32> to vector<2x784xf32>
    %633 = vector.broadcast %630 : f32 to vector<2x784xf32>
    %634 = arith.mulf %633, %632 : vector<2x784xf32>
    %635 = arith.addf %629, %634 : vector<2x784xf32>
    %c85 = arith.constant 85 : index
    %636 = memref.load %arg2[%c85] : memref<144xf32, #tpu.memory_space<smem>>
    %c4_366 = arith.constant 4 : index
    %c0_367 = arith.constant 0 : index
    %c0_368 = arith.constant 0 : index
    %637 = vector.load %arg8[%c4_366, %c0_367, %c0_368] : memref<9x2x784xf32, #tpu.memory_space<vmem>>, vector<1x2x784xf32>
    %638 = vector.shape_cast %637 : vector<1x2x784xf32> to vector<2x784xf32>
    %639 = vector.broadcast %636 : f32 to vector<2x784xf32>
    %640 = arith.mulf %639, %638 : vector<2x784xf32>
    %641 = arith.addf %635, %640 : vector<2x784xf32>
    %c86 = arith.constant 86 : index
    %642 = memref.load %arg2[%c86] : memref<144xf32, #tpu.memory_space<smem>>
    %c5_369 = arith.constant 5 : index
    %c0_370 = arith.constant 0 : index
    %c0_371 = arith.constant 0 : index
    %643 = vector.load %arg8[%c5_369, %c0_370, %c0_371] : memref<9x2x784xf32, #tpu.memory_space<vmem>>, vector<1x2x784xf32>
    %644 = vector.shape_cast %643 : vector<1x2x784xf32> to vector<2x784xf32>
    %645 = vector.broadcast %642 : f32 to vector<2x784xf32>
    %646 = arith.mulf %645, %644 : vector<2x784xf32>
    %647 = arith.addf %641, %646 : vector<2x784xf32>
    %c87 = arith.constant 87 : index
    %648 = memref.load %arg2[%c87] : memref<144xf32, #tpu.memory_space<smem>>
    %c6_372 = arith.constant 6 : index
    %c0_373 = arith.constant 0 : index
    %c0_374 = arith.constant 0 : index
    %649 = vector.load %arg8[%c6_372, %c0_373, %c0_374] : memref<9x2x784xf32, #tpu.memory_space<vmem>>, vector<1x2x784xf32>
    %650 = vector.shape_cast %649 : vector<1x2x784xf32> to vector<2x784xf32>
    %651 = vector.broadcast %648 : f32 to vector<2x784xf32>
    %652 = arith.mulf %651, %650 : vector<2x784xf32>
    %653 = arith.addf %647, %652 : vector<2x784xf32>
    %c88 = arith.constant 88 : index
    %654 = memref.load %arg2[%c88] : memref<144xf32, #tpu.memory_space<smem>>
    %c7_375 = arith.constant 7 : index
    %c0_376 = arith.constant 0 : index
    %c0_377 = arith.constant 0 : index
    %655 = vector.load %arg8[%c7_375, %c0_376, %c0_377] : memref<9x2x784xf32, #tpu.memory_space<vmem>>, vector<1x2x784xf32>
    %656 = vector.shape_cast %655 : vector<1x2x784xf32> to vector<2x784xf32>
    %657 = vector.broadcast %654 : f32 to vector<2x784xf32>
    %658 = arith.mulf %657, %656 : vector<2x784xf32>
    %659 = arith.addf %653, %658 : vector<2x784xf32>
    %c89 = arith.constant 89 : index
    %660 = memref.load %arg2[%c89] : memref<144xf32, #tpu.memory_space<smem>>
    %c8_378 = arith.constant 8 : index
    %c0_379 = arith.constant 0 : index
    %c0_380 = arith.constant 0 : index
    %661 = vector.load %arg8[%c8_378, %c0_379, %c0_380] : memref<9x2x784xf32, #tpu.memory_space<vmem>>, vector<1x2x784xf32>
    %662 = vector.shape_cast %661 : vector<1x2x784xf32> to vector<2x784xf32>
    %663 = vector.broadcast %660 : f32 to vector<2x784xf32>
    %664 = arith.mulf %663, %662 : vector<2x784xf32>
    %665 = arith.addf %659, %664 : vector<2x784xf32>
    %c9_381 = arith.constant 9 : index
    %666 = memref.load %arg3[%c9_381] : memref<16xf32, #tpu.memory_space<smem>>
    %667 = vector.broadcast %666 : f32 to vector<2x784xf32>
    %668 = arith.addf %665, %667 : vector<2x784xf32>
    %cst_382 = arith.constant 0.000000e+00 : f32
    %669 = vector.broadcast %cst_382 : f32 to vector<2x784xf32>
    %670 = arith.maximumf %668, %669 : vector<2x784xf32>
    %c9_383 = arith.constant 9 : index
    %c0_384 = arith.constant 0 : index
    %c0_385 = arith.constant 0 : index
    %671 = vector.load %arg5[%c9_383, %c0_384, %c0_385] : memref<16x784x128xf32, #tpu.memory_space<vmem>>, vector<1x784x128xf32>
    %672 = vector.shape_cast %671 : vector<1x784x128xf32> to vector<784x128xf32>
    %cst_386 = arith.constant dense<0.000000e+00> : vector<2x128xf32>
    %673 = tpu.matmul %670, %672, %cst_386 {dimension_numbers = #tpu.dot_dimension_numbers<[1], [0], [0], [1], [0, 0, 1, 1], [], []>} : vector<2x784xf32>, vector<784x128xf32>, vector<2x128xf32> -> vector<2x128xf32>
    %674 = arith.addf %612, %673 : vector<2x128xf32>
    %c90 = arith.constant 90 : index
    %675 = memref.load %arg2[%c90] : memref<144xf32, #tpu.memory_space<smem>>
    %c0_387 = arith.constant 0 : index
    %c0_388 = arith.constant 0 : index
    %c0_389 = arith.constant 0 : index
    %676 = vector.load %arg8[%c0_387, %c0_388, %c0_389] : memref<9x2x784xf32, #tpu.memory_space<vmem>>, vector<1x2x784xf32>
    %677 = vector.shape_cast %676 : vector<1x2x784xf32> to vector<2x784xf32>
    %678 = vector.broadcast %675 : f32 to vector<2x784xf32>
    %679 = arith.mulf %678, %677 : vector<2x784xf32>
    %c91 = arith.constant 91 : index
    %680 = memref.load %arg2[%c91] : memref<144xf32, #tpu.memory_space<smem>>
    %c1_390 = arith.constant 1 : index
    %c0_391 = arith.constant 0 : index
    %c0_392 = arith.constant 0 : index
    %681 = vector.load %arg8[%c1_390, %c0_391, %c0_392] : memref<9x2x784xf32, #tpu.memory_space<vmem>>, vector<1x2x784xf32>
    %682 = vector.shape_cast %681 : vector<1x2x784xf32> to vector<2x784xf32>
    %683 = vector.broadcast %680 : f32 to vector<2x784xf32>
    %684 = arith.mulf %683, %682 : vector<2x784xf32>
    %685 = arith.addf %679, %684 : vector<2x784xf32>
    %c92 = arith.constant 92 : index
    %686 = memref.load %arg2[%c92] : memref<144xf32, #tpu.memory_space<smem>>
    %c2_393 = arith.constant 2 : index
    %c0_394 = arith.constant 0 : index
    %c0_395 = arith.constant 0 : index
    %687 = vector.load %arg8[%c2_393, %c0_394, %c0_395] : memref<9x2x784xf32, #tpu.memory_space<vmem>>, vector<1x2x784xf32>
    %688 = vector.shape_cast %687 : vector<1x2x784xf32> to vector<2x784xf32>
    %689 = vector.broadcast %686 : f32 to vector<2x784xf32>
    %690 = arith.mulf %689, %688 : vector<2x784xf32>
    %691 = arith.addf %685, %690 : vector<2x784xf32>
    %c93 = arith.constant 93 : index
    %692 = memref.load %arg2[%c93] : memref<144xf32, #tpu.memory_space<smem>>
    %c3_396 = arith.constant 3 : index
    %c0_397 = arith.constant 0 : index
    %c0_398 = arith.constant 0 : index
    %693 = vector.load %arg8[%c3_396, %c0_397, %c0_398] : memref<9x2x784xf32, #tpu.memory_space<vmem>>, vector<1x2x784xf32>
    %694 = vector.shape_cast %693 : vector<1x2x784xf32> to vector<2x784xf32>
    %695 = vector.broadcast %692 : f32 to vector<2x784xf32>
    %696 = arith.mulf %695, %694 : vector<2x784xf32>
    %697 = arith.addf %691, %696 : vector<2x784xf32>
    %c94 = arith.constant 94 : index
    %698 = memref.load %arg2[%c94] : memref<144xf32, #tpu.memory_space<smem>>
    %c4_399 = arith.constant 4 : index
    %c0_400 = arith.constant 0 : index
    %c0_401 = arith.constant 0 : index
    %699 = vector.load %arg8[%c4_399, %c0_400, %c0_401] : memref<9x2x784xf32, #tpu.memory_space<vmem>>, vector<1x2x784xf32>
    %700 = vector.shape_cast %699 : vector<1x2x784xf32> to vector<2x784xf32>
    %701 = vector.broadcast %698 : f32 to vector<2x784xf32>
    %702 = arith.mulf %701, %700 : vector<2x784xf32>
    %703 = arith.addf %697, %702 : vector<2x784xf32>
    %c95 = arith.constant 95 : index
    %704 = memref.load %arg2[%c95] : memref<144xf32, #tpu.memory_space<smem>>
    %c5_402 = arith.constant 5 : index
    %c0_403 = arith.constant 0 : index
    %c0_404 = arith.constant 0 : index
    %705 = vector.load %arg8[%c5_402, %c0_403, %c0_404] : memref<9x2x784xf32, #tpu.memory_space<vmem>>, vector<1x2x784xf32>
    %706 = vector.shape_cast %705 : vector<1x2x784xf32> to vector<2x784xf32>
    %707 = vector.broadcast %704 : f32 to vector<2x784xf32>
    %708 = arith.mulf %707, %706 : vector<2x784xf32>
    %709 = arith.addf %703, %708 : vector<2x784xf32>
    %c96 = arith.constant 96 : index
    %710 = memref.load %arg2[%c96] : memref<144xf32, #tpu.memory_space<smem>>
    %c6_405 = arith.constant 6 : index
    %c0_406 = arith.constant 0 : index
    %c0_407 = arith.constant 0 : index
    %711 = vector.load %arg8[%c6_405, %c0_406, %c0_407] : memref<9x2x784xf32, #tpu.memory_space<vmem>>, vector<1x2x784xf32>
    %712 = vector.shape_cast %711 : vector<1x2x784xf32> to vector<2x784xf32>
    %713 = vector.broadcast %710 : f32 to vector<2x784xf32>
    %714 = arith.mulf %713, %712 : vector<2x784xf32>
    %715 = arith.addf %709, %714 : vector<2x784xf32>
    %c97 = arith.constant 97 : index
    %716 = memref.load %arg2[%c97] : memref<144xf32, #tpu.memory_space<smem>>
    %c7_408 = arith.constant 7 : index
    %c0_409 = arith.constant 0 : index
    %c0_410 = arith.constant 0 : index
    %717 = vector.load %arg8[%c7_408, %c0_409, %c0_410] : memref<9x2x784xf32, #tpu.memory_space<vmem>>, vector<1x2x784xf32>
    %718 = vector.shape_cast %717 : vector<1x2x784xf32> to vector<2x784xf32>
    %719 = vector.broadcast %716 : f32 to vector<2x784xf32>
    %720 = arith.mulf %719, %718 : vector<2x784xf32>
    %721 = arith.addf %715, %720 : vector<2x784xf32>
    %c98 = arith.constant 98 : index
    %722 = memref.load %arg2[%c98] : memref<144xf32, #tpu.memory_space<smem>>
    %c8_411 = arith.constant 8 : index
    %c0_412 = arith.constant 0 : index
    %c0_413 = arith.constant 0 : index
    %723 = vector.load %arg8[%c8_411, %c0_412, %c0_413] : memref<9x2x784xf32, #tpu.memory_space<vmem>>, vector<1x2x784xf32>
    %724 = vector.shape_cast %723 : vector<1x2x784xf32> to vector<2x784xf32>
    %725 = vector.broadcast %722 : f32 to vector<2x784xf32>
    %726 = arith.mulf %725, %724 : vector<2x784xf32>
    %727 = arith.addf %721, %726 : vector<2x784xf32>
    %c10_414 = arith.constant 10 : index
    %728 = memref.load %arg3[%c10_414] : memref<16xf32, #tpu.memory_space<smem>>
    %729 = vector.broadcast %728 : f32 to vector<2x784xf32>
    %730 = arith.addf %727, %729 : vector<2x784xf32>
    %cst_415 = arith.constant 0.000000e+00 : f32
    %731 = vector.broadcast %cst_415 : f32 to vector<2x784xf32>
    %732 = arith.maximumf %730, %731 : vector<2x784xf32>
    %c10_416 = arith.constant 10 : index
    %c0_417 = arith.constant 0 : index
    %c0_418 = arith.constant 0 : index
    %733 = vector.load %arg5[%c10_416, %c0_417, %c0_418] : memref<16x784x128xf32, #tpu.memory_space<vmem>>, vector<1x784x128xf32>
    %734 = vector.shape_cast %733 : vector<1x784x128xf32> to vector<784x128xf32>
    %cst_419 = arith.constant dense<0.000000e+00> : vector<2x128xf32>
    %735 = tpu.matmul %732, %734, %cst_419 {dimension_numbers = #tpu.dot_dimension_numbers<[1], [0], [0], [1], [0, 0, 1, 1], [], []>} : vector<2x784xf32>, vector<784x128xf32>, vector<2x128xf32> -> vector<2x128xf32>
    %736 = arith.addf %674, %735 : vector<2x128xf32>
    %c99 = arith.constant 99 : index
    %737 = memref.load %arg2[%c99] : memref<144xf32, #tpu.memory_space<smem>>
    %c0_420 = arith.constant 0 : index
    %c0_421 = arith.constant 0 : index
    %c0_422 = arith.constant 0 : index
    %738 = vector.load %arg8[%c0_420, %c0_421, %c0_422] : memref<9x2x784xf32, #tpu.memory_space<vmem>>, vector<1x2x784xf32>
    %739 = vector.shape_cast %738 : vector<1x2x784xf32> to vector<2x784xf32>
    %740 = vector.broadcast %737 : f32 to vector<2x784xf32>
    %741 = arith.mulf %740, %739 : vector<2x784xf32>
    %c100 = arith.constant 100 : index
    %742 = memref.load %arg2[%c100] : memref<144xf32, #tpu.memory_space<smem>>
    %c1_423 = arith.constant 1 : index
    %c0_424 = arith.constant 0 : index
    %c0_425 = arith.constant 0 : index
    %743 = vector.load %arg8[%c1_423, %c0_424, %c0_425] : memref<9x2x784xf32, #tpu.memory_space<vmem>>, vector<1x2x784xf32>
    %744 = vector.shape_cast %743 : vector<1x2x784xf32> to vector<2x784xf32>
    %745 = vector.broadcast %742 : f32 to vector<2x784xf32>
    %746 = arith.mulf %745, %744 : vector<2x784xf32>
    %747 = arith.addf %741, %746 : vector<2x784xf32>
    %c101 = arith.constant 101 : index
    %748 = memref.load %arg2[%c101] : memref<144xf32, #tpu.memory_space<smem>>
    %c2_426 = arith.constant 2 : index
    %c0_427 = arith.constant 0 : index
    %c0_428 = arith.constant 0 : index
    %749 = vector.load %arg8[%c2_426, %c0_427, %c0_428] : memref<9x2x784xf32, #tpu.memory_space<vmem>>, vector<1x2x784xf32>
    %750 = vector.shape_cast %749 : vector<1x2x784xf32> to vector<2x784xf32>
    %751 = vector.broadcast %748 : f32 to vector<2x784xf32>
    %752 = arith.mulf %751, %750 : vector<2x784xf32>
    %753 = arith.addf %747, %752 : vector<2x784xf32>
    %c102 = arith.constant 102 : index
    %754 = memref.load %arg2[%c102] : memref<144xf32, #tpu.memory_space<smem>>
    %c3_429 = arith.constant 3 : index
    %c0_430 = arith.constant 0 : index
    %c0_431 = arith.constant 0 : index
    %755 = vector.load %arg8[%c3_429, %c0_430, %c0_431] : memref<9x2x784xf32, #tpu.memory_space<vmem>>, vector<1x2x784xf32>
    %756 = vector.shape_cast %755 : vector<1x2x784xf32> to vector<2x784xf32>
    %757 = vector.broadcast %754 : f32 to vector<2x784xf32>
    %758 = arith.mulf %757, %756 : vector<2x784xf32>
    %759 = arith.addf %753, %758 : vector<2x784xf32>
    %c103 = arith.constant 103 : index
    %760 = memref.load %arg2[%c103] : memref<144xf32, #tpu.memory_space<smem>>
    %c4_432 = arith.constant 4 : index
    %c0_433 = arith.constant 0 : index
    %c0_434 = arith.constant 0 : index
    %761 = vector.load %arg8[%c4_432, %c0_433, %c0_434] : memref<9x2x784xf32, #tpu.memory_space<vmem>>, vector<1x2x784xf32>
    %762 = vector.shape_cast %761 : vector<1x2x784xf32> to vector<2x784xf32>
    %763 = vector.broadcast %760 : f32 to vector<2x784xf32>
    %764 = arith.mulf %763, %762 : vector<2x784xf32>
    %765 = arith.addf %759, %764 : vector<2x784xf32>
    %c104 = arith.constant 104 : index
    %766 = memref.load %arg2[%c104] : memref<144xf32, #tpu.memory_space<smem>>
    %c5_435 = arith.constant 5 : index
    %c0_436 = arith.constant 0 : index
    %c0_437 = arith.constant 0 : index
    %767 = vector.load %arg8[%c5_435, %c0_436, %c0_437] : memref<9x2x784xf32, #tpu.memory_space<vmem>>, vector<1x2x784xf32>
    %768 = vector.shape_cast %767 : vector<1x2x784xf32> to vector<2x784xf32>
    %769 = vector.broadcast %766 : f32 to vector<2x784xf32>
    %770 = arith.mulf %769, %768 : vector<2x784xf32>
    %771 = arith.addf %765, %770 : vector<2x784xf32>
    %c105 = arith.constant 105 : index
    %772 = memref.load %arg2[%c105] : memref<144xf32, #tpu.memory_space<smem>>
    %c6_438 = arith.constant 6 : index
    %c0_439 = arith.constant 0 : index
    %c0_440 = arith.constant 0 : index
    %773 = vector.load %arg8[%c6_438, %c0_439, %c0_440] : memref<9x2x784xf32, #tpu.memory_space<vmem>>, vector<1x2x784xf32>
    %774 = vector.shape_cast %773 : vector<1x2x784xf32> to vector<2x784xf32>
    %775 = vector.broadcast %772 : f32 to vector<2x784xf32>
    %776 = arith.mulf %775, %774 : vector<2x784xf32>
    %777 = arith.addf %771, %776 : vector<2x784xf32>
    %c106 = arith.constant 106 : index
    %778 = memref.load %arg2[%c106] : memref<144xf32, #tpu.memory_space<smem>>
    %c7_441 = arith.constant 7 : index
    %c0_442 = arith.constant 0 : index
    %c0_443 = arith.constant 0 : index
    %779 = vector.load %arg8[%c7_441, %c0_442, %c0_443] : memref<9x2x784xf32, #tpu.memory_space<vmem>>, vector<1x2x784xf32>
    %780 = vector.shape_cast %779 : vector<1x2x784xf32> to vector<2x784xf32>
    %781 = vector.broadcast %778 : f32 to vector<2x784xf32>
    %782 = arith.mulf %781, %780 : vector<2x784xf32>
    %783 = arith.addf %777, %782 : vector<2x784xf32>
    %c107 = arith.constant 107 : index
    %784 = memref.load %arg2[%c107] : memref<144xf32, #tpu.memory_space<smem>>
    %c8_444 = arith.constant 8 : index
    %c0_445 = arith.constant 0 : index
    %c0_446 = arith.constant 0 : index
    %785 = vector.load %arg8[%c8_444, %c0_445, %c0_446] : memref<9x2x784xf32, #tpu.memory_space<vmem>>, vector<1x2x784xf32>
    %786 = vector.shape_cast %785 : vector<1x2x784xf32> to vector<2x784xf32>
    %787 = vector.broadcast %784 : f32 to vector<2x784xf32>
    %788 = arith.mulf %787, %786 : vector<2x784xf32>
    %789 = arith.addf %783, %788 : vector<2x784xf32>
    %c11_447 = arith.constant 11 : index
    %790 = memref.load %arg3[%c11_447] : memref<16xf32, #tpu.memory_space<smem>>
    %791 = vector.broadcast %790 : f32 to vector<2x784xf32>
    %792 = arith.addf %789, %791 : vector<2x784xf32>
    %cst_448 = arith.constant 0.000000e+00 : f32
    %793 = vector.broadcast %cst_448 : f32 to vector<2x784xf32>
    %794 = arith.maximumf %792, %793 : vector<2x784xf32>
    %c11_449 = arith.constant 11 : index
    %c0_450 = arith.constant 0 : index
    %c0_451 = arith.constant 0 : index
    %795 = vector.load %arg5[%c11_449, %c0_450, %c0_451] : memref<16x784x128xf32, #tpu.memory_space<vmem>>, vector<1x784x128xf32>
    %796 = vector.shape_cast %795 : vector<1x784x128xf32> to vector<784x128xf32>
    %cst_452 = arith.constant dense<0.000000e+00> : vector<2x128xf32>
    %797 = tpu.matmul %794, %796, %cst_452 {dimension_numbers = #tpu.dot_dimension_numbers<[1], [0], [0], [1], [0, 0, 1, 1], [], []>} : vector<2x784xf32>, vector<784x128xf32>, vector<2x128xf32> -> vector<2x128xf32>
    %798 = arith.addf %736, %797 : vector<2x128xf32>
    %c108 = arith.constant 108 : index
    %799 = memref.load %arg2[%c108] : memref<144xf32, #tpu.memory_space<smem>>
    %c0_453 = arith.constant 0 : index
    %c0_454 = arith.constant 0 : index
    %c0_455 = arith.constant 0 : index
    %800 = vector.load %arg8[%c0_453, %c0_454, %c0_455] : memref<9x2x784xf32, #tpu.memory_space<vmem>>, vector<1x2x784xf32>
    %801 = vector.shape_cast %800 : vector<1x2x784xf32> to vector<2x784xf32>
    %802 = vector.broadcast %799 : f32 to vector<2x784xf32>
    %803 = arith.mulf %802, %801 : vector<2x784xf32>
    %c109 = arith.constant 109 : index
    %804 = memref.load %arg2[%c109] : memref<144xf32, #tpu.memory_space<smem>>
    %c1_456 = arith.constant 1 : index
    %c0_457 = arith.constant 0 : index
    %c0_458 = arith.constant 0 : index
    %805 = vector.load %arg8[%c1_456, %c0_457, %c0_458] : memref<9x2x784xf32, #tpu.memory_space<vmem>>, vector<1x2x784xf32>
    %806 = vector.shape_cast %805 : vector<1x2x784xf32> to vector<2x784xf32>
    %807 = vector.broadcast %804 : f32 to vector<2x784xf32>
    %808 = arith.mulf %807, %806 : vector<2x784xf32>
    %809 = arith.addf %803, %808 : vector<2x784xf32>
    %c110 = arith.constant 110 : index
    %810 = memref.load %arg2[%c110] : memref<144xf32, #tpu.memory_space<smem>>
    %c2_459 = arith.constant 2 : index
    %c0_460 = arith.constant 0 : index
    %c0_461 = arith.constant 0 : index
    %811 = vector.load %arg8[%c2_459, %c0_460, %c0_461] : memref<9x2x784xf32, #tpu.memory_space<vmem>>, vector<1x2x784xf32>
    %812 = vector.shape_cast %811 : vector<1x2x784xf32> to vector<2x784xf32>
    %813 = vector.broadcast %810 : f32 to vector<2x784xf32>
    %814 = arith.mulf %813, %812 : vector<2x784xf32>
    %815 = arith.addf %809, %814 : vector<2x784xf32>
    %c111 = arith.constant 111 : index
    %816 = memref.load %arg2[%c111] : memref<144xf32, #tpu.memory_space<smem>>
    %c3_462 = arith.constant 3 : index
    %c0_463 = arith.constant 0 : index
    %c0_464 = arith.constant 0 : index
    %817 = vector.load %arg8[%c3_462, %c0_463, %c0_464] : memref<9x2x784xf32, #tpu.memory_space<vmem>>, vector<1x2x784xf32>
    %818 = vector.shape_cast %817 : vector<1x2x784xf32> to vector<2x784xf32>
    %819 = vector.broadcast %816 : f32 to vector<2x784xf32>
    %820 = arith.mulf %819, %818 : vector<2x784xf32>
    %821 = arith.addf %815, %820 : vector<2x784xf32>
    %c112 = arith.constant 112 : index
    %822 = memref.load %arg2[%c112] : memref<144xf32, #tpu.memory_space<smem>>
    %c4_465 = arith.constant 4 : index
    %c0_466 = arith.constant 0 : index
    %c0_467 = arith.constant 0 : index
    %823 = vector.load %arg8[%c4_465, %c0_466, %c0_467] : memref<9x2x784xf32, #tpu.memory_space<vmem>>, vector<1x2x784xf32>
    %824 = vector.shape_cast %823 : vector<1x2x784xf32> to vector<2x784xf32>
    %825 = vector.broadcast %822 : f32 to vector<2x784xf32>
    %826 = arith.mulf %825, %824 : vector<2x784xf32>
    %827 = arith.addf %821, %826 : vector<2x784xf32>
    %c113 = arith.constant 113 : index
    %828 = memref.load %arg2[%c113] : memref<144xf32, #tpu.memory_space<smem>>
    %c5_468 = arith.constant 5 : index
    %c0_469 = arith.constant 0 : index
    %c0_470 = arith.constant 0 : index
    %829 = vector.load %arg8[%c5_468, %c0_469, %c0_470] : memref<9x2x784xf32, #tpu.memory_space<vmem>>, vector<1x2x784xf32>
    %830 = vector.shape_cast %829 : vector<1x2x784xf32> to vector<2x784xf32>
    %831 = vector.broadcast %828 : f32 to vector<2x784xf32>
    %832 = arith.mulf %831, %830 : vector<2x784xf32>
    %833 = arith.addf %827, %832 : vector<2x784xf32>
    %c114 = arith.constant 114 : index
    %834 = memref.load %arg2[%c114] : memref<144xf32, #tpu.memory_space<smem>>
    %c6_471 = arith.constant 6 : index
    %c0_472 = arith.constant 0 : index
    %c0_473 = arith.constant 0 : index
    %835 = vector.load %arg8[%c6_471, %c0_472, %c0_473] : memref<9x2x784xf32, #tpu.memory_space<vmem>>, vector<1x2x784xf32>
    %836 = vector.shape_cast %835 : vector<1x2x784xf32> to vector<2x784xf32>
    %837 = vector.broadcast %834 : f32 to vector<2x784xf32>
    %838 = arith.mulf %837, %836 : vector<2x784xf32>
    %839 = arith.addf %833, %838 : vector<2x784xf32>
    %c115 = arith.constant 115 : index
    %840 = memref.load %arg2[%c115] : memref<144xf32, #tpu.memory_space<smem>>
    %c7_474 = arith.constant 7 : index
    %c0_475 = arith.constant 0 : index
    %c0_476 = arith.constant 0 : index
    %841 = vector.load %arg8[%c7_474, %c0_475, %c0_476] : memref<9x2x784xf32, #tpu.memory_space<vmem>>, vector<1x2x784xf32>
    %842 = vector.shape_cast %841 : vector<1x2x784xf32> to vector<2x784xf32>
    %843 = vector.broadcast %840 : f32 to vector<2x784xf32>
    %844 = arith.mulf %843, %842 : vector<2x784xf32>
    %845 = arith.addf %839, %844 : vector<2x784xf32>
    %c116 = arith.constant 116 : index
    %846 = memref.load %arg2[%c116] : memref<144xf32, #tpu.memory_space<smem>>
    %c8_477 = arith.constant 8 : index
    %c0_478 = arith.constant 0 : index
    %c0_479 = arith.constant 0 : index
    %847 = vector.load %arg8[%c8_477, %c0_478, %c0_479] : memref<9x2x784xf32, #tpu.memory_space<vmem>>, vector<1x2x784xf32>
    %848 = vector.shape_cast %847 : vector<1x2x784xf32> to vector<2x784xf32>
    %849 = vector.broadcast %846 : f32 to vector<2x784xf32>
    %850 = arith.mulf %849, %848 : vector<2x784xf32>
    %851 = arith.addf %845, %850 : vector<2x784xf32>
    %c12_480 = arith.constant 12 : index
    %852 = memref.load %arg3[%c12_480] : memref<16xf32, #tpu.memory_space<smem>>
    %853 = vector.broadcast %852 : f32 to vector<2x784xf32>
    %854 = arith.addf %851, %853 : vector<2x784xf32>
    %cst_481 = arith.constant 0.000000e+00 : f32
    %855 = vector.broadcast %cst_481 : f32 to vector<2x784xf32>
    %856 = arith.maximumf %854, %855 : vector<2x784xf32>
    %c12_482 = arith.constant 12 : index
    %c0_483 = arith.constant 0 : index
    %c0_484 = arith.constant 0 : index
    %857 = vector.load %arg5[%c12_482, %c0_483, %c0_484] : memref<16x784x128xf32, #tpu.memory_space<vmem>>, vector<1x784x128xf32>
    %858 = vector.shape_cast %857 : vector<1x784x128xf32> to vector<784x128xf32>
    %cst_485 = arith.constant dense<0.000000e+00> : vector<2x128xf32>
    %859 = tpu.matmul %856, %858, %cst_485 {dimension_numbers = #tpu.dot_dimension_numbers<[1], [0], [0], [1], [0, 0, 1, 1], [], []>} : vector<2x784xf32>, vector<784x128xf32>, vector<2x128xf32> -> vector<2x128xf32>
    %860 = arith.addf %798, %859 : vector<2x128xf32>
    %c117 = arith.constant 117 : index
    %861 = memref.load %arg2[%c117] : memref<144xf32, #tpu.memory_space<smem>>
    %c0_486 = arith.constant 0 : index
    %c0_487 = arith.constant 0 : index
    %c0_488 = arith.constant 0 : index
    %862 = vector.load %arg8[%c0_486, %c0_487, %c0_488] : memref<9x2x784xf32, #tpu.memory_space<vmem>>, vector<1x2x784xf32>
    %863 = vector.shape_cast %862 : vector<1x2x784xf32> to vector<2x784xf32>
    %864 = vector.broadcast %861 : f32 to vector<2x784xf32>
    %865 = arith.mulf %864, %863 : vector<2x784xf32>
    %c118 = arith.constant 118 : index
    %866 = memref.load %arg2[%c118] : memref<144xf32, #tpu.memory_space<smem>>
    %c1_489 = arith.constant 1 : index
    %c0_490 = arith.constant 0 : index
    %c0_491 = arith.constant 0 : index
    %867 = vector.load %arg8[%c1_489, %c0_490, %c0_491] : memref<9x2x784xf32, #tpu.memory_space<vmem>>, vector<1x2x784xf32>
    %868 = vector.shape_cast %867 : vector<1x2x784xf32> to vector<2x784xf32>
    %869 = vector.broadcast %866 : f32 to vector<2x784xf32>
    %870 = arith.mulf %869, %868 : vector<2x784xf32>
    %871 = arith.addf %865, %870 : vector<2x784xf32>
    %c119 = arith.constant 119 : index
    %872 = memref.load %arg2[%c119] : memref<144xf32, #tpu.memory_space<smem>>
    %c2_492 = arith.constant 2 : index
    %c0_493 = arith.constant 0 : index
    %c0_494 = arith.constant 0 : index
    %873 = vector.load %arg8[%c2_492, %c0_493, %c0_494] : memref<9x2x784xf32, #tpu.memory_space<vmem>>, vector<1x2x784xf32>
    %874 = vector.shape_cast %873 : vector<1x2x784xf32> to vector<2x784xf32>
    %875 = vector.broadcast %872 : f32 to vector<2x784xf32>
    %876 = arith.mulf %875, %874 : vector<2x784xf32>
    %877 = arith.addf %871, %876 : vector<2x784xf32>
    %c120 = arith.constant 120 : index
    %878 = memref.load %arg2[%c120] : memref<144xf32, #tpu.memory_space<smem>>
    %c3_495 = arith.constant 3 : index
    %c0_496 = arith.constant 0 : index
    %c0_497 = arith.constant 0 : index
    %879 = vector.load %arg8[%c3_495, %c0_496, %c0_497] : memref<9x2x784xf32, #tpu.memory_space<vmem>>, vector<1x2x784xf32>
    %880 = vector.shape_cast %879 : vector<1x2x784xf32> to vector<2x784xf32>
    %881 = vector.broadcast %878 : f32 to vector<2x784xf32>
    %882 = arith.mulf %881, %880 : vector<2x784xf32>
    %883 = arith.addf %877, %882 : vector<2x784xf32>
    %c121 = arith.constant 121 : index
    %884 = memref.load %arg2[%c121] : memref<144xf32, #tpu.memory_space<smem>>
    %c4_498 = arith.constant 4 : index
    %c0_499 = arith.constant 0 : index
    %c0_500 = arith.constant 0 : index
    %885 = vector.load %arg8[%c4_498, %c0_499, %c0_500] : memref<9x2x784xf32, #tpu.memory_space<vmem>>, vector<1x2x784xf32>
    %886 = vector.shape_cast %885 : vector<1x2x784xf32> to vector<2x784xf32>
    %887 = vector.broadcast %884 : f32 to vector<2x784xf32>
    %888 = arith.mulf %887, %886 : vector<2x784xf32>
    %889 = arith.addf %883, %888 : vector<2x784xf32>
    %c122 = arith.constant 122 : index
    %890 = memref.load %arg2[%c122] : memref<144xf32, #tpu.memory_space<smem>>
    %c5_501 = arith.constant 5 : index
    %c0_502 = arith.constant 0 : index
    %c0_503 = arith.constant 0 : index
    %891 = vector.load %arg8[%c5_501, %c0_502, %c0_503] : memref<9x2x784xf32, #tpu.memory_space<vmem>>, vector<1x2x784xf32>
    %892 = vector.shape_cast %891 : vector<1x2x784xf32> to vector<2x784xf32>
    %893 = vector.broadcast %890 : f32 to vector<2x784xf32>
    %894 = arith.mulf %893, %892 : vector<2x784xf32>
    %895 = arith.addf %889, %894 : vector<2x784xf32>
    %c123 = arith.constant 123 : index
    %896 = memref.load %arg2[%c123] : memref<144xf32, #tpu.memory_space<smem>>
    %c6_504 = arith.constant 6 : index
    %c0_505 = arith.constant 0 : index
    %c0_506 = arith.constant 0 : index
    %897 = vector.load %arg8[%c6_504, %c0_505, %c0_506] : memref<9x2x784xf32, #tpu.memory_space<vmem>>, vector<1x2x784xf32>
    %898 = vector.shape_cast %897 : vector<1x2x784xf32> to vector<2x784xf32>
    %899 = vector.broadcast %896 : f32 to vector<2x784xf32>
    %900 = arith.mulf %899, %898 : vector<2x784xf32>
    %901 = arith.addf %895, %900 : vector<2x784xf32>
    %c124 = arith.constant 124 : index
    %902 = memref.load %arg2[%c124] : memref<144xf32, #tpu.memory_space<smem>>
    %c7_507 = arith.constant 7 : index
    %c0_508 = arith.constant 0 : index
    %c0_509 = arith.constant 0 : index
    %903 = vector.load %arg8[%c7_507, %c0_508, %c0_509] : memref<9x2x784xf32, #tpu.memory_space<vmem>>, vector<1x2x784xf32>
    %904 = vector.shape_cast %903 : vector<1x2x784xf32> to vector<2x784xf32>
    %905 = vector.broadcast %902 : f32 to vector<2x784xf32>
    %906 = arith.mulf %905, %904 : vector<2x784xf32>
    %907 = arith.addf %901, %906 : vector<2x784xf32>
    %c125 = arith.constant 125 : index
    %908 = memref.load %arg2[%c125] : memref<144xf32, #tpu.memory_space<smem>>
    %c8_510 = arith.constant 8 : index
    %c0_511 = arith.constant 0 : index
    %c0_512 = arith.constant 0 : index
    %909 = vector.load %arg8[%c8_510, %c0_511, %c0_512] : memref<9x2x784xf32, #tpu.memory_space<vmem>>, vector<1x2x784xf32>
    %910 = vector.shape_cast %909 : vector<1x2x784xf32> to vector<2x784xf32>
    %911 = vector.broadcast %908 : f32 to vector<2x784xf32>
    %912 = arith.mulf %911, %910 : vector<2x784xf32>
    %913 = arith.addf %907, %912 : vector<2x784xf32>
    %c13_513 = arith.constant 13 : index
    %914 = memref.load %arg3[%c13_513] : memref<16xf32, #tpu.memory_space<smem>>
    %915 = vector.broadcast %914 : f32 to vector<2x784xf32>
    %916 = arith.addf %913, %915 : vector<2x784xf32>
    %cst_514 = arith.constant 0.000000e+00 : f32
    %917 = vector.broadcast %cst_514 : f32 to vector<2x784xf32>
    %918 = arith.maximumf %916, %917 : vector<2x784xf32>
    %c13_515 = arith.constant 13 : index
    %c0_516 = arith.constant 0 : index
    %c0_517 = arith.constant 0 : index
    %919 = vector.load %arg5[%c13_515, %c0_516, %c0_517] : memref<16x784x128xf32, #tpu.memory_space<vmem>>, vector<1x784x128xf32>
    %920 = vector.shape_cast %919 : vector<1x784x128xf32> to vector<784x128xf32>
    %cst_518 = arith.constant dense<0.000000e+00> : vector<2x128xf32>
    %921 = tpu.matmul %918, %920, %cst_518 {dimension_numbers = #tpu.dot_dimension_numbers<[1], [0], [0], [1], [0, 0, 1, 1], [], []>} : vector<2x784xf32>, vector<784x128xf32>, vector<2x128xf32> -> vector<2x128xf32>
    %922 = arith.addf %860, %921 : vector<2x128xf32>
    %c126 = arith.constant 126 : index
    %923 = memref.load %arg2[%c126] : memref<144xf32, #tpu.memory_space<smem>>
    %c0_519 = arith.constant 0 : index
    %c0_520 = arith.constant 0 : index
    %c0_521 = arith.constant 0 : index
    %924 = vector.load %arg8[%c0_519, %c0_520, %c0_521] : memref<9x2x784xf32, #tpu.memory_space<vmem>>, vector<1x2x784xf32>
    %925 = vector.shape_cast %924 : vector<1x2x784xf32> to vector<2x784xf32>
    %926 = vector.broadcast %923 : f32 to vector<2x784xf32>
    %927 = arith.mulf %926, %925 : vector<2x784xf32>
    %c127 = arith.constant 127 : index
    %928 = memref.load %arg2[%c127] : memref<144xf32, #tpu.memory_space<smem>>
    %c1_522 = arith.constant 1 : index
    %c0_523 = arith.constant 0 : index
    %c0_524 = arith.constant 0 : index
    %929 = vector.load %arg8[%c1_522, %c0_523, %c0_524] : memref<9x2x784xf32, #tpu.memory_space<vmem>>, vector<1x2x784xf32>
    %930 = vector.shape_cast %929 : vector<1x2x784xf32> to vector<2x784xf32>
    %931 = vector.broadcast %928 : f32 to vector<2x784xf32>
    %932 = arith.mulf %931, %930 : vector<2x784xf32>
    %933 = arith.addf %927, %932 : vector<2x784xf32>
    %c128 = arith.constant 128 : index
    %934 = memref.load %arg2[%c128] : memref<144xf32, #tpu.memory_space<smem>>
    %c2_525 = arith.constant 2 : index
    %c0_526 = arith.constant 0 : index
    %c0_527 = arith.constant 0 : index
    %935 = vector.load %arg8[%c2_525, %c0_526, %c0_527] : memref<9x2x784xf32, #tpu.memory_space<vmem>>, vector<1x2x784xf32>
    %936 = vector.shape_cast %935 : vector<1x2x784xf32> to vector<2x784xf32>
    %937 = vector.broadcast %934 : f32 to vector<2x784xf32>
    %938 = arith.mulf %937, %936 : vector<2x784xf32>
    %939 = arith.addf %933, %938 : vector<2x784xf32>
    %c129 = arith.constant 129 : index
    %940 = memref.load %arg2[%c129] : memref<144xf32, #tpu.memory_space<smem>>
    %c3_528 = arith.constant 3 : index
    %c0_529 = arith.constant 0 : index
    %c0_530 = arith.constant 0 : index
    %941 = vector.load %arg8[%c3_528, %c0_529, %c0_530] : memref<9x2x784xf32, #tpu.memory_space<vmem>>, vector<1x2x784xf32>
    %942 = vector.shape_cast %941 : vector<1x2x784xf32> to vector<2x784xf32>
    %943 = vector.broadcast %940 : f32 to vector<2x784xf32>
    %944 = arith.mulf %943, %942 : vector<2x784xf32>
    %945 = arith.addf %939, %944 : vector<2x784xf32>
    %c130 = arith.constant 130 : index
    %946 = memref.load %arg2[%c130] : memref<144xf32, #tpu.memory_space<smem>>
    %c4_531 = arith.constant 4 : index
    %c0_532 = arith.constant 0 : index
    %c0_533 = arith.constant 0 : index
    %947 = vector.load %arg8[%c4_531, %c0_532, %c0_533] : memref<9x2x784xf32, #tpu.memory_space<vmem>>, vector<1x2x784xf32>
    %948 = vector.shape_cast %947 : vector<1x2x784xf32> to vector<2x784xf32>
    %949 = vector.broadcast %946 : f32 to vector<2x784xf32>
    %950 = arith.mulf %949, %948 : vector<2x784xf32>
    %951 = arith.addf %945, %950 : vector<2x784xf32>
    %c131 = arith.constant 131 : index
    %952 = memref.load %arg2[%c131] : memref<144xf32, #tpu.memory_space<smem>>
    %c5_534 = arith.constant 5 : index
    %c0_535 = arith.constant 0 : index
    %c0_536 = arith.constant 0 : index
    %953 = vector.load %arg8[%c5_534, %c0_535, %c0_536] : memref<9x2x784xf32, #tpu.memory_space<vmem>>, vector<1x2x784xf32>
    %954 = vector.shape_cast %953 : vector<1x2x784xf32> to vector<2x784xf32>
    %955 = vector.broadcast %952 : f32 to vector<2x784xf32>
    %956 = arith.mulf %955, %954 : vector<2x784xf32>
    %957 = arith.addf %951, %956 : vector<2x784xf32>
    %c132 = arith.constant 132 : index
    %958 = memref.load %arg2[%c132] : memref<144xf32, #tpu.memory_space<smem>>
    %c6_537 = arith.constant 6 : index
    %c0_538 = arith.constant 0 : index
    %c0_539 = arith.constant 0 : index
    %959 = vector.load %arg8[%c6_537, %c0_538, %c0_539] : memref<9x2x784xf32, #tpu.memory_space<vmem>>, vector<1x2x784xf32>
    %960 = vector.shape_cast %959 : vector<1x2x784xf32> to vector<2x784xf32>
    %961 = vector.broadcast %958 : f32 to vector<2x784xf32>
    %962 = arith.mulf %961, %960 : vector<2x784xf32>
    %963 = arith.addf %957, %962 : vector<2x784xf32>
    %c133 = arith.constant 133 : index
    %964 = memref.load %arg2[%c133] : memref<144xf32, #tpu.memory_space<smem>>
    %c7_540 = arith.constant 7 : index
    %c0_541 = arith.constant 0 : index
    %c0_542 = arith.constant 0 : index
    %965 = vector.load %arg8[%c7_540, %c0_541, %c0_542] : memref<9x2x784xf32, #tpu.memory_space<vmem>>, vector<1x2x784xf32>
    %966 = vector.shape_cast %965 : vector<1x2x784xf32> to vector<2x784xf32>
    %967 = vector.broadcast %964 : f32 to vector<2x784xf32>
    %968 = arith.mulf %967, %966 : vector<2x784xf32>
    %969 = arith.addf %963, %968 : vector<2x784xf32>
    %c134 = arith.constant 134 : index
    %970 = memref.load %arg2[%c134] : memref<144xf32, #tpu.memory_space<smem>>
    %c8_543 = arith.constant 8 : index
    %c0_544 = arith.constant 0 : index
    %c0_545 = arith.constant 0 : index
    %971 = vector.load %arg8[%c8_543, %c0_544, %c0_545] : memref<9x2x784xf32, #tpu.memory_space<vmem>>, vector<1x2x784xf32>
    %972 = vector.shape_cast %971 : vector<1x2x784xf32> to vector<2x784xf32>
    %973 = vector.broadcast %970 : f32 to vector<2x784xf32>
    %974 = arith.mulf %973, %972 : vector<2x784xf32>
    %975 = arith.addf %969, %974 : vector<2x784xf32>
    %c14_546 = arith.constant 14 : index
    %976 = memref.load %arg3[%c14_546] : memref<16xf32, #tpu.memory_space<smem>>
    %977 = vector.broadcast %976 : f32 to vector<2x784xf32>
    %978 = arith.addf %975, %977 : vector<2x784xf32>
    %cst_547 = arith.constant 0.000000e+00 : f32
    %979 = vector.broadcast %cst_547 : f32 to vector<2x784xf32>
    %980 = arith.maximumf %978, %979 : vector<2x784xf32>
    %c14_548 = arith.constant 14 : index
    %c0_549 = arith.constant 0 : index
    %c0_550 = arith.constant 0 : index
    %981 = vector.load %arg5[%c14_548, %c0_549, %c0_550] : memref<16x784x128xf32, #tpu.memory_space<vmem>>, vector<1x784x128xf32>
    %982 = vector.shape_cast %981 : vector<1x784x128xf32> to vector<784x128xf32>
    %cst_551 = arith.constant dense<0.000000e+00> : vector<2x128xf32>
    %983 = tpu.matmul %980, %982, %cst_551 {dimension_numbers = #tpu.dot_dimension_numbers<[1], [0], [0], [1], [0, 0, 1, 1], [], []>} : vector<2x784xf32>, vector<784x128xf32>, vector<2x128xf32> -> vector<2x128xf32>
    %984 = arith.addf %922, %983 : vector<2x128xf32>
    %c135 = arith.constant 135 : index
    %985 = memref.load %arg2[%c135] : memref<144xf32, #tpu.memory_space<smem>>
    %c0_552 = arith.constant 0 : index
    %c0_553 = arith.constant 0 : index
    %c0_554 = arith.constant 0 : index
    %986 = vector.load %arg8[%c0_552, %c0_553, %c0_554] : memref<9x2x784xf32, #tpu.memory_space<vmem>>, vector<1x2x784xf32>
    %987 = vector.shape_cast %986 : vector<1x2x784xf32> to vector<2x784xf32>
    %988 = vector.broadcast %985 : f32 to vector<2x784xf32>
    %989 = arith.mulf %988, %987 : vector<2x784xf32>
    %c136 = arith.constant 136 : index
    %990 = memref.load %arg2[%c136] : memref<144xf32, #tpu.memory_space<smem>>
    %c1_555 = arith.constant 1 : index
    %c0_556 = arith.constant 0 : index
    %c0_557 = arith.constant 0 : index
    %991 = vector.load %arg8[%c1_555, %c0_556, %c0_557] : memref<9x2x784xf32, #tpu.memory_space<vmem>>, vector<1x2x784xf32>
    %992 = vector.shape_cast %991 : vector<1x2x784xf32> to vector<2x784xf32>
    %993 = vector.broadcast %990 : f32 to vector<2x784xf32>
    %994 = arith.mulf %993, %992 : vector<2x784xf32>
    %995 = arith.addf %989, %994 : vector<2x784xf32>
    %c137 = arith.constant 137 : index
    %996 = memref.load %arg2[%c137] : memref<144xf32, #tpu.memory_space<smem>>
    %c2_558 = arith.constant 2 : index
    %c0_559 = arith.constant 0 : index
    %c0_560 = arith.constant 0 : index
    %997 = vector.load %arg8[%c2_558, %c0_559, %c0_560] : memref<9x2x784xf32, #tpu.memory_space<vmem>>, vector<1x2x784xf32>
    %998 = vector.shape_cast %997 : vector<1x2x784xf32> to vector<2x784xf32>
    %999 = vector.broadcast %996 : f32 to vector<2x784xf32>
    %1000 = arith.mulf %999, %998 : vector<2x784xf32>
    %1001 = arith.addf %995, %1000 : vector<2x784xf32>
    %c138 = arith.constant 138 : index
    %1002 = memref.load %arg2[%c138] : memref<144xf32, #tpu.memory_space<smem>>
    %c3_561 = arith.constant 3 : index
    %c0_562 = arith.constant 0 : index
    %c0_563 = arith.constant 0 : index
    %1003 = vector.load %arg8[%c3_561, %c0_562, %c0_563] : memref<9x2x784xf32, #tpu.memory_space<vmem>>, vector<1x2x784xf32>
    %1004 = vector.shape_cast %1003 : vector<1x2x784xf32> to vector<2x784xf32>
    %1005 = vector.broadcast %1002 : f32 to vector<2x784xf32>
    %1006 = arith.mulf %1005, %1004 : vector<2x784xf32>
    %1007 = arith.addf %1001, %1006 : vector<2x784xf32>
    %c139 = arith.constant 139 : index
    %1008 = memref.load %arg2[%c139] : memref<144xf32, #tpu.memory_space<smem>>
    %c4_564 = arith.constant 4 : index
    %c0_565 = arith.constant 0 : index
    %c0_566 = arith.constant 0 : index
    %1009 = vector.load %arg8[%c4_564, %c0_565, %c0_566] : memref<9x2x784xf32, #tpu.memory_space<vmem>>, vector<1x2x784xf32>
    %1010 = vector.shape_cast %1009 : vector<1x2x784xf32> to vector<2x784xf32>
    %1011 = vector.broadcast %1008 : f32 to vector<2x784xf32>
    %1012 = arith.mulf %1011, %1010 : vector<2x784xf32>
    %1013 = arith.addf %1007, %1012 : vector<2x784xf32>
    %c140 = arith.constant 140 : index
    %1014 = memref.load %arg2[%c140] : memref<144xf32, #tpu.memory_space<smem>>
    %c5_567 = arith.constant 5 : index
    %c0_568 = arith.constant 0 : index
    %c0_569 = arith.constant 0 : index
    %1015 = vector.load %arg8[%c5_567, %c0_568, %c0_569] : memref<9x2x784xf32, #tpu.memory_space<vmem>>, vector<1x2x784xf32>
    %1016 = vector.shape_cast %1015 : vector<1x2x784xf32> to vector<2x784xf32>
    %1017 = vector.broadcast %1014 : f32 to vector<2x784xf32>
    %1018 = arith.mulf %1017, %1016 : vector<2x784xf32>
    %1019 = arith.addf %1013, %1018 : vector<2x784xf32>
    %c141 = arith.constant 141 : index
    %1020 = memref.load %arg2[%c141] : memref<144xf32, #tpu.memory_space<smem>>
    %c6_570 = arith.constant 6 : index
    %c0_571 = arith.constant 0 : index
    %c0_572 = arith.constant 0 : index
    %1021 = vector.load %arg8[%c6_570, %c0_571, %c0_572] : memref<9x2x784xf32, #tpu.memory_space<vmem>>, vector<1x2x784xf32>
    %1022 = vector.shape_cast %1021 : vector<1x2x784xf32> to vector<2x784xf32>
    %1023 = vector.broadcast %1020 : f32 to vector<2x784xf32>
    %1024 = arith.mulf %1023, %1022 : vector<2x784xf32>
    %1025 = arith.addf %1019, %1024 : vector<2x784xf32>
    %c142 = arith.constant 142 : index
    %1026 = memref.load %arg2[%c142] : memref<144xf32, #tpu.memory_space<smem>>
    %c7_573 = arith.constant 7 : index
    %c0_574 = arith.constant 0 : index
    %c0_575 = arith.constant 0 : index
    %1027 = vector.load %arg8[%c7_573, %c0_574, %c0_575] : memref<9x2x784xf32, #tpu.memory_space<vmem>>, vector<1x2x784xf32>
    %1028 = vector.shape_cast %1027 : vector<1x2x784xf32> to vector<2x784xf32>
    %1029 = vector.broadcast %1026 : f32 to vector<2x784xf32>
    %1030 = arith.mulf %1029, %1028 : vector<2x784xf32>
    %1031 = arith.addf %1025, %1030 : vector<2x784xf32>
    %c143 = arith.constant 143 : index
    %1032 = memref.load %arg2[%c143] : memref<144xf32, #tpu.memory_space<smem>>
    %c8_576 = arith.constant 8 : index
    %c0_577 = arith.constant 0 : index
    %c0_578 = arith.constant 0 : index
    %1033 = vector.load %arg8[%c8_576, %c0_577, %c0_578] : memref<9x2x784xf32, #tpu.memory_space<vmem>>, vector<1x2x784xf32>
    %1034 = vector.shape_cast %1033 : vector<1x2x784xf32> to vector<2x784xf32>
    %1035 = vector.broadcast %1032 : f32 to vector<2x784xf32>
    %1036 = arith.mulf %1035, %1034 : vector<2x784xf32>
    %1037 = arith.addf %1031, %1036 : vector<2x784xf32>
    %c15_579 = arith.constant 15 : index
    %1038 = memref.load %arg3[%c15_579] : memref<16xf32, #tpu.memory_space<smem>>
    %1039 = vector.broadcast %1038 : f32 to vector<2x784xf32>
    %1040 = arith.addf %1037, %1039 : vector<2x784xf32>
    %cst_580 = arith.constant 0.000000e+00 : f32
    %1041 = vector.broadcast %cst_580 : f32 to vector<2x784xf32>
    %1042 = arith.maximumf %1040, %1041 : vector<2x784xf32>
    %c15_581 = arith.constant 15 : index
    %c0_582 = arith.constant 0 : index
    %c0_583 = arith.constant 0 : index
    %1043 = vector.load %arg5[%c15_581, %c0_582, %c0_583] : memref<16x784x128xf32, #tpu.memory_space<vmem>>, vector<1x784x128xf32>
    %1044 = vector.shape_cast %1043 : vector<1x784x128xf32> to vector<784x128xf32>
    %cst_584 = arith.constant dense<0.000000e+00> : vector<2x128xf32>
    %1045 = tpu.matmul %1042, %1044, %cst_584 {dimension_numbers = #tpu.dot_dimension_numbers<[1], [0], [0], [1], [0, 0, 1, 1], [], []>} : vector<2x784xf32>, vector<784x128xf32>, vector<2x128xf32> -> vector<2x128xf32>
    %1046 = arith.addf %984, %1045 : vector<2x128xf32>
    %c0_585 = arith.constant 0 : index
    %c0_586 = arith.constant 0 : index
    %1047 = vector.load %arg6[%c0_585, %c0_586] : memref<1x128xf32, #tpu.memory_space<vmem>>, vector<1x128xf32>
    %1048 = vector.broadcast %1047 : vector<1x128xf32> to vector<2x128xf32>
    %1049 = arith.addf %1046, %1048 : vector<2x128xf32>
    %c0_587 = arith.constant 0 : index
    %c0_588 = arith.constant 0 : index
    %1050 = vector.load %arg7[%c0_587, %c0_588] : memref<2x128xf32, #tpu.memory_space<vmem>>, vector<2x128xf32>
    tpu.vector_store %arg7[%c0_587, %c0_588], %1049 {strides = array<i32>} : memref<2x128xf32, #tpu.memory_space<vmem>>, vector<2x128xf32>,
    return
  }
  func.func @transform_0(%arg0: i32) -> (i32, i32) {
    %c0_i32 = arith.constant 0 : i32
    %c0_i32_0 = arith.constant 0 : i32
    return %arg0, %c0_i32 : i32, i32
  }
  func.func @transform_1(%arg0: i32) -> i32 {
    %c0_i32 = arith.constant 0 : i32
    %c0_i32_0 = arith.constant 0 : i32
    return %c0_i32 : i32
  }
  func.func @transform_2(%arg0: i32) -> i32 {
    %c0_i32 = arith.constant 0 : i32
    %c0_i32_0 = arith.constant 0 : i32
    return %c0_i32 : i32
  }
  func.func @transform_3(%arg0: i32) -> (i32, i32) {
    %c0_i32 = arith.constant 0 : i32
    %c0_i32_0 = arith.constant 0 : i32
    %c0_i32_1 = arith.constant 0 : i32
    return %c0_i32, %c0_i32_0 : i32, i32
  }
  func.func @transform_4(%arg0: i32) -> (i32, i32, i32) {
    %c0_i32 = arith.constant 0 : i32
    %c0_i32_0 = arith.constant 0 : i32
    %c0_i32_1 = arith.constant 0 : i32
    %c0_i32_2 = arith.constant 0 : i32
    return %c0_i32, %c0_i32_0, %c0_i32_1 : i32, i32, i32
  }
  func.func @transform_5(%arg0: i32) -> (i32, i32) {
    %c0_i32 = arith.constant 0 : i32
    %c0_i32_0 = arith.constant 0 : i32
    %c0_i32_1 = arith.constant 0 : i32
    return %c0_i32, %c0_i32_0 : i32, i32
  }
  func.func @transform_6(%arg0: i32) -> (i32, i32) {
    %c0_i32 = arith.constant 0 : i32
    %c0_i32_0 = arith.constant 0 : i32
    return %arg0, %c0_i32 : i32, i32
  }
}

</mosaic_0001>

<llo_original>
// kernel: simple_net.1
$region0: #{simple_net.1}
  #allocation0 [shape = 'u32[]', space=smem, size = 0x4, offset = 0x4, fixed_abs, tag = 'smem constant byte address 0x4 - core index']
  #allocation1 [shape = 'u32[144,128]{1,0:T(1,128)}', space=vmem, size = 0x12000, scoped, tag = 'internal scratch']
  #allocation2 [shape = 'f32[9,2,784]{2,1,0:T(2,128)}', space=vmem, size = 0xfc00, scoped, tag = 'scratch operand']
  %s0 = inlined_call_operand.vmem [shape: f32[2,842], index: 0, kind: input, shape index: {}]
  %s1 = inlined_call_operand.vmem [shape: f32[144], index: 1, kind: input, shape index: {}]
  %s2 = inlined_call_operand.vmem [shape: f32[16], index: 2, kind: input, shape index: {}]
  %s3 = inlined_call_operand.vmem [shape: f32[2,784], index: 3, kind: input, shape index: {}]
  %s4 = inlined_call_operand.vmem [shape: f32[16,784,128], index: 4, kind: input, shape index: {}]
  %s5 = inlined_call_operand.vmem [shape: f32[1,128], index: 5, kind: input, shape index: {}]
  %s6 = inlined_call_operand.hbm [shape: f32[2,128], index: 6, kind: output, shape index: {}]
  %s7 = sld [smem:[#allocation0]]
  $region42: #{simple_net.1} parent=0
    _
  %s9 = ssub.s32 1, %s7
  %s10 = scalar_select 0, %s9, %s7
  $region1: #{simple_net.1} parent=0
    #allocation3 [shape = 'u8[1024]{0}', space=smem, size = 0x400, scoped, tag = 'input window, operand 1, single buffered']
    #allocation4 [shape = 's32[1]{0}', space=sflag, size = 0x4, scoped, tag = 'scoped memory for simple_net.1']
    #allocation5 [shape = 's32[1]{0}', space=sflag, size = 0x4, scoped, tag = 'scoped memory for simple_net.1']
    #allocation6 [shape = 'u8[512]{0}', space=smem, size = 0x200, scoped, tag = 'input window, operand 2, single buffered']
    #allocation7 [shape = 's32[1]{0}', space=sflag, size = 0x4, scoped, tag = 'scoped memory for simple_net.1']
    #allocation8 [shape = 'u8[1024]{0}', space=vmem, size = 0x400, scoped, tag = 'output window, operand 0, single buffered']
    %11 = vsyncpa [#allocation5], 0
    %12 = vsyncpa [#allocation7], 0
    %13 = vsyncpa [#allocation4], 0
    // Predicated region
    $region2: #{simple_net.1} parent=1 // pred_check
      _
    $region3: #{simple_net.1} parent=1 // pred_check_branch
      %15 = sbr.rel (0) target = $region5
    $region4: #{simple_net.1} parent=1 // pred_region
      _
    $region5: #{simple_net.1} parent=1 // pred_fallthru
      _
    // Predicated region
    $region6: #{simple_net.1} parent=1 // pred_check
      _
    $region7: #{simple_net.1} parent=1 // pred_check_branch
      %17 = sbr.rel (0) target = $region9
    $region8: #{simple_net.1} parent=1 // pred_region
      %s19 = ssub.s32 32, 32
      %20 = vsyncadd [#allocation5], %s19
      %s22 = sshll.u32 %s1, 4
      %s23 = int_to_ptr.vmem [resolvable:$true] %s22
      %25 = dma.vmem_to_smem %s23, 32, [#allocation3], [#allocation5]
    $region9: #{simple_net.1} parent=1 // pred_fallthru
      _
    // Predicated region
    $region10: #{simple_net.1} parent=1 // pred_check
      _
    $region11: #{simple_net.1} parent=1 // pred_check_branch
      %27 = sbr.rel (0) target = $region13
    $region12: #{simple_net.1} parent=1 // pred_region
      %s29 = ssub.s32 16, 16
      %30 = vsyncadd [#allocation7], %s29
      %s32 = sshll.u32 %s2, 4
      %s33 = int_to_ptr.vmem [resolvable:$true] %s32
      %35 = dma.vmem_to_smem %s33, 16, [#allocation6], [#allocation7]
    $region13: #{simple_net.1} parent=1 // pred_fallthru
      _
    // Predicated region
    $region14: #{simple_net.1} parent=1 // pred_check
      _
    $region15: #{simple_net.1} parent=1 // pred_check_branch
      %37 = sbr.rel (0) target = $region17
    $region16: #{simple_net.1} parent=1 // pred_region
      _
    $region17: #{simple_net.1} parent=1 // pred_fallthru
      _
    // Predicated region
    $region18: #{simple_net.1} parent=1 // pred_check
      _
    $region19: #{simple_net.1} parent=1 // pred_check_branch
      %39 = sbr.rel (0) target = $region21
    $region20: #{simple_net.1} parent=1 // pred_region
      _
    $region21: #{simple_net.1} parent=1 // pred_fallthru
      _
    // Predicated region
    $region22: #{simple_net.1} parent=1 // pred_check
      _
    $region23: #{simple_net.1} parent=1 // pred_check_branch
      %41 = sbr.rel (0) target = $region25
    $region24: #{simple_net.1} parent=1 // pred_region
      _
    $region25: #{simple_net.1} parent=1 // pred_fallthru
      _
    // Predicated region
    $region26: #{simple_net.1} parent=1 // pred_check
      _
    $region27: #{simple_net.1} parent=1 // pred_check_branch
      %43 = sbr.rel (0) target = $region29
    $region28: #{simple_net.1} parent=1 // pred_region
      %44 = dma.done [#allocation5], 32
    $region29: #{simple_net.1} parent=1 // pred_fallthru
      _
    // Predicated region
    $region30: #{simple_net.1} parent=1 // pred_check
      _
    $region31: #{simple_net.1} parent=1 // pred_check_branch
      %46 = sbr.rel (0) target = $region33
    $region32: #{simple_net.1} parent=1 // pred_region
      %47 = dma.done [#allocation7], 16
    $region33: #{simple_net.1} parent=1 // pred_fallthru
      _
    %48 = sfence
    %v49 = vld [vmem:[%s0] sm:$0xff]
    %v50 = vld [vmem:[%s0 + $0x8] sm:$0x3f]
    %v51 = vld [vmem:[%s3] ss:$2 sm:$0x7f]
    %v53 = vlaneseq
    %v54 = vshrl.u32 %v53, 7
    %v55 = vsub.s32 0, %v54
    %v56 = vrot.slane %v51, %v55
    %v57 = vlaneseq
    %v58 = vshrl.u32 %v57, 7
    %v59 = vsub.s32 1, %v58
    %v60 = vrot.slane %v51, %v59
    %v61 = vlaneseq
    %v62 = vshrl.u32 %v61, 7
    %v63 = vsub.s32 2, %v62
    %v64 = vrot.slane %v51, %v63
    %v65 = vlaneseq
    %v66 = vshrl.u32 %v65, 7
    %v67 = vsub.s32 3, %v66
    %v68 = vrot.slane %v51, %v67
    %v69 = vlaneseq
    %v70 = vshrl.u32 %v69, 7
    %v71 = vsub.s32 4, %v70
    %v72 = vrot.slane %v51, %v71
    %v73 = vlaneseq
    %v74 = vshrl.u32 %v73, 7
    %v75 = vsub.s32 5, %v74
    %v76 = vrot.slane %v51, %v75
    %v77 = vlaneseq
    %v78 = vshrl.u32 %v77, 7
    %v79 = vsub.s32 6, %v78
    %v80 = vrot.slane %v51, %v79
    %v81 = vcombine.low %v56, %v60
    %v82 = vcombine.low %v64, %v68
    %v84 = vunpack.c.l.s4 1983009808
    %v85 = vunpack.c.0.s8 %v84
    %v86 = vlaneseq
    %v87 = vshrl.u32 %v86, 7
    %v88 = vsub.s32 %v85, %v87
    %v89 = vrot.slane %v81, %v88
    %v91 = vunpack.c.l.s4 1983009808
    %v92 = vunpack.c.0.s8 %v91
    %v93 = vlaneseq
    %v94 = vshrl.u32 %v93, 7
    %v95 = vsub.s32 %v92, %v94
    %v96 = vrot.slane %v82, %v95
    %v97 = vcombine.low %v89, %v96
    %v98 = vcombine.low %v72, %v76
    %v100 = vunpack.c.l.s4 1983009808
    %v101 = vunpack.c.0.s8 %v100
    %v102 = vlaneseq
    %v103 = vshrl.u32 %v102, 7
    %v104 = vsub.s32 %v101, %v103
    %v105 = vrot.slane %v98, %v104
    %v107 = vunpack.c.l.s4 1983009808
    %v108 = vunpack.c.0.s8 %v107
    %v109 = vlaneseq
    %v110 = vshrl.u32 %v109, 7
    %v111 = vsub.s32 %v108, %v110
    %v112 = vrot.slane %v80, %v111
    %v113 = vcombine.low %v105, %v112
    %v116 = vmul.f32 %v49, %v97
    %v117 = vmul.f32 %v50, %v113
    %118 = vst [vmem:[#allocation2] sm:$0xff] %v116
    %vm119 = vcmask 1041408
    %vm120 = vcmask 1043458
    %vm121 = vmor %vm120, %vm119
    %vm122 = vcmask 128004
    %vm123 = vmor %vm122, %vm121
    %124 = vst.msk [vmem:[#allocation2 + $0x8] sm:$0x3f] %vm123, %v117
    %v125 = vld [vmem:[%s0] sm:$0xff]
    %v126 = vld [vmem:[%s0 + $0x8] sm:$0x3f]
    %129 = vrot.lane.b32.xlu0 %v125, 127
    %v130 = vpop.permute.xlu0 %129
    %131 = vrot.lane.b32.xlu0 %v126, 127
    %v132 = vpop.permute.xlu0 %131
    %v133 = vrot.slane %v130, 2
    %v134 = vrot.slane %v132, 2
    %vm135 = vcmask 1045504
    %v136 = vsel %vm135, %v133, %v134
    %vm137 = vcmask 1039360
    %v138 = vsel %vm137, %v130, %v136
    %v139 = vsel %vm137, %v132, %v134
    %s142 = scalar_lea.vmem [#allocation2], 14
    %143 = vst [vmem:[%s142] sm:$0xff] %v138
    %144 = vst.msk [vmem:[%s142 + $0x8] sm:$0x3f] %vm123, %v139
    %v145 = vld [vmem:[%s0] sm:$0xff]
    %v146 = vld [vmem:[%s0 + $0x8] sm:$0x3f]
    %s147 = scalar_lea.vmem %s3, 1
    %v148 = vld [vmem:[%s147] ss:$2 sm:$0x7f]
    %v150 = vlaneseq
    %v151 = vshrl.u32 %v150, 7
    %v152 = vsub.s32 0, %v151
    %v153 = vrot.slane %v148, %v152
    %v154 = vlaneseq
    %v155 = vshrl.u32 %v154, 7
    %v156 = vsub.s32 1, %v155
    %v157 = vrot.slane %v148, %v156
    %v158 = vlaneseq
    %v159 = vshrl.u32 %v158, 7
    %v160 = vsub.s32 2, %v159
    %v161 = vrot.slane %v148, %v160
    %v162 = vlaneseq
    %v163 = vshrl.u32 %v162, 7
    %v164 = vsub.s32 3, %v163
    %v165 = vrot.slane %v148, %v164
    %v166 = vlaneseq
    %v167 = vshrl.u32 %v166, 7
    %v168 = vsub.s32 4, %v167
    %v169 = vrot.slane %v148, %v168
    %v170 = vlaneseq
    %v171 = vshrl.u32 %v170, 7
    %v172 = vsub.s32 5, %v171
    %v173 = vrot.slane %v148, %v172
    %v174 = vlaneseq
    %v175 = vshrl.u32 %v174, 7
    %v176 = vsub.s32 6, %v175
    %v177 = vrot.slane %v148, %v176
    %v178 = vcombine.low %v153, %v157
    %v179 = vcombine.low %v161, %v165
    %v181 = vunpack.c.l.s4 1983009808
    %v182 = vunpack.c.0.s8 %v181
    %v183 = vlaneseq
    %v184 = vshrl.u32 %v183, 7
    %v185 = vsub.s32 %v182, %v184
    %v186 = vrot.slane %v178, %v185
    %v188 = vunpack.c.l.s4 1983009808
    %v189 = vunpack.c.0.s8 %v188
    %v190 = vlaneseq
    %v191 = vshrl.u32 %v190, 7
    %v192 = vsub.s32 %v189, %v191
    %v193 = vrot.slane %v179, %v192
    %v194 = vcombine.low %v186, %v193
    %v195 = vcombine.low %v169, %v173
    %v197 = vunpack.c.l.s4 1983009808
    %v198 = vunpack.c.0.s8 %v197
    %v199 = vlaneseq
    %v200 = vshrl.u32 %v199, 7
    %v201 = vsub.s32 %v198, %v200
    %v202 = vrot.slane %v195, %v201
    %v204 = vunpack.c.l.s4 1983009808
    %v205 = vunpack.c.0.s8 %v204
    %v206 = vlaneseq
    %v207 = vshrl.u32 %v206, 7
    %v208 = vsub.s32 %v205, %v207
    %v209 = vrot.slane %v177, %v208
    %v210 = vcombine.low %v202, %v209
    %211 = vrot.lane.b32.xlu0 %v194, 2
    %v212 = vpop.permute.xlu0 %211
    %213 = vrot.lane.b32.xlu0 %v210, 2
    %v214 = vpop.permute.xlu0 %213
    %v215 = vrot.slane %v212, 6
    %v216 = vrot.slane %v214, 6
    %vm217 = vcmask 15360
    %v218 = vsel %vm217, %v215, %v212
    %v219 = vsel %vm119, %v215, %v216
    %v220 = vsel %vm217, %v219, %v214
    %v223 = vmul.f32 %v145, %v218
    %v224 = vmul.f32 %v146, %v220
    %227 = vrot.lane.b32.xlu0 %v223, 126
    %v228 = vpop.permute.xlu0 %227
    %229 = vrot.lane.b32.xlu0 %v224, 126
    %v230 = vpop.permute.xlu0 %229
    %v231 = vrot.slane %v228, 2
    %v232 = vrot.slane %v230, 2
    %v233 = vsel %vm135, %v231, %v232
    %vm234 = vcmask 1031168
    %v235 = vsel %vm234, %v228, %v233
    %v236 = vsel %vm234, %v230, %v232
    %s239 = scalar_lea.vmem [#allocation2], 28
    %240 = vst [vmem:[%s239] sm:$0xff] %v235
    %241 = vst.msk [vmem:[%s239 + $0x8] sm:$0x3f] %vm123, %v236
    %v242 = vld [vmem:[%s0] sm:$0xff]
    %v243 = vld [vmem:[%s0 + $0x8] sm:$0x3f]
    %v244 = vld [vmem:[%s3] ss:$2 sm:$0x7f]
    %v246 = vlaneseq
    %v247 = vshrl.u32 %v246, 7
    %v248 = vsub.s32 0, %v247
    %v249 = vrot.slane %v244, %v248
    %v250 = vlaneseq
    %v251 = vshrl.u32 %v250, 7
    %v252 = vsub.s32 1, %v251
    %v253 = vrot.slane %v244, %v252
    %v254 = vlaneseq
    %v255 = vshrl.u32 %v254, 7
    %v256 = vsub.s32 2, %v255
    %v257 = vrot.slane %v244, %v256
    %v258 = vlaneseq
    %v259 = vshrl.u32 %v258, 7
    %v260 = vsub.s32 3, %v259
    %v261 = vrot.slane %v244, %v260
    %v262 = vlaneseq
    %v263 = vshrl.u32 %v262, 7
    %v264 = vsub.s32 4, %v263
    %v265 = vrot.slane %v244, %v264
    %v266 = vlaneseq
    %v267 = vshrl.u32 %v266, 7
    %v268 = vsub.s32 5, %v267
    %v269 = vrot.slane %v244, %v268
    %v270 = vlaneseq
    %v271 = vshrl.u32 %v270, 7
    %v272 = vsub.s32 6, %v271
    %v273 = vrot.slane %v244, %v272
    %v274 = vcombine.low %v249, %v253
    %v275 = vcombine.low %v257, %v261
    %v277 = vunpack.c.l.s4 1983009808
    %v278 = vunpack.c.0.s8 %v277
    %v279 = vlaneseq
    %v280 = vshrl.u32 %v279, 7
    %v281 = vsub.s32 %v278, %v280
    %v282 = vrot.slane %v274, %v281
    %v284 = vunpack.c.l.s4 1983009808
    %v285 = vunpack.c.0.s8 %v284
    %v286 = vlaneseq
    %v287 = vshrl.u32 %v286, 7
    %v288 = vsub.s32 %v285, %v287
    %v289 = vrot.slane %v275, %v288
    %v290 = vcombine.low %v282, %v289
    %v291 = vcombine.low %v265, %v269
    %v293 = vunpack.c.l.s4 1983009808
    %v294 = vunpack.c.0.s8 %v293
    %v295 = vlaneseq
    %v296 = vshrl.u32 %v295, 7
    %v297 = vsub.s32 %v294, %v296
    %v298 = vrot.slane %v291, %v297
    %v300 = vunpack.c.l.s4 1983009808
    %v301 = vunpack.c.0.s8 %v300
    %v302 = vlaneseq
    %v303 = vshrl.u32 %v302, 7
    %v304 = vsub.s32 %v301, %v303
    %v305 = vrot.slane %v273, %v304
    %v306 = vcombine.low %v298, %v305
    %307 = vrot.lane.b32.xlu0 %v290, 28
    %v308 = vpop.permute.xlu0 %307
    %309 = vrot.lane.b32.xlu0 %v306, 28
    %v310 = vpop.permute.xlu0 %309
    %v311 = vrot.slane %v308, 6
    %v312 = vrot.slane %v310, 6
    %vm313 = vcmask 228352
    %v314 = vsel %vm313, %v311, %v308
    %v315 = vsel %vm119, %v311, %v312
    %v316 = vsel %vm313, %v315, %v310
    %v319 = vmul.f32 %v242, %v314
    %v320 = vmul.f32 %v243, %v316
    %323 = vrot.lane.b32.xlu0 %v319, 100
    %v324 = vpop.permute.xlu0 %323
    %325 = vrot.lane.b32.xlu0 %v320, 100
    %v326 = vpop.permute.xlu0 %325
    %v327 = vrot.slane %v324, 2
    %v328 = vrot.slane %v326, 2
    %v329 = vsel %vm135, %v327, %v328
    %vm330 = vcmask 818176
    %v331 = vsel %vm330, %v324, %v329
    %v332 = vsel %vm330, %v326, %v328
    %s335 = scalar_lea.vmem [#allocation2], 42
    %336 = vst [vmem:[%s335] sm:$0xff] %v331
    %337 = vst.msk [vmem:[%s335 + $0x8] sm:$0x3f] %vm123, %v332
    %v338 = vld [vmem:[%s0] sm:$0xff]
    %v339 = vld [vmem:[%s0 + $0x8] sm:$0x3f]
    %342 = vrot.lane.b32.xlu0 %v338, 99
    %v343 = vpop.permute.xlu0 %342
    %344 = vrot.lane.b32.xlu0 %v339, 99
    %v345 = vpop.permute.xlu0 %344
    %v346 = vrot.slane %v343, 2
    %v347 = vrot.slane %v345, 2
    %v348 = vsel %vm135, %v346, %v347
    %vm349 = vcmask 809984
    %v350 = vsel %vm349, %v343, %v348
    %v351 = vsel %vm349, %v345, %v347
    %s354 = scalar_lea.vmem [#allocation2], 56
    %355 = vst [vmem:[%s354] sm:$0xff] %v350
    %356 = vst.msk [vmem:[%s354 + $0x8] sm:$0x3f] %vm123, %v351
    %v357 = vld [vmem:[%s0] sm:$0xff]
    %v358 = vld [vmem:[%s0 + $0x8] sm:$0x3f]
    %v359 = vld [vmem:[%s147] ss:$2 sm:$0x7f]
    %v361 = vlaneseq
    %v362 = vshrl.u32 %v361, 7
    %v363 = vsub.s32 0, %v362
    %v364 = vrot.slane %v359, %v363
    %v365 = vlaneseq
    %v366 = vshrl.u32 %v365, 7
    %v367 = vsub.s32 1, %v366
    %v368 = vrot.slane %v359, %v367
    %v369 = vlaneseq
    %v370 = vshrl.u32 %v369, 7
    %v371 = vsub.s32 2, %v370
    %v372 = vrot.slane %v359, %v371
    %v373 = vlaneseq
    %v374 = vshrl.u32 %v373, 7
    %v375 = vsub.s32 3, %v374
    %v376 = vrot.slane %v359, %v375
    %v377 = vlaneseq
    %v378 = vshrl.u32 %v377, 7
    %v379 = vsub.s32 4, %v378
    %v380 = vrot.slane %v359, %v379
    %v381 = vlaneseq
    %v382 = vshrl.u32 %v381, 7
    %v383 = vsub.s32 5, %v382
    %v384 = vrot.slane %v359, %v383
    %v385 = vlaneseq
    %v386 = vshrl.u32 %v385, 7
    %v387 = vsub.s32 6, %v386
    %v388 = vrot.slane %v359, %v387
    %v389 = vcombine.low %v364, %v368
    %v390 = vcombine.low %v372, %v376
    %v392 = vunpack.c.l.s4 1983009808
    %v393 = vunpack.c.0.s8 %v392
    %v394 = vlaneseq
    %v395 = vshrl.u32 %v394, 7
    %v396 = vsub.s32 %v393, %v395
    %v397 = vrot.slane %v389, %v396
    %v399 = vunpack.c.l.s4 1983009808
    %v400 = vunpack.c.0.s8 %v399
    %v401 = vlaneseq
    %v402 = vshrl.u32 %v401, 7
    %v403 = vsub.s32 %v400, %v402
    %v404 = vrot.slane %v390, %v403
    %v405 = vcombine.low %v397, %v404
    %v406 = vcombine.low %v380, %v384
    %v408 = vunpack.c.l.s4 1983009808
    %v409 = vunpack.c.0.s8 %v408
    %v410 = vlaneseq
    %v411 = vshrl.u32 %v410, 7
    %v412 = vsub.s32 %v409, %v411
    %v413 = vrot.slane %v406, %v412
    %v415 = vunpack.c.l.s4 1983009808
    %v416 = vunpack.c.0.s8 %v415
    %v417 = vlaneseq
    %v418 = vshrl.u32 %v417, 7
    %v419 = vsub.s32 %v416, %v418
    %v420 = vrot.slane %v388, %v419
    %v421 = vcombine.low %v413, %v420
    %422 = vrot.lane.b32.xlu0 %v405, 30
    %v423 = vpop.permute.xlu0 %422
    %424 = vrot.lane.b32.xlu0 %v421, 30
    %v425 = vpop.permute.xlu0 %424
    %v426 = vrot.slane %v423, 6
    %v427 = vrot.slane %v425, 6
    %vm428 = vcmask 244736
    %v429 = vsel %vm428, %v426, %v423
    %v430 = vsel %vm119, %v426, %v427
    %v431 = vsel %vm428, %v430, %v425
    %v434 = vmul.f32 %v357, %v429
    %v435 = vmul.f32 %v358, %v431
    %438 = vrot.lane.b32.xlu0 %v434, 98
    %v439 = vpop.permute.xlu0 %438
    %440 = vrot.lane.b32.xlu0 %v435, 98
    %v441 = vpop.permute.xlu0 %440
    %v442 = vrot.slane %v439, 2
    %v443 = vrot.slane %v441, 2
    %v444 = vsel %vm135, %v442, %v443
    %vm445 = vcmask 801792
    %v446 = vsel %vm445, %v439, %v444
    %v447 = vsel %vm445, %v441, %v443
    %s450 = scalar_lea.vmem [#allocation2], 70
    %451 = vst [vmem:[%s450] sm:$0xff] %v446
    %452 = vst.msk [vmem:[%s450 + $0x8] sm:$0x3f] %vm123, %v447
    %v453 = vld [vmem:[%s0] sm:$0xff]
    %v454 = vld [vmem:[%s0 + $0x8] sm:$0x3f]
    %v455 = vld [vmem:[%s3] ss:$2 sm:$0x7f]
    %v457 = vlaneseq
    %v458 = vshrl.u32 %v457, 7
    %v459 = vsub.s32 0, %v458
    %v460 = vrot.slane %v455, %v459
    %v461 = vlaneseq
    %v462 = vshrl.u32 %v461, 7
    %v463 = vsub.s32 1, %v462
    %v464 = vrot.slane %v455, %v463
    %v465 = vlaneseq
    %v466 = vshrl.u32 %v465, 7
    %v467 = vsub.s32 2, %v466
    %v468 = vrot.slane %v455, %v467
    %v469 = vlaneseq
    %v470 = vshrl.u32 %v469, 7
    %v471 = vsub.s32 3, %v470
    %v472 = vrot.slane %v455, %v471
    %v473 = vlaneseq
    %v474 = vshrl.u32 %v473, 7
    %v475 = vsub.s32 4, %v474
    %v476 = vrot.slane %v455, %v475
    %v477 = vlaneseq
    %v478 = vshrl.u32 %v477, 7
    %v479 = vsub.s32 5, %v478
    %v480 = vrot.slane %v455, %v479
    %v481 = vlaneseq
    %v482 = vshrl.u32 %v481, 7
    %v483 = vsub.s32 6, %v482
    %v484 = vrot.slane %v455, %v483
    %v485 = vcombine.low %v460, %v464
    %v486 = vcombine.low %v468, %v472
    %v488 = vunpack.c.l.s4 1983009808
    %v489 = vunpack.c.0.s8 %v488
    %v490 = vlaneseq
    %v491 = vshrl.u32 %v490, 7
    %v492 = vsub.s32 %v489, %v491
    %v493 = vrot.slane %v485, %v492
    %v495 = vunpack.c.l.s4 1983009808
    %v496 = vunpack.c.0.s8 %v495
    %v497 = vlaneseq
    %v498 = vshrl.u32 %v497, 7
    %v499 = vsub.s32 %v496, %v498
    %v500 = vrot.slane %v486, %v499
    %v501 = vcombine.low %v493, %v500
    %v502 = vcombine.low %v476, %v480
    %v504 = vunpack.c.l.s4 1983009808
    %v505 = vunpack.c.0.s8 %v504
    %v506 = vlaneseq
    %v507 = vshrl.u32 %v506, 7
    %v508 = vsub.s32 %v505, %v507
    %v509 = vrot.slane %v502, %v508
    %v511 = vunpack.c.l.s4 1983009808
    %v512 = vunpack.c.0.s8 %v511
    %v513 = vlaneseq
    %v514 = vshrl.u32 %v513, 7
    %v515 = vsub.s32 %v512, %v514
    %v516 = vrot.slane %v484, %v515
    %v517 = vcombine.low %v509, %v516
    %518 = vrot.lane.b32.xlu0 %v501, 56
    %v519 = vpop.permute.xlu0 %518
    %520 = vrot.lane.b32.xlu0 %v517, 56
    %v521 = vpop.permute.xlu0 %520
    %v522 = vrot.slane %v519, 6
    %v523 = vrot.slane %v521, 6
    %vm524 = vcmask 457728
    %v525 = vsel %vm524, %v522, %v519
    %v526 = vsel %vm119, %v522, %v523
    %v527 = vsel %vm524, %v526, %v521
    %v530 = vmul.f32 %v453, %v525
    %v531 = vmul.f32 %v454, %v527
    %534 = vrot.lane.b32.xlu0 %v530, 72
    %v535 = vpop.permute.xlu0 %534
    %536 = vrot.lane.b32.xlu0 %v531, 72
    %v537 = vpop.permute.xlu0 %536
    %v538 = vrot.slane %v535, 2
    %v539 = vrot.slane %v537, 2
    %v540 = vsel %vm135, %v538, %v539
    %vm541 = vcmask 588800
    %v542 = vsel %vm541, %v535, %v540
    %v543 = vsel %vm541, %v537, %v539
    %s546 = scalar_lea.vmem [#allocation2], 84
    %547 = vst [vmem:[%s546] sm:$0xff] %v542
    %548 = vst.msk [vmem:[%s546 + $0x8] sm:$0x3f] %vm123, %v543
    %v549 = vld [vmem:[%s0] sm:$0xff]
    %v550 = vld [vmem:[%s0 + $0x8] sm:$0x3f]
    %553 = vrot.lane.b32.xlu0 %v549, 71
    %v554 = vpop.permute.xlu0 %553
    %555 = vrot.lane.b32.xlu0 %v550, 71
    %v556 = vpop.permute.xlu0 %555
    %v557 = vrot.slane %v554, 2
    %v558 = vrot.slane %v556, 2
    %v559 = vsel %vm135, %v557, %v558
    %vm560 = vcmask 580608
    %v561 = vsel %vm560, %v554, %v559
    %v562 = vsel %vm560, %v556, %v558
    %s565 = scalar_lea.vmem [#allocation2], 98
    %566 = vst [vmem:[%s565] sm:$0xff] %v561
    %567 = vst.msk [vmem:[%s565 + $0x8] sm:$0x3f] %vm123, %v562
    %v568 = vld [vmem:[%s0] sm:$0xff]
    %v569 = vld [vmem:[%s0 + $0x8] sm:$0x3f]
    %v570 = vld [vmem:[%s147] ss:$2 sm:$0x7f]
    %v572 = vlaneseq
    %v573 = vshrl.u32 %v572, 7
    %v574 = vsub.s32 0, %v573
    %v575 = vrot.slane %v570, %v574
    %v576 = vlaneseq
    %v577 = vshrl.u32 %v576, 7
    %v578 = vsub.s32 1, %v577
    %v579 = vrot.slane %v570, %v578
    %v580 = vlaneseq
    %v581 = vshrl.u32 %v580, 7
    %v582 = vsub.s32 2, %v581
    %v583 = vrot.slane %v570, %v582
    %v584 = vlaneseq
    %v585 = vshrl.u32 %v584, 7
    %v586 = vsub.s32 3, %v585
    %v587 = vrot.slane %v570, %v586
    %v588 = vlaneseq
    %v589 = vshrl.u32 %v588, 7
    %v590 = vsub.s32 4, %v589
    %v591 = vrot.slane %v570, %v590
    %v592 = vlaneseq
    %v593 = vshrl.u32 %v592, 7
    %v594 = vsub.s32 5, %v593
    %v595 = vrot.slane %v570, %v594
    %v596 = vlaneseq
    %v597 = vshrl.u32 %v596, 7
    %v598 = vsub.s32 6, %v597
    %v599 = vrot.slane %v570, %v598
    %v600 = vcombine.low %v575, %v579
    %v601 = vcombine.low %v583, %v587
    %v603 = vunpack.c.l.s4 1983009808
    %v604 = vunpack.c.0.s8 %v603
    %v605 = vlaneseq
    %v606 = vshrl.u32 %v605, 7
    %v607 = vsub.s32 %v604, %v606
    %v608 = vrot.slane %v600, %v607
    %v610 = vunpack.c.l.s4 1983009808
    %v611 = vunpack.c.0.s8 %v610
    %v612 = vlaneseq
    %v613 = vshrl.u32 %v612, 7
    %v614 = vsub.s32 %v611, %v613
    %v615 = vrot.slane %v601, %v614
    %v616 = vcombine.low %v608, %v615
    %v617 = vcombine.low %v591, %v595
    %v619 = vunpack.c.l.s4 1983009808
    %v620 = vunpack.c.0.s8 %v619
    %v621 = vlaneseq
    %v622 = vshrl.u32 %v621, 7
    %v623 = vsub.s32 %v620, %v622
    %v624 = vrot.slane %v617, %v623
    %v626 = vunpack.c.l.s4 1983009808
    %v627 = vunpack.c.0.s8 %v626
    %v628 = vlaneseq
    %v629 = vshrl.u32 %v628, 7
    %v630 = vsub.s32 %v627, %v629
    %v631 = vrot.slane %v599, %v630
    %v632 = vcombine.low %v624, %v631
    %633 = vrot.lane.b32.xlu0 %v616, 58
    %v634 = vpop.permute.xlu0 %633
    %635 = vrot.lane.b32.xlu0 %v632, 58
    %v636 = vpop.permute.xlu0 %635
    %v637 = vrot.slane %v634, 6
    %v638 = vrot.slane %v636, 6
    %vm639 = vcmask 474112
    %v640 = vsel %vm639, %v637, %v634
    %v641 = vsel %vm119, %v637, %v638
    %v642 = vsel %vm639, %v641, %v636
    %v645 = vmul.f32 %v568, %v640
    %v646 = vmul.f32 %v569, %v642
    %649 = vrot.lane.b32.xlu0 %v645, 70
    %v650 = vpop.permute.xlu0 %649
    %651 = vrot.lane.b32.xlu0 %v646, 70
    %v652 = vpop.permute.xlu0 %651
    %v653 = vrot.slane %v650, 2
    %v654 = vrot.slane %v652, 2
    %v655 = vsel %vm135, %v653, %v654
    %vm656 = vcmask 572416
    %v657 = vsel %vm656, %v650, %v655
    %v658 = vsel %vm656, %v652, %v654
    %s661 = scalar_lea.vmem [#allocation2], 112
    %662 = vst [vmem:[%s661] sm:$0xff] %v657
    %663 = vst.msk [vmem:[%s661 + $0x8] sm:$0x3f] %vm123, %v658
    %s664 = sld [smem:[#allocation3]]
    %v665 = vld [vmem:[#allocation2] sm:$0xff]
    %v666 = vld [vmem:[#allocation2 + $0x8] sm:$0x3f]
    %v667 = vstv %s664
    %v668 = vmul.f32 %v667, %v665
    %v669 = vmul.f32 %v667, %v666
    %s670 = sld [smem:[#allocation3 + $0x1]]
    %v671 = vld [vmem:[%s142] sm:$0xff]
    %v672 = vld [vmem:[%s142 + $0x8] sm:$0x3f]
    %v673 = vstv %s670
    %v674 = vmul.f32 %v673, %v671
    %v675 = vmul.f32 %v673, %v672
    %v676 = vadd.f32 %v668, %v674
    %v677 = vadd.f32 %v669, %v675
    %s678 = sld [smem:[#allocation3 + $0x2]]
    %v679 = vld [vmem:[%s239] sm:$0xff]
    %v680 = vld [vmem:[%s239 + $0x8] sm:$0x3f]
    %v681 = vstv %s678
    %v682 = vmul.f32 %v681, %v679
    %v683 = vmul.f32 %v681, %v680
    %v684 = vadd.f32 %v676, %v682
    %v685 = vadd.f32 %v677, %v683
    %s686 = sld [smem:[#allocation3 + $0x3]]
    %v687 = vld [vmem:[%s335] sm:$0xff]
    %v688 = vld [vmem:[%s335 + $0x8] sm:$0x3f]
    %v689 = vstv %s686
    %v690 = vmul.f32 %v689, %v687
    %v691 = vmul.f32 %v689, %v688
    %v692 = vadd.f32 %v684, %v690
    %v693 = vadd.f32 %v685, %v691
    %s694 = sld [smem:[#allocation3 + $0x4]]
    %v695 = vld [vmem:[%s354] sm:$0xff]
    %v696 = vld [vmem:[%s354 + $0x8] sm:$0x3f]
    %v697 = vstv %s694
    %v698 = vmul.f32 %v697, %v695
    %v699 = vmul.f32 %v697, %v696
    %v700 = vadd.f32 %v692, %v698
    %v701 = vadd.f32 %v693, %v699
    %s702 = sld [smem:[#allocation3 + $0x5]]
    %v703 = vld [vmem:[%s450] sm:$0xff]
    %v704 = vld [vmem:[%s450 + $0x8] sm:$0x3f]
    %v705 = vstv %s702
    %v706 = vmul.f32 %v705, %v703
    %v707 = vmul.f32 %v705, %v704
    %v708 = vadd.f32 %v700, %v706
    %v709 = vadd.f32 %v701, %v707
    %s710 = sld [smem:[#allocation3 + $0x6]]
    %v711 = vld [vmem:[%s546] sm:$0xff]
    %v712 = vld [vmem:[%s546 + $0x8] sm:$0x3f]
    %v713 = vstv %s710
    %v714 = vmul.f32 %v713, %v711
    %v715 = vmul.f32 %v713, %v712
    %v716 = vadd.f32 %v708, %v714
    %v717 = vadd.f32 %v709, %v715
    %s718 = sld [smem:[#allocation3 + $0x7]]
    %v719 = vld [vmem:[%s565] sm:$0xff]
    %v720 = vld [vmem:[%s565 + $0x8] sm:$0x3f]
    %v721 = vstv %s718
    %v722 = vmul.f32 %v721, %v719
    %v723 = vmul.f32 %v721, %v720
    %v724 = vadd.f32 %v716, %v722
    %v725 = vadd.f32 %v717, %v723
    %s726 = sld [smem:[#allocation3 + $0x8]]
    %v727 = vld [vmem:[%s661] sm:$0xff]
    %v728 = vld [vmem:[%s661 + $0x8] sm:$0x3f]
    %v729 = vstv %s726
    %v730 = vmul.f32 %v729, %v727
    %v731 = vmul.f32 %v729, %v728
    %v732 = vadd.f32 %v724, %v730
    %v733 = vadd.f32 %v725, %v731
    %s734 = sld [smem:[#allocation6]]
    %v735 = vstv %s734
    %v736 = vadd.f32 %v732, %v735
    %v737 = vadd.f32 %v733, %v735
    %v738 = vmax.f32 %v736, 0.0
    %v739 = vmax.f32 %v737, 0.0
    %v740 = vld [vmem:[%s4] sm:$0xff]
    %v741 = vld [vmem:[%s4 + $0x8] sm:$0xff]
    %v742 = vld [vmem:[%s4 + $0x10] sm:$0xff]
    %v743 = vld [vmem:[%s4 + $0x18] sm:$0xff]
    %v744 = vld [vmem:[%s4 + $0x20] sm:$0xff]
    %v745 = vld [vmem:[%s4 + $0x28] sm:$0xff]
    %v746 = vld [vmem:[%s4 + $0x30] sm:$0xff]
    %v747 = vld [vmem:[%s4 + $0x38] sm:$0xff]
    %v748 = vld [vmem:[%s4 + $0x40] sm:$0xff]
    %v749 = vld [vmem:[%s4 + $0x48] sm:$0xff]
    %v750 = vld [vmem:[%s4 + $0x50] sm:$0xff]
    %v751 = vld [vmem:[%s4 + $0x58] sm:$0xff]
    %v752 = vld [vmem:[%s4 + $0x60] sm:$0xff]
    %v753 = vld [vmem:[%s4 + $0x68] sm:$0xff]
    %v754 = vld [vmem:[%s4 + $0x70] sm:$0xff]
    %v755 = vld [vmem:[%s4 + $0x78] sm:$0xff]
    %v756 = vld [vmem:[%s4 + $0x80] sm:$0xff]
    %v757 = vld [vmem:[%s4 + $0x88] sm:$0xff]
    %v758 = vld [vmem:[%s4 + $0x90] sm:$0xff]
    %v759 = vld [vmem:[%s4 + $0x98] sm:$0xff]
    %v760 = vld [vmem:[%s4 + $0xa0] sm:$0xff]
    %v761 = vld [vmem:[%s4 + $0xa8] sm:$0xff]
    %v762 = vld [vmem:[%s4 + $0xb0] sm:$0xff]
    %v763 = vld [vmem:[%s4 + $0xb8] sm:$0xff]
    %v764 = vld [vmem:[%s4 + $0xc0] sm:$0xff]
    %v765 = vld [vmem:[%s4 + $0xc8] sm:$0xff]
    %v766 = vld [vmem:[%s4 + $0xd0] sm:$0xff]
    %v767 = vld [vmem:[%s4 + $0xd8] sm:$0xff]
    %v768 = vld [vmem:[%s4 + $0xe0] sm:$0xff]
    %v769 = vld [vmem:[%s4 + $0xe8] sm:$0xff]
    %v770 = vld [vmem:[%s4 + $0xf0] sm:$0xff]
    %v771 = vld [vmem:[%s4 + $0xf8] sm:$0xff]
    %v772 = vld [vmem:[%s4 + $0x100] sm:$0xff]
    %v773 = vld [vmem:[%s4 + $0x108] sm:$0xff]
    %v774 = vld [vmem:[%s4 + $0x110] sm:$0xff]
    %v775 = vld [vmem:[%s4 + $0x118] sm:$0xff]
    %v776 = vld [vmem:[%s4 + $0x120] sm:$0xff]
    %v777 = vld [vmem:[%s4 + $0x128] sm:$0xff]
    %v778 = vld [vmem:[%s4 + $0x130] sm:$0xff]
    %v779 = vld [vmem:[%s4 + $0x138] sm:$0xff]
    %v780 = vld [vmem:[%s4 + $0x140] sm:$0xff]
    %v781 = vld [vmem:[%s4 + $0x148] sm:$0xff]
    %v782 = vld [vmem:[%s4 + $0x150] sm:$0xff]
    %v783 = vld [vmem:[%s4 + $0x158] sm:$0xff]
    %v784 = vld [vmem:[%s4 + $0x160] sm:$0xff]
    %v785 = vld [vmem:[%s4 + $0x168] sm:$0xff]
    %v786 = vld [vmem:[%s4 + $0x170] sm:$0xff]
    %v787 = vld [vmem:[%s4 + $0x178] sm:$0xff]
    %v788 = vld [vmem:[%s4 + $0x180] sm:$0xff]
    %v789 = vld [vmem:[%s4 + $0x188] sm:$0xff]
    %v790 = vld [vmem:[%s4 + $0x190] sm:$0xff]
    %v791 = vld [vmem:[%s4 + $0x198] sm:$0xff]
    %v792 = vld [vmem:[%s4 + $0x1a0] sm:$0xff]
    %v793 = vld [vmem:[%s4 + $0x1a8] sm:$0xff]
    %v794 = vld [vmem:[%s4 + $0x1b0] sm:$0xff]
    %v795 = vld [vmem:[%s4 + $0x1b8] sm:$0xff]
    %v796 = vld [vmem:[%s4 + $0x1c0] sm:$0xff]
    %v797 = vld [vmem:[%s4 + $0x1c8] sm:$0xff]
    %v798 = vld [vmem:[%s4 + $0x1d0] sm:$0xff]
    %v799 = vld [vmem:[%s4 + $0x1d8] sm:$0xff]
    %v800 = vld [vmem:[%s4 + $0x1e0] sm:$0xff]
    %v801 = vld [vmem:[%s4 + $0x1e8] sm:$0xff]
    %v802 = vld [vmem:[%s4 + $0x1f0] sm:$0xff]
    %v803 = vld [vmem:[%s4 + $0x1f8] sm:$0xff]
    %v804 = vld [vmem:[%s4 + $0x200] sm:$0xff]
    %v805 = vld [vmem:[%s4 + $0x208] sm:$0xff]
    %v806 = vld [vmem:[%s4 + $0x210] sm:$0xff]
    %v807 = vld [vmem:[%s4 + $0x218] sm:$0xff]
    %v808 = vld [vmem:[%s4 + $0x220] sm:$0xff]
    %v809 = vld [vmem:[%s4 + $0x228] sm:$0xff]
    %v810 = vld [vmem:[%s4 + $0x230] sm:$0xff]
    %v811 = vld [vmem:[%s4 + $0x238] sm:$0xff]
    %v812 = vld [vmem:[%s4 + $0x240] sm:$0xff]
    %v813 = vld [vmem:[%s4 + $0x248] sm:$0xff]
    %v814 = vld [vmem:[%s4 + $0x250] sm:$0xff]
    %v815 = vld [vmem:[%s4 + $0x258] sm:$0xff]
    %v816 = vld [vmem:[%s4 + $0x260] sm:$0xff]
    %v817 = vld [vmem:[%s4 + $0x268] sm:$0xff]
    %v818 = vld [vmem:[%s4 + $0x270] sm:$0xff]
    %v819 = vld [vmem:[%s4 + $0x278] sm:$0xff]
    %v820 = vld [vmem:[%s4 + $0x280] sm:$0xff]
    %v821 = vld [vmem:[%s4 + $0x288] sm:$0xff]
    %v822 = vld [vmem:[%s4 + $0x290] sm:$0xff]
    %v823 = vld [vmem:[%s4 + $0x298] sm:$0xff]
    %v824 = vld [vmem:[%s4 + $0x2a0] sm:$0xff]
    %v825 = vld [vmem:[%s4 + $0x2a8] sm:$0xff]
    %v826 = vld [vmem:[%s4 + $0x2b0] sm:$0xff]
    %v827 = vld [vmem:[%s4 + $0x2b8] sm:$0xff]
    %v828 = vld [vmem:[%s4 + $0x2c0] sm:$0xff]
    %v829 = vld [vmem:[%s4 + $0x2c8] sm:$0xff]
    %v830 = vld [vmem:[%s4 + $0x2d0] sm:$0xff]
    %v831 = vld [vmem:[%s4 + $0x2d8] sm:$0xff]
    %v832 = vld [vmem:[%s4 + $0x2e0] sm:$0xff]
    %v833 = vld [vmem:[%s4 + $0x2e8] sm:$0xff]
    %v834 = vld [vmem:[%s4 + $0x2f0] sm:$0xff]
    %v835 = vld [vmem:[%s4 + $0x2f8] sm:$0xff]
    %v836 = vld [vmem:[%s4 + $0x300] sm:$0xff]
    %v837 = vld [vmem:[%s4 + $0x308] sm:$0xff]
    %s838 = sld [smem:[#allocation3 + $0x9]]
    %v839 = vstv %s838
    %v840 = vmul.f32 %v839, %v665
    %v841 = vmul.f32 %v839, %v666
    %s842 = sld [smem:[#allocation3 + $0xa]]
    %v843 = vstv %s842
    %v844 = vmul.f32 %v843, %v671
    %v845 = vmul.f32 %v843, %v672
    %v846 = vadd.f32 %v840, %v844
    %v847 = vadd.f32 %v841, %v845
    %s848 = sld [smem:[#allocation3 + $0xb]]
    %v849 = vstv %s848
    %v850 = vmul.f32 %v849, %v679
    %v851 = vmul.f32 %v849, %v680
    %v852 = vadd.f32 %v846, %v850
    %v853 = vadd.f32 %v847, %v851
    %s854 = sld [smem:[#allocation3 + $0xc]]
    %v855 = vstv %s854
    %v856 = vmul.f32 %v855, %v687
    %v857 = vmul.f32 %v855, %v688
    %v858 = vadd.f32 %v852, %v856
    %v859 = vadd.f32 %v853, %v857
    %s860 = sld [smem:[#allocation3 + $0xd]]
    %v861 = vstv %s860
    %v862 = vmul.f32 %v861, %v695
    %v863 = vmul.f32 %v861, %v696
    %v864 = vadd.f32 %v858, %v862
    %v865 = vadd.f32 %v859, %v863
    %s866 = sld [smem:[#allocation3 + $0xe]]
    %v867 = vstv %s866
    %v868 = vmul.f32 %v867, %v703
    %v869 = vmul.f32 %v867, %v704
    %v870 = vadd.f32 %v864, %v868
    %v871 = vadd.f32 %v865, %v869
    %s872 = sld [smem:[#allocation3 + $0xf]]
    %v873 = vstv %s872
    %v874 = vmul.f32 %v873, %v711
    %v875 = vmul.f32 %v873, %v712
    %v876 = vadd.f32 %v870, %v874
    %v877 = vadd.f32 %v871, %v875
    %s878 = sld [smem:[#allocation3 + $0x10]]
    %v879 = vstv %s878
    %v880 = vmul.f32 %v879, %v719
    %v881 = vmul.f32 %v879, %v720
    %v882 = vadd.f32 %v876, %v880
    %v883 = vadd.f32 %v877, %v881
    %s884 = sld [smem:[#allocation3 + $0x11]]
    %v885 = vstv %s884
    %v886 = vmul.f32 %v885, %v727
    %v887 = vmul.f32 %v885, %v728
    %v888 = vadd.f32 %v882, %v886
    %v889 = vadd.f32 %v883, %v887
    %s890 = sld [smem:[#allocation6 + $0x1]]
    %v891 = vstv %s890
    %v892 = vadd.f32 %v888, %v891
    %v893 = vadd.f32 %v889, %v891
    %v894 = vmax.f32 %v892, 0.0
    %v895 = vmax.f32 %v893, 0.0
    %s896 = scalar_lea.vmem %s4, 784
    %v897 = vld [vmem:[%s896] sm:$0xff]
    %v898 = vld [vmem:[%s896 + $0x8] sm:$0xff]
    %v899 = vld [vmem:[%s896 + $0x10] sm:$0xff]
    %v900 = vld [vmem:[%s896 + $0x18] sm:$0xff]
    %v901 = vld [vmem:[%s896 + $0x20] sm:$0xff]
    %v902 = vld [vmem:[%s896 + $0x28] sm:$0xff]
    %v903 = vld [vmem:[%s896 + $0x30] sm:$0xff]
    %v904 = vld [vmem:[%s896 + $0x38] sm:$0xff]
    %v905 = vld [vmem:[%s896 + $0x40] sm:$0xff]
    %v906 = vld [vmem:[%s896 + $0x48] sm:$0xff]
    %v907 = vld [vmem:[%s896 + $0x50] sm:$0xff]
    %v908 = vld [vmem:[%s896 + $0x58] sm:$0xff]
    %v909 = vld [vmem:[%s896 + $0x60] sm:$0xff]
    %v910 = vld [vmem:[%s896 + $0x68] sm:$0xff]
    %v911 = vld [vmem:[%s896 + $0x70] sm:$0xff]
    %v912 = vld [vmem:[%s896 + $0x78] sm:$0xff]
    %v913 = vld [vmem:[%s896 + $0x80] sm:$0xff]
    %v914 = vld [vmem:[%s896 + $0x88] sm:$0xff]
    %v915 = vld [vmem:[%s896 + $0x90] sm:$0xff]
    %v916 = vld [vmem:[%s896 + $0x98] sm:$0xff]
    %v917 = vld [vmem:[%s896 + $0xa0] sm:$0xff]
    %v918 = vld [vmem:[%s896 + $0xa8] sm:$0xff]
    %v919 = vld [vmem:[%s896 + $0xb0] sm:$0xff]
    %v920 = vld [vmem:[%s896 + $0xb8] sm:$0xff]
    %v921 = vld [vmem:[%s896 + $0xc0] sm:$0xff]
    %v922 = vld [vmem:[%s896 + $0xc8] sm:$0xff]
    %v923 = vld [vmem:[%s896 + $0xd0] sm:$0xff]
    %v924 = vld [vmem:[%s896 + $0xd8] sm:$0xff]
    %v925 = vld [vmem:[%s896 + $0xe0] sm:$0xff]
    %v926 = vld [vmem:[%s896 + $0xe8] sm:$0xff]
    %v927 = vld [vmem:[%s896 + $0xf0] sm:$0xff]
    %v928 = vld [vmem:[%s896 + $0xf8] sm:$0xff]
    %v929 = vld [vmem:[%s896 + $0x100] sm:$0xff]
    %v930 = vld [vmem:[%s896 + $0x108] sm:$0xff]
    %v931 = vld [vmem:[%s896 + $0x110] sm:$0xff]
    %v932 = vld [vmem:[%s896 + $0x118] sm:$0xff]
    %v933 = vld [vmem:[%s896 + $0x120] sm:$0xff]
    %v934 = vld [vmem:[%s896 + $0x128] sm:$0xff]
    %v935 = vld [vmem:[%s896 + $0x130] sm:$0xff]
    %v936 = vld [vmem:[%s896 + $0x138] sm:$0xff]
    %v937 = vld [vmem:[%s896 + $0x140] sm:$0xff]
    %v938 = vld [vmem:[%s896 + $0x148] sm:$0xff]
    %v939 = vld [vmem:[%s896 + $0x150] sm:$0xff]
    %v940 = vld [vmem:[%s896 + $0x158] sm:$0xff]
    %v941 = vld [vmem:[%s896 + $0x160] sm:$0xff]
    %v942 = vld [vmem:[%s896 + $0x168] sm:$0xff]
    %v943 = vld [vmem:[%s896 + $0x170] sm:$0xff]
    %v944 = vld [vmem:[%s896 + $0x178] sm:$0xff]
    %v945 = vld [vmem:[%s896 + $0x180] sm:$0xff]
    %v946 = vld [vmem:[%s896 + $0x188] sm:$0xff]
    %v947 = vld [vmem:[%s896 + $0x190] sm:$0xff]
    %v948 = vld [vmem:[%s896 + $0x198] sm:$0xff]
    %v949 = vld [vmem:[%s896 + $0x1a0] sm:$0xff]
    %v950 = vld [vmem:[%s896 + $0x1a8] sm:$0xff]
    %v951 = vld [vmem:[%s896 + $0x1b0] sm:$0xff]
    %v952 = vld [vmem:[%s896 + $0x1b8] sm:$0xff]
    %v953 = vld [vmem:[%s896 + $0x1c0] sm:$0xff]
    %v954 = vld [vmem:[%s896 + $0x1c8] sm:$0xff]
    %v955 = vld [vmem:[%s896 + $0x1d0] sm:$0xff]
    %v956 = vld [vmem:[%s896 + $0x1d8] sm:$0xff]
    %v957 = vld [vmem:[%s896 + $0x1e0] sm:$0xff]
    %v958 = vld [vmem:[%s896 + $0x1e8] sm:$0xff]
    %v959 = vld [vmem:[%s896 + $0x1f0] sm:$0xff]
    %v960 = vld [vmem:[%s896 + $0x1f8] sm:$0xff]
    %v961 = vld [vmem:[%s896 + $0x200] sm:$0xff]
    %v962 = vld [vmem:[%s896 + $0x208] sm:$0xff]
    %v963 = vld [vmem:[%s896 + $0x210] sm:$0xff]
    %v964 = vld [vmem:[%s896 + $0x218] sm:$0xff]
    %v965 = vld [vmem:[%s896 + $0x220] sm:$0xff]
    %v966 = vld [vmem:[%s896 + $0x228] sm:$0xff]
    %v967 = vld [vmem:[%s896 + $0x230] sm:$0xff]
    %v968 = vld [vmem:[%s896 + $0x238] sm:$0xff]
    %v969 = vld [vmem:[%s896 + $0x240] sm:$0xff]
    %v970 = vld [vmem:[%s896 + $0x248] sm:$0xff]
    %v971 = vld [vmem:[%s896 + $0x250] sm:$0xff]
    %v972 = vld [vmem:[%s896 + $0x258] sm:$0xff]
    %v973 = vld [vmem:[%s896 + $0x260] sm:$0xff]
    %v974 = vld [vmem:[%s896 + $0x268] sm:$0xff]
    %v975 = vld [vmem:[%s896 + $0x270] sm:$0xff]
    %v976 = vld [vmem:[%s896 + $0x278] sm:$0xff]
    %v977 = vld [vmem:[%s896 + $0x280] sm:$0xff]
    %v978 = vld [vmem:[%s896 + $0x288] sm:$0xff]
    %v979 = vld [vmem:[%s896 + $0x290] sm:$0xff]
    %v980 = vld [vmem:[%s896 + $0x298] sm:$0xff]
    %v981 = vld [vmem:[%s896 + $0x2a0] sm:$0xff]
    %v982 = vld [vmem:[%s896 + $0x2a8] sm:$0xff]
    %v983 = vld [vmem:[%s896 + $0x2b0] sm:$0xff]
    %v984 = vld [vmem:[%s896 + $0x2b8] sm:$0xff]
    %v985 = vld [vmem:[%s896 + $0x2c0] sm:$0xff]
    %v986 = vld [vmem:[%s896 + $0x2c8] sm:$0xff]
    %v987 = vld [vmem:[%s896 + $0x2d0] sm:$0xff]
    %v988 = vld [vmem:[%s896 + $0x2d8] sm:$0xff]
    %v989 = vld [vmem:[%s896 + $0x2e0] sm:$0xff]
    %v990 = vld [vmem:[%s896 + $0x2e8] sm:$0xff]
    %v991 = vld [vmem:[%s896 + $0x2f0] sm:$0xff]
    %v992 = vld [vmem:[%s896 + $0x2f8] sm:$0xff]
    %v993 = vld [vmem:[%s896 + $0x300] sm:$0xff]
    %v994 = vld [vmem:[%s896 + $0x308] sm:$0xff]
    %v997 = vcombine.high %v894, %v894
    %v999 = vunpack.c.l.s4 1983009808
    %v1000 = vunpack.c.0.s8 %v999
    %v1001 = vlaneseq
    %v1002 = vshrl.u32 %v1001, 7
    %v1003 = vsub.s32 %v1000, %v1002
    %v1004 = vrot.slane %v894, %v1003
    %v1006 = vunpack.c.l.s4 1983009808
    %v1007 = vunpack.c.0.s8 %v1006
    %v1008 = vlaneseq
    %v1009 = vshrl.u32 %v1008, 7
    %v1010 = vsub.s32 %v1007, %v1009
    %v1011 = vrot.slane %v997, %v1010
    %v1012 = vcombine.high %v1004, %v1004
    %v1013 = vcombine.high %v1011, %v1011
    %v1014 = vcombine.high %v895, %v895
    %v1016 = vunpack.c.l.s4 1983009808
    %v1017 = vunpack.c.0.s8 %v1016
    %v1018 = vlaneseq
    %v1019 = vshrl.u32 %v1018, 7
    %v1020 = vsub.s32 %v1017, %v1019
    %v1021 = vrot.slane %v895, %v1020
    %v1023 = vunpack.c.l.s4 1983009808
    %v1024 = vunpack.c.0.s8 %v1023
    %v1025 = vlaneseq
    %v1026 = vshrl.u32 %v1025, 7
    %v1027 = vsub.s32 %v1024, %v1026
    %v1028 = vrot.slane %v1014, %v1027
    %v1029 = vcombine.high %v1021, %v1021
    %vm1036 = vcmask 130048
    %v1037 = vsel %vm1036, %v1028, 0
    %1039 = vmatprep.subr.mxu0 0.0
    %1040 = vmatpush1.msra.mxu0 %v897
    %1041 = vmatprep.subr.mxu0 0.0
    %1042 = vmatpush1.msra.mxu0 %v898
    %1043 = vmatprep.subr.mxu0 0.0
    %1044 = vmatpush1.msra.mxu0 %v899
    %1045 = vmatprep.subr.mxu0 0.0
    %1046 = vmatpush1.msra.mxu0 %v900
    %1047 = vmatprep.subr.mxu0 0.0
    %1048 = vmatpush1.msra.mxu0 %v901
    %1049 = vmatprep.subr.mxu0 0.0
    %1050 = vmatpush1.msra.mxu0 %v902
    %1051 = vmatprep.subr.mxu0 0.0
    %1052 = vmatpush1.msra.mxu0 %v903
    %1053 = vmatprep.subr.mxu0 0.0
    %1054 = vmatpush1.msra.mxu0 %v904
    %1055 = vmatprep.subr.mxu0 0.0
    %1056 = vmatpush1.msra.mxu0 %v905
    %1057 = vmatprep.subr.mxu0 0.0
    %1058 = vmatpush1.msra.mxu0 %v906
    %1059 = vmatprep.subr.mxu0 0.0
    %1060 = vmatpush1.msra.mxu0 %v907
    %1061 = vmatprep.subr.mxu0 0.0
    %1062 = vmatpush1.msra.mxu0 %v908
    %1063 = vmatprep.subr.mxu0 0.0
    %1064 = vmatpush1.msra.mxu0 %v909
    %1065 = vmatprep.subr.mxu0 0.0
    %1066 = vmatpush1.msra.mxu0 %v910
    %1067 = vmatprep.subr.mxu0 0.0
    %1068 = vmatpush1.msra.mxu0 %v911
    %1069 = vmatprep.subr.mxu0 0.0
    %1070 = vmatpush1.msra.mxu0 %v912
    %1071 = vmatprep.subr.mxu0 0.0
    %1072 = vmatpush1.msra.mxu0 %v913
    %1073 = vmatprep.subr.mxu0 0.0
    %1074 = vmatpush1.msra.mxu0 %v914
    %1075 = vmatprep.subr.mxu0 0.0
    %1076 = vmatpush1.msra.mxu0 %v915
    %1077 = vmatprep.subr.mxu0 0.0
    %1078 = vmatpush1.msra.mxu0 %v916
    %1079 = vmatprep.subr.mxu0 0.0
    %1080 = vmatpush1.msra.mxu0 %v917
    %1081 = vmatprep.subr.mxu0 0.0
    %1082 = vmatpush1.msra.mxu0 %v918
    %1083 = vmatprep.subr.mxu0 0.0
    %1084 = vmatpush1.msra.mxu0 %v919
    %1085 = vmatprep.subr.mxu0 0.0
    %1086 = vmatpush1.msra.mxu0 %v920
    %1087 = vmatprep.subr.mxu0 0.0
    %1088 = vmatpush1.msra.mxu0 %v921
    %1089 = vmatprep.subr.mxu0 0.0
    %1090 = vmatpush1.msra.mxu0 %v922
    %1091 = vmatprep.subr.mxu0 0.0
    %1092 = vmatpush1.msra.mxu0 %v923
    %1093 = vmatprep.subr.mxu0 0.0
    %1094 = vmatpush1.msra.mxu0 %v924
    %1095 = vmatprep.subr.mxu0 0.0
    %1096 = vmatpush1.msra.mxu0 %v925
    %1097 = vmatprep.subr.mxu0 0.0
    %1098 = vmatpush1.msra.mxu0 %v926
    %1099 = vmatprep.subr.mxu0 0.0
    %1100 = vmatpush1.msra.mxu0 %v927
    %1101 = vmatprep.subr.mxu0 0.0
    %1102 = vmatpush1.msra.mxu0 %v928
    %1103 = vmatprep.mubr.f32.mxu0 %v1012
    %1104 = vmatmul.mubr.f32.gmra.mrb[0].mxu0 %v1004
    %v1105 = vpop.f32.mrb[0].mxu0
    %v1106 = vadd.f32 0.0, %v1105
    %v1107 = vpop.f32.mrb[0].mxu0
    %1108 = vdwg.mxu0
    %1109 = vmatprep.subr.mxu0 0.0
    %1110 = vmatpush1.msra.mxu0 %v929
    %1111 = vmatprep.subr.mxu0 0.0
    %1112 = vmatpush1.msra.mxu0 %v930
    %1113 = vmatprep.subr.mxu0 0.0
    %1114 = vmatpush1.msra.mxu0 %v931
    %1115 = vmatprep.subr.mxu0 0.0
    %1116 = vmatpush1.msra.mxu0 %v932
    %1117 = vmatprep.subr.mxu0 0.0
    %1118 = vmatpush1.msra.mxu0 %v933
    %1119 = vmatprep.subr.mxu0 0.0
    %1120 = vmatpush1.msra.mxu0 %v934
    %1121 = vmatprep.subr.mxu0 0.0
    %1122 = vmatpush1.msra.mxu0 %v935
    %1123 = vmatprep.subr.mxu0 0.0
    %1124 = vmatpush1.msra.mxu0 %v936
    %1125 = vmatprep.subr.mxu0 0.0
    %1126 = vmatpush1.msra.mxu0 %v937
    %1127 = vmatprep.subr.mxu0 0.0
    %1128 = vmatpush1.msra.mxu0 %v938
    %1129 = vmatprep.subr.mxu0 0.0
    %1130 = vmatpush1.msra.mxu0 %v939
    %1131 = vmatprep.subr.mxu0 0.0
    %1132 = vmatpush1.msra.mxu0 %v940
    %1133 = vmatprep.subr.mxu0 0.0
    %1134 = vmatpush1.msra.mxu0 %v941
    %1135 = vmatprep.subr.mxu0 0.0
    %1136 = vmatpush1.msra.mxu0 %v942
    %1137 = vmatprep.subr.mxu0 0.0
    %1138 = vmatpush1.msra.mxu0 %v943
    %1139 = vmatprep.subr.mxu0 0.0
    %1140 = vmatpush1.msra.mxu0 %v944
    %1141 = vmatprep.subr.mxu0 0.0
    %1142 = vmatpush1.msra.mxu0 %v945
    %1143 = vmatprep.subr.mxu0 0.0
    %1144 = vmatpush1.msra.mxu0 %v946
    %1145 = vmatprep.subr.mxu0 0.0
    %1146 = vmatpush1.msra.mxu0 %v947
    %1147 = vmatprep.subr.mxu0 0.0
    %1148 = vmatpush1.msra.mxu0 %v948
    %1149 = vmatprep.subr.mxu0 0.0
    %1150 = vmatpush1.msra.mxu0 %v949
    %1151 = vmatprep.subr.mxu0 0.0
    %1152 = vmatpush1.msra.mxu0 %v950
    %1153 = vmatprep.subr.mxu0 0.0
    %1154 = vmatpush1.msra.mxu0 %v951
    %1155 = vmatprep.subr.mxu0 0.0
    %1156 = vmatpush1.msra.mxu0 %v952
    %1157 = vmatprep.subr.mxu0 0.0
    %1158 = vmatpush1.msra.mxu0 %v953
    %1159 = vmatprep.subr.mxu0 0.0
    %1160 = vmatpush1.msra.mxu0 %v954
    %1161 = vmatprep.subr.mxu0 0.0
    %1162 = vmatpush1.msra.mxu0 %v955
    %1163 = vmatprep.subr.mxu0 0.0
    %1164 = vmatpush1.msra.mxu0 %v956
    %1165 = vmatprep.subr.mxu0 0.0
    %1166 = vmatpush1.msra.mxu0 %v957
    %1167 = vmatprep.subr.mxu0 0.0
    %1168 = vmatpush1.msra.mxu0 %v958
    %1169 = vmatprep.subr.mxu0 0.0
    %1170 = vmatpush1.msra.mxu0 %v959
    %1171 = vmatprep.subr.mxu0 0.0
    %1172 = vmatpush1.msra.mxu0 %v960
    %1173 = vmatprep.mubr.f32.mxu0 %v1013
    %1174 = vmatmul.mubr.f32.gmra.mrb[0].mxu0 %v1011
    %v1175 = vpop.f32.mrb[0].mxu0
    %v1176 = vadd.f32 %v1106, %v1175
    %v1177 = vpop.f32.mrb[0].mxu0
    %1178 = vdwg.mxu0
    %1179 = vmatprep.subr.mxu0 0.0
    %1180 = vmatpush1.msra.mxu0 %v961
    %1181 = vmatprep.subr.mxu0 0.0
    %1182 = vmatpush1.msra.mxu0 %v962
    %1183 = vmatprep.subr.mxu0 0.0
    %1184 = vmatpush1.msra.mxu0 %v963
    %1185 = vmatprep.subr.mxu0 0.0
    %1186 = vmatpush1.msra.mxu0 %v964
    %1187 = vmatprep.subr.mxu0 0.0
    %1188 = vmatpush1.msra.mxu0 %v965
    %1189 = vmatprep.subr.mxu0 0.0
    %1190 = vmatpush1.msra.mxu0 %v966
    %1191 = vmatprep.subr.mxu0 0.0
    %1192 = vmatpush1.msra.mxu0 %v967
    %1193 = vmatprep.subr.mxu0 0.0
    %1194 = vmatpush1.msra.mxu0 %v968
    %1195 = vmatprep.subr.mxu0 0.0
    %1196 = vmatpush1.msra.mxu0 %v969
    %1197 = vmatprep.subr.mxu0 0.0
    %1198 = vmatpush1.msra.mxu0 %v970
    %1199 = vmatprep.subr.mxu0 0.0
    %1200 = vmatpush1.msra.mxu0 %v971
    %1201 = vmatprep.subr.mxu0 0.0
    %1202 = vmatpush1.msra.mxu0 %v972
    %1203 = vmatprep.subr.mxu0 0.0
    %1204 = vmatpush1.msra.mxu0 %v973
    %1205 = vmatprep.subr.mxu0 0.0
    %1206 = vmatpush1.msra.mxu0 %v974
    %1207 = vmatprep.subr.mxu0 0.0
    %1208 = vmatpush1.msra.mxu0 %v975
    %1209 = vmatprep.subr.mxu0 0.0
    %1210 = vmatpush1.msra.mxu0 %v976
    %1211 = vmatprep.subr.mxu0 0.0
    %1212 = vmatpush1.msra.mxu0 %v977
    %1213 = vmatprep.subr.mxu0 0.0
    %1214 = vmatpush1.msra.mxu0 %v978
    %1215 = vmatprep.subr.mxu0 0.0
    %1216 = vmatpush1.msra.mxu0 %v979
    %1217 = vmatprep.subr.mxu0 0.0
    %1218 = vmatpush1.msra.mxu0 %v980
    %1219 = vmatprep.subr.mxu0 0.0
    %1220 = vmatpush1.msra.mxu0 %v981
    %1221 = vmatprep.subr.mxu0 0.0
    %1222 = vmatpush1.msra.mxu0 %v982
    %1223 = vmatprep.subr.mxu0 0.0
    %1224 = vmatpush1.msra.mxu0 %v983
    %1225 = vmatprep.subr.mxu0 0.0
    %1226 = vmatpush1.msra.mxu0 %v984
    %1227 = vmatprep.subr.mxu0 0.0
    %1228 = vmatpush1.msra.mxu0 %v985
    %1229 = vmatprep.subr.mxu0 0.0
    %1230 = vmatpush1.msra.mxu0 %v986
    %1231 = vmatprep.subr.mxu0 0.0
    %1232 = vmatpush1.msra.mxu0 %v987
    %1233 = vmatprep.subr.mxu0 0.0
    %1234 = vmatpush1.msra.mxu0 %v988
    %1235 = vmatprep.subr.mxu0 0.0
    %1236 = vmatpush1.msra.mxu0 %v989
    %1237 = vmatprep.subr.mxu0 0.0
    %1238 = vmatpush1.msra.mxu0 %v990
    %1239 = vmatprep.subr.mxu0 0.0
    %1240 = vmatpush1.msra.mxu0 %v991
    %1241 = vmatprep.subr.mxu0 0.0
    %1242 = vmatpush1.msra.mxu0 %v992
    %1243 = vmatprep.mubr.f32.mxu0 %v1029
    %1244 = vmatmul.mubr.f32.gmra.mrb[0].mxu0 %v1021
    %v1245 = vpop.f32.mrb[0].mxu0
    %v1246 = vadd.f32 %v1176, %v1245
    %v1247 = vpop.f32.mrb[0].mxu0
    %1248 = vdwg.mxu0
    %1249 = vmatprep.subr.mxu0 0.0
    %1250 = vmatpush1.msra.mxu0 %v993
    %1251 = vmatprep.subr.mxu0 0.0
    %1252 = vmatpush1.msra.mxu0 %v994
    %1253 = vmatprep.subr.mxu0 0.0
    %1254 = vmatpush1.msra.mxu0 0.0
    %1255 = vmatprep.subr.mxu0 0.0
    %1256 = vmatpush1.msra.mxu0 0.0
    %1257 = vmatprep.subr.mxu0 0.0
    %1258 = vmatpush1.msra.mxu0 0.0
    %1259 = vmatprep.subr.mxu0 0.0
    %1260 = vmatpush1.msra.mxu0 0.0
    %1261 = vmatprep.subr.mxu0 0.0
    %1262 = vmatpush1.msra.mxu0 0.0
    %1263 = vmatprep.subr.mxu0 0.0
    %1264 = vmatpush1.msra.mxu0 0.0
    %1265 = vmatprep.subr.mxu0 0.0
    %1266 = vmatpush1.msra.mxu0 0.0
    %1267 = vmatprep.subr.mxu0 0.0
    %1268 = vmatpush1.msra.mxu0 0.0
    %1269 = vmatprep.subr.mxu0 0.0
    %1270 = vmatpush1.msra.mxu0 0.0
    %1271 = vmatprep.subr.mxu0 0.0
    %1272 = vmatpush1.msra.mxu0 0.0
    %1273 = vmatprep.subr.mxu0 0.0
    %1274 = vmatpush1.msra.mxu0 0.0
    %1275 = vmatprep.subr.mxu0 0.0
    %1276 = vmatpush1.msra.mxu0 0.0
    %1277 = vmatprep.subr.mxu0 0.0
    %1278 = vmatpush1.msra.mxu0 0.0
    %1279 = vmatprep.subr.mxu0 0.0
    %1280 = vmatpush1.msra.mxu0 0.0
    %1281 = vmatprep.subr.mxu0 0.0
    %1282 = vmatpush1.msra.mxu0 0.0
    %1283 = vmatprep.subr.mxu0 0.0
    %1284 = vmatpush1.msra.mxu0 0.0
    %1285 = vmatprep.subr.mxu0 0.0
    %1286 = vmatpush1.msra.mxu0 0.0
    %1287 = vmatprep.subr.mxu0 0.0
    %1288 = vmatpush1.msra.mxu0 0.0
    %1289 = vmatprep.subr.mxu0 0.0
    %1290 = vmatpush1.msra.mxu0 0.0
    %1291 = vmatprep.subr.mxu0 0.0
    %1292 = vmatpush1.msra.mxu0 0.0
    %1293 = vmatprep.subr.mxu0 0.0
    %1294 = vmatpush1.msra.mxu0 0.0
    %1295 = vmatprep.subr.mxu0 0.0
    %1296 = vmatpush1.msra.mxu0 0.0
    %1297 = vmatprep.subr.mxu0 0.0
    %1298 = vmatpush1.msra.mxu0 0.0
    %1299 = vmatprep.subr.mxu0 0.0
    %1300 = vmatpush1.msra.mxu0 0.0
    %1301 = vmatprep.subr.mxu0 0.0
    %1302 = vmatpush1.msra.mxu0 0.0
    %1303 = vmatprep.subr.mxu0 0.0
    %1304 = vmatpush1.msra.mxu0 0.0
    %1305 = vmatprep.subr.mxu0 0.0
    %1306 = vmatpush1.msra.mxu0 0.0
    %1307 = vmatprep.subr.mxu0 0.0
    %1308 = vmatpush1.msra.mxu0 0.0
    %1309 = vmatprep.subr.mxu0 0.0
    %1310 = vmatpush1.msra.mxu0 0.0
    %1311 = vmatprep.subr.mxu0 0.0
    %1312 = vmatpush1.msra.mxu0 0.0
    %1313 = vmatprep.mubr.f32.mxu0 0.0
    %1314 = vmatmul.mubr.f32.gmra.mrb[0].mxu0 %v1037
    %v1315 = vpop.f32.mrb[0].mxu0
    %v1316 = vadd.f32 %v1246, %v1315
    %v1317 = vpop.f32.mrb[0].mxu0
    %1318 = vdwg.mxu0
    %v1321 = vcombine.high %v738, %v738
    %v1323 = vunpack.c.l.s4 1983009808
    %v1324 = vunpack.c.0.s8 %v1323
    %v1325 = vlaneseq
    %v1326 = vshrl.u32 %v1325, 7
    %v1327 = vsub.s32 %v1324, %v1326
    %v1328 = vrot.slane %v738, %v1327
    %v1330 = vunpack.c.l.s4 1983009808
    %v1331 = vunpack.c.0.s8 %v1330
    %v1332 = vlaneseq
    %v1333 = vshrl.u32 %v1332, 7
    %v1334 = vsub.s32 %v1331, %v1333
    %v1335 = vrot.slane %v1321, %v1334
    %v1336 = vcombine.high %v1328, %v1328
    %v1337 = vcombine.high %v1335, %v1335
    %v1338 = vcombine.high %v739, %v739
    %v1340 = vunpack.c.l.s4 1983009808
    %v1341 = vunpack.c.0.s8 %v1340
    %v1342 = vlaneseq
    %v1343 = vshrl.u32 %v1342, 7
    %v1344 = vsub.s32 %v1341, %v1343
    %v1345 = vrot.slane %v739, %v1344
    %v1347 = vunpack.c.l.s4 1983009808
    %v1348 = vunpack.c.0.s8 %v1347
    %v1349 = vlaneseq
    %v1350 = vshrl.u32 %v1349, 7
    %v1351 = vsub.s32 %v1348, %v1350
    %v1352 = vrot.slane %v1338, %v1351
    %v1353 = vcombine.high %v1345, %v1345
    %v1360 = vsel %vm1036, %v1352, 0
    %1362 = vmatprep.subr.mxu0 0.0
    %1363 = vmatpush1.msra.mxu0 %v740
    %1364 = vmatprep.subr.mxu0 0.0
    %1365 = vmatpush1.msra.mxu0 %v741
    %1366 = vmatprep.subr.mxu0 0.0
    %1367 = vmatpush1.msra.mxu0 %v742
    %1368 = vmatprep.subr.mxu0 0.0
    %1369 = vmatpush1.msra.mxu0 %v743
    %1370 = vmatprep.subr.mxu0 0.0
    %1371 = vmatpush1.msra.mxu0 %v744
    %1372 = vmatprep.subr.mxu0 0.0
    %1373 = vmatpush1.msra.mxu0 %v745
    %1374 = vmatprep.subr.mxu0 0.0
    %1375 = vmatpush1.msra.mxu0 %v746
    %1376 = vmatprep.subr.mxu0 0.0
    %1377 = vmatpush1.msra.mxu0 %v747
    %1378 = vmatprep.subr.mxu0 0.0
    %1379 = vmatpush1.msra.mxu0 %v748
    %1380 = vmatprep.subr.mxu0 0.0
    %1381 = vmatpush1.msra.mxu0 %v749
    %1382 = vmatprep.subr.mxu0 0.0
    %1383 = vmatpush1.msra.mxu0 %v750
    %1384 = vmatprep.subr.mxu0 0.0
    %1385 = vmatpush1.msra.mxu0 %v751
    %1386 = vmatprep.subr.mxu0 0.0
    %1387 = vmatpush1.msra.mxu0 %v752
    %1388 = vmatprep.subr.mxu0 0.0
    %1389 = vmatpush1.msra.mxu0 %v753
    %1390 = vmatprep.subr.mxu0 0.0
    %1391 = vmatpush1.msra.mxu0 %v754
    %1392 = vmatprep.subr.mxu0 0.0
    %1393 = vmatpush1.msra.mxu0 %v755
    %1394 = vmatprep.subr.mxu0 0.0
    %1395 = vmatpush1.msra.mxu0 %v756
    %1396 = vmatprep.subr.mxu0 0.0
    %1397 = vmatpush1.msra.mxu0 %v757
    %1398 = vmatprep.subr.mxu0 0.0
    %1399 = vmatpush1.msra.mxu0 %v758
    %1400 = vmatprep.subr.mxu0 0.0
    %1401 = vmatpush1.msra.mxu0 %v759
    %1402 = vmatprep.subr.mxu0 0.0
    %1403 = vmatpush1.msra.mxu0 %v760
    %1404 = vmatprep.subr.mxu0 0.0
    %1405 = vmatpush1.msra.mxu0 %v761
    %1406 = vmatprep.subr.mxu0 0.0
    %1407 = vmatpush1.msra.mxu0 %v762
    %1408 = vmatprep.subr.mxu0 0.0
    %1409 = vmatpush1.msra.mxu0 %v763
    %1410 = vmatprep.subr.mxu0 0.0
    %1411 = vmatpush1.msra.mxu0 %v764
    %1412 = vmatprep.subr.mxu0 0.0
    %1413 = vmatpush1.msra.mxu0 %v765
    %1414 = vmatprep.subr.mxu0 0.0
    %1415 = vmatpush1.msra.mxu0 %v766
    %1416 = vmatprep.subr.mxu0 0.0
    %1417 = vmatpush1.msra.mxu0 %v767
    %1418 = vmatprep.subr.mxu0 0.0
    %1419 = vmatpush1.msra.mxu0 %v768
    %1420 = vmatprep.subr.mxu0 0.0
    %1421 = vmatpush1.msra.mxu0 %v769
    %1422 = vmatprep.subr.mxu0 0.0
    %1423 = vmatpush1.msra.mxu0 %v770
    %1424 = vmatprep.subr.mxu0 0.0
    %1425 = vmatpush1.msra.mxu0 %v771
    %1426 = vmatprep.mubr.f32.mxu0 %v1336
    %1427 = vmatmul.mubr.f32.gmra.mrb[0].mxu0 %v1328
    %v1428 = vpop.f32.mrb[0].mxu0
    %v1429 = vadd.f32 %v1316, %v1428
    %v1430 = vpop.f32.mrb[0].mxu0
    %1431 = vdwg.mxu0
    %1432 = vmatprep.subr.mxu0 0.0
    %1433 = vmatpush1.msra.mxu0 %v772
    %1434 = vmatprep.subr.mxu0 0.0
    %1435 = vmatpush1.msra.mxu0 %v773
    %1436 = vmatprep.subr.mxu0 0.0
    %1437 = vmatpush1.msra.mxu0 %v774
    %1438 = vmatprep.subr.mxu0 0.0
    %1439 = vmatpush1.msra.mxu0 %v775
    %1440 = vmatprep.subr.mxu0 0.0
    %1441 = vmatpush1.msra.mxu0 %v776
    %1442 = vmatprep.subr.mxu0 0.0
    %1443 = vmatpush1.msra.mxu0 %v777
    %1444 = vmatprep.subr.mxu0 0.0
    %1445 = vmatpush1.msra.mxu0 %v778
    %1446 = vmatprep.subr.mxu0 0.0
    %1447 = vmatpush1.msra.mxu0 %v779
    %1448 = vmatprep.subr.mxu0 0.0
    %1449 = vmatpush1.msra.mxu0 %v780
    %1450 = vmatprep.subr.mxu0 0.0
    %1451 = vmatpush1.msra.mxu0 %v781
    %1452 = vmatprep.subr.mxu0 0.0
    %1453 = vmatpush1.msra.mxu0 %v782
    %1454 = vmatprep.subr.mxu0 0.0
    %1455 = vmatpush1.msra.mxu0 %v783
    %1456 = vmatprep.subr.mxu0 0.0
    %1457 = vmatpush1.msra.mxu0 %v784
    %1458 = vmatprep.subr.mxu0 0.0
    %1459 = vmatpush1.msra.mxu0 %v785
    %1460 = vmatprep.subr.mxu0 0.0
    %1461 = vmatpush1.msra.mxu0 %v786
    %1462 = vmatprep.subr.mxu0 0.0
    %1463 = vmatpush1.msra.mxu0 %v787
    %1464 = vmatprep.subr.mxu0 0.0
    %1465 = vmatpush1.msra.mxu0 %v788
    %1466 = vmatprep.subr.mxu0 0.0
    %1467 = vmatpush1.msra.mxu0 %v789
    %1468 = vmatprep.subr.mxu0 0.0
    %1469 = vmatpush1.msra.mxu0 %v790
    %1470 = vmatprep.subr.mxu0 0.0
    %1471 = vmatpush1.msra.mxu0 %v791
    %1472 = vmatprep.subr.mxu0 0.0
    %1473 = vmatpush1.msra.mxu0 %v792
    %1474 = vmatprep.subr.mxu0 0.0
    %1475 = vmatpush1.msra.mxu0 %v793
    %1476 = vmatprep.subr.mxu0 0.0
    %1477 = vmatpush1.msra.mxu0 %v794
    %1478 = vmatprep.subr.mxu0 0.0
    %1479 = vmatpush1.msra.mxu0 %v795
    %1480 = vmatprep.subr.mxu0 0.0
    %1481 = vmatpush1.msra.mxu0 %v796
    %1482 = vmatprep.subr.mxu0 0.0
    %1483 = vmatpush1.msra.mxu0 %v797
    %1484 = vmatprep.subr.mxu0 0.0
    %1485 = vmatpush1.msra.mxu0 %v798
    %1486 = vmatprep.subr.mxu0 0.0
    %1487 = vmatpush1.msra.mxu0 %v799
    %1488 = vmatprep.subr.mxu0 0.0
    %1489 = vmatpush1.msra.mxu0 %v800
    %1490 = vmatprep.subr.mxu0 0.0
    %1491 = vmatpush1.msra.mxu0 %v801
    %1492 = vmatprep.subr.mxu0 0.0
    %1493 = vmatpush1.msra.mxu0 %v802
    %1494 = vmatprep.subr.mxu0 0.0
    %1495 = vmatpush1.msra.mxu0 %v803
    %1496 = vmatprep.mubr.f32.mxu0 %v1337
    %1497 = vmatmul.mubr.f32.gmra.mrb[0].mxu0 %v1335
    %v1498 = vpop.f32.mrb[0].mxu0
    %v1499 = vadd.f32 %v1429, %v1498
    %v1500 = vpop.f32.mrb[0].mxu0
    %1501 = vdwg.mxu0
    %1502 = vmatprep.subr.mxu0 0.0
    %1503 = vmatpush1.msra.mxu0 %v804
    %1504 = vmatprep.subr.mxu0 0.0
    %1505 = vmatpush1.msra.mxu0 %v805
    %1506 = vmatprep.subr.mxu0 0.0
    %1507 = vmatpush1.msra.mxu0 %v806
    %1508 = vmatprep.subr.mxu0 0.0
    %1509 = vmatpush1.msra.mxu0 %v807
    %1510 = vmatprep.subr.mxu0 0.0
    %1511 = vmatpush1.msra.mxu0 %v808
    %1512 = vmatprep.subr.mxu0 0.0
    %1513 = vmatpush1.msra.mxu0 %v809
    %1514 = vmatprep.subr.mxu0 0.0
    %1515 = vmatpush1.msra.mxu0 %v810
    %1516 = vmatprep.subr.mxu0 0.0
    %1517 = vmatpush1.msra.mxu0 %v811
    %1518 = vmatprep.subr.mxu0 0.0
    %1519 = vmatpush1.msra.mxu0 %v812
    %1520 = vmatprep.subr.mxu0 0.0
    %1521 = vmatpush1.msra.mxu0 %v813
    %1522 = vmatprep.subr.mxu0 0.0
    %1523 = vmatpush1.msra.mxu0 %v814
    %1524 = vmatprep.subr.mxu0 0.0
    %1525 = vmatpush1.msra.mxu0 %v815
    %1526 = vmatprep.subr.mxu0 0.0
    %1527 = vmatpush1.msra.mxu0 %v816
    %1528 = vmatprep.subr.mxu0 0.0
    %1529 = vmatpush1.msra.mxu0 %v817
    %1530 = vmatprep.subr.mxu0 0.0
    %1531 = vmatpush1.msra.mxu0 %v818
    %1532 = vmatprep.subr.mxu0 0.0
    %1533 = vmatpush1.msra.mxu0 %v819
    %1534 = vmatprep.subr.mxu0 0.0
    %1535 = vmatpush1.msra.mxu0 %v820
    %1536 = vmatprep.subr.mxu0 0.0
    %1537 = vmatpush1.msra.mxu0 %v821
    %1538 = vmatprep.subr.mxu0 0.0
    %1539 = vmatpush1.msra.mxu0 %v822
    %1540 = vmatprep.subr.mxu0 0.0
    %1541 = vmatpush1.msra.mxu0 %v823
    %1542 = vmatprep.subr.mxu0 0.0
    %1543 = vmatpush1.msra.mxu0 %v824
    %1544 = vmatprep.subr.mxu0 0.0
    %1545 = vmatpush1.msra.mxu0 %v825
    %1546 = vmatprep.subr.mxu0 0.0
    %1547 = vmatpush1.msra.mxu0 %v826
    %1548 = vmatprep.subr.mxu0 0.0
    %1549 = vmatpush1.msra.mxu0 %v827
    %1550 = vmatprep.subr.mxu0 0.0
    %1551 = vmatpush1.msra.mxu0 %v828
    %1552 = vmatprep.subr.mxu0 0.0
    %1553 = vmatpush1.msra.mxu0 %v829
    %1554 = vmatprep.subr.mxu0 0.0
    %1555 = vmatpush1.msra.mxu0 %v830
    %1556 = vmatprep.subr.mxu0 0.0
    %1557 = vmatpush1.msra.mxu0 %v831
    %1558 = vmatprep.subr.mxu0 0.0
    %1559 = vmatpush1.msra.mxu0 %v832
    %1560 = vmatprep.subr.mxu0 0.0
    %1561 = vmatpush1.msra.mxu0 %v833
    %1562 = vmatprep.subr.mxu0 0.0
    %1563 = vmatpush1.msra.mxu0 %v834
    %1564 = vmatprep.subr.mxu0 0.0
    %1565 = vmatpush1.msra.mxu0 %v835
    %1566 = vmatprep.mubr.f32.mxu0 %v1353
    %1567 = vmatmul.mubr.f32.gmra.mrb[0].mxu0 %v1345
    %v1568 = vpop.f32.mrb[0].mxu0
    %v1569 = vadd.f32 %v1499, %v1568
    %v1570 = vpop.f32.mrb[0].mxu0
    %1571 = vdwg.mxu0
    %1572 = vmatprep.subr.mxu0 0.0
    %1573 = vmatpush1.msra.mxu0 %v836
    %1574 = vmatprep.subr.mxu0 0.0
    %1575 = vmatpush1.msra.mxu0 %v837
    %1576 = vmatprep.subr.mxu0 0.0
    %1577 = vmatpush1.msra.mxu0 0.0
    %1578 = vmatprep.subr.mxu0 0.0
    %1579 = vmatpush1.msra.mxu0 0.0
    %1580 = vmatprep.subr.mxu0 0.0
    %1581 = vmatpush1.msra.mxu0 0.0
    %1582 = vmatprep.subr.mxu0 0.0
    %1583 = vmatpush1.msra.mxu0 0.0
    %1584 = vmatprep.subr.mxu0 0.0
    %1585 = vmatpush1.msra.mxu0 0.0
    %1586 = vmatprep.subr.mxu0 0.0
    %1587 = vmatpush1.msra.mxu0 0.0
    %1588 = vmatprep.subr.mxu0 0.0
    %1589 = vmatpush1.msra.mxu0 0.0
    %1590 = vmatprep.subr.mxu0 0.0
    %1591 = vmatpush1.msra.mxu0 0.0
    %1592 = vmatprep.subr.mxu0 0.0
    %1593 = vmatpush1.msra.mxu0 0.0
    %1594 = vmatprep.subr.mxu0 0.0
    %1595 = vmatpush1.msra.mxu0 0.0
    %1596 = vmatprep.subr.mxu0 0.0
    %1597 = vmatpush1.msra.mxu0 0.0
    %1598 = vmatprep.subr.mxu0 0.0
    %1599 = vmatpush1.msra.mxu0 0.0
    %1600 = vmatprep.subr.mxu0 0.0
    %1601 = vmatpush1.msra.mxu0 0.0
    %1602 = vmatprep.subr.mxu0 0.0
    %1603 = vmatpush1.msra.mxu0 0.0
    %1604 = vmatprep.subr.mxu0 0.0
    %1605 = vmatpush1.msra.mxu0 0.0
    %1606 = vmatprep.subr.mxu0 0.0
    %1607 = vmatpush1.msra.mxu0 0.0
    %1608 = vmatprep.subr.mxu0 0.0
    %1609 = vmatpush1.msra.mxu0 0.0
    %1610 = vmatprep.subr.mxu0 0.0
    %1611 = vmatpush1.msra.mxu0 0.0
    %1612 = vmatprep.subr.mxu0 0.0
    %1613 = vmatpush1.msra.mxu0 0.0
    %1614 = vmatprep.subr.mxu0 0.0
    %1615 = vmatpush1.msra.mxu0 0.0
    %1616 = vmatprep.subr.mxu0 0.0
    %1617 = vmatpush1.msra.mxu0 0.0
    %1618 = vmatprep.subr.mxu0 0.0
    %1619 = vmatpush1.msra.mxu0 0.0
    %1620 = vmatprep.subr.mxu0 0.0
    %1621 = vmatpush1.msra.mxu0 0.0
    %1622 = vmatprep.subr.mxu0 0.0
    %1623 = vmatpush1.msra.mxu0 0.0
    %1624 = vmatprep.subr.mxu0 0.0
    %1625 = vmatpush1.msra.mxu0 0.0
    %1626 = vmatprep.subr.mxu0 0.0
    %1627 = vmatpush1.msra.mxu0 0.0
    %1628 = vmatprep.subr.mxu0 0.0
    %1629 = vmatpush1.msra.mxu0 0.0
    %1630 = vmatprep.subr.mxu0 0.0
    %1631 = vmatpush1.msra.mxu0 0.0
    %1632 = vmatprep.subr.mxu0 0.0
    %1633 = vmatpush1.msra.mxu0 0.0
    %1634 = vmatprep.subr.mxu0 0.0
    %1635 = vmatpush1.msra.mxu0 0.0
    %1636 = vmatprep.mubr.f32.mxu0 0.0
    %1637 = vmatmul.mubr.f32.gmra.mrb[0].mxu0 %v1360
    %v1638 = vpop.f32.mrb[0].mxu0
    %v1639 = vadd.f32 %v1569, %v1638
    %v1640 = vpop.f32.mrb[0].mxu0
    %1641 = vdwg.mxu0
    %s1642 = sld [smem:[#allocation3 + $0x12]]
    %v1643 = vstv %s1642
    %v1644 = vmul.f32 %v1643, %v665
    %v1645 = vmul.f32 %v1643, %v666
    %s1646 = sld [smem:[#allocation3 + $0x13]]
    %v1647 = vstv %s1646
    %v1648 = vmul.f32 %v1647, %v671
    %v1649 = vmul.f32 %v1647, %v672
    %v1650 = vadd.f32 %v1644, %v1648
    %v1651 = vadd.f32 %v1645, %v1649
    %s1652 = sld [smem:[#allocation3 + $0x14]]
    %v1653 = vstv %s1652
    %v1654 = vmul.f32 %v1653, %v679
    %v1655 = vmul.f32 %v1653, %v680
    %v1656 = vadd.f32 %v1650, %v1654
    %v1657 = vadd.f32 %v1651, %v1655
    %s1658 = sld [smem:[#allocation3 + $0x15]]
    %v1659 = vstv %s1658
    %v1660 = vmul.f32 %v1659, %v687
    %v1661 = vmul.f32 %v1659, %v688
    %v1662 = vadd.f32 %v1656, %v1660
    %v1663 = vadd.f32 %v1657, %v1661
    %s1664 = sld [smem:[#allocation3 + $0x16]]
    %v1665 = vstv %s1664
    %v1666 = vmul.f32 %v1665, %v695
    %v1667 = vmul.f32 %v1665, %v696
    %v1668 = vadd.f32 %v1662, %v1666
    %v1669 = vadd.f32 %v1663, %v1667
    %s1670 = sld [smem:[#allocation3 + $0x17]]
    %v1671 = vstv %s1670
    %v1672 = vmul.f32 %v1671, %v703
    %v1673 = vmul.f32 %v1671, %v704
    %v1674 = vadd.f32 %v1668, %v1672
    %v1675 = vadd.f32 %v1669, %v1673
    %s1676 = sld [smem:[#allocation3 + $0x18]]
    %v1677 = vstv %s1676
    %v1678 = vmul.f32 %v1677, %v711
    %v1679 = vmul.f32 %v1677, %v712
    %v1680 = vadd.f32 %v1674, %v1678
    %v1681 = vadd.f32 %v1675, %v1679
    %s1682 = sld [smem:[#allocation3 + $0x19]]
    %v1683 = vstv %s1682
    %v1684 = vmul.f32 %v1683, %v719
    %v1685 = vmul.f32 %v1683, %v720
    %v1686 = vadd.f32 %v1680, %v1684
    %v1687 = vadd.f32 %v1681, %v1685
    %s1688 = sld [smem:[#allocation3 + $0x1a]]
    %v1689 = vstv %s1688
    %v1690 = vmul.f32 %v1689, %v727
    %v1691 = vmul.f32 %v1689, %v728
    %v1692 = vadd.f32 %v1686, %v1690
    %v1693 = vadd.f32 %v1687, %v1691
    %s1694 = sld [smem:[#allocation6 + $0x2]]
    %v1695 = vstv %s1694
    %v1696 = vadd.f32 %v1692, %v1695
    %v1697 = vadd.f32 %v1693, %v1695
    %v1698 = vmax.f32 %v1696, 0.0
    %v1699 = vmax.f32 %v1697, 0.0
    %s1700 = scalar_lea.vmem %s4, 1568
    %v1701 = vld [vmem:[%s1700] sm:$0xff]
    %v1702 = vld [vmem:[%s1700 + $0x8] sm:$0xff]
    %v1703 = vld [vmem:[%s1700 + $0x10] sm:$0xff]
    %v1704 = vld [vmem:[%s1700 + $0x18] sm:$0xff]
    %v1705 = vld [vmem:[%s1700 + $0x20] sm:$0xff]
    %v1706 = vld [vmem:[%s1700 + $0x28] sm:$0xff]
    %v1707 = vld [vmem:[%s1700 + $0x30] sm:$0xff]
    %v1708 = vld [vmem:[%s1700 + $0x38] sm:$0xff]
    %v1709 = vld [vmem:[%s1700 + $0x40] sm:$0xff]
    %v1710 = vld [vmem:[%s1700 + $0x48] sm:$0xff]
    %v1711 = vld [vmem:[%s1700 + $0x50] sm:$0xff]
    %v1712 = vld [vmem:[%s1700 + $0x58] sm:$0xff]
    %v1713 = vld [vmem:[%s1700 + $0x60] sm:$0xff]
    %v1714 = vld [vmem:[%s1700 + $0x68] sm:$0xff]
    %v1715 = vld [vmem:[%s1700 + $0x70] sm:$0xff]
    %v1716 = vld [vmem:[%s1700 + $0x78] sm:$0xff]
    %v1717 = vld [vmem:[%s1700 + $0x80] sm:$0xff]
    %v1718 = vld [vmem:[%s1700 + $0x88] sm:$0xff]
    %v1719 = vld [vmem:[%s1700 + $0x90] sm:$0xff]
    %v1720 = vld [vmem:[%s1700 + $0x98] sm:$0xff]
    %v1721 = vld [vmem:[%s1700 + $0xa0] sm:$0xff]
    %v1722 = vld [vmem:[%s1700 + $0xa8] sm:$0xff]
    %v1723 = vld [vmem:[%s1700 + $0xb0] sm:$0xff]
    %v1724 = vld [vmem:[%s1700 + $0xb8] sm:$0xff]
    %v1725 = vld [vmem:[%s1700 + $0xc0] sm:$0xff]
    %v1726 = vld [vmem:[%s1700 + $0xc8] sm:$0xff]
    %v1727 = vld [vmem:[%s1700 + $0xd0] sm:$0xff]
    %v1728 = vld [vmem:[%s1700 + $0xd8] sm:$0xff]
    %v1729 = vld [vmem:[%s1700 + $0xe0] sm:$0xff]
    %v1730 = vld [vmem:[%s1700 + $0xe8] sm:$0xff]
    %v1731 = vld [vmem:[%s1700 + $0xf0] sm:$0xff]
    %v1732 = vld [vmem:[%s1700 + $0xf8] sm:$0xff]
    %v1733 = vld [vmem:[%s1700 + $0x100] sm:$0xff]
    %v1734 = vld [vmem:[%s1700 + $0x108] sm:$0xff]
    %v1735 = vld [vmem:[%s1700 + $0x110] sm:$0xff]
    %v1736 = vld [vmem:[%s1700 + $0x118] sm:$0xff]
    %v1737 = vld [vmem:[%s1700 + $0x120] sm:$0xff]
    %v1738 = vld [vmem:[%s1700 + $0x128] sm:$0xff]
    %v1739 = vld [vmem:[%s1700 + $0x130] sm:$0xff]
    %v1740 = vld [vmem:[%s1700 + $0x138] sm:$0xff]
    %v1741 = vld [vmem:[%s1700 + $0x140] sm:$0xff]
    %v1742 = vld [vmem:[%s1700 + $0x148] sm:$0xff]
    %v1743 = vld [vmem:[%s1700 + $0x150] sm:$0xff]
    %v1744 = vld [vmem:[%s1700 + $0x158] sm:$0xff]
    %v1745 = vld [vmem:[%s1700 + $0x160] sm:$0xff]
    %v1746 = vld [vmem:[%s1700 + $0x168] sm:$0xff]
    %v1747 = vld [vmem:[%s1700 + $0x170] sm:$0xff]
    %v1748 = vld [vmem:[%s1700 + $0x178] sm:$0xff]
    %v1749 = vld [vmem:[%s1700 + $0x180] sm:$0xff]
    %v1750 = vld [vmem:[%s1700 + $0x188] sm:$0xff]
    %v1751 = vld [vmem:[%s1700 + $0x190] sm:$0xff]
    %v1752 = vld [vmem:[%s1700 + $0x198] sm:$0xff]
    %v1753 = vld [vmem:[%s1700 + $0x1a0] sm:$0xff]
    %v1754 = vld [vmem:[%s1700 + $0x1a8] sm:$0xff]
    %v1755 = vld [vmem:[%s1700 + $0x1b0] sm:$0xff]
    %v1756 = vld [vmem:[%s1700 + $0x1b8] sm:$0xff]
    %v1757 = vld [vmem:[%s1700 + $0x1c0] sm:$0xff]
    %v1758 = vld [vmem:[%s1700 + $0x1c8] sm:$0xff]
    %v1759 = vld [vmem:[%s1700 + $0x1d0] sm:$0xff]
    %v1760 = vld [vmem:[%s1700 + $0x1d8] sm:$0xff]
    %v1761 = vld [vmem:[%s1700 + $0x1e0] sm:$0xff]
    %v1762 = vld [vmem:[%s1700 + $0x1e8] sm:$0xff]
    %v1763 = vld [vmem:[%s1700 + $0x1f0] sm:$0xff]
    %v1764 = vld [vmem:[%s1700 + $0x1f8] sm:$0xff]
    %v1765 = vld [vmem:[%s1700 + $0x200] sm:$0xff]
    %v1766 = vld [vmem:[%s1700 + $0x208] sm:$0xff]
    %v1767 = vld [vmem:[%s1700 + $0x210] sm:$0xff]
    %v1768 = vld [vmem:[%s1700 + $0x218] sm:$0xff]
    %v1769 = vld [vmem:[%s1700 + $0x220] sm:$0xff]
    %v1770 = vld [vmem:[%s1700 + $0x228] sm:$0xff]
    %v1771 = vld [vmem:[%s1700 + $0x230] sm:$0xff]
    %v1772 = vld [vmem:[%s1700 + $0x238] sm:$0xff]
    %v1773 = vld [vmem:[%s1700 + $0x240] sm:$0xff]
    %v1774 = vld [vmem:[%s1700 + $0x248] sm:$0xff]
    %v1775 = vld [vmem:[%s1700 + $0x250] sm:$0xff]
    %v1776 = vld [vmem:[%s1700 + $0x258] sm:$0xff]
    %v1777 = vld [vmem:[%s1700 + $0x260] sm:$0xff]
    %v1778 = vld [vmem:[%s1700 + $0x268] sm:$0xff]
    %v1779 = vld [vmem:[%s1700 + $0x270] sm:$0xff]
    %v1780 = vld [vmem:[%s1700 + $0x278] sm:$0xff]
    %v1781 = vld [vmem:[%s1700 + $0x280] sm:$0xff]
    %v1782 = vld [vmem:[%s1700 + $0x288] sm:$0xff]
    %v1783 = vld [vmem:[%s1700 + $0x290] sm:$0xff]
    %v1784 = vld [vmem:[%s1700 + $0x298] sm:$0xff]
    %v1785 = vld [vmem:[%s1700 + $0x2a0] sm:$0xff]
    %v1786 = vld [vmem:[%s1700 + $0x2a8] sm:$0xff]
    %v1787 = vld [vmem:[%s1700 + $0x2b0] sm:$0xff]
    %v1788 = vld [vmem:[%s1700 + $0x2b8] sm:$0xff]
    %v1789 = vld [vmem:[%s1700 + $0x2c0] sm:$0xff]
    %v1790 = vld [vmem:[%s1700 + $0x2c8] sm:$0xff]
    %v1791 = vld [vmem:[%s1700 + $0x2d0] sm:$0xff]
    %v1792 = vld [vmem:[%s1700 + $0x2d8] sm:$0xff]
    %v1793 = vld [vmem:[%s1700 + $0x2e0] sm:$0xff]
    %v1794 = vld [vmem:[%s1700 + $0x2e8] sm:$0xff]
    %v1795 = vld [vmem:[%s1700 + $0x2f0] sm:$0xff]
    %v1796 = vld [vmem:[%s1700 + $0x2f8] sm:$0xff]
    %v1797 = vld [vmem:[%s1700 + $0x300] sm:$0xff]
    %v1798 = vld [vmem:[%s1700 + $0x308] sm:$0xff]
    %v1801 = vcombine.high %v1698, %v1698
    %v1803 = vunpack.c.l.s4 1983009808
    %v1804 = vunpack.c.0.s8 %v1803
    %v1805 = vlaneseq
    %v1806 = vshrl.u32 %v1805, 7
    %v1807 = vsub.s32 %v1804, %v1806
    %v1808 = vrot.slane %v1698, %v1807
    %v1810 = vunpack.c.l.s4 1983009808
    %v1811 = vunpack.c.0.s8 %v1810
    %v1812 = vlaneseq
    %v1813 = vshrl.u32 %v1812, 7
    %v1814 = vsub.s32 %v1811, %v1813
    %v1815 = vrot.slane %v1801, %v1814
    %v1816 = vcombine.high %v1808, %v1808
    %v1817 = vcombine.high %v1815, %v1815
    %v1818 = vcombine.high %v1699, %v1699
    %v1820 = vunpack.c.l.s4 1983009808
    %v1821 = vunpack.c.0.s8 %v1820
    %v1822 = vlaneseq
    %v1823 = vshrl.u32 %v1822, 7
    %v1824 = vsub.s32 %v1821, %v1823
    %v1825 = vrot.slane %v1699, %v1824
    %v1827 = vunpack.c.l.s4 1983009808
    %v1828 = vunpack.c.0.s8 %v1827
    %v1829 = vlaneseq
    %v1830 = vshrl.u32 %v1829, 7
    %v1831 = vsub.s32 %v1828, %v1830
    %v1832 = vrot.slane %v1818, %v1831
    %v1833 = vcombine.high %v1825, %v1825
    %v1840 = vsel %vm1036, %v1832, 0
    %1842 = vmatprep.subr.mxu0 0.0
    %1843 = vmatpush1.msra.mxu0 %v1701
    %1844 = vmatprep.subr.mxu0 0.0
    %1845 = vmatpush1.msra.mxu0 %v1702
    %1846 = vmatprep.subr.mxu0 0.0
    %1847 = vmatpush1.msra.mxu0 %v1703
    %1848 = vmatprep.subr.mxu0 0.0
    %1849 = vmatpush1.msra.mxu0 %v1704
    %1850 = vmatprep.subr.mxu0 0.0
    %1851 = vmatpush1.msra.mxu0 %v1705
    %1852 = vmatprep.subr.mxu0 0.0
    %1853 = vmatpush1.msra.mxu0 %v1706
    %1854 = vmatprep.subr.mxu0 0.0
    %1855 = vmatpush1.msra.mxu0 %v1707
    %1856 = vmatprep.subr.mxu0 0.0
    %1857 = vmatpush1.msra.mxu0 %v1708
    %1858 = vmatprep.subr.mxu0 0.0
    %1859 = vmatpush1.msra.mxu0 %v1709
    %1860 = vmatprep.subr.mxu0 0.0
    %1861 = vmatpush1.msra.mxu0 %v1710
    %1862 = vmatprep.subr.mxu0 0.0
    %1863 = vmatpush1.msra.mxu0 %v1711
    %1864 = vmatprep.subr.mxu0 0.0
    %1865 = vmatpush1.msra.mxu0 %v1712
    %1866 = vmatprep.subr.mxu0 0.0
    %1867 = vmatpush1.msra.mxu0 %v1713
    %1868 = vmatprep.subr.mxu0 0.0
    %1869 = vmatpush1.msra.mxu0 %v1714
    %1870 = vmatprep.subr.mxu0 0.0
    %1871 = vmatpush1.msra.mxu0 %v1715
    %1872 = vmatprep.subr.mxu0 0.0
    %1873 = vmatpush1.msra.mxu0 %v1716
    %1874 = vmatprep.subr.mxu0 0.0
    %1875 = vmatpush1.msra.mxu0 %v1717
    %1876 = vmatprep.subr.mxu0 0.0
    %1877 = vmatpush1.msra.mxu0 %v1718
    %1878 = vmatprep.subr.mxu0 0.0
    %1879 = vmatpush1.msra.mxu0 %v1719
    %1880 = vmatprep.subr.mxu0 0.0
    %1881 = vmatpush1.msra.mxu0 %v1720
    %1882 = vmatprep.subr.mxu0 0.0
    %1883 = vmatpush1.msra.mxu0 %v1721
    %1884 = vmatprep.subr.mxu0 0.0
    %1885 = vmatpush1.msra.mxu0 %v1722
    %1886 = vmatprep.subr.mxu0 0.0
    %1887 = vmatpush1.msra.mxu0 %v1723
    %1888 = vmatprep.subr.mxu0 0.0
    %1889 = vmatpush1.msra.mxu0 %v1724
    %1890 = vmatprep.subr.mxu0 0.0
    %1891 = vmatpush1.msra.mxu0 %v1725
    %1892 = vmatprep.subr.mxu0 0.0
    %1893 = vmatpush1.msra.mxu0 %v1726
    %1894 = vmatprep.subr.mxu0 0.0
    %1895 = vmatpush1.msra.mxu0 %v1727
    %1896 = vmatprep.subr.mxu0 0.0
    %1897 = vmatpush1.msra.mxu0 %v1728
    %1898 = vmatprep.subr.mxu0 0.0
    %1899 = vmatpush1.msra.mxu0 %v1729
    %1900 = vmatprep.subr.mxu0 0.0
    %1901 = vmatpush1.msra.mxu0 %v1730
    %1902 = vmatprep.subr.mxu0 0.0
    %1903 = vmatpush1.msra.mxu0 %v1731
    %1904 = vmatprep.subr.mxu0 0.0
    %1905 = vmatpush1.msra.mxu0 %v1732
    %1906 = vmatprep.mubr.f32.mxu0 %v1816
    %1907 = vmatmul.mubr.f32.gmra.mrb[0].mxu0 %v1808
    %v1908 = vpop.f32.mrb[0].mxu0
    %v1909 = vadd.f32 0.0, %v1908
    %v1910 = vpop.f32.mrb[0].mxu0
    %1911 = vdwg.mxu0
    %1912 = vmatprep.subr.mxu0 0.0
    %1913 = vmatpush1.msra.mxu0 %v1733
    %1914 = vmatprep.subr.mxu0 0.0
    %1915 = vmatpush1.msra.mxu0 %v1734
    %1916 = vmatprep.subr.mxu0 0.0
    %1917 = vmatpush1.msra.mxu0 %v1735
    %1918 = vmatprep.subr.mxu0 0.0
    %1919 = vmatpush1.msra.mxu0 %v1736
    %1920 = vmatprep.subr.mxu0 0.0
    %1921 = vmatpush1.msra.mxu0 %v1737
    %1922 = vmatprep.subr.mxu0 0.0
    %1923 = vmatpush1.msra.mxu0 %v1738
    %1924 = vmatprep.subr.mxu0 0.0
    %1925 = vmatpush1.msra.mxu0 %v1739
    %1926 = vmatprep.subr.mxu0 0.0
    %1927 = vmatpush1.msra.mxu0 %v1740
    %1928 = vmatprep.subr.mxu0 0.0
    %1929 = vmatpush1.msra.mxu0 %v1741
    %1930 = vmatprep.subr.mxu0 0.0
    %1931 = vmatpush1.msra.mxu0 %v1742
    %1932 = vmatprep.subr.mxu0 0.0
    %1933 = vmatpush1.msra.mxu0 %v1743
    %1934 = vmatprep.subr.mxu0 0.0
    %1935 = vmatpush1.msra.mxu0 %v1744
    %1936 = vmatprep.subr.mxu0 0.0
    %1937 = vmatpush1.msra.mxu0 %v1745
    %1938 = vmatprep.subr.mxu0 0.0
    %1939 = vmatpush1.msra.mxu0 %v1746
    %1940 = vmatprep.subr.mxu0 0.0
    %1941 = vmatpush1.msra.mxu0 %v1747
    %1942 = vmatprep.subr.mxu0 0.0
    %1943 = vmatpush1.msra.mxu0 %v1748
    %1944 = vmatprep.subr.mxu0 0.0
    %1945 = vmatpush1.msra.mxu0 %v1749
    %1946 = vmatprep.subr.mxu0 0.0
    %1947 = vmatpush1.msra.mxu0 %v1750
    %1948 = vmatprep.subr.mxu0 0.0
    %1949 = vmatpush1.msra.mxu0 %v1751
    %1950 = vmatprep.subr.mxu0 0.0
    %1951 = vmatpush1.msra.mxu0 %v1752
    %1952 = vmatprep.subr.mxu0 0.0
    %1953 = vmatpush1.msra.mxu0 %v1753
    %1954 = vmatprep.subr.mxu0 0.0
    %1955 = vmatpush1.msra.mxu0 %v1754
    %1956 = vmatprep.subr.mxu0 0.0
    %1957 = vmatpush1.msra.mxu0 %v1755
    %1958 = vmatprep.subr.mxu0 0.0
    %1959 = vmatpush1.msra.mxu0 %v1756
    %1960 = vmatprep.subr.mxu0 0.0
    %1961 = vmatpush1.msra.mxu0 %v1757
    %1962 = vmatprep.subr.mxu0 0.0
    %1963 = vmatpush1.msra.mxu0 %v1758
    %1964 = vmatprep.subr.mxu0 0.0
    %1965 = vmatpush1.msra.mxu0 %v1759
    %1966 = vmatprep.subr.mxu0 0.0
    %1967 = vmatpush1.msra.mxu0 %v1760
    %1968 = vmatprep.subr.mxu0 0.0
    %1969 = vmatpush1.msra.mxu0 %v1761
    %1970 = vmatprep.subr.mxu0 0.0
    %1971 = vmatpush1.msra.mxu0 %v1762
    %1972 = vmatprep.subr.mxu0 0.0
    %1973 = vmatpush1.msra.mxu0 %v1763
    %1974 = vmatprep.subr.mxu0 0.0
    %1975 = vmatpush1.msra.mxu0 %v1764
    %1976 = vmatprep.mubr.f32.mxu0 %v1817
    %1977 = vmatmul.mubr.f32.gmra.mrb[0].mxu0 %v1815
    %v1978 = vpop.f32.mrb[0].mxu0
    %v1979 = vadd.f32 %v1909, %v1978
    %v1980 = vpop.f32.mrb[0].mxu0
    %1981 = vdwg.mxu0
    %1982 = vmatprep.subr.mxu0 0.0
    %1983 = vmatpush1.msra.mxu0 %v1765
    %1984 = vmatprep.subr.mxu0 0.0
    %1985 = vmatpush1.msra.mxu0 %v1766
    %1986 = vmatprep.subr.mxu0 0.0
    %1987 = vmatpush1.msra.mxu0 %v1767
    %1988 = vmatprep.subr.mxu0 0.0
    %1989 = vmatpush1.msra.mxu0 %v1768
    %1990 = vmatprep.subr.mxu0 0.0
    %1991 = vmatpush1.msra.mxu0 %v1769
    %1992 = vmatprep.subr.mxu0 0.0
    %1993 = vmatpush1.msra.mxu0 %v1770
    %1994 = vmatprep.subr.mxu0 0.0
    %1995 = vmatpush1.msra.mxu0 %v1771
    %1996 = vmatprep.subr.mxu0 0.0
    %1997 = vmatpush1.msra.mxu0 %v1772
    %1998 = vmatprep.subr.mxu0 0.0
    %1999 = vmatpush1.msra.mxu0 %v1773
    %2000 = vmatprep.subr.mxu0 0.0
    %2001 = vmatpush1.msra.mxu0 %v1774
    %2002 = vmatprep.subr.mxu0 0.0
    %2003 = vmatpush1.msra.mxu0 %v1775
    %2004 = vmatprep.subr.mxu0 0.0
    %2005 = vmatpush1.msra.mxu0 %v1776
    %2006 = vmatprep.subr.mxu0 0.0
    %2007 = vmatpush1.msra.mxu0 %v1777
    %2008 = vmatprep.subr.mxu0 0.0
    %2009 = vmatpush1.msra.mxu0 %v1778
    %2010 = vmatprep.subr.mxu0 0.0
    %2011 = vmatpush1.msra.mxu0 %v1779
    %2012 = vmatprep.subr.mxu0 0.0
    %2013 = vmatpush1.msra.mxu0 %v1780
    %2014 = vmatprep.subr.mxu0 0.0
    %2015 = vmatpush1.msra.mxu0 %v1781
    %2016 = vmatprep.subr.mxu0 0.0
    %2017 = vmatpush1.msra.mxu0 %v1782
    %2018 = vmatprep.subr.mxu0 0.0
    %2019 = vmatpush1.msra.mxu0 %v1783
    %2020 = vmatprep.subr.mxu0 0.0
    %2021 = vmatpush1.msra.mxu0 %v1784
    %2022 = vmatprep.subr.mxu0 0.0
    %2023 = vmatpush1.msra.mxu0 %v1785
    %2024 = vmatprep.subr.mxu0 0.0
    %2025 = vmatpush1.msra.mxu0 %v1786
    %2026 = vmatprep.subr.mxu0 0.0
    %2027 = vmatpush1.msra.mxu0 %v1787
    %2028 = vmatprep.subr.mxu0 0.0
    %2029 = vmatpush1.msra.mxu0 %v1788
    %2030 = vmatprep.subr.mxu0 0.0
    %2031 = vmatpush1.msra.mxu0 %v1789
    %2032 = vmatprep.subr.mxu0 0.0
    %2033 = vmatpush1.msra.mxu0 %v1790
    %2034 = vmatprep.subr.mxu0 0.0
    %2035 = vmatpush1.msra.mxu0 %v1791
    %2036 = vmatprep.subr.mxu0 0.0
    %2037 = vmatpush1.msra.mxu0 %v1792
    %2038 = vmatprep.subr.mxu0 0.0
    %2039 = vmatpush1.msra.mxu0 %v1793
    %2040 = vmatprep.subr.mxu0 0.0
    %2041 = vmatpush1.msra.mxu0 %v1794
    %2042 = vmatprep.subr.mxu0 0.0
    %2043 = vmatpush1.msra.mxu0 %v1795
    %2044 = vmatprep.subr.mxu0 0.0
    %2045 = vmatpush1.msra.mxu0 %v1796
    %2046 = vmatprep.mubr.f32.mxu0 %v1833
    %2047 = vmatmul.mubr.f32.gmra.mrb[0].mxu0 %v1825
    %v2048 = vpop.f32.mrb[0].mxu0
    %v2049 = vadd.f32 %v1979, %v2048
    %v2050 = vpop.f32.mrb[0].mxu0
    %2051 = vdwg.mxu0
    %2052 = vmatprep.subr.mxu0 0.0
    %2053 = vmatpush1.msra.mxu0 %v1797
    %2054 = vmatprep.subr.mxu0 0.0
    %2055 = vmatpush1.msra.mxu0 %v1798
    %2056 = vmatprep.subr.mxu0 0.0
    %2057 = vmatpush1.msra.mxu0 0.0
    %2058 = vmatprep.subr.mxu0 0.0
    %2059 = vmatpush1.msra.mxu0 0.0
    %2060 = vmatprep.subr.mxu0 0.0
    %2061 = vmatpush1.msra.mxu0 0.0
    %2062 = vmatprep.subr.mxu0 0.0
    %2063 = vmatpush1.msra.mxu0 0.0
    %2064 = vmatprep.subr.mxu0 0.0
    %2065 = vmatpush1.msra.mxu0 0.0
    %2066 = vmatprep.subr.mxu0 0.0
    %2067 = vmatpush1.msra.mxu0 0.0
    %2068 = vmatprep.subr.mxu0 0.0
    %2069 = vmatpush1.msra.mxu0 0.0
    %2070 = vmatprep.subr.mxu0 0.0
    %2071 = vmatpush1.msra.mxu0 0.0
    %2072 = vmatprep.subr.mxu0 0.0
    %2073 = vmatpush1.msra.mxu0 0.0
    %2074 = vmatprep.subr.mxu0 0.0
    %2075 = vmatpush1.msra.mxu0 0.0
    %2076 = vmatprep.subr.mxu0 0.0
    %2077 = vmatpush1.msra.mxu0 0.0
    %2078 = vmatprep.subr.mxu0 0.0
    %2079 = vmatpush1.msra.mxu0 0.0
    %2080 = vmatprep.subr.mxu0 0.0
    %2081 = vmatpush1.msra.mxu0 0.0
    %2082 = vmatprep.subr.mxu0 0.0
    %2083 = vmatpush1.msra.mxu0 0.0
    %2084 = vmatprep.subr.mxu0 0.0
    %2085 = vmatpush1.msra.mxu0 0.0
    %2086 = vmatprep.subr.mxu0 0.0
    %2087 = vmatpush1.msra.mxu0 0.0
    %2088 = vmatprep.subr.mxu0 0.0
    %2089 = vmatpush1.msra.mxu0 0.0
    %2090 = vmatprep.subr.mxu0 0.0
    %2091 = vmatpush1.msra.mxu0 0.0
    %2092 = vmatprep.subr.mxu0 0.0
    %2093 = vmatpush1.msra.mxu0 0.0
    %2094 = vmatprep.subr.mxu0 0.0
    %2095 = vmatpush1.msra.mxu0 0.0
    %2096 = vmatprep.subr.mxu0 0.0
    %2097 = vmatpush1.msra.mxu0 0.0
    %2098 = vmatprep.subr.mxu0 0.0
    %2099 = vmatpush1.msra.mxu0 0.0
    %2100 = vmatprep.subr.mxu0 0.0
    %2101 = vmatpush1.msra.mxu0 0.0
    %2102 = vmatprep.subr.mxu0 0.0
    %2103 = vmatpush1.msra.mxu0 0.0
    %2104 = vmatprep.subr.mxu0 0.0
    %2105 = vmatpush1.msra.mxu0 0.0
    %2106 = vmatprep.subr.mxu0 0.0
    %2107 = vmatpush1.msra.mxu0 0.0
    %2108 = vmatprep.subr.mxu0 0.0
    %2109 = vmatpush1.msra.mxu0 0.0
    %2110 = vmatprep.subr.mxu0 0.0
    %2111 = vmatpush1.msra.mxu0 0.0
    %2112 = vmatprep.subr.mxu0 0.0
    %2113 = vmatpush1.msra.mxu0 0.0
    %2114 = vmatprep.subr.mxu0 0.0
    %2115 = vmatpush1.msra.mxu0 0.0
    %2116 = vmatprep.mubr.f32.mxu0 0.0
    %2117 = vmatmul.mubr.f32.gmra.mrb[0].mxu0 %v1840
    %v2118 = vpop.f32.mrb[0].mxu0
    %v2119 = vadd.f32 %v2049, %v2118
    %v2120 = vpop.f32.mrb[0].mxu0
    %2121 = vdwg.mxu0
    %v2122 = vadd.f32 %v1639, %v2119
    %s2123 = sld [smem:[#allocation3 + $0x1b]]
    %v2124 = vstv %s2123
    %v2125 = vmul.f32 %v2124, %v665
    %v2126 = vmul.f32 %v2124, %v666
    %s2127 = sld [smem:[#allocation3 + $0x1c]]
    %v2128 = vstv %s2127
    %v2129 = vmul.f32 %v2128, %v671
    %v2130 = vmul.f32 %v2128, %v672
    %v2131 = vadd.f32 %v2125, %v2129
    %v2132 = vadd.f32 %v2126, %v2130
    %s2133 = sld [smem:[#allocation3 + $0x1d]]
    %v2134 = vstv %s2133
    %v2135 = vmul.f32 %v2134, %v679
    %v2136 = vmul.f32 %v2134, %v680
    %v2137 = vadd.f32 %v2131, %v2135
    %v2138 = vadd.f32 %v2132, %v2136
    %s2139 = sld [smem:[#allocation3 + $0x1e]]
    %v2140 = vstv %s2139
    %v2141 = vmul.f32 %v2140, %v687
    %v2142 = vmul.f32 %v2140, %v688
    %v2143 = vadd.f32 %v2137, %v2141
    %v2144 = vadd.f32 %v2138, %v2142
    %s2145 = sld [smem:[#allocation3 + $0x1f]]
    %v2146 = vstv %s2145
    %v2147 = vmul.f32 %v2146, %v695
    %v2148 = vmul.f32 %v2146, %v696
    %v2149 = vadd.f32 %v2143, %v2147
    %v2150 = vadd.f32 %v2144, %v2148
    %s2151 = sld [smem:[#allocation3 + $0x20]]
    %v2152 = vstv %s2151
    %v2153 = vmul.f32 %v2152, %v703
    %v2154 = vmul.f32 %v2152, %v704
    %v2155 = vadd.f32 %v2149, %v2153
    %v2156 = vadd.f32 %v2150, %v2154
    %s2157 = sld [smem:[#allocation3 + $0x21]]
    %v2158 = vstv %s2157
    %v2159 = vmul.f32 %v2158, %v711
    %v2160 = vmul.f32 %v2158, %v712
    %v2161 = vadd.f32 %v2155, %v2159
    %v2162 = vadd.f32 %v2156, %v2160
    %s2163 = sld [smem:[#allocation3 + $0x22]]
    %v2164 = vstv %s2163
    %v2165 = vmul.f32 %v2164, %v719
    %v2166 = vmul.f32 %v2164, %v720
    %v2167 = vadd.f32 %v2161, %v2165
    %v2168 = vadd.f32 %v2162, %v2166
    %s2169 = sld [smem:[#allocation3 + $0x23]]
    %v2170 = vstv %s2169
    %v2171 = vmul.f32 %v2170, %v727
    %v2172 = vmul.f32 %v2170, %v728
    %v2173 = vadd.f32 %v2167, %v2171
    %v2174 = vadd.f32 %v2168, %v2172
    %s2175 = sld [smem:[#allocation6 + $0x3]]
    %v2176 = vstv %s2175
    %v2177 = vadd.f32 %v2173, %v2176
    %v2178 = vadd.f32 %v2174, %v2176
    %v2179 = vmax.f32 %v2177, 0.0
    %v2180 = vmax.f32 %v2178, 0.0
    %s2181 = scalar_lea.vmem %s4, 2352
    %v2182 = vld [vmem:[%s2181] sm:$0xff]
    %v2183 = vld [vmem:[%s2181 + $0x8] sm:$0xff]
    %v2184 = vld [vmem:[%s2181 + $0x10] sm:$0xff]
    %v2185 = vld [vmem:[%s2181 + $0x18] sm:$0xff]
    %v2186 = vld [vmem:[%s2181 + $0x20] sm:$0xff]
    %v2187 = vld [vmem:[%s2181 + $0x28] sm:$0xff]
    %v2188 = vld [vmem:[%s2181 + $0x30] sm:$0xff]
    %v2189 = vld [vmem:[%s2181 + $0x38] sm:$0xff]
    %v2190 = vld [vmem:[%s2181 + $0x40] sm:$0xff]
    %v2191 = vld [vmem:[%s2181 + $0x48] sm:$0xff]
    %v2192 = vld [vmem:[%s2181 + $0x50] sm:$0xff]
    %v2193 = vld [vmem:[%s2181 + $0x58] sm:$0xff]
    %v2194 = vld [vmem:[%s2181 + $0x60] sm:$0xff]
    %v2195 = vld [vmem:[%s2181 + $0x68] sm:$0xff]
    %v2196 = vld [vmem:[%s2181 + $0x70] sm:$0xff]
    %v2197 = vld [vmem:[%s2181 + $0x78] sm:$0xff]
    %v2198 = vld [vmem:[%s2181 + $0x80] sm:$0xff]
    %v2199 = vld [vmem:[%s2181 + $0x88] sm:$0xff]
    %v2200 = vld [vmem:[%s2181 + $0x90] sm:$0xff]
    %v2201 = vld [vmem:[%s2181 + $0x98] sm:$0xff]
    %v2202 = vld [vmem:[%s2181 + $0xa0] sm:$0xff]
    %v2203 = vld [vmem:[%s2181 + $0xa8] sm:$0xff]
    %v2204 = vld [vmem:[%s2181 + $0xb0] sm:$0xff]
    %v2205 = vld [vmem:[%s2181 + $0xb8] sm:$0xff]
    %v2206 = vld [vmem:[%s2181 + $0xc0] sm:$0xff]
    %v2207 = vld [vmem:[%s2181 + $0xc8] sm:$0xff]
    %v2208 = vld [vmem:[%s2181 + $0xd0] sm:$0xff]
    %v2209 = vld [vmem:[%s2181 + $0xd8] sm:$0xff]
    %v2210 = vld [vmem:[%s2181 + $0xe0] sm:$0xff]
    %v2211 = vld [vmem:[%s2181 + $0xe8] sm:$0xff]
    %v2212 = vld [vmem:[%s2181 + $0xf0] sm:$0xff]
    %v2213 = vld [vmem:[%s2181 + $0xf8] sm:$0xff]
    %v2214 = vld [vmem:[%s2181 + $0x100] sm:$0xff]
    %v2215 = vld [vmem:[%s2181 + $0x108] sm:$0xff]
    %v2216 = vld [vmem:[%s2181 + $0x110] sm:$0xff]
    %v2217 = vld [vmem:[%s2181 + $0x118] sm:$0xff]
    %v2218 = vld [vmem:[%s2181 + $0x120] sm:$0xff]
    %v2219 = vld [vmem:[%s2181 + $0x128] sm:$0xff]
    %v2220 = vld [vmem:[%s2181 + $0x130] sm:$0xff]
    %v2221 = vld [vmem:[%s2181 + $0x138] sm:$0xff]
    %v2222 = vld [vmem:[%s2181 + $0x140] sm:$0xff]
    %v2223 = vld [vmem:[%s2181 + $0x148] sm:$0xff]
    %v2224 = vld [vmem:[%s2181 + $0x150] sm:$0xff]
    %v2225 = vld [vmem:[%s2181 + $0x158] sm:$0xff]
    %v2226 = vld [vmem:[%s2181 + $0x160] sm:$0xff]
    %v2227 = vld [vmem:[%s2181 + $0x168] sm:$0xff]
    %v2228 = vld [vmem:[%s2181 + $0x170] sm:$0xff]
    %v2229 = vld [vmem:[%s2181 + $0x178] sm:$0xff]
    %v2230 = vld [vmem:[%s2181 + $0x180] sm:$0xff]
    %v2231 = vld [vmem:[%s2181 + $0x188] sm:$0xff]
    %v2232 = vld [vmem:[%s2181 + $0x190] sm:$0xff]
    %v2233 = vld [vmem:[%s2181 + $0x198] sm:$0xff]
    %v2234 = vld [vmem:[%s2181 + $0x1a0] sm:$0xff]
    %v2235 = vld [vmem:[%s2181 + $0x1a8] sm:$0xff]
    %v2236 = vld [vmem:[%s2181 + $0x1b0] sm:$0xff]
    %v2237 = vld [vmem:[%s2181 + $0x1b8] sm:$0xff]
    %v2238 = vld [vmem:[%s2181 + $0x1c0] sm:$0xff]
    %v2239 = vld [vmem:[%s2181 + $0x1c8] sm:$0xff]
    %v2240 = vld [vmem:[%s2181 + $0x1d0] sm:$0xff]
    %v2241 = vld [vmem:[%s2181 + $0x1d8] sm:$0xff]
    %v2242 = vld [vmem:[%s2181 + $0x1e0] sm:$0xff]
    %v2243 = vld [vmem:[%s2181 + $0x1e8] sm:$0xff]
    %v2244 = vld [vmem:[%s2181 + $0x1f0] sm:$0xff]
    %v2245 = vld [vmem:[%s2181 + $0x1f8] sm:$0xff]
    %v2246 = vld [vmem:[%s2181 + $0x200] sm:$0xff]
    %v2247 = vld [vmem:[%s2181 + $0x208] sm:$0xff]
    %v2248 = vld [vmem:[%s2181 + $0x210] sm:$0xff]
    %v2249 = vld [vmem:[%s2181 + $0x218] sm:$0xff]
    %v2250 = vld [vmem:[%s2181 + $0x220] sm:$0xff]
    %v2251 = vld [vmem:[%s2181 + $0x228] sm:$0xff]
    %v2252 = vld [vmem:[%s2181 + $0x230] sm:$0xff]
    %v2253 = vld [vmem:[%s2181 + $0x238] sm:$0xff]
    %v2254 = vld [vmem:[%s2181 + $0x240] sm:$0xff]
    %v2255 = vld [vmem:[%s2181 + $0x248] sm:$0xff]
    %v2256 = vld [vmem:[%s2181 + $0x250] sm:$0xff]
    %v2257 = vld [vmem:[%s2181 + $0x258] sm:$0xff]
    %v2258 = vld [vmem:[%s2181 + $0x260] sm:$0xff]
    %v2259 = vld [vmem:[%s2181 + $0x268] sm:$0xff]
    %v2260 = vld [vmem:[%s2181 + $0x270] sm:$0xff]
    %v2261 = vld [vmem:[%s2181 + $0x278] sm:$0xff]
    %v2262 = vld [vmem:[%s2181 + $0x280] sm:$0xff]
    %v2263 = vld [vmem:[%s2181 + $0x288] sm:$0xff]
    %v2264 = vld [vmem:[%s2181 + $0x290] sm:$0xff]
    %v2265 = vld [vmem:[%s2181 + $0x298] sm:$0xff]
    %v2266 = vld [vmem:[%s2181 + $0x2a0] sm:$0xff]
    %v2267 = vld [vmem:[%s2181 + $0x2a8] sm:$0xff]
    %v2268 = vld [vmem:[%s2181 + $0x2b0] sm:$0xff]
    %v2269 = vld [vmem:[%s2181 + $0x2b8] sm:$0xff]
    %v2270 = vld [vmem:[%s2181 + $0x2c0] sm:$0xff]
    %v2271 = vld [vmem:[%s2181 + $0x2c8] sm:$0xff]
    %v2272 = vld [vmem:[%s2181 + $0x2d0] sm:$0xff]
    %v2273 = vld [vmem:[%s2181 + $0x2d8] sm:$0xff]
    %v2274 = vld [vmem:[%s2181 + $0x2e0] sm:$0xff]
    %v2275 = vld [vmem:[%s2181 + $0x2e8] sm:$0xff]
    %v2276 = vld [vmem:[%s2181 + $0x2f0] sm:$0xff]
    %v2277 = vld [vmem:[%s2181 + $0x2f8] sm:$0xff]
    %v2278 = vld [vmem:[%s2181 + $0x300] sm:$0xff]
    %v2279 = vld [vmem:[%s2181 + $0x308] sm:$0xff]
    %v2282 = vcombine.high %v2179, %v2179
    %v2284 = vunpack.c.l.s4 1983009808
    %v2285 = vunpack.c.0.s8 %v2284
    %v2286 = vlaneseq
    %v2287 = vshrl.u32 %v2286, 7
    %v2288 = vsub.s32 %v2285, %v2287
    %v2289 = vrot.slane %v2179, %v2288
    %v2291 = vunpack.c.l.s4 1983009808
    %v2292 = vunpack.c.0.s8 %v2291
    %v2293 = vlaneseq
    %v2294 = vshrl.u32 %v2293, 7
    %v2295 = vsub.s32 %v2292, %v2294
    %v2296 = vrot.slane %v2282, %v2295
    %v2297 = vcombine.high %v2289, %v2289
    %v2298 = vcombine.high %v2296, %v2296
    %v2299 = vcombine.high %v2180, %v2180
    %v2301 = vunpack.c.l.s4 1983009808
    %v2302 = vunpack.c.0.s8 %v2301
    %v2303 = vlaneseq
    %v2304 = vshrl.u32 %v2303, 7
    %v2305 = vsub.s32 %v2302, %v2304
    %v2306 = vrot.slane %v2180, %v2305
    %v2308 = vunpack.c.l.s4 1983009808
    %v2309 = vunpack.c.0.s8 %v2308
    %v2310 = vlaneseq
    %v2311 = vshrl.u32 %v2310, 7
    %v2312 = vsub.s32 %v2309, %v2311
    %v2313 = vrot.slane %v2299, %v2312
    %v2314 = vcombine.high %v2306, %v2306
    %v2321 = vsel %vm1036, %v2313, 0
    %2323 = vmatprep.subr.mxu0 0.0
    %2324 = vmatpush1.msra.mxu0 %v2182
    %2325 = vmatprep.subr.mxu0 0.0
    %2326 = vmatpush1.msra.mxu0 %v2183
    %2327 = vmatprep.subr.mxu0 0.0
    %2328 = vmatpush1.msra.mxu0 %v2184
    %2329 = vmatprep.subr.mxu0 0.0
    %2330 = vmatpush1.msra.mxu0 %v2185
    %2331 = vmatprep.subr.mxu0 0.0
    %2332 = vmatpush1.msra.mxu0 %v2186
    %2333 = vmatprep.subr.mxu0 0.0
    %2334 = vmatpush1.msra.mxu0 %v2187
    %2335 = vmatprep.subr.mxu0 0.0
    %2336 = vmatpush1.msra.mxu0 %v2188
    %2337 = vmatprep.subr.mxu0 0.0
    %2338 = vmatpush1.msra.mxu0 %v2189
    %2339 = vmatprep.subr.mxu0 0.0
    %2340 = vmatpush1.msra.mxu0 %v2190
    %2341 = vmatprep.subr.mxu0 0.0
    %2342 = vmatpush1.msra.mxu0 %v2191
    %2343 = vmatprep.subr.mxu0 0.0
    %2344 = vmatpush1.msra.mxu0 %v2192
    %2345 = vmatprep.subr.mxu0 0.0
    %2346 = vmatpush1.msra.mxu0 %v2193
    %2347 = vmatprep.subr.mxu0 0.0
    %2348 = vmatpush1.msra.mxu0 %v2194
    %2349 = vmatprep.subr.mxu0 0.0
    %2350 = vmatpush1.msra.mxu0 %v2195
    %2351 = vmatprep.subr.mxu0 0.0
    %2352 = vmatpush1.msra.mxu0 %v2196
    %2353 = vmatprep.subr.mxu0 0.0
    %2354 = vmatpush1.msra.mxu0 %v2197
    %2355 = vmatprep.subr.mxu0 0.0
    %2356 = vmatpush1.msra.mxu0 %v2198
    %2357 = vmatprep.subr.mxu0 0.0
    %2358 = vmatpush1.msra.mxu0 %v2199
    %2359 = vmatprep.subr.mxu0 0.0
    %2360 = vmatpush1.msra.mxu0 %v2200
    %2361 = vmatprep.subr.mxu0 0.0
    %2362 = vmatpush1.msra.mxu0 %v2201
    %2363 = vmatprep.subr.mxu0 0.0
    %2364 = vmatpush1.msra.mxu0 %v2202
    %2365 = vmatprep.subr.mxu0 0.0
    %2366 = vmatpush1.msra.mxu0 %v2203
    %2367 = vmatprep.subr.mxu0 0.0
    %2368 = vmatpush1.msra.mxu0 %v2204
    %2369 = vmatprep.subr.mxu0 0.0
    %2370 = vmatpush1.msra.mxu0 %v2205
    %2371 = vmatprep.subr.mxu0 0.0
    %2372 = vmatpush1.msra.mxu0 %v2206
    %2373 = vmatprep.subr.mxu0 0.0
    %2374 = vmatpush1.msra.mxu0 %v2207
    %2375 = vmatprep.subr.mxu0 0.0
    %2376 = vmatpush1.msra.mxu0 %v2208
    %2377 = vmatprep.subr.mxu0 0.0
    %2378 = vmatpush1.msra.mxu0 %v2209
    %2379 = vmatprep.subr.mxu0 0.0
    %2380 = vmatpush1.msra.mxu0 %v2210
    %2381 = vmatprep.subr.mxu0 0.0
    %2382 = vmatpush1.msra.mxu0 %v2211
    %2383 = vmatprep.subr.mxu0 0.0
    %2384 = vmatpush1.msra.mxu0 %v2212
    %2385 = vmatprep.subr.mxu0 0.0
    %2386 = vmatpush1.msra.mxu0 %v2213
    %2387 = vmatprep.mubr.f32.mxu0 %v2297
    %2388 = vmatmul.mubr.f32.gmra.mrb[0].mxu0 %v2289
    %v2389 = vpop.f32.mrb[0].mxu0
    %v2390 = vadd.f32 0.0, %v2389
    %v2391 = vpop.f32.mrb[0].mxu0
    %2392 = vdwg.mxu0
    %2393 = vmatprep.subr.mxu0 0.0
    %2394 = vmatpush1.msra.mxu0 %v2214
    %2395 = vmatprep.subr.mxu0 0.0
    %2396 = vmatpush1.msra.mxu0 %v2215
    %2397 = vmatprep.subr.mxu0 0.0
    %2398 = vmatpush1.msra.mxu0 %v2216
    %2399 = vmatprep.subr.mxu0 0.0
    %2400 = vmatpush1.msra.mxu0 %v2217
    %2401 = vmatprep.subr.mxu0 0.0
    %2402 = vmatpush1.msra.mxu0 %v2218
    %2403 = vmatprep.subr.mxu0 0.0
    %2404 = vmatpush1.msra.mxu0 %v2219
    %2405 = vmatprep.subr.mxu0 0.0
    %2406 = vmatpush1.msra.mxu0 %v2220
    %2407 = vmatprep.subr.mxu0 0.0
    %2408 = vmatpush1.msra.mxu0 %v2221
    %2409 = vmatprep.subr.mxu0 0.0
    %2410 = vmatpush1.msra.mxu0 %v2222
    %2411 = vmatprep.subr.mxu0 0.0
    %2412 = vmatpush1.msra.mxu0 %v2223
    %2413 = vmatprep.subr.mxu0 0.0
    %2414 = vmatpush1.msra.mxu0 %v2224
    %2415 = vmatprep.subr.mxu0 0.0
    %2416 = vmatpush1.msra.mxu0 %v2225
    %2417 = vmatprep.subr.mxu0 0.0
    %2418 = vmatpush1.msra.mxu0 %v2226
    %2419 = vmatprep.subr.mxu0 0.0
    %2420 = vmatpush1.msra.mxu0 %v2227
    %2421 = vmatprep.subr.mxu0 0.0
    %2422 = vmatpush1.msra.mxu0 %v2228
    %2423 = vmatprep.subr.mxu0 0.0
    %2424 = vmatpush1.msra.mxu0 %v2229
    %2425 = vmatprep.subr.mxu0 0.0
    %2426 = vmatpush1.msra.mxu0 %v2230
    %2427 = vmatprep.subr.mxu0 0.0
    %2428 = vmatpush1.msra.mxu0 %v2231
    %2429 = vmatprep.subr.mxu0 0.0
    %2430 = vmatpush1.msra.mxu0 %v2232
    %2431 = vmatprep.subr.mxu0 0.0
    %2432 = vmatpush1.msra.mxu0 %v2233
    %2433 = vmatprep.subr.mxu0 0.0
    %2434 = vmatpush1.msra.mxu0 %v2234
    %2435 = vmatprep.subr.mxu0 0.0
    %2436 = vmatpush1.msra.mxu0 %v2235
    %2437 = vmatprep.subr.mxu0 0.0
    %2438 = vmatpush1.msra.mxu0 %v2236
    %2439 = vmatprep.subr.mxu0 0.0
    %2440 = vmatpush1.msra.mxu0 %v2237
    %2441 = vmatprep.subr.mxu0 0.0
    %2442 = vmatpush1.msra.mxu0 %v2238
    %2443 = vmatprep.subr.mxu0 0.0
    %2444 = vmatpush1.msra.mxu0 %v2239
    %2445 = vmatprep.subr.mxu0 0.0
    %2446 = vmatpush1.msra.mxu0 %v2240
    %2447 = vmatprep.subr.mxu0 0.0
    %2448 = vmatpush1.msra.mxu0 %v2241
    %2449 = vmatprep.subr.mxu0 0.0
    %2450 = vmatpush1.msra.mxu0 %v2242
    %2451 = vmatprep.subr.mxu0 0.0
    %2452 = vmatpush1.msra.mxu0 %v2243
    %2453 = vmatprep.subr.mxu0 0.0
    %2454 = vmatpush1.msra.mxu0 %v2244
    %2455 = vmatprep.subr.mxu0 0.0
    %2456 = vmatpush1.msra.mxu0 %v2245
    %2457 = vmatprep.mubr.f32.mxu0 %v2298
    %2458 = vmatmul.mubr.f32.gmra.mrb[0].mxu0 %v2296
    %v2459 = vpop.f32.mrb[0].mxu0
    %v2460 = vadd.f32 %v2390, %v2459
    %v2461 = vpop.f32.mrb[0].mxu0
    %2462 = vdwg.mxu0
    %2463 = vmatprep.subr.mxu0 0.0
    %2464 = vmatpush1.msra.mxu0 %v2246
    %2465 = vmatprep.subr.mxu0 0.0
    %2466 = vmatpush1.msra.mxu0 %v2247
    %2467 = vmatprep.subr.mxu0 0.0
    %2468 = vmatpush1.msra.mxu0 %v2248
    %2469 = vmatprep.subr.mxu0 0.0
    %2470 = vmatpush1.msra.mxu0 %v2249
    %2471 = vmatprep.subr.mxu0 0.0
    %2472 = vmatpush1.msra.mxu0 %v2250
    %2473 = vmatprep.subr.mxu0 0.0
    %2474 = vmatpush1.msra.mxu0 %v2251
    %2475 = vmatprep.subr.mxu0 0.0
    %2476 = vmatpush1.msra.mxu0 %v2252
    %2477 = vmatprep.subr.mxu0 0.0
    %2478 = vmatpush1.msra.mxu0 %v2253
    %2479 = vmatprep.subr.mxu0 0.0
    %2480 = vmatpush1.msra.mxu0 %v2254
    %2481 = vmatprep.subr.mxu0 0.0
    %2482 = vmatpush1.msra.mxu0 %v2255
    %2483 = vmatprep.subr.mxu0 0.0
    %2484 = vmatpush1.msra.mxu0 %v2256
    %2485 = vmatprep.subr.mxu0 0.0
    %2486 = vmatpush1.msra.mxu0 %v2257
    %2487 = vmatprep.subr.mxu0 0.0
    %2488 = vmatpush1.msra.mxu0 %v2258
    %2489 = vmatprep.subr.mxu0 0.0
    %2490 = vmatpush1.msra.mxu0 %v2259
    %2491 = vmatprep.subr.mxu0 0.0
    %2492 = vmatpush1.msra.mxu0 %v2260
    %2493 = vmatprep.subr.mxu0 0.0
    %2494 = vmatpush1.msra.mxu0 %v2261
    %2495 = vmatprep.subr.mxu0 0.0
    %2496 = vmatpush1.msra.mxu0 %v2262
    %2497 = vmatprep.subr.mxu0 0.0
    %2498 = vmatpush1.msra.mxu0 %v2263
    %2499 = vmatprep.subr.mxu0 0.0
    %2500 = vmatpush1.msra.mxu0 %v2264
    %2501 = vmatprep.subr.mxu0 0.0
    %2502 = vmatpush1.msra.mxu0 %v2265
    %2503 = vmatprep.subr.mxu0 0.0
    %2504 = vmatpush1.msra.mxu0 %v2266
    %2505 = vmatprep.subr.mxu0 0.0
    %2506 = vmatpush1.msra.mxu0 %v2267
    %2507 = vmatprep.subr.mxu0 0.0
    %2508 = vmatpush1.msra.mxu0 %v2268
    %2509 = vmatprep.subr.mxu0 0.0
    %2510 = vmatpush1.msra.mxu0 %v2269
    %2511 = vmatprep.subr.mxu0 0.0
    %2512 = vmatpush1.msra.mxu0 %v2270
    %2513 = vmatprep.subr.mxu0 0.0
    %2514 = vmatpush1.msra.mxu0 %v2271
    %2515 = vmatprep.subr.mxu0 0.0
    %2516 = vmatpush1.msra.mxu0 %v2272
    %2517 = vmatprep.subr.mxu0 0.0
    %2518 = vmatpush1.msra.mxu0 %v2273
    %2519 = vmatprep.subr.mxu0 0.0
    %2520 = vmatpush1.msra.mxu0 %v2274
    %2521 = vmatprep.subr.mxu0 0.0
    %2522 = vmatpush1.msra.mxu0 %v2275
    %2523 = vmatprep.subr.mxu0 0.0
    %2524 = vmatpush1.msra.mxu0 %v2276
    %2525 = vmatprep.subr.mxu0 0.0
    %2526 = vmatpush1.msra.mxu0 %v2277
    %2527 = vmatprep.mubr.f32.mxu0 %v2314
    %2528 = vmatmul.mubr.f32.gmra.mrb[0].mxu0 %v2306
    %v2529 = vpop.f32.mrb[0].mxu0
    %v2530 = vadd.f32 %v2460, %v2529
    %v2531 = vpop.f32.mrb[0].mxu0
    %2532 = vdwg.mxu0
    %2533 = vmatprep.subr.mxu0 0.0
    %2534 = vmatpush1.msra.mxu0 %v2278
    %2535 = vmatprep.subr.mxu0 0.0
    %2536 = vmatpush1.msra.mxu0 %v2279
    %2537 = vmatprep.subr.mxu0 0.0
    %2538 = vmatpush1.msra.mxu0 0.0
    %2539 = vmatprep.subr.mxu0 0.0
    %2540 = vmatpush1.msra.mxu0 0.0
    %2541 = vmatprep.subr.mxu0 0.0
    %2542 = vmatpush1.msra.mxu0 0.0
    %2543 = vmatprep.subr.mxu0 0.0
    %2544 = vmatpush1.msra.mxu0 0.0
    %2545 = vmatprep.subr.mxu0 0.0
    %2546 = vmatpush1.msra.mxu0 0.0
    %2547 = vmatprep.subr.mxu0 0.0
    %2548 = vmatpush1.msra.mxu0 0.0
    %2549 = vmatprep.subr.mxu0 0.0
    %2550 = vmatpush1.msra.mxu0 0.0
    %2551 = vmatprep.subr.mxu0 0.0
    %2552 = vmatpush1.msra.mxu0 0.0
    %2553 = vmatprep.subr.mxu0 0.0
    %2554 = vmatpush1.msra.mxu0 0.0
    %2555 = vmatprep.subr.mxu0 0.0
    %2556 = vmatpush1.msra.mxu0 0.0
    %2557 = vmatprep.subr.mxu0 0.0
    %2558 = vmatpush1.msra.mxu0 0.0
    %2559 = vmatprep.subr.mxu0 0.0
    %2560 = vmatpush1.msra.mxu0 0.0
    %2561 = vmatprep.subr.mxu0 0.0
    %2562 = vmatpush1.msra.mxu0 0.0
    %2563 = vmatprep.subr.mxu0 0.0
    %2564 = vmatpush1.msra.mxu0 0.0
    %2565 = vmatprep.subr.mxu0 0.0
    %2566 = vmatpush1.msra.mxu0 0.0
    %2567 = vmatprep.subr.mxu0 0.0
    %2568 = vmatpush1.msra.mxu0 0.0
    %2569 = vmatprep.subr.mxu0 0.0
    %2570 = vmatpush1.msra.mxu0 0.0
    %2571 = vmatprep.subr.mxu0 0.0
    %2572 = vmatpush1.msra.mxu0 0.0
    %2573 = vmatprep.subr.mxu0 0.0
    %2574 = vmatpush1.msra.mxu0 0.0
    %2575 = vmatprep.subr.mxu0 0.0
    %2576 = vmatpush1.msra.mxu0 0.0
    %2577 = vmatprep.subr.mxu0 0.0
    %2578 = vmatpush1.msra.mxu0 0.0
    %2579 = vmatprep.subr.mxu0 0.0
    %2580 = vmatpush1.msra.mxu0 0.0
    %2581 = vmatprep.subr.mxu0 0.0
    %2582 = vmatpush1.msra.mxu0 0.0
    %2583 = vmatprep.subr.mxu0 0.0
    %2584 = vmatpush1.msra.mxu0 0.0
    %2585 = vmatprep.subr.mxu0 0.0
    %2586 = vmatpush1.msra.mxu0 0.0
    %2587 = vmatprep.subr.mxu0 0.0
    %2588 = vmatpush1.msra.mxu0 0.0
    %2589 = vmatprep.subr.mxu0 0.0
    %2590 = vmatpush1.msra.mxu0 0.0
    %2591 = vmatprep.subr.mxu0 0.0
    %2592 = vmatpush1.msra.mxu0 0.0
    %2593 = vmatprep.subr.mxu0 0.0
    %2594 = vmatpush1.msra.mxu0 0.0
    %2595 = vmatprep.subr.mxu0 0.0
    %2596 = vmatpush1.msra.mxu0 0.0
    %2597 = vmatprep.mubr.f32.mxu0 0.0
    %2598 = vmatmul.mubr.f32.gmra.mrb[0].mxu0 %v2321
    %v2599 = vpop.f32.mrb[0].mxu0
    %v2600 = vadd.f32 %v2530, %v2599
    %v2601 = vpop.f32.mrb[0].mxu0
    %2602 = vdwg.mxu0
    %v2603 = vadd.f32 %v2122, %v2600
    %s2604 = sld [smem:[#allocation3 + $0x24]]
    %v2605 = vstv %s2604
    %v2606 = vmul.f32 %v2605, %v665
    %v2607 = vmul.f32 %v2605, %v666
    %s2608 = sld [smem:[#allocation3 + $0x25]]
    %v2609 = vstv %s2608
    %v2610 = vmul.f32 %v2609, %v671
    %v2611 = vmul.f32 %v2609, %v672
    %v2612 = vadd.f32 %v2606, %v2610
    %v2613 = vadd.f32 %v2607, %v2611
    %s2614 = sld [smem:[#allocation3 + $0x26]]
    %v2615 = vstv %s2614
    %v2616 = vmul.f32 %v2615, %v679
    %v2617 = vmul.f32 %v2615, %v680
    %v2618 = vadd.f32 %v2612, %v2616
    %v2619 = vadd.f32 %v2613, %v2617
    %s2620 = sld [smem:[#allocation3 + $0x27]]
    %v2621 = vstv %s2620
    %v2622 = vmul.f32 %v2621, %v687
    %v2623 = vmul.f32 %v2621, %v688
    %v2624 = vadd.f32 %v2618, %v2622
    %v2625 = vadd.f32 %v2619, %v2623
    %s2626 = sld [smem:[#allocation3 + $0x28]]
    %v2627 = vstv %s2626
    %v2628 = vmul.f32 %v2627, %v695
    %v2629 = vmul.f32 %v2627, %v696
    %v2630 = vadd.f32 %v2624, %v2628
    %v2631 = vadd.f32 %v2625, %v2629
    %s2632 = sld [smem:[#allocation3 + $0x29]]
    %v2633 = vstv %s2632
    %v2634 = vmul.f32 %v2633, %v703
    %v2635 = vmul.f32 %v2633, %v704
    %v2636 = vadd.f32 %v2630, %v2634
    %v2637 = vadd.f32 %v2631, %v2635
    %s2638 = sld [smem:[#allocation3 + $0x2a]]
    %v2639 = vstv %s2638
    %v2640 = vmul.f32 %v2639, %v711
    %v2641 = vmul.f32 %v2639, %v712
    %v2642 = vadd.f32 %v2636, %v2640
    %v2643 = vadd.f32 %v2637, %v2641
    %s2644 = sld [smem:[#allocation3 + $0x2b]]
    %v2645 = vstv %s2644
    %v2646 = vmul.f32 %v2645, %v719
    %v2647 = vmul.f32 %v2645, %v720
    %v2648 = vadd.f32 %v2642, %v2646
    %v2649 = vadd.f32 %v2643, %v2647
    %s2650 = sld [smem:[#allocation3 + $0x2c]]
    %v2651 = vstv %s2650
    %v2652 = vmul.f32 %v2651, %v727
    %v2653 = vmul.f32 %v2651, %v728
    %v2654 = vadd.f32 %v2648, %v2652
    %v2655 = vadd.f32 %v2649, %v2653
    %s2656 = sld [smem:[#allocation6 + $0x4]]
    %v2657 = vstv %s2656
    %v2658 = vadd.f32 %v2654, %v2657
    %v2659 = vadd.f32 %v2655, %v2657
    %v2660 = vmax.f32 %v2658, 0.0
    %v2661 = vmax.f32 %v2659, 0.0
    %s2662 = scalar_lea.vmem %s4, 3136
    %v2663 = vld [vmem:[%s2662] sm:$0xff]
    %v2664 = vld [vmem:[%s2662 + $0x8] sm:$0xff]
    %v2665 = vld [vmem:[%s2662 + $0x10] sm:$0xff]
    %v2666 = vld [vmem:[%s2662 + $0x18] sm:$0xff]
    %v2667 = vld [vmem:[%s2662 + $0x20] sm:$0xff]
    %v2668 = vld [vmem:[%s2662 + $0x28] sm:$0xff]
    %v2669 = vld [vmem:[%s2662 + $0x30] sm:$0xff]
    %v2670 = vld [vmem:[%s2662 + $0x38] sm:$0xff]
    %v2671 = vld [vmem:[%s2662 + $0x40] sm:$0xff]
    %v2672 = vld [vmem:[%s2662 + $0x48] sm:$0xff]
    %v2673 = vld [vmem:[%s2662 + $0x50] sm:$0xff]
    %v2674 = vld [vmem:[%s2662 + $0x58] sm:$0xff]
    %v2675 = vld [vmem:[%s2662 + $0x60] sm:$0xff]
    %v2676 = vld [vmem:[%s2662 + $0x68] sm:$0xff]
    %v2677 = vld [vmem:[%s2662 + $0x70] sm:$0xff]
    %v2678 = vld [vmem:[%s2662 + $0x78] sm:$0xff]
    %v2679 = vld [vmem:[%s2662 + $0x80] sm:$0xff]
    %v2680 = vld [vmem:[%s2662 + $0x88] sm:$0xff]
    %v2681 = vld [vmem:[%s2662 + $0x90] sm:$0xff]
    %v2682 = vld [vmem:[%s2662 + $0x98] sm:$0xff]
    %v2683 = vld [vmem:[%s2662 + $0xa0] sm:$0xff]
    %v2684 = vld [vmem:[%s2662 + $0xa8] sm:$0xff]
    %v2685 = vld [vmem:[%s2662 + $0xb0] sm:$0xff]
    %v2686 = vld [vmem:[%s2662 + $0xb8] sm:$0xff]
    %v2687 = vld [vmem:[%s2662 + $0xc0] sm:$0xff]
    %v2688 = vld [vmem:[%s2662 + $0xc8] sm:$0xff]
    %v2689 = vld [vmem:[%s2662 + $0xd0] sm:$0xff]
    %v2690 = vld [vmem:[%s2662 + $0xd8] sm:$0xff]
    %v2691 = vld [vmem:[%s2662 + $0xe0] sm:$0xff]
    %v2692 = vld [vmem:[%s2662 + $0xe8] sm:$0xff]
    %v2693 = vld [vmem:[%s2662 + $0xf0] sm:$0xff]
    %v2694 = vld [vmem:[%s2662 + $0xf8] sm:$0xff]
    %v2695 = vld [vmem:[%s2662 + $0x100] sm:$0xff]
    %v2696 = vld [vmem:[%s2662 + $0x108] sm:$0xff]
    %v2697 = vld [vmem:[%s2662 + $0x110] sm:$0xff]
    %v2698 = vld [vmem:[%s2662 + $0x118] sm:$0xff]
    %v2699 = vld [vmem:[%s2662 + $0x120] sm:$0xff]
    %v2700 = vld [vmem:[%s2662 + $0x128] sm:$0xff]
    %v2701 = vld [vmem:[%s2662 + $0x130] sm:$0xff]
    %v2702 = vld [vmem:[%s2662 + $0x138] sm:$0xff]
    %v2703 = vld [vmem:[%s2662 + $0x140] sm:$0xff]
    %v2704 = vld [vmem:[%s2662 + $0x148] sm:$0xff]
    %v2705 = vld [vmem:[%s2662 + $0x150] sm:$0xff]
    %v2706 = vld [vmem:[%s2662 + $0x158] sm:$0xff]
    %v2707 = vld [vmem:[%s2662 + $0x160] sm:$0xff]
    %v2708 = vld [vmem:[%s2662 + $0x168] sm:$0xff]
    %v2709 = vld [vmem:[%s2662 + $0x170] sm:$0xff]
    %v2710 = vld [vmem:[%s2662 + $0x178] sm:$0xff]
    %v2711 = vld [vmem:[%s2662 + $0x180] sm:$0xff]
    %v2712 = vld [vmem:[%s2662 + $0x188] sm:$0xff]
    %v2713 = vld [vmem:[%s2662 + $0x190] sm:$0xff]
    %v2714 = vld [vmem:[%s2662 + $0x198] sm:$0xff]
    %v2715 = vld [vmem:[%s2662 + $0x1a0] sm:$0xff]
    %v2716 = vld [vmem:[%s2662 + $0x1a8] sm:$0xff]
    %v2717 = vld [vmem:[%s2662 + $0x1b0] sm:$0xff]
    %v2718 = vld [vmem:[%s2662 + $0x1b8] sm:$0xff]
    %v2719 = vld [vmem:[%s2662 + $0x1c0] sm:$0xff]
    %v2720 = vld [vmem:[%s2662 + $0x1c8] sm:$0xff]
    %v2721 = vld [vmem:[%s2662 + $0x1d0] sm:$0xff]
    %v2722 = vld [vmem:[%s2662 + $0x1d8] sm:$0xff]
    %v2723 = vld [vmem:[%s2662 + $0x1e0] sm:$0xff]
    %v2724 = vld [vmem:[%s2662 + $0x1e8] sm:$0xff]
    %v2725 = vld [vmem:[%s2662 + $0x1f0] sm:$0xff]
    %v2726 = vld [vmem:[%s2662 + $0x1f8] sm:$0xff]
    %v2727 = vld [vmem:[%s2662 + $0x200] sm:$0xff]
    %v2728 = vld [vmem:[%s2662 + $0x208] sm:$0xff]
    %v2729 = vld [vmem:[%s2662 + $0x210] sm:$0xff]
    %v2730 = vld [vmem:[%s2662 + $0x218] sm:$0xff]
    %v2731 = vld [vmem:[%s2662 + $0x220] sm:$0xff]
    %v2732 = vld [vmem:[%s2662 + $0x228] sm:$0xff]
    %v2733 = vld [vmem:[%s2662 + $0x230] sm:$0xff]
    %v2734 = vld [vmem:[%s2662 + $0x238] sm:$0xff]
    %v2735 = vld [vmem:[%s2662 + $0x240] sm:$0xff]
    %v2736 = vld [vmem:[%s2662 + $0x248] sm:$0xff]
    %v2737 = vld [vmem:[%s2662 + $0x250] sm:$0xff]
    %v2738 = vld [vmem:[%s2662 + $0x258] sm:$0xff]
    %v2739 = vld [vmem:[%s2662 + $0x260] sm:$0xff]
    %v2740 = vld [vmem:[%s2662 + $0x268] sm:$0xff]
    %v2741 = vld [vmem:[%s2662 + $0x270] sm:$0xff]
    %v2742 = vld [vmem:[%s2662 + $0x278] sm:$0xff]
    %v2743 = vld [vmem:[%s2662 + $0x280] sm:$0xff]
    %v2744 = vld [vmem:[%s2662 + $0x288] sm:$0xff]
    %v2745 = vld [vmem:[%s2662 + $0x290] sm:$0xff]
    %v2746 = vld [vmem:[%s2662 + $0x298] sm:$0xff]
    %v2747 = vld [vmem:[%s2662 + $0x2a0] sm:$0xff]
    %v2748 = vld [vmem:[%s2662 + $0x2a8] sm:$0xff]
    %v2749 = vld [vmem:[%s2662 + $0x2b0] sm:$0xff]
    %v2750 = vld [vmem:[%s2662 + $0x2b8] sm:$0xff]
    %v2751 = vld [vmem:[%s2662 + $0x2c0] sm:$0xff]
    %v2752 = vld [vmem:[%s2662 + $0x2c8] sm:$0xff]
    %v2753 = vld [vmem:[%s2662 + $0x2d0] sm:$0xff]
    %v2754 = vld [vmem:[%s2662 + $0x2d8] sm:$0xff]
    %v2755 = vld [vmem:[%s2662 + $0x2e0] sm:$0xff]
    %v2756 = vld [vmem:[%s2662 + $0x2e8] sm:$0xff]
    %v2757 = vld [vmem:[%s2662 + $0x2f0] sm:$0xff]
    %v2758 = vld [vmem:[%s2662 + $0x2f8] sm:$0xff]
    %v2759 = vld [vmem:[%s2662 + $0x300] sm:$0xff]
    %v2760 = vld [vmem:[%s2662 + $0x308] sm:$0xff]
    %v2763 = vcombine.high %v2660, %v2660
    %v2765 = vunpack.c.l.s4 1983009808
    %v2766 = vunpack.c.0.s8 %v2765
    %v2767 = vlaneseq
    %v2768 = vshrl.u32 %v2767, 7
    %v2769 = vsub.s32 %v2766, %v2768
    %v2770 = vrot.slane %v2660, %v2769
    %v2772 = vunpack.c.l.s4 1983009808
    %v2773 = vunpack.c.0.s8 %v2772
    %v2774 = vlaneseq
    %v2775 = vshrl.u32 %v2774, 7
    %v2776 = vsub.s32 %v2773, %v2775
    %v2777 = vrot.slane %v2763, %v2776
    %v2778 = vcombine.high %v2770, %v2770
    %v2779 = vcombine.high %v2777, %v2777
    %v2780 = vcombine.high %v2661, %v2661
    %v2782 = vunpack.c.l.s4 1983009808
    %v2783 = vunpack.c.0.s8 %v2782
    %v2784 = vlaneseq
    %v2785 = vshrl.u32 %v2784, 7
    %v2786 = vsub.s32 %v2783, %v2785
    %v2787 = vrot.slane %v2661, %v2786
    %v2789 = vunpack.c.l.s4 1983009808
    %v2790 = vunpack.c.0.s8 %v2789
    %v2791 = vlaneseq
    %v2792 = vshrl.u32 %v2791, 7
    %v2793 = vsub.s32 %v2790, %v2792
    %v2794 = vrot.slane %v2780, %v2793
    %v2795 = vcombine.high %v2787, %v2787
    %v2802 = vsel %vm1036, %v2794, 0
    %2804 = vmatprep.subr.mxu0 0.0
    %2805 = vmatpush1.msra.mxu0 %v2663
    %2806 = vmatprep.subr.mxu0 0.0
    %2807 = vmatpush1.msra.mxu0 %v2664
    %2808 = vmatprep.subr.mxu0 0.0
    %2809 = vmatpush1.msra.mxu0 %v2665
    %2810 = vmatprep.subr.mxu0 0.0
    %2811 = vmatpush1.msra.mxu0 %v2666
    %2812 = vmatprep.subr.mxu0 0.0
    %2813 = vmatpush1.msra.mxu0 %v2667
    %2814 = vmatprep.subr.mxu0 0.0
    %2815 = vmatpush1.msra.mxu0 %v2668
    %2816 = vmatprep.subr.mxu0 0.0
    %2817 = vmatpush1.msra.mxu0 %v2669
    %2818 = vmatprep.subr.mxu0 0.0
    %2819 = vmatpush1.msra.mxu0 %v2670
    %2820 = vmatprep.subr.mxu0 0.0
    %2821 = vmatpush1.msra.mxu0 %v2671
    %2822 = vmatprep.subr.mxu0 0.0
    %2823 = vmatpush1.msra.mxu0 %v2672
    %2824 = vmatprep.subr.mxu0 0.0
    %2825 = vmatpush1.msra.mxu0 %v2673
    %2826 = vmatprep.subr.mxu0 0.0
    %2827 = vmatpush1.msra.mxu0 %v2674
    %2828 = vmatprep.subr.mxu0 0.0
    %2829 = vmatpush1.msra.mxu0 %v2675
    %2830 = vmatprep.subr.mxu0 0.0
    %2831 = vmatpush1.msra.mxu0 %v2676
    %2832 = vmatprep.subr.mxu0 0.0
    %2833 = vmatpush1.msra.mxu0 %v2677
    %2834 = vmatprep.subr.mxu0 0.0
    %2835 = vmatpush1.msra.mxu0 %v2678
    %2836 = vmatprep.subr.mxu0 0.0
    %2837 = vmatpush1.msra.mxu0 %v2679
    %2838 = vmatprep.subr.mxu0 0.0
    %2839 = vmatpush1.msra.mxu0 %v2680
    %2840 = vmatprep.subr.mxu0 0.0
    %2841 = vmatpush1.msra.mxu0 %v2681
    %2842 = vmatprep.subr.mxu0 0.0
    %2843 = vmatpush1.msra.mxu0 %v2682
    %2844 = vmatprep.subr.mxu0 0.0
    %2845 = vmatpush1.msra.mxu0 %v2683
    %2846 = vmatprep.subr.mxu0 0.0
    %2847 = vmatpush1.msra.mxu0 %v2684
    %2848 = vmatprep.subr.mxu0 0.0
    %2849 = vmatpush1.msra.mxu0 %v2685
    %2850 = vmatprep.subr.mxu0 0.0
    %2851 = vmatpush1.msra.mxu0 %v2686
    %2852 = vmatprep.subr.mxu0 0.0
    %2853 = vmatpush1.msra.mxu0 %v2687
    %2854 = vmatprep.subr.mxu0 0.0
    %2855 = vmatpush1.msra.mxu0 %v2688
    %2856 = vmatprep.subr.mxu0 0.0
    %2857 = vmatpush1.msra.mxu0 %v2689
    %2858 = vmatprep.subr.mxu0 0.0
    %2859 = vmatpush1.msra.mxu0 %v2690
    %2860 = vmatprep.subr.mxu0 0.0
    %2861 = vmatpush1.msra.mxu0 %v2691
    %2862 = vmatprep.subr.mxu0 0.0
    %2863 = vmatpush1.msra.mxu0 %v2692
    %2864 = vmatprep.subr.mxu0 0.0
    %2865 = vmatpush1.msra.mxu0 %v2693
    %2866 = vmatprep.subr.mxu0 0.0
    %2867 = vmatpush1.msra.mxu0 %v2694
    %2868 = vmatprep.mubr.f32.mxu0 %v2778
    %2869 = vmatmul.mubr.f32.gmra.mrb[0].mxu0 %v2770
    %v2870 = vpop.f32.mrb[0].mxu0
    %v2871 = vadd.f32 0.0, %v2870
    %v2872 = vpop.f32.mrb[0].mxu0
    %2873 = vdwg.mxu0
    %2874 = vmatprep.subr.mxu0 0.0
    %2875 = vmatpush1.msra.mxu0 %v2695
    %2876 = vmatprep.subr.mxu0 0.0
    %2877 = vmatpush1.msra.mxu0 %v2696
    %2878 = vmatprep.subr.mxu0 0.0
    %2879 = vmatpush1.msra.mxu0 %v2697
    %2880 = vmatprep.subr.mxu0 0.0
    %2881 = vmatpush1.msra.mxu0 %v2698
    %2882 = vmatprep.subr.mxu0 0.0
    %2883 = vmatpush1.msra.mxu0 %v2699
    %2884 = vmatprep.subr.mxu0 0.0
    %2885 = vmatpush1.msra.mxu0 %v2700
    %2886 = vmatprep.subr.mxu0 0.0
    %2887 = vmatpush1.msra.mxu0 %v2701
    %2888 = vmatprep.subr.mxu0 0.0
    %2889 = vmatpush1.msra.mxu0 %v2702
    %2890 = vmatprep.subr.mxu0 0.0
    %2891 = vmatpush1.msra.mxu0 %v2703
    %2892 = vmatprep.subr.mxu0 0.0
    %2893 = vmatpush1.msra.mxu0 %v2704
    %2894 = vmatprep.subr.mxu0 0.0
    %2895 = vmatpush1.msra.mxu0 %v2705
    %2896 = vmatprep.subr.mxu0 0.0
    %2897 = vmatpush1.msra.mxu0 %v2706
    %2898 = vmatprep.subr.mxu0 0.0
    %2899 = vmatpush1.msra.mxu0 %v2707
    %2900 = vmatprep.subr.mxu0 0.0
    %2901 = vmatpush1.msra.mxu0 %v2708
    %2902 = vmatprep.subr.mxu0 0.0
    %2903 = vmatpush1.msra.mxu0 %v2709
    %2904 = vmatprep.subr.mxu0 0.0
    %2905 = vmatpush1.msra.mxu0 %v2710
    %2906 = vmatprep.subr.mxu0 0.0
    %2907 = vmatpush1.msra.mxu0 %v2711
    %2908 = vmatprep.subr.mxu0 0.0
    %2909 = vmatpush1.msra.mxu0 %v2712
    %2910 = vmatprep.subr.mxu0 0.0
    %2911 = vmatpush1.msra.mxu0 %v2713
    %2912 = vmatprep.subr.mxu0 0.0
    %2913 = vmatpush1.msra.mxu0 %v2714
    %2914 = vmatprep.subr.mxu0 0.0
    %2915 = vmatpush1.msra.mxu0 %v2715
    %2916 = vmatprep.subr.mxu0 0.0
    %2917 = vmatpush1.msra.mxu0 %v2716
    %2918 = vmatprep.subr.mxu0 0.0
    %2919 = vmatpush1.msra.mxu0 %v2717
    %2920 = vmatprep.subr.mxu0 0.0
    %2921 = vmatpush1.msra.mxu0 %v2718
    %2922 = vmatprep.subr.mxu0 0.0
    %2923 = vmatpush1.msra.mxu0 %v2719
    %2924 = vmatprep.subr.mxu0 0.0
    %2925 = vmatpush1.msra.mxu0 %v2720
    %2926 = vmatprep.subr.mxu0 0.0
    %2927 = vmatpush1.msra.mxu0 %v2721
    %2928 = vmatprep.subr.mxu0 0.0
    %2929 = vmatpush1.msra.mxu0 %v2722
    %2930 = vmatprep.subr.mxu0 0.0
    %2931 = vmatpush1.msra.mxu0 %v2723
    %2932 = vmatprep.subr.mxu0 0.0
    %2933 = vmatpush1.msra.mxu0 %v2724
    %2934 = vmatprep.subr.mxu0 0.0
    %2935 = vmatpush1.msra.mxu0 %v2725
    %2936 = vmatprep.subr.mxu0 0.0
    %2937 = vmatpush1.msra.mxu0 %v2726
    %2938 = vmatprep.mubr.f32.mxu0 %v2779
    %2939 = vmatmul.mubr.f32.gmra.mrb[0].mxu0 %v2777
    %v2940 = vpop.f32.mrb[0].mxu0
    %v2941 = vadd.f32 %v2871, %v2940
    %v2942 = vpop.f32.mrb[0].mxu0
    %2943 = vdwg.mxu0
    %2944 = vmatprep.subr.mxu0 0.0
    %2945 = vmatpush1.msra.mxu0 %v2727
    %2946 = vmatprep.subr.mxu0 0.0
    %2947 = vmatpush1.msra.mxu0 %v2728
    %2948 = vmatprep.subr.mxu0 0.0
    %2949 = vmatpush1.msra.mxu0 %v2729
    %2950 = vmatprep.subr.mxu0 0.0
    %2951 = vmatpush1.msra.mxu0 %v2730
    %2952 = vmatprep.subr.mxu0 0.0
    %2953 = vmatpush1.msra.mxu0 %v2731
    %2954 = vmatprep.subr.mxu0 0.0
    %2955 = vmatpush1.msra.mxu0 %v2732
    %2956 = vmatprep.subr.mxu0 0.0
    %2957 = vmatpush1.msra.mxu0 %v2733
    %2958 = vmatprep.subr.mxu0 0.0
    %2959 = vmatpush1.msra.mxu0 %v2734
    %2960 = vmatprep.subr.mxu0 0.0
    %2961 = vmatpush1.msra.mxu0 %v2735
    %2962 = vmatprep.subr.mxu0 0.0
    %2963 = vmatpush1.msra.mxu0 %v2736
    %2964 = vmatprep.subr.mxu0 0.0
    %2965 = vmatpush1.msra.mxu0 %v2737
    %2966 = vmatprep.subr.mxu0 0.0
    %2967 = vmatpush1.msra.mxu0 %v2738
    %2968 = vmatprep.subr.mxu0 0.0
    %2969 = vmatpush1.msra.mxu0 %v2739
    %2970 = vmatprep.subr.mxu0 0.0
    %2971 = vmatpush1.msra.mxu0 %v2740
    %2972 = vmatprep.subr.mxu0 0.0
    %2973 = vmatpush1.msra.mxu0 %v2741
    %2974 = vmatprep.subr.mxu0 0.0
    %2975 = vmatpush1.msra.mxu0 %v2742
    %2976 = vmatprep.subr.mxu0 0.0
    %2977 = vmatpush1.msra.mxu0 %v2743
    %2978 = vmatprep.subr.mxu0 0.0
    %2979 = vmatpush1.msra.mxu0 %v2744
    %2980 = vmatprep.subr.mxu0 0.0
    %2981 = vmatpush1.msra.mxu0 %v2745
    %2982 = vmatprep.subr.mxu0 0.0
    %2983 = vmatpush1.msra.mxu0 %v2746
    %2984 = vmatprep.subr.mxu0 0.0
    %2985 = vmatpush1.msra.mxu0 %v2747
    %2986 = vmatprep.subr.mxu0 0.0
    %2987 = vmatpush1.msra.mxu0 %v2748
    %2988 = vmatprep.subr.mxu0 0.0
    %2989 = vmatpush1.msra.mxu0 %v2749
    %2990 = vmatprep.subr.mxu0 0.0
    %2991 = vmatpush1.msra.mxu0 %v2750
    %2992 = vmatprep.subr.mxu0 0.0
    %2993 = vmatpush1.msra.mxu0 %v2751
    %2994 = vmatprep.subr.mxu0 0.0
    %2995 = vmatpush1.msra.mxu0 %v2752
    %2996 = vmatprep.subr.mxu0 0.0
    %2997 = vmatpush1.msra.mxu0 %v2753
    %2998 = vmatprep.subr.mxu0 0.0
    %2999 = vmatpush1.msra.mxu0 %v2754
    %3000 = vmatprep.subr.mxu0 0.0
    %3001 = vmatpush1.msra.mxu0 %v2755
    %3002 = vmatprep.subr.mxu0 0.0
    %3003 = vmatpush1.msra.mxu0 %v2756
    %3004 = vmatprep.subr.mxu0 0.0
    %3005 = vmatpush1.msra.mxu0 %v2757
    %3006 = vmatprep.subr.mxu0 0.0
    %3007 = vmatpush1.msra.mxu0 %v2758
    %3008 = vmatprep.mubr.f32.mxu0 %v2795
    %3009 = vmatmul.mubr.f32.gmra.mrb[0].mxu0 %v2787
    %v3010 = vpop.f32.mrb[0].mxu0
    %v3011 = vadd.f32 %v2941, %v3010
    %v3012 = vpop.f32.mrb[0].mxu0
    %3013 = vdwg.mxu0
    %3014 = vmatprep.subr.mxu0 0.0
    %3015 = vmatpush1.msra.mxu0 %v2759
    %3016 = vmatprep.subr.mxu0 0.0
    %3017 = vmatpush1.msra.mxu0 %v2760
    %3018 = vmatprep.subr.mxu0 0.0
    %3019 = vmatpush1.msra.mxu0 0.0
    %3020 = vmatprep.subr.mxu0 0.0
    %3021 = vmatpush1.msra.mxu0 0.0
    %3022 = vmatprep.subr.mxu0 0.0
    %3023 = vmatpush1.msra.mxu0 0.0
    %3024 = vmatprep.subr.mxu0 0.0
    %3025 = vmatpush1.msra.mxu0 0.0
    %3026 = vmatprep.subr.mxu0 0.0
    %3027 = vmatpush1.msra.mxu0 0.0
    %3028 = vmatprep.subr.mxu0 0.0
    %3029 = vmatpush1.msra.mxu0 0.0
    %3030 = vmatprep.subr.mxu0 0.0
    %3031 = vmatpush1.msra.mxu0 0.0
    %3032 = vmatprep.subr.mxu0 0.0
    %3033 = vmatpush1.msra.mxu0 0.0
    %3034 = vmatprep.subr.mxu0 0.0
    %3035 = vmatpush1.msra.mxu0 0.0
    %3036 = vmatprep.subr.mxu0 0.0
    %3037 = vmatpush1.msra.mxu0 0.0
    %3038 = vmatprep.subr.mxu0 0.0
    %3039 = vmatpush1.msra.mxu0 0.0
    %3040 = vmatprep.subr.mxu0 0.0
    %3041 = vmatpush1.msra.mxu0 0.0
    %3042 = vmatprep.subr.mxu0 0.0
    %3043 = vmatpush1.msra.mxu0 0.0
    %3044 = vmatprep.subr.mxu0 0.0
    %3045 = vmatpush1.msra.mxu0 0.0
    %3046 = vmatprep.subr.mxu0 0.0
    %3047 = vmatpush1.msra.mxu0 0.0
    %3048 = vmatprep.subr.mxu0 0.0
    %3049 = vmatpush1.msra.mxu0 0.0
    %3050 = vmatprep.subr.mxu0 0.0
    %3051 = vmatpush1.msra.mxu0 0.0
    %3052 = vmatprep.subr.mxu0 0.0
    %3053 = vmatpush1.msra.mxu0 0.0
    %3054 = vmatprep.subr.mxu0 0.0
    %3055 = vmatpush1.msra.mxu0 0.0
    %3056 = vmatprep.subr.mxu0 0.0
    %3057 = vmatpush1.msra.mxu0 0.0
    %3058 = vmatprep.subr.mxu0 0.0
    %3059 = vmatpush1.msra.mxu0 0.0
    %3060 = vmatprep.subr.mxu0 0.0
    %3061 = vmatpush1.msra.mxu0 0.0
    %3062 = vmatprep.subr.mxu0 0.0
    %3063 = vmatpush1.msra.mxu0 0.0
    %3064 = vmatprep.subr.mxu0 0.0
    %3065 = vmatpush1.msra.mxu0 0.0
    %3066 = vmatprep.subr.mxu0 0.0
    %3067 = vmatpush1.msra.mxu0 0.0
    %3068 = vmatprep.subr.mxu0 0.0
    %3069 = vmatpush1.msra.mxu0 0.0
    %3070 = vmatprep.subr.mxu0 0.0
    %3071 = vmatpush1.msra.mxu0 0.0
    %3072 = vmatprep.subr.mxu0 0.0
    %3073 = vmatpush1.msra.mxu0 0.0
    %3074 = vmatprep.subr.mxu0 0.0
    %3075 = vmatpush1.msra.mxu0 0.0
    %3076 = vmatprep.subr.mxu0 0.0
    %3077 = vmatpush1.msra.mxu0 0.0
    %3078 = vmatprep.mubr.f32.mxu0 0.0
    %3079 = vmatmul.mubr.f32.gmra.mrb[0].mxu0 %v2802
    %v3080 = vpop.f32.mrb[0].mxu0
    %v3081 = vadd.f32 %v3011, %v3080
    %v3082 = vpop.f32.mrb[0].mxu0
    %3083 = vdwg.mxu0
    %v3084 = vadd.f32 %v2603, %v3081
    %s3085 = sld [smem:[#allocation3 + $0x2d]]
    %v3086 = vstv %s3085
    %v3087 = vmul.f32 %v3086, %v665
    %v3088 = vmul.f32 %v3086, %v666
    %s3089 = sld [smem:[#allocation3 + $0x2e]]
    %v3090 = vstv %s3089
    %v3091 = vmul.f32 %v3090, %v671
    %v3092 = vmul.f32 %v3090, %v672
    %v3093 = vadd.f32 %v3087, %v3091
    %v3094 = vadd.f32 %v3088, %v3092
    %s3095 = sld [smem:[#allocation3 + $0x2f]]
    %v3096 = vstv %s3095
    %v3097 = vmul.f32 %v3096, %v679
    %v3098 = vmul.f32 %v3096, %v680
    %v3099 = vadd.f32 %v3093, %v3097
    %v3100 = vadd.f32 %v3094, %v3098
    %s3101 = sld [smem:[#allocation3 + $0x30]]
    %v3102 = vstv %s3101
    %v3103 = vmul.f32 %v3102, %v687
    %v3104 = vmul.f32 %v3102, %v688
    %v3105 = vadd.f32 %v3099, %v3103
    %v3106 = vadd.f32 %v3100, %v3104
    %s3107 = sld [smem:[#allocation3 + $0x31]]
    %v3108 = vstv %s3107
    %v3109 = vmul.f32 %v3108, %v695
    %v3110 = vmul.f32 %v3108, %v696
    %v3111 = vadd.f32 %v3105, %v3109
    %v3112 = vadd.f32 %v3106, %v3110
    %s3113 = sld [smem:[#allocation3 + $0x32]]
    %v3114 = vstv %s3113
    %v3115 = vmul.f32 %v3114, %v703
    %v3116 = vmul.f32 %v3114, %v704
    %v3117 = vadd.f32 %v3111, %v3115
    %v3118 = vadd.f32 %v3112, %v3116
    %s3119 = sld [smem:[#allocation3 + $0x33]]
    %v3120 = vstv %s3119
    %v3121 = vmul.f32 %v3120, %v711
    %v3122 = vmul.f32 %v3120, %v712
    %v3123 = vadd.f32 %v3117, %v3121
    %v3124 = vadd.f32 %v3118, %v3122
    %s3125 = sld [smem:[#allocation3 + $0x34]]
    %v3126 = vstv %s3125
    %v3127 = vmul.f32 %v3126, %v719
    %v3128 = vmul.f32 %v3126, %v720
    %v3129 = vadd.f32 %v3123, %v3127
    %v3130 = vadd.f32 %v3124, %v3128
    %s3131 = sld [smem:[#allocation3 + $0x35]]
    %v3132 = vstv %s3131
    %v3133 = vmul.f32 %v3132, %v727
    %v3134 = vmul.f32 %v3132, %v728
    %v3135 = vadd.f32 %v3129, %v3133
    %v3136 = vadd.f32 %v3130, %v3134
    %s3137 = sld [smem:[#allocation6 + $0x5]]
    %v3138 = vstv %s3137
    %v3139 = vadd.f32 %v3135, %v3138
    %v3140 = vadd.f32 %v3136, %v3138
    %v3141 = vmax.f32 %v3139, 0.0
    %v3142 = vmax.f32 %v3140, 0.0
    %s3143 = scalar_lea.vmem %s4, 3920
    %v3144 = vld [vmem:[%s3143] sm:$0xff]
    %v3145 = vld [vmem:[%s3143 + $0x8] sm:$0xff]
    %v3146 = vld [vmem:[%s3143 + $0x10] sm:$0xff]
    %v3147 = vld [vmem:[%s3143 + $0x18] sm:$0xff]
    %v3148 = vld [vmem:[%s3143 + $0x20] sm:$0xff]
    %v3149 = vld [vmem:[%s3143 + $0x28] sm:$0xff]
    %v3150 = vld [vmem:[%s3143 + $0x30] sm:$0xff]
    %v3151 = vld [vmem:[%s3143 + $0x38] sm:$0xff]
    %v3152 = vld [vmem:[%s3143 + $0x40] sm:$0xff]
    %v3153 = vld [vmem:[%s3143 + $0x48] sm:$0xff]
    %v3154 = vld [vmem:[%s3143 + $0x50] sm:$0xff]
    %v3155 = vld [vmem:[%s3143 + $0x58] sm:$0xff]
    %v3156 = vld [vmem:[%s3143 + $0x60] sm:$0xff]
    %v3157 = vld [vmem:[%s3143 + $0x68] sm:$0xff]
    %v3158 = vld [vmem:[%s3143 + $0x70] sm:$0xff]
    %v3159 = vld [vmem:[%s3143 + $0x78] sm:$0xff]
    %v3160 = vld [vmem:[%s3143 + $0x80] sm:$0xff]
    %v3161 = vld [vmem:[%s3143 + $0x88] sm:$0xff]
    %v3162 = vld [vmem:[%s3143 + $0x90] sm:$0xff]
    %v3163 = vld [vmem:[%s3143 + $0x98] sm:$0xff]
    %v3164 = vld [vmem:[%s3143 + $0xa0] sm:$0xff]
    %v3165 = vld [vmem:[%s3143 + $0xa8] sm:$0xff]
    %v3166 = vld [vmem:[%s3143 + $0xb0] sm:$0xff]
    %v3167 = vld [vmem:[%s3143 + $0xb8] sm:$0xff]
    %v3168 = vld [vmem:[%s3143 + $0xc0] sm:$0xff]
    %v3169 = vld [vmem:[%s3143 + $0xc8] sm:$0xff]
    %v3170 = vld [vmem:[%s3143 + $0xd0] sm:$0xff]
    %v3171 = vld [vmem:[%s3143 + $0xd8] sm:$0xff]
    %v3172 = vld [vmem:[%s3143 + $0xe0] sm:$0xff]
    %v3173 = vld [vmem:[%s3143 + $0xe8] sm:$0xff]
    %v3174 = vld [vmem:[%s3143 + $0xf0] sm:$0xff]
    %v3175 = vld [vmem:[%s3143 + $0xf8] sm:$0xff]
    %v3176 = vld [vmem:[%s3143 + $0x100] sm:$0xff]
    %v3177 = vld [vmem:[%s3143 + $0x108] sm:$0xff]
    %v3178 = vld [vmem:[%s3143 + $0x110] sm:$0xff]
    %v3179 = vld [vmem:[%s3143 + $0x118] sm:$0xff]
    %v3180 = vld [vmem:[%s3143 + $0x120] sm:$0xff]
    %v3181 = vld [vmem:[%s3143 + $0x128] sm:$0xff]
    %v3182 = vld [vmem:[%s3143 + $0x130] sm:$0xff]
    %v3183 = vld [vmem:[%s3143 + $0x138] sm:$0xff]
    %v3184 = vld [vmem:[%s3143 + $0x140] sm:$0xff]
    %v3185 = vld [vmem:[%s3143 + $0x148] sm:$0xff]
    %v3186 = vld [vmem:[%s3143 + $0x150] sm:$0xff]
    %v3187 = vld [vmem:[%s3143 + $0x158] sm:$0xff]
    %v3188 = vld [vmem:[%s3143 + $0x160] sm:$0xff]
    %v3189 = vld [vmem:[%s3143 + $0x168] sm:$0xff]
    %v3190 = vld [vmem:[%s3143 + $0x170] sm:$0xff]
    %v3191 = vld [vmem:[%s3143 + $0x178] sm:$0xff]
    %v3192 = vld [vmem:[%s3143 + $0x180] sm:$0xff]
    %v3193 = vld [vmem:[%s3143 + $0x188] sm:$0xff]
    %v3194 = vld [vmem:[%s3143 + $0x190] sm:$0xff]
    %v3195 = vld [vmem:[%s3143 + $0x198] sm:$0xff]
    %v3196 = vld [vmem:[%s3143 + $0x1a0] sm:$0xff]
    %v3197 = vld [vmem:[%s3143 + $0x1a8] sm:$0xff]
    %v3198 = vld [vmem:[%s3143 + $0x1b0] sm:$0xff]
    %v3199 = vld [vmem:[%s3143 + $0x1b8] sm:$0xff]
    %v3200 = vld [vmem:[%s3143 + $0x1c0] sm:$0xff]
    %v3201 = vld [vmem:[%s3143 + $0x1c8] sm:$0xff]
    %v3202 = vld [vmem:[%s3143 + $0x1d0] sm:$0xff]
    %v3203 = vld [vmem:[%s3143 + $0x1d8] sm:$0xff]
    %v3204 = vld [vmem:[%s3143 + $0x1e0] sm:$0xff]
    %v3205 = vld [vmem:[%s3143 + $0x1e8] sm:$0xff]
    %v3206 = vld [vmem:[%s3143 + $0x1f0] sm:$0xff]
    %v3207 = vld [vmem:[%s3143 + $0x1f8] sm:$0xff]
    %v3208 = vld [vmem:[%s3143 + $0x200] sm:$0xff]
    %v3209 = vld [vmem:[%s3143 + $0x208] sm:$0xff]
    %v3210 = vld [vmem:[%s3143 + $0x210] sm:$0xff]
    %v3211 = vld [vmem:[%s3143 + $0x218] sm:$0xff]
    %v3212 = vld [vmem:[%s3143 + $0x220] sm:$0xff]
    %v3213 = vld [vmem:[%s3143 + $0x228] sm:$0xff]
    %v3214 = vld [vmem:[%s3143 + $0x230] sm:$0xff]
    %v3215 = vld [vmem:[%s3143 + $0x238] sm:$0xff]
    %v3216 = vld [vmem:[%s3143 + $0x240] sm:$0xff]
    %v3217 = vld [vmem:[%s3143 + $0x248] sm:$0xff]
    %v3218 = vld [vmem:[%s3143 + $0x250] sm:$0xff]
    %v3219 = vld [vmem:[%s3143 + $0x258] sm:$0xff]
    %v3220 = vld [vmem:[%s3143 + $0x260] sm:$0xff]
    %v3221 = vld [vmem:[%s3143 + $0x268] sm:$0xff]
    %v3222 = vld [vmem:[%s3143 + $0x270] sm:$0xff]
    %v3223 = vld [vmem:[%s3143 + $0x278] sm:$0xff]
    %v3224 = vld [vmem:[%s3143 + $0x280] sm:$0xff]
    %v3225 = vld [vmem:[%s3143 + $0x288] sm:$0xff]
    %v3226 = vld [vmem:[%s3143 + $0x290] sm:$0xff]
    %v3227 = vld [vmem:[%s3143 + $0x298] sm:$0xff]
    %v3228 = vld [vmem:[%s3143 + $0x2a0] sm:$0xff]
    %v3229 = vld [vmem:[%s3143 + $0x2a8] sm:$0xff]
    %v3230 = vld [vmem:[%s3143 + $0x2b0] sm:$0xff]
    %v3231 = vld [vmem:[%s3143 + $0x2b8] sm:$0xff]
    %v3232 = vld [vmem:[%s3143 + $0x2c0] sm:$0xff]
    %v3233 = vld [vmem:[%s3143 + $0x2c8] sm:$0xff]
    %v3234 = vld [vmem:[%s3143 + $0x2d0] sm:$0xff]
    %v3235 = vld [vmem:[%s3143 + $0x2d8] sm:$0xff]
    %v3236 = vld [vmem:[%s3143 + $0x2e0] sm:$0xff]
    %v3237 = vld [vmem:[%s3143 + $0x2e8] sm:$0xff]
    %v3238 = vld [vmem:[%s3143 + $0x2f0] sm:$0xff]
    %v3239 = vld [vmem:[%s3143 + $0x2f8] sm:$0xff]
    %v3240 = vld [vmem:[%s3143 + $0x300] sm:$0xff]
    %v3241 = vld [vmem:[%s3143 + $0x308] sm:$0xff]
    %v3244 = vcombine.high %v3141, %v3141
    %v3246 = vunpack.c.l.s4 1983009808
    %v3247 = vunpack.c.0.s8 %v3246
    %v3248 = vlaneseq
    %v3249 = vshrl.u32 %v3248, 7
    %v3250 = vsub.s32 %v3247, %v3249
    %v3251 = vrot.slane %v3141, %v3250
    %v3253 = vunpack.c.l.s4 1983009808
    %v3254 = vunpack.c.0.s8 %v3253
    %v3255 = vlaneseq
    %v3256 = vshrl.u32 %v3255, 7
    %v3257 = vsub.s32 %v3254, %v3256
    %v3258 = vrot.slane %v3244, %v3257
    %v3259 = vcombine.high %v3251, %v3251
    %v3260 = vcombine.high %v3258, %v3258
    %v3261 = vcombine.high %v3142, %v3142
    %v3263 = vunpack.c.l.s4 1983009808
    %v3264 = vunpack.c.0.s8 %v3263
    %v3265 = vlaneseq
    %v3266 = vshrl.u32 %v3265, 7
    %v3267 = vsub.s32 %v3264, %v3266
    %v3268 = vrot.slane %v3142, %v3267
    %v3270 = vunpack.c.l.s4 1983009808
    %v3271 = vunpack.c.0.s8 %v3270
    %v3272 = vlaneseq
    %v3273 = vshrl.u32 %v3272, 7
    %v3274 = vsub.s32 %v3271, %v3273
    %v3275 = vrot.slane %v3261, %v3274
    %v3276 = vcombine.high %v3268, %v3268
    %v3283 = vsel %vm1036, %v3275, 0
    %3285 = vmatprep.subr.mxu0 0.0
    %3286 = vmatpush1.msra.mxu0 %v3144
    %3287 = vmatprep.subr.mxu0 0.0
    %3288 = vmatpush1.msra.mxu0 %v3145
    %3289 = vmatprep.subr.mxu0 0.0
    %3290 = vmatpush1.msra.mxu0 %v3146
    %3291 = vmatprep.subr.mxu0 0.0
    %3292 = vmatpush1.msra.mxu0 %v3147
    %3293 = vmatprep.subr.mxu0 0.0
    %3294 = vmatpush1.msra.mxu0 %v3148
    %3295 = vmatprep.subr.mxu0 0.0
    %3296 = vmatpush1.msra.mxu0 %v3149
    %3297 = vmatprep.subr.mxu0 0.0
    %3298 = vmatpush1.msra.mxu0 %v3150
    %3299 = vmatprep.subr.mxu0 0.0
    %3300 = vmatpush1.msra.mxu0 %v3151
    %3301 = vmatprep.subr.mxu0 0.0
    %3302 = vmatpush1.msra.mxu0 %v3152
    %3303 = vmatprep.subr.mxu0 0.0
    %3304 = vmatpush1.msra.mxu0 %v3153
    %3305 = vmatprep.subr.mxu0 0.0
    %3306 = vmatpush1.msra.mxu0 %v3154
    %3307 = vmatprep.subr.mxu0 0.0
    %3308 = vmatpush1.msra.mxu0 %v3155
    %3309 = vmatprep.subr.mxu0 0.0
    %3310 = vmatpush1.msra.mxu0 %v3156
    %3311 = vmatprep.subr.mxu0 0.0
    %3312 = vmatpush1.msra.mxu0 %v3157
    %3313 = vmatprep.subr.mxu0 0.0
    %3314 = vmatpush1.msra.mxu0 %v3158
    %3315 = vmatprep.subr.mxu0 0.0
    %3316 = vmatpush1.msra.mxu0 %v3159
    %3317 = vmatprep.subr.mxu0 0.0
    %3318 = vmatpush1.msra.mxu0 %v3160
    %3319 = vmatprep.subr.mxu0 0.0
    %3320 = vmatpush1.msra.mxu0 %v3161
    %3321 = vmatprep.subr.mxu0 0.0
    %3322 = vmatpush1.msra.mxu0 %v3162
    %3323 = vmatprep.subr.mxu0 0.0
    %3324 = vmatpush1.msra.mxu0 %v3163
    %3325 = vmatprep.subr.mxu0 0.0
    %3326 = vmatpush1.msra.mxu0 %v3164
    %3327 = vmatprep.subr.mxu0 0.0
    %3328 = vmatpush1.msra.mxu0 %v3165
    %3329 = vmatprep.subr.mxu0 0.0
    %3330 = vmatpush1.msra.mxu0 %v3166
    %3331 = vmatprep.subr.mxu0 0.0
    %3332 = vmatpush1.msra.mxu0 %v3167
    %3333 = vmatprep.subr.mxu0 0.0
    %3334 = vmatpush1.msra.mxu0 %v3168
    %3335 = vmatprep.subr.mxu0 0.0
    %3336 = vmatpush1.msra.mxu0 %v3169
    %3337 = vmatprep.subr.mxu0 0.0
    %3338 = vmatpush1.msra.mxu0 %v3170
    %3339 = vmatprep.subr.mxu0 0.0
    %3340 = vmatpush1.msra.mxu0 %v3171
    %3341 = vmatprep.subr.mxu0 0.0
    %3342 = vmatpush1.msra.mxu0 %v3172
    %3343 = vmatprep.subr.mxu0 0.0
    %3344 = vmatpush1.msra.mxu0 %v3173
    %3345 = vmatprep.subr.mxu0 0.0
    %3346 = vmatpush1.msra.mxu0 %v3174
    %3347 = vmatprep.subr.mxu0 0.0
    %3348 = vmatpush1.msra.mxu0 %v3175
    %3349 = vmatprep.mubr.f32.mxu0 %v3259
    %3350 = vmatmul.mubr.f32.gmra.mrb[0].mxu0 %v3251
    %v3351 = vpop.f32.mrb[0].mxu0
    %v3352 = vadd.f32 0.0, %v3351
    %v3353 = vpop.f32.mrb[0].mxu0
    %3354 = vdwg.mxu0
    %3355 = vmatprep.subr.mxu0 0.0
    %3356 = vmatpush1.msra.mxu0 %v3176
    %3357 = vmatprep.subr.mxu0 0.0
    %3358 = vmatpush1.msra.mxu0 %v3177
    %3359 = vmatprep.subr.mxu0 0.0
    %3360 = vmatpush1.msra.mxu0 %v3178
    %3361 = vmatprep.subr.mxu0 0.0
    %3362 = vmatpush1.msra.mxu0 %v3179
    %3363 = vmatprep.subr.mxu0 0.0
    %3364 = vmatpush1.msra.mxu0 %v3180
    %3365 = vmatprep.subr.mxu0 0.0
    %3366 = vmatpush1.msra.mxu0 %v3181
    %3367 = vmatprep.subr.mxu0 0.0
    %3368 = vmatpush1.msra.mxu0 %v3182
    %3369 = vmatprep.subr.mxu0 0.0
    %3370 = vmatpush1.msra.mxu0 %v3183
    %3371 = vmatprep.subr.mxu0 0.0
    %3372 = vmatpush1.msra.mxu0 %v3184
    %3373 = vmatprep.subr.mxu0 0.0
    %3374 = vmatpush1.msra.mxu0 %v3185
    %3375 = vmatprep.subr.mxu0 0.0
    %3376 = vmatpush1.msra.mxu0 %v3186
    %3377 = vmatprep.subr.mxu0 0.0
    %3378 = vmatpush1.msra.mxu0 %v3187
    %3379 = vmatprep.subr.mxu0 0.0
    %3380 = vmatpush1.msra.mxu0 %v3188
    %3381 = vmatprep.subr.mxu0 0.0
    %3382 = vmatpush1.msra.mxu0 %v3189
    %3383 = vmatprep.subr.mxu0 0.0
    %3384 = vmatpush1.msra.mxu0 %v3190
    %3385 = vmatprep.subr.mxu0 0.0
    %3386 = vmatpush1.msra.mxu0 %v3191
    %3387 = vmatprep.subr.mxu0 0.0
    %3388 = vmatpush1.msra.mxu0 %v3192
    %3389 = vmatprep.subr.mxu0 0.0
    %3390 = vmatpush1.msra.mxu0 %v3193
    %3391 = vmatprep.subr.mxu0 0.0
    %3392 = vmatpush1.msra.mxu0 %v3194
    %3393 = vmatprep.subr.mxu0 0.0
    %3394 = vmatpush1.msra.mxu0 %v3195
    %3395 = vmatprep.subr.mxu0 0.0
    %3396 = vmatpush1.msra.mxu0 %v3196
    %3397 = vmatprep.subr.mxu0 0.0
    %3398 = vmatpush1.msra.mxu0 %v3197
    %3399 = vmatprep.subr.mxu0 0.0
    %3400 = vmatpush1.msra.mxu0 %v3198
    %3401 = vmatprep.subr.mxu0 0.0
    %3402 = vmatpush1.msra.mxu0 %v3199
    %3403 = vmatprep.subr.mxu0 0.0
    %3404 = vmatpush1.msra.mxu0 %v3200
    %3405 = vmatprep.subr.mxu0 0.0
    %3406 = vmatpush1.msra.mxu0 %v3201
    %3407 = vmatprep.subr.mxu0 0.0
    %3408 = vmatpush1.msra.mxu0 %v3202
    %3409 = vmatprep.subr.mxu0 0.0
    %3410 = vmatpush1.msra.mxu0 %v3203
    %3411 = vmatprep.subr.mxu0 0.0
    %3412 = vmatpush1.msra.mxu0 %v3204
    %3413 = vmatprep.subr.mxu0 0.0
    %3414 = vmatpush1.msra.mxu0 %v3205
    %3415 = vmatprep.subr.mxu0 0.0
    %3416 = vmatpush1.msra.mxu0 %v3206
    %3417 = vmatprep.subr.mxu0 0.0
    %3418 = vmatpush1.msra.mxu0 %v3207
    %3419 = vmatprep.mubr.f32.mxu0 %v3260
    %3420 = vmatmul.mubr.f32.gmra.mrb[0].mxu0 %v3258
    %v3421 = vpop.f32.mrb[0].mxu0
    %v3422 = vadd.f32 %v3352, %v3421
    %v3423 = vpop.f32.mrb[0].mxu0
    %3424 = vdwg.mxu0
    %3425 = vmatprep.subr.mxu0 0.0
    %3426 = vmatpush1.msra.mxu0 %v3208
    %3427 = vmatprep.subr.mxu0 0.0
    %3428 = vmatpush1.msra.mxu0 %v3209
    %3429 = vmatprep.subr.mxu0 0.0
    %3430 = vmatpush1.msra.mxu0 %v3210
    %3431 = vmatprep.subr.mxu0 0.0
    %3432 = vmatpush1.msra.mxu0 %v3211
    %3433 = vmatprep.subr.mxu0 0.0
    %3434 = vmatpush1.msra.mxu0 %v3212
    %3435 = vmatprep.subr.mxu0 0.0
    %3436 = vmatpush1.msra.mxu0 %v3213
    %3437 = vmatprep.subr.mxu0 0.0
    %3438 = vmatpush1.msra.mxu0 %v3214
    %3439 = vmatprep.subr.mxu0 0.0
    %3440 = vmatpush1.msra.mxu0 %v3215
    %3441 = vmatprep.subr.mxu0 0.0
    %3442 = vmatpush1.msra.mxu0 %v3216
    %3443 = vmatprep.subr.mxu0 0.0
    %3444 = vmatpush1.msra.mxu0 %v3217
    %3445 = vmatprep.subr.mxu0 0.0
    %3446 = vmatpush1.msra.mxu0 %v3218
    %3447 = vmatprep.subr.mxu0 0.0
    %3448 = vmatpush1.msra.mxu0 %v3219
    %3449 = vmatprep.subr.mxu0 0.0
    %3450 = vmatpush1.msra.mxu0 %v3220
    %3451 = vmatprep.subr.mxu0 0.0
    %3452 = vmatpush1.msra.mxu0 %v3221
    %3453 = vmatprep.subr.mxu0 0.0
    %3454 = vmatpush1.msra.mxu0 %v3222
    %3455 = vmatprep.subr.mxu0 0.0
    %3456 = vmatpush1.msra.mxu0 %v3223
    %3457 = vmatprep.subr.mxu0 0.0
    %3458 = vmatpush1.msra.mxu0 %v3224
    %3459 = vmatprep.subr.mxu0 0.0
    %3460 = vmatpush1.msra.mxu0 %v3225
    %3461 = vmatprep.subr.mxu0 0.0
    %3462 = vmatpush1.msra.mxu0 %v3226
    %3463 = vmatprep.subr.mxu0 0.0
    %3464 = vmatpush1.msra.mxu0 %v3227
    %3465 = vmatprep.subr.mxu0 0.0
    %3466 = vmatpush1.msra.mxu0 %v3228
    %3467 = vmatprep.subr.mxu0 0.0
    %3468 = vmatpush1.msra.mxu0 %v3229
    %3469 = vmatprep.subr.mxu0 0.0
    %3470 = vmatpush1.msra.mxu0 %v3230
    %3471 = vmatprep.subr.mxu0 0.0
    %3472 = vmatpush1.msra.mxu0 %v3231
    %3473 = vmatprep.subr.mxu0 0.0
    %3474 = vmatpush1.msra.mxu0 %v3232
    %3475 = vmatprep.subr.mxu0 0.0
    %3476 = vmatpush1.msra.mxu0 %v3233
    %3477 = vmatprep.subr.mxu0 0.0
    %3478 = vmatpush1.msra.mxu0 %v3234
    %3479 = vmatprep.subr.mxu0 0.0
    %3480 = vmatpush1.msra.mxu0 %v3235
    %3481 = vmatprep.subr.mxu0 0.0
    %3482 = vmatpush1.msra.mxu0 %v3236
    %3483 = vmatprep.subr.mxu0 0.0
    %3484 = vmatpush1.msra.mxu0 %v3237
    %3485 = vmatprep.subr.mxu0 0.0
    %3486 = vmatpush1.msra.mxu0 %v3238
    %3487 = vmatprep.subr.mxu0 0.0
    %3488 = vmatpush1.msra.mxu0 %v3239
    %3489 = vmatprep.mubr.f32.mxu0 %v3276
    %3490 = vmatmul.mubr.f32.gmra.mrb[0].mxu0 %v3268
    %v3491 = vpop.f32.mrb[0].mxu0
    %v3492 = vadd.f32 %v3422, %v3491
    %v3493 = vpop.f32.mrb[0].mxu0
    %3494 = vdwg.mxu0
    %3495 = vmatprep.subr.mxu0 0.0
    %3496 = vmatpush1.msra.mxu0 %v3240
    %3497 = vmatprep.subr.mxu0 0.0
    %3498 = vmatpush1.msra.mxu0 %v3241
    %3499 = vmatprep.subr.mxu0 0.0
    %3500 = vmatpush1.msra.mxu0 0.0
    %3501 = vmatprep.subr.mxu0 0.0
    %3502 = vmatpush1.msra.mxu0 0.0
    %3503 = vmatprep.subr.mxu0 0.0
    %3504 = vmatpush1.msra.mxu0 0.0
    %3505 = vmatprep.subr.mxu0 0.0
    %3506 = vmatpush1.msra.mxu0 0.0
    %3507 = vmatprep.subr.mxu0 0.0
    %3508 = vmatpush1.msra.mxu0 0.0
    %3509 = vmatprep.subr.mxu0 0.0
    %3510 = vmatpush1.msra.mxu0 0.0
    %3511 = vmatprep.subr.mxu0 0.0
    %3512 = vmatpush1.msra.mxu0 0.0
    %3513 = vmatprep.subr.mxu0 0.0
    %3514 = vmatpush1.msra.mxu0 0.0
    %3515 = vmatprep.subr.mxu0 0.0
    %3516 = vmatpush1.msra.mxu0 0.0
    %3517 = vmatprep.subr.mxu0 0.0
    %3518 = vmatpush1.msra.mxu0 0.0
    %3519 = vmatprep.subr.mxu0 0.0
    %3520 = vmatpush1.msra.mxu0 0.0
    %3521 = vmatprep.subr.mxu0 0.0
    %3522 = vmatpush1.msra.mxu0 0.0
    %3523 = vmatprep.subr.mxu0 0.0
    %3524 = vmatpush1.msra.mxu0 0.0
    %3525 = vmatprep.subr.mxu0 0.0
    %3526 = vmatpush1.msra.mxu0 0.0
    %3527 = vmatprep.subr.mxu0 0.0
    %3528 = vmatpush1.msra.mxu0 0.0
    %3529 = vmatprep.subr.mxu0 0.0
    %3530 = vmatpush1.msra.mxu0 0.0
    %3531 = vmatprep.subr.mxu0 0.0
    %3532 = vmatpush1.msra.mxu0 0.0
    %3533 = vmatprep.subr.mxu0 0.0
    %3534 = vmatpush1.msra.mxu0 0.0
    %3535 = vmatprep.subr.mxu0 0.0
    %3536 = vmatpush1.msra.mxu0 0.0
    %3537 = vmatprep.subr.mxu0 0.0
    %3538 = vmatpush1.msra.mxu0 0.0
    %3539 = vmatprep.subr.mxu0 0.0
    %3540 = vmatpush1.msra.mxu0 0.0
    %3541 = vmatprep.subr.mxu0 0.0
    %3542 = vmatpush1.msra.mxu0 0.0
    %3543 = vmatprep.subr.mxu0 0.0
    %3544 = vmatpush1.msra.mxu0 0.0
    %3545 = vmatprep.subr.mxu0 0.0
    %3546 = vmatpush1.msra.mxu0 0.0
    %3547 = vmatprep.subr.mxu0 0.0
    %3548 = vmatpush1.msra.mxu0 0.0
    %3549 = vmatprep.subr.mxu0 0.0
    %3550 = vmatpush1.msra.mxu0 0.0
    %3551 = vmatprep.subr.mxu0 0.0
    %3552 = vmatpush1.msra.mxu0 0.0
    %3553 = vmatprep.subr.mxu0 0.0
    %3554 = vmatpush1.msra.mxu0 0.0
    %3555 = vmatprep.subr.mxu0 0.0
    %3556 = vmatpush1.msra.mxu0 0.0
    %3557 = vmatprep.subr.mxu0 0.0
    %3558 = vmatpush1.msra.mxu0 0.0
    %3559 = vmatprep.mubr.f32.mxu0 0.0
    %3560 = vmatmul.mubr.f32.gmra.mrb[0].mxu0 %v3283
    %v3561 = vpop.f32.mrb[0].mxu0
    %v3562 = vadd.f32 %v3492, %v3561
    %v3563 = vpop.f32.mrb[0].mxu0
    %3564 = vdwg.mxu0
    %v3565 = vadd.f32 %v3084, %v3562
    %s3566 = sld [smem:[#allocation3 + $0x36]]
    %v3567 = vstv %s3566
    %v3568 = vmul.f32 %v3567, %v665
    %v3569 = vmul.f32 %v3567, %v666
    %s3570 = sld [smem:[#allocation3 + $0x37]]
    %v3571 = vstv %s3570
    %v3572 = vmul.f32 %v3571, %v671
    %v3573 = vmul.f32 %v3571, %v672
    %v3574 = vadd.f32 %v3568, %v3572
    %v3575 = vadd.f32 %v3569, %v3573
    %s3576 = sld [smem:[#allocation3 + $0x38]]
    %v3577 = vstv %s3576
    %v3578 = vmul.f32 %v3577, %v679
    %v3579 = vmul.f32 %v3577, %v680
    %v3580 = vadd.f32 %v3574, %v3578
    %v3581 = vadd.f32 %v3575, %v3579
    %s3582 = sld [smem:[#allocation3 + $0x39]]
    %v3583 = vstv %s3582
    %v3584 = vmul.f32 %v3583, %v687
    %v3585 = vmul.f32 %v3583, %v688
    %v3586 = vadd.f32 %v3580, %v3584
    %v3587 = vadd.f32 %v3581, %v3585
    %s3588 = sld [smem:[#allocation3 + $0x3a]]
    %v3589 = vstv %s3588
    %v3590 = vmul.f32 %v3589, %v695
    %v3591 = vmul.f32 %v3589, %v696
    %v3592 = vadd.f32 %v3586, %v3590
    %v3593 = vadd.f32 %v3587, %v3591
    %s3594 = sld [smem:[#allocation3 + $0x3b]]
    %v3595 = vstv %s3594
    %v3596 = vmul.f32 %v3595, %v703
    %v3597 = vmul.f32 %v3595, %v704
    %v3598 = vadd.f32 %v3592, %v3596
    %v3599 = vadd.f32 %v3593, %v3597
    %s3600 = sld [smem:[#allocation3 + $0x3c]]
    %v3601 = vstv %s3600
    %v3602 = vmul.f32 %v3601, %v711
    %v3603 = vmul.f32 %v3601, %v712
    %v3604 = vadd.f32 %v3598, %v3602
    %v3605 = vadd.f32 %v3599, %v3603
    %s3606 = sld [smem:[#allocation3 + $0x3d]]
    %v3607 = vstv %s3606
    %v3608 = vmul.f32 %v3607, %v719
    %v3609 = vmul.f32 %v3607, %v720
    %v3610 = vadd.f32 %v3604, %v3608
    %v3611 = vadd.f32 %v3605, %v3609
    %s3612 = sld [smem:[#allocation3 + $0x3e]]
    %v3613 = vstv %s3612
    %v3614 = vmul.f32 %v3613, %v727
    %v3615 = vmul.f32 %v3613, %v728
    %v3616 = vadd.f32 %v3610, %v3614
    %v3617 = vadd.f32 %v3611, %v3615
    %s3618 = sld [smem:[#allocation6 + $0x6]]
    %v3619 = vstv %s3618
    %v3620 = vadd.f32 %v3616, %v3619
    %v3621 = vadd.f32 %v3617, %v3619
    %v3622 = vmax.f32 %v3620, 0.0
    %v3623 = vmax.f32 %v3621, 0.0
    %s3624 = scalar_lea.vmem %s4, 4704
    %v3625 = vld [vmem:[%s3624] sm:$0xff]
    %v3626 = vld [vmem:[%s3624 + $0x8] sm:$0xff]
    %v3627 = vld [vmem:[%s3624 + $0x10] sm:$0xff]
    %v3628 = vld [vmem:[%s3624 + $0x18] sm:$0xff]
    %v3629 = vld [vmem:[%s3624 + $0x20] sm:$0xff]
    %v3630 = vld [vmem:[%s3624 + $0x28] sm:$0xff]
    %v3631 = vld [vmem:[%s3624 + $0x30] sm:$0xff]
    %v3632 = vld [vmem:[%s3624 + $0x38] sm:$0xff]
    %v3633 = vld [vmem:[%s3624 + $0x40] sm:$0xff]
    %v3634 = vld [vmem:[%s3624 + $0x48] sm:$0xff]
    %v3635 = vld [vmem:[%s3624 + $0x50] sm:$0xff]
    %v3636 = vld [vmem:[%s3624 + $0x58] sm:$0xff]
    %v3637 = vld [vmem:[%s3624 + $0x60] sm:$0xff]
    %v3638 = vld [vmem:[%s3624 + $0x68] sm:$0xff]
    %v3639 = vld [vmem:[%s3624 + $0x70] sm:$0xff]
    %v3640 = vld [vmem:[%s3624 + $0x78] sm:$0xff]
    %v3641 = vld [vmem:[%s3624 + $0x80] sm:$0xff]
    %v3642 = vld [vmem:[%s3624 + $0x88] sm:$0xff]
    %v3643 = vld [vmem:[%s3624 + $0x90] sm:$0xff]
    %v3644 = vld [vmem:[%s3624 + $0x98] sm:$0xff]
    %v3645 = vld [vmem:[%s3624 + $0xa0] sm:$0xff]
    %v3646 = vld [vmem:[%s3624 + $0xa8] sm:$0xff]
    %v3647 = vld [vmem:[%s3624 + $0xb0] sm:$0xff]
    %v3648 = vld [vmem:[%s3624 + $0xb8] sm:$0xff]
    %v3649 = vld [vmem:[%s3624 + $0xc0] sm:$0xff]
    %v3650 = vld [vmem:[%s3624 + $0xc8] sm:$0xff]
    %v3651 = vld [vmem:[%s3624 + $0xd0] sm:$0xff]
    %v3652 = vld [vmem:[%s3624 + $0xd8] sm:$0xff]
    %v3653 = vld [vmem:[%s3624 + $0xe0] sm:$0xff]
    %v3654 = vld [vmem:[%s3624 + $0xe8] sm:$0xff]
    %v3655 = vld [vmem:[%s3624 + $0xf0] sm:$0xff]
    %v3656 = vld [vmem:[%s3624 + $0xf8] sm:$0xff]
    %v3657 = vld [vmem:[%s3624 + $0x100] sm:$0xff]
    %v3658 = vld [vmem:[%s3624 + $0x108] sm:$0xff]
    %v3659 = vld [vmem:[%s3624 + $0x110] sm:$0xff]
    %v3660 = vld [vmem:[%s3624 + $0x118] sm:$0xff]
    %v3661 = vld [vmem:[%s3624 + $0x120] sm:$0xff]
    %v3662 = vld [vmem:[%s3624 + $0x128] sm:$0xff]
    %v3663 = vld [vmem:[%s3624 + $0x130] sm:$0xff]
    %v3664 = vld [vmem:[%s3624 + $0x138] sm:$0xff]
    %v3665 = vld [vmem:[%s3624 + $0x140] sm:$0xff]
    %v3666 = vld [vmem:[%s3624 + $0x148] sm:$0xff]
    %v3667 = vld [vmem:[%s3624 + $0x150] sm:$0xff]
    %v3668 = vld [vmem:[%s3624 + $0x158] sm:$0xff]
    %v3669 = vld [vmem:[%s3624 + $0x160] sm:$0xff]
    %v3670 = vld [vmem:[%s3624 + $0x168] sm:$0xff]
    %v3671 = vld [vmem:[%s3624 + $0x170] sm:$0xff]
    %v3672 = vld [vmem:[%s3624 + $0x178] sm:$0xff]
    %v3673 = vld [vmem:[%s3624 + $0x180] sm:$0xff]
    %v3674 = vld [vmem:[%s3624 + $0x188] sm:$0xff]
    %v3675 = vld [vmem:[%s3624 + $0x190] sm:$0xff]
    %v3676 = vld [vmem:[%s3624 + $0x198] sm:$0xff]
    %v3677 = vld [vmem:[%s3624 + $0x1a0] sm:$0xff]
    %v3678 = vld [vmem:[%s3624 + $0x1a8] sm:$0xff]
    %v3679 = vld [vmem:[%s3624 + $0x1b0] sm:$0xff]
    %v3680 = vld [vmem:[%s3624 + $0x1b8] sm:$0xff]
    %v3681 = vld [vmem:[%s3624 + $0x1c0] sm:$0xff]
    %v3682 = vld [vmem:[%s3624 + $0x1c8] sm:$0xff]
    %v3683 = vld [vmem:[%s3624 + $0x1d0] sm:$0xff]
    %v3684 = vld [vmem:[%s3624 + $0x1d8] sm:$0xff]
    %v3685 = vld [vmem:[%s3624 + $0x1e0] sm:$0xff]
    %v3686 = vld [vmem:[%s3624 + $0x1e8] sm:$0xff]
    %v3687 = vld [vmem:[%s3624 + $0x1f0] sm:$0xff]
    %v3688 = vld [vmem:[%s3624 + $0x1f8] sm:$0xff]
    %v3689 = vld [vmem:[%s3624 + $0x200] sm:$0xff]
    %v3690 = vld [vmem:[%s3624 + $0x208] sm:$0xff]
    %v3691 = vld [vmem:[%s3624 + $0x210] sm:$0xff]
    %v3692 = vld [vmem:[%s3624 + $0x218] sm:$0xff]
    %v3693 = vld [vmem:[%s3624 + $0x220] sm:$0xff]
    %v3694 = vld [vmem:[%s3624 + $0x228] sm:$0xff]
    %v3695 = vld [vmem:[%s3624 + $0x230] sm:$0xff]
    %v3696 = vld [vmem:[%s3624 + $0x238] sm:$0xff]
    %v3697 = vld [vmem:[%s3624 + $0x240] sm:$0xff]
    %v3698 = vld [vmem:[%s3624 + $0x248] sm:$0xff]
    %v3699 = vld [vmem:[%s3624 + $0x250] sm:$0xff]
    %v3700 = vld [vmem:[%s3624 + $0x258] sm:$0xff]
    %v3701 = vld [vmem:[%s3624 + $0x260] sm:$0xff]
    %v3702 = vld [vmem:[%s3624 + $0x268] sm:$0xff]
    %v3703 = vld [vmem:[%s3624 + $0x270] sm:$0xff]
    %v3704 = vld [vmem:[%s3624 + $0x278] sm:$0xff]
    %v3705 = vld [vmem:[%s3624 + $0x280] sm:$0xff]
    %v3706 = vld [vmem:[%s3624 + $0x288] sm:$0xff]
    %v3707 = vld [vmem:[%s3624 + $0x290] sm:$0xff]
    %v3708 = vld [vmem:[%s3624 + $0x298] sm:$0xff]
    %v3709 = vld [vmem:[%s3624 + $0x2a0] sm:$0xff]
    %v3710 = vld [vmem:[%s3624 + $0x2a8] sm:$0xff]
    %v3711 = vld [vmem:[%s3624 + $0x2b0] sm:$0xff]
    %v3712 = vld [vmem:[%s3624 + $0x2b8] sm:$0xff]
    %v3713 = vld [vmem:[%s3624 + $0x2c0] sm:$0xff]
    %v3714 = vld [vmem:[%s3624 + $0x2c8] sm:$0xff]
    %v3715 = vld [vmem:[%s3624 + $0x2d0] sm:$0xff]
    %v3716 = vld [vmem:[%s3624 + $0x2d8] sm:$0xff]
    %v3717 = vld [vmem:[%s3624 + $0x2e0] sm:$0xff]
    %v3718 = vld [vmem:[%s3624 + $0x2e8] sm:$0xff]
    %v3719 = vld [vmem:[%s3624 + $0x2f0] sm:$0xff]
    %v3720 = vld [vmem:[%s3624 + $0x2f8] sm:$0xff]
    %v3721 = vld [vmem:[%s3624 + $0x300] sm:$0xff]
    %v3722 = vld [vmem:[%s3624 + $0x308] sm:$0xff]
    %v3725 = vcombine.high %v3622, %v3622
    %v3727 = vunpack.c.l.s4 1983009808
    %v3728 = vunpack.c.0.s8 %v3727
    %v3729 = vlaneseq
    %v3730 = vshrl.u32 %v3729, 7
    %v3731 = vsub.s32 %v3728, %v3730
    %v3732 = vrot.slane %v3622, %v3731
    %v3734 = vunpack.c.l.s4 1983009808
    %v3735 = vunpack.c.0.s8 %v3734
    %v3736 = vlaneseq
    %v3737 = vshrl.u32 %v3736, 7
    %v3738 = vsub.s32 %v3735, %v3737
    %v3739 = vrot.slane %v3725, %v3738
    %v3740 = vcombine.high %v3732, %v3732
    %v3741 = vcombine.high %v3739, %v3739
    %v3742 = vcombine.high %v3623, %v3623
    %v3744 = vunpack.c.l.s4 1983009808
    %v3745 = vunpack.c.0.s8 %v3744
    %v3746 = vlaneseq
    %v3747 = vshrl.u32 %v3746, 7
    %v3748 = vsub.s32 %v3745, %v3747
    %v3749 = vrot.slane %v3623, %v3748
    %v3751 = vunpack.c.l.s4 1983009808
    %v3752 = vunpack.c.0.s8 %v3751
    %v3753 = vlaneseq
    %v3754 = vshrl.u32 %v3753, 7
    %v3755 = vsub.s32 %v3752, %v3754
    %v3756 = vrot.slane %v3742, %v3755
    %v3757 = vcombine.high %v3749, %v3749
    %v3764 = vsel %vm1036, %v3756, 0
    %3766 = vmatprep.subr.mxu0 0.0
    %3767 = vmatpush1.msra.mxu0 %v3625
    %3768 = vmatprep.subr.mxu0 0.0
    %3769 = vmatpush1.msra.mxu0 %v3626
    %3770 = vmatprep.subr.mxu0 0.0
    %3771 = vmatpush1.msra.mxu0 %v3627
    %3772 = vmatprep.subr.mxu0 0.0
    %3773 = vmatpush1.msra.mxu0 %v3628
    %3774 = vmatprep.subr.mxu0 0.0
    %3775 = vmatpush1.msra.mxu0 %v3629
    %3776 = vmatprep.subr.mxu0 0.0
    %3777 = vmatpush1.msra.mxu0 %v3630
    %3778 = vmatprep.subr.mxu0 0.0
    %3779 = vmatpush1.msra.mxu0 %v3631
    %3780 = vmatprep.subr.mxu0 0.0
    %3781 = vmatpush1.msra.mxu0 %v3632
    %3782 = vmatprep.subr.mxu0 0.0
    %3783 = vmatpush1.msra.mxu0 %v3633
    %3784 = vmatprep.subr.mxu0 0.0
    %3785 = vmatpush1.msra.mxu0 %v3634
    %3786 = vmatprep.subr.mxu0 0.0
    %3787 = vmatpush1.msra.mxu0 %v3635
    %3788 = vmatprep.subr.mxu0 0.0
    %3789 = vmatpush1.msra.mxu0 %v3636
    %3790 = vmatprep.subr.mxu0 0.0
    %3791 = vmatpush1.msra.mxu0 %v3637
    %3792 = vmatprep.subr.mxu0 0.0
    %3793 = vmatpush1.msra.mxu0 %v3638
    %3794 = vmatprep.subr.mxu0 0.0
    %3795 = vmatpush1.msra.mxu0 %v3639
    %3796 = vmatprep.subr.mxu0 0.0
    %3797 = vmatpush1.msra.mxu0 %v3640
    %3798 = vmatprep.subr.mxu0 0.0
    %3799 = vmatpush1.msra.mxu0 %v3641
    %3800 = vmatprep.subr.mxu0 0.0
    %3801 = vmatpush1.msra.mxu0 %v3642
    %3802 = vmatprep.subr.mxu0 0.0
    %3803 = vmatpush1.msra.mxu0 %v3643
    %3804 = vmatprep.subr.mxu0 0.0
    %3805 = vmatpush1.msra.mxu0 %v3644
    %3806 = vmatprep.subr.mxu0 0.0
    %3807 = vmatpush1.msra.mxu0 %v3645
    %3808 = vmatprep.subr.mxu0 0.0
    %3809 = vmatpush1.msra.mxu0 %v3646
    %3810 = vmatprep.subr.mxu0 0.0
    %3811 = vmatpush1.msra.mxu0 %v3647
    %3812 = vmatprep.subr.mxu0 0.0
    %3813 = vmatpush1.msra.mxu0 %v3648
    %3814 = vmatprep.subr.mxu0 0.0
    %3815 = vmatpush1.msra.mxu0 %v3649
    %3816 = vmatprep.subr.mxu0 0.0
    %3817 = vmatpush1.msra.mxu0 %v3650
    %3818 = vmatprep.subr.mxu0 0.0
    %3819 = vmatpush1.msra.mxu0 %v3651
    %3820 = vmatprep.subr.mxu0 0.0
    %3821 = vmatpush1.msra.mxu0 %v3652
    %3822 = vmatprep.subr.mxu0 0.0
    %3823 = vmatpush1.msra.mxu0 %v3653
    %3824 = vmatprep.subr.mxu0 0.0
    %3825 = vmatpush1.msra.mxu0 %v3654
    %3826 = vmatprep.subr.mxu0 0.0
    %3827 = vmatpush1.msra.mxu0 %v3655
    %3828 = vmatprep.subr.mxu0 0.0
    %3829 = vmatpush1.msra.mxu0 %v3656
    %3830 = vmatprep.mubr.f32.mxu0 %v3740
    %3831 = vmatmul.mubr.f32.gmra.mrb[0].mxu0 %v3732
    %v3832 = vpop.f32.mrb[0].mxu0
    %v3833 = vadd.f32 0.0, %v3832
    %v3834 = vpop.f32.mrb[0].mxu0
    %3835 = vdwg.mxu0
    %3836 = vmatprep.subr.mxu0 0.0
    %3837 = vmatpush1.msra.mxu0 %v3657
    %3838 = vmatprep.subr.mxu0 0.0
    %3839 = vmatpush1.msra.mxu0 %v3658
    %3840 = vmatprep.subr.mxu0 0.0
    %3841 = vmatpush1.msra.mxu0 %v3659
    %3842 = vmatprep.subr.mxu0 0.0
    %3843 = vmatpush1.msra.mxu0 %v3660
    %3844 = vmatprep.subr.mxu0 0.0
    %3845 = vmatpush1.msra.mxu0 %v3661
    %3846 = vmatprep.subr.mxu0 0.0
    %3847 = vmatpush1.msra.mxu0 %v3662
    %3848 = vmatprep.subr.mxu0 0.0
    %3849 = vmatpush1.msra.mxu0 %v3663
    %3850 = vmatprep.subr.mxu0 0.0
    %3851 = vmatpush1.msra.mxu0 %v3664
    %3852 = vmatprep.subr.mxu0 0.0
    %3853 = vmatpush1.msra.mxu0 %v3665
    %3854 = vmatprep.subr.mxu0 0.0
    %3855 = vmatpush1.msra.mxu0 %v3666
    %3856 = vmatprep.subr.mxu0 0.0
    %3857 = vmatpush1.msra.mxu0 %v3667
    %3858 = vmatprep.subr.mxu0 0.0
    %3859 = vmatpush1.msra.mxu0 %v3668
    %3860 = vmatprep.subr.mxu0 0.0
    %3861 = vmatpush1.msra.mxu0 %v3669
    %3862 = vmatprep.subr.mxu0 0.0
    %3863 = vmatpush1.msra.mxu0 %v3670
    %3864 = vmatprep.subr.mxu0 0.0
    %3865 = vmatpush1.msra.mxu0 %v3671
    %3866 = vmatprep.subr.mxu0 0.0
    %3867 = vmatpush1.msra.mxu0 %v3672
    %3868 = vmatprep.subr.mxu0 0.0
    %3869 = vmatpush1.msra.mxu0 %v3673
    %3870 = vmatprep.subr.mxu0 0.0
    %3871 = vmatpush1.msra.mxu0 %v3674
    %3872 = vmatprep.subr.mxu0 0.0
    %3873 = vmatpush1.msra.mxu0 %v3675
    %3874 = vmatprep.subr.mxu0 0.0
    %3875 = vmatpush1.msra.mxu0 %v3676
    %3876 = vmatprep.subr.mxu0 0.0
    %3877 = vmatpush1.msra.mxu0 %v3677
    %3878 = vmatprep.subr.mxu0 0.0
    %3879 = vmatpush1.msra.mxu0 %v3678
    %3880 = vmatprep.subr.mxu0 0.0
    %3881 = vmatpush1.msra.mxu0 %v3679
    %3882 = vmatprep.subr.mxu0 0.0
    %3883 = vmatpush1.msra.mxu0 %v3680
    %3884 = vmatprep.subr.mxu0 0.0
    %3885 = vmatpush1.msra.mxu0 %v3681
    %3886 = vmatprep.subr.mxu0 0.0
    %3887 = vmatpush1.msra.mxu0 %v3682
    %3888 = vmatprep.subr.mxu0 0.0
    %3889 = vmatpush1.msra.mxu0 %v3683
    %3890 = vmatprep.subr.mxu0 0.0
    %3891 = vmatpush1.msra.mxu0 %v3684
    %3892 = vmatprep.subr.mxu0 0.0
    %3893 = vmatpush1.msra.mxu0 %v3685
    %3894 = vmatprep.subr.mxu0 0.0
    %3895 = vmatpush1.msra.mxu0 %v3686
    %3896 = vmatprep.subr.mxu0 0.0
    %3897 = vmatpush1.msra.mxu0 %v3687
    %3898 = vmatprep.subr.mxu0 0.0
    %3899 = vmatpush1.msra.mxu0 %v3688
    %3900 = vmatprep.mubr.f32.mxu0 %v3741
    %3901 = vmatmul.mubr.f32.gmra.mrb[0].mxu0 %v3739
    %v3902 = vpop.f32.mrb[0].mxu0
    %v3903 = vadd.f32 %v3833, %v3902
    %v3904 = vpop.f32.mrb[0].mxu0
    %3905 = vdwg.mxu0
    %3906 = vmatprep.subr.mxu0 0.0
    %3907 = vmatpush1.msra.mxu0 %v3689
    %3908 = vmatprep.subr.mxu0 0.0
    %3909 = vmatpush1.msra.mxu0 %v3690
    %3910 = vmatprep.subr.mxu0 0.0
    %3911 = vmatpush1.msra.mxu0 %v3691
    %3912 = vmatprep.subr.mxu0 0.0
    %3913 = vmatpush1.msra.mxu0 %v3692
    %3914 = vmatprep.subr.mxu0 0.0
    %3915 = vmatpush1.msra.mxu0 %v3693
    %3916 = vmatprep.subr.mxu0 0.0
    %3917 = vmatpush1.msra.mxu0 %v3694
    %3918 = vmatprep.subr.mxu0 0.0
    %3919 = vmatpush1.msra.mxu0 %v3695
    %3920 = vmatprep.subr.mxu0 0.0
    %3921 = vmatpush1.msra.mxu0 %v3696
    %3922 = vmatprep.subr.mxu0 0.0
    %3923 = vmatpush1.msra.mxu0 %v3697
    %3924 = vmatprep.subr.mxu0 0.0
    %3925 = vmatpush1.msra.mxu0 %v3698
    %3926 = vmatprep.subr.mxu0 0.0
    %3927 = vmatpush1.msra.mxu0 %v3699
    %3928 = vmatprep.subr.mxu0 0.0
    %3929 = vmatpush1.msra.mxu0 %v3700
    %3930 = vmatprep.subr.mxu0 0.0
    %3931 = vmatpush1.msra.mxu0 %v3701
    %3932 = vmatprep.subr.mxu0 0.0
    %3933 = vmatpush1.msra.mxu0 %v3702
    %3934 = vmatprep.subr.mxu0 0.0
    %3935 = vmatpush1.msra.mxu0 %v3703
    %3936 = vmatprep.subr.mxu0 0.0
    %3937 = vmatpush1.msra.mxu0 %v3704
    %3938 = vmatprep.subr.mxu0 0.0
    %3939 = vmatpush1.msra.mxu0 %v3705
    %3940 = vmatprep.subr.mxu0 0.0
    %3941 = vmatpush1.msra.mxu0 %v3706
    %3942 = vmatprep.subr.mxu0 0.0
    %3943 = vmatpush1.msra.mxu0 %v3707
    %3944 = vmatprep.subr.mxu0 0.0
    %3945 = vmatpush1.msra.mxu0 %v3708
    %3946 = vmatprep.subr.mxu0 0.0
    %3947 = vmatpush1.msra.mxu0 %v3709
    %3948 = vmatprep.subr.mxu0 0.0
    %3949 = vmatpush1.msra.mxu0 %v3710
    %3950 = vmatprep.subr.mxu0 0.0
    %3951 = vmatpush1.msra.mxu0 %v3711
    %3952 = vmatprep.subr.mxu0 0.0
    %3953 = vmatpush1.msra.mxu0 %v3712
    %3954 = vmatprep.subr.mxu0 0.0
    %3955 = vmatpush1.msra.mxu0 %v3713
    %3956 = vmatprep.subr.mxu0 0.0
    %3957 = vmatpush1.msra.mxu0 %v3714
    %3958 = vmatprep.subr.mxu0 0.0
    %3959 = vmatpush1.msra.mxu0 %v3715
    %3960 = vmatprep.subr.mxu0 0.0
    %3961 = vmatpush1.msra.mxu0 %v3716
    %3962 = vmatprep.subr.mxu0 0.0
    %3963 = vmatpush1.msra.mxu0 %v3717
    %3964 = vmatprep.subr.mxu0 0.0
    %3965 = vmatpush1.msra.mxu0 %v3718
    %3966 = vmatprep.subr.mxu0 0.0
    %3967 = vmatpush1.msra.mxu0 %v3719
    %3968 = vmatprep.subr.mxu0 0.0
    %3969 = vmatpush1.msra.mxu0 %v3720
    %3970 = vmatprep.mubr.f32.mxu0 %v3757
    %3971 = vmatmul.mubr.f32.gmra.mrb[0].mxu0 %v3749
    %v3972 = vpop.f32.mrb[0].mxu0
    %v3973 = vadd.f32 %v3903, %v3972
    %v3974 = vpop.f32.mrb[0].mxu0
    %3975 = vdwg.mxu0
    %3976 = vmatprep.subr.mxu0 0.0
    %3977 = vmatpush1.msra.mxu0 %v3721
    %3978 = vmatprep.subr.mxu0 0.0
    %3979 = vmatpush1.msra.mxu0 %v3722
    %3980 = vmatprep.subr.mxu0 0.0
    %3981 = vmatpush1.msra.mxu0 0.0
    %3982 = vmatprep.subr.mxu0 0.0
    %3983 = vmatpush1.msra.mxu0 0.0
    %3984 = vmatprep.subr.mxu0 0.0
    %3985 = vmatpush1.msra.mxu0 0.0
    %3986 = vmatprep.subr.mxu0 0.0
    %3987 = vmatpush1.msra.mxu0 0.0
    %3988 = vmatprep.subr.mxu0 0.0
    %3989 = vmatpush1.msra.mxu0 0.0
    %3990 = vmatprep.subr.mxu0 0.0
    %3991 = vmatpush1.msra.mxu0 0.0
    %3992 = vmatprep.subr.mxu0 0.0
    %3993 = vmatpush1.msra.mxu0 0.0
    %3994 = vmatprep.subr.mxu0 0.0
    %3995 = vmatpush1.msra.mxu0 0.0
    %3996 = vmatprep.subr.mxu0 0.0
    %3997 = vmatpush1.msra.mxu0 0.0
    %3998 = vmatprep.subr.mxu0 0.0
    %3999 = vmatpush1.msra.mxu0 0.0
    %4000 = vmatprep.subr.mxu0 0.0
    %4001 = vmatpush1.msra.mxu0 0.0
    %4002 = vmatprep.subr.mxu0 0.0
    %4003 = vmatpush1.msra.mxu0 0.0
    %4004 = vmatprep.subr.mxu0 0.0
    %4005 = vmatpush1.msra.mxu0 0.0
    %4006 = vmatprep.subr.mxu0 0.0
    %4007 = vmatpush1.msra.mxu0 0.0
    %4008 = vmatprep.subr.mxu0 0.0
    %4009 = vmatpush1.msra.mxu0 0.0
    %4010 = vmatprep.subr.mxu0 0.0
    %4011 = vmatpush1.msra.mxu0 0.0
    %4012 = vmatprep.subr.mxu0 0.0
    %4013 = vmatpush1.msra.mxu0 0.0
    %4014 = vmatprep.subr.mxu0 0.0
    %4015 = vmatpush1.msra.mxu0 0.0
    %4016 = vmatprep.subr.mxu0 0.0
    %4017 = vmatpush1.msra.mxu0 0.0
    %4018 = vmatprep.subr.mxu0 0.0
    %4019 = vmatpush1.msra.mxu0 0.0
    %4020 = vmatprep.subr.mxu0 0.0
    %4021 = vmatpush1.msra.mxu0 0.0
    %4022 = vmatprep.subr.mxu0 0.0
    %4023 = vmatpush1.msra.mxu0 0.0
    %4024 = vmatprep.subr.mxu0 0.0
    %4025 = vmatpush1.msra.mxu0 0.0
    %4026 = vmatprep.subr.mxu0 0.0
    %4027 = vmatpush1.msra.mxu0 0.0
    %4028 = vmatprep.subr.mxu0 0.0
    %4029 = vmatpush1.msra.mxu0 0.0
    %4030 = vmatprep.subr.mxu0 0.0
    %4031 = vmatpush1.msra.mxu0 0.0
    %4032 = vmatprep.subr.mxu0 0.0
    %4033 = vmatpush1.msra.mxu0 0.0
    %4034 = vmatprep.subr.mxu0 0.0
    %4035 = vmatpush1.msra.mxu0 0.0
    %4036 = vmatprep.subr.mxu0 0.0
    %4037 = vmatpush1.msra.mxu0 0.0
    %4038 = vmatprep.subr.mxu0 0.0
    %4039 = vmatpush1.msra.mxu0 0.0
    %4040 = vmatprep.mubr.f32.mxu0 0.0
    %4041 = vmatmul.mubr.f32.gmra.mrb[0].mxu0 %v3764
    %v4042 = vpop.f32.mrb[0].mxu0
    %v4043 = vadd.f32 %v3973, %v4042
    %v4044 = vpop.f32.mrb[0].mxu0
    %4045 = vdwg.mxu0
    %v4046 = vadd.f32 %v3565, %v4043
    %s4047 = sld [smem:[#allocation3 + $0x3f]]
    %v4048 = vstv %s4047
    %v4049 = vmul.f32 %v4048, %v665
    %v4050 = vmul.f32 %v4048, %v666
    %s4051 = sld [smem:[#allocation3 + $0x40]]
    %v4052 = vstv %s4051
    %v4053 = vmul.f32 %v4052, %v671
    %v4054 = vmul.f32 %v4052, %v672
    %v4055 = vadd.f32 %v4049, %v4053
    %v4056 = vadd.f32 %v4050, %v4054
    %s4057 = sld [smem:[#allocation3 + $0x41]]
    %v4058 = vstv %s4057
    %v4059 = vmul.f32 %v4058, %v679
    %v4060 = vmul.f32 %v4058, %v680
    %v4061 = vadd.f32 %v4055, %v4059
    %v4062 = vadd.f32 %v4056, %v4060
    %s4063 = sld [smem:[#allocation3 + $0x42]]
    %v4064 = vstv %s4063
    %v4065 = vmul.f32 %v4064, %v687
    %v4066 = vmul.f32 %v4064, %v688
    %v4067 = vadd.f32 %v4061, %v4065
    %v4068 = vadd.f32 %v4062, %v4066
    %s4069 = sld [smem:[#allocation3 + $0x43]]
    %v4070 = vstv %s4069
    %v4071 = vmul.f32 %v4070, %v695
    %v4072 = vmul.f32 %v4070, %v696
    %v4073 = vadd.f32 %v4067, %v4071
    %v4074 = vadd.f32 %v4068, %v4072
    %s4075 = sld [smem:[#allocation3 + $0x44]]
    %v4076 = vstv %s4075
    %v4077 = vmul.f32 %v4076, %v703
    %v4078 = vmul.f32 %v4076, %v704
    %v4079 = vadd.f32 %v4073, %v4077
    %v4080 = vadd.f32 %v4074, %v4078
    %s4081 = sld [smem:[#allocation3 + $0x45]]
    %v4082 = vstv %s4081
    %v4083 = vmul.f32 %v4082, %v711
    %v4084 = vmul.f32 %v4082, %v712
    %v4085 = vadd.f32 %v4079, %v4083
    %v4086 = vadd.f32 %v4080, %v4084
    %s4087 = sld [smem:[#allocation3 + $0x46]]
    %v4088 = vstv %s4087
    %v4089 = vmul.f32 %v4088, %v719
    %v4090 = vmul.f32 %v4088, %v720
    %v4091 = vadd.f32 %v4085, %v4089
    %v4092 = vadd.f32 %v4086, %v4090
    %s4093 = sld [smem:[#allocation3 + $0x47]]
    %v4094 = vstv %s4093
    %v4095 = vmul.f32 %v4094, %v727
    %v4096 = vmul.f32 %v4094, %v728
    %v4097 = vadd.f32 %v4091, %v4095
    %v4098 = vadd.f32 %v4092, %v4096
    %s4099 = sld [smem:[#allocation6 + $0x7]]
    %v4100 = vstv %s4099
    %v4101 = vadd.f32 %v4097, %v4100
    %v4102 = vadd.f32 %v4098, %v4100
    %v4103 = vmax.f32 %v4101, 0.0
    %v4104 = vmax.f32 %v4102, 0.0
    %s4105 = scalar_lea.vmem %s4, 5488
    %v4106 = vld [vmem:[%s4105] sm:$0xff]
    %v4107 = vld [vmem:[%s4105 + $0x8] sm:$0xff]
    %v4108 = vld [vmem:[%s4105 + $0x10] sm:$0xff]
    %v4109 = vld [vmem:[%s4105 + $0x18] sm:$0xff]
    %v4110 = vld [vmem:[%s4105 + $0x20] sm:$0xff]
    %v4111 = vld [vmem:[%s4105 + $0x28] sm:$0xff]
    %v4112 = vld [vmem:[%s4105 + $0x30] sm:$0xff]
    %v4113 = vld [vmem:[%s4105 + $0x38] sm:$0xff]
    %v4114 = vld [vmem:[%s4105 + $0x40] sm:$0xff]
    %v4115 = vld [vmem:[%s4105 + $0x48] sm:$0xff]
    %v4116 = vld [vmem:[%s4105 + $0x50] sm:$0xff]
    %v4117 = vld [vmem:[%s4105 + $0x58] sm:$0xff]
    %v4118 = vld [vmem:[%s4105 + $0x60] sm:$0xff]
    %v4119 = vld [vmem:[%s4105 + $0x68] sm:$0xff]
    %v4120 = vld [vmem:[%s4105 + $0x70] sm:$0xff]
    %v4121 = vld [vmem:[%s4105 + $0x78] sm:$0xff]
    %v4122 = vld [vmem:[%s4105 + $0x80] sm:$0xff]
    %v4123 = vld [vmem:[%s4105 + $0x88] sm:$0xff]
    %v4124 = vld [vmem:[%s4105 + $0x90] sm:$0xff]
    %v4125 = vld [vmem:[%s4105 + $0x98] sm:$0xff]
    %v4126 = vld [vmem:[%s4105 + $0xa0] sm:$0xff]
    %v4127 = vld [vmem:[%s4105 + $0xa8] sm:$0xff]
    %v4128 = vld [vmem:[%s4105 + $0xb0] sm:$0xff]
    %v4129 = vld [vmem:[%s4105 + $0xb8] sm:$0xff]
    %v4130 = vld [vmem:[%s4105 + $0xc0] sm:$0xff]
    %v4131 = vld [vmem:[%s4105 + $0xc8] sm:$0xff]
    %v4132 = vld [vmem:[%s4105 + $0xd0] sm:$0xff]
    %v4133 = vld [vmem:[%s4105 + $0xd8] sm:$0xff]
    %v4134 = vld [vmem:[%s4105 + $0xe0] sm:$0xff]
    %v4135 = vld [vmem:[%s4105 + $0xe8] sm:$0xff]
    %v4136 = vld [vmem:[%s4105 + $0xf0] sm:$0xff]
    %v4137 = vld [vmem:[%s4105 + $0xf8] sm:$0xff]
    %v4138 = vld [vmem:[%s4105 + $0x100] sm:$0xff]
    %v4139 = vld [vmem:[%s4105 + $0x108] sm:$0xff]
    %v4140 = vld [vmem:[%s4105 + $0x110] sm:$0xff]
    %v4141 = vld [vmem:[%s4105 + $0x118] sm:$0xff]
    %v4142 = vld [vmem:[%s4105 + $0x120] sm:$0xff]
    %v4143 = vld [vmem:[%s4105 + $0x128] sm:$0xff]
    %v4144 = vld [vmem:[%s4105 + $0x130] sm:$0xff]
    %v4145 = vld [vmem:[%s4105 + $0x138] sm:$0xff]
    %v4146 = vld [vmem:[%s4105 + $0x140] sm:$0xff]
    %v4147 = vld [vmem:[%s4105 + $0x148] sm:$0xff]
    %v4148 = vld [vmem:[%s4105 + $0x150] sm:$0xff]
    %v4149 = vld [vmem:[%s4105 + $0x158] sm:$0xff]
    %v4150 = vld [vmem:[%s4105 + $0x160] sm:$0xff]
    %v4151 = vld [vmem:[%s4105 + $0x168] sm:$0xff]
    %v4152 = vld [vmem:[%s4105 + $0x170] sm:$0xff]
    %v4153 = vld [vmem:[%s4105 + $0x178] sm:$0xff]
    %v4154 = vld [vmem:[%s4105 + $0x180] sm:$0xff]
    %v4155 = vld [vmem:[%s4105 + $0x188] sm:$0xff]
    %v4156 = vld [vmem:[%s4105 + $0x190] sm:$0xff]
    %v4157 = vld [vmem:[%s4105 + $0x198] sm:$0xff]
    %v4158 = vld [vmem:[%s4105 + $0x1a0] sm:$0xff]
    %v4159 = vld [vmem:[%s4105 + $0x1a8] sm:$0xff]
    %v4160 = vld [vmem:[%s4105 + $0x1b0] sm:$0xff]
    %v4161 = vld [vmem:[%s4105 + $0x1b8] sm:$0xff]
    %v4162 = vld [vmem:[%s4105 + $0x1c0] sm:$0xff]
    %v4163 = vld [vmem:[%s4105 + $0x1c8] sm:$0xff]
    %v4164 = vld [vmem:[%s4105 + $0x1d0] sm:$0xff]
    %v4165 = vld [vmem:[%s4105 + $0x1d8] sm:$0xff]
    %v4166 = vld [vmem:[%s4105 + $0x1e0] sm:$0xff]
    %v4167 = vld [vmem:[%s4105 + $0x1e8] sm:$0xff]
    %v4168 = vld [vmem:[%s4105 + $0x1f0] sm:$0xff]
    %v4169 = vld [vmem:[%s4105 + $0x1f8] sm:$0xff]
    %v4170 = vld [vmem:[%s4105 + $0x200] sm:$0xff]
    %v4171 = vld [vmem:[%s4105 + $0x208] sm:$0xff]
    %v4172 = vld [vmem:[%s4105 + $0x210] sm:$0xff]
    %v4173 = vld [vmem:[%s4105 + $0x218] sm:$0xff]
    %v4174 = vld [vmem:[%s4105 + $0x220] sm:$0xff]
    %v4175 = vld [vmem:[%s4105 + $0x228] sm:$0xff]
    %v4176 = vld [vmem:[%s4105 + $0x230] sm:$0xff]
    %v4177 = vld [vmem:[%s4105 + $0x238] sm:$0xff]
    %v4178 = vld [vmem:[%s4105 + $0x240] sm:$0xff]
    %v4179 = vld [vmem:[%s4105 + $0x248] sm:$0xff]
    %v4180 = vld [vmem:[%s4105 + $0x250] sm:$0xff]
    %v4181 = vld [vmem:[%s4105 + $0x258] sm:$0xff]
    %v4182 = vld [vmem:[%s4105 + $0x260] sm:$0xff]
    %v4183 = vld [vmem:[%s4105 + $0x268] sm:$0xff]
    %v4184 = vld [vmem:[%s4105 + $0x270] sm:$0xff]
    %v4185 = vld [vmem:[%s4105 + $0x278] sm:$0xff]
    %v4186 = vld [vmem:[%s4105 + $0x280] sm:$0xff]
    %v4187 = vld [vmem:[%s4105 + $0x288] sm:$0xff]
    %v4188 = vld [vmem:[%s4105 + $0x290] sm:$0xff]
    %v4189 = vld [vmem:[%s4105 + $0x298] sm:$0xff]
    %v4190 = vld [vmem:[%s4105 + $0x2a0] sm:$0xff]
    %v4191 = vld [vmem:[%s4105 + $0x2a8] sm:$0xff]
    %v4192 = vld [vmem:[%s4105 + $0x2b0] sm:$0xff]
    %v4193 = vld [vmem:[%s4105 + $0x2b8] sm:$0xff]
    %v4194 = vld [vmem:[%s4105 + $0x2c0] sm:$0xff]
    %v4195 = vld [vmem:[%s4105 + $0x2c8] sm:$0xff]
    %v4196 = vld [vmem:[%s4105 + $0x2d0] sm:$0xff]
    %v4197 = vld [vmem:[%s4105 + $0x2d8] sm:$0xff]
    %v4198 = vld [vmem:[%s4105 + $0x2e0] sm:$0xff]
    %v4199 = vld [vmem:[%s4105 + $0x2e8] sm:$0xff]
    %v4200 = vld [vmem:[%s4105 + $0x2f0] sm:$0xff]
    %v4201 = vld [vmem:[%s4105 + $0x2f8] sm:$0xff]
    %v4202 = vld [vmem:[%s4105 + $0x300] sm:$0xff]
    %v4203 = vld [vmem:[%s4105 + $0x308] sm:$0xff]
    %v4206 = vcombine.high %v4103, %v4103
    %v4208 = vunpack.c.l.s4 1983009808
    %v4209 = vunpack.c.0.s8 %v4208
    %v4210 = vlaneseq
    %v4211 = vshrl.u32 %v4210, 7
    %v4212 = vsub.s32 %v4209, %v4211
    %v4213 = vrot.slane %v4103, %v4212
    %v4215 = vunpack.c.l.s4 1983009808
    %v4216 = vunpack.c.0.s8 %v4215
    %v4217 = vlaneseq
    %v4218 = vshrl.u32 %v4217, 7
    %v4219 = vsub.s32 %v4216, %v4218
    %v4220 = vrot.slane %v4206, %v4219
    %v4221 = vcombine.high %v4213, %v4213
    %v4222 = vcombine.high %v4220, %v4220
    %v4223 = vcombine.high %v4104, %v4104
    %v4225 = vunpack.c.l.s4 1983009808
    %v4226 = vunpack.c.0.s8 %v4225
    %v4227 = vlaneseq
    %v4228 = vshrl.u32 %v4227, 7
    %v4229 = vsub.s32 %v4226, %v4228
    %v4230 = vrot.slane %v4104, %v4229
    %v4232 = vunpack.c.l.s4 1983009808
    %v4233 = vunpack.c.0.s8 %v4232
    %v4234 = vlaneseq
    %v4235 = vshrl.u32 %v4234, 7
    %v4236 = vsub.s32 %v4233, %v4235
    %v4237 = vrot.slane %v4223, %v4236
    %v4238 = vcombine.high %v4230, %v4230
    %v4245 = vsel %vm1036, %v4237, 0
    %4247 = vmatprep.subr.mxu0 0.0
    %4248 = vmatpush1.msra.mxu0 %v4106
    %4249 = vmatprep.subr.mxu0 0.0
    %4250 = vmatpush1.msra.mxu0 %v4107
    %4251 = vmatprep.subr.mxu0 0.0
    %4252 = vmatpush1.msra.mxu0 %v4108
    %4253 = vmatprep.subr.mxu0 0.0
    %4254 = vmatpush1.msra.mxu0 %v4109
    %4255 = vmatprep.subr.mxu0 0.0
    %4256 = vmatpush1.msra.mxu0 %v4110
    %4257 = vmatprep.subr.mxu0 0.0
    %4258 = vmatpush1.msra.mxu0 %v4111
    %4259 = vmatprep.subr.mxu0 0.0
    %4260 = vmatpush1.msra.mxu0 %v4112
    %4261 = vmatprep.subr.mxu0 0.0
    %4262 = vmatpush1.msra.mxu0 %v4113
    %4263 = vmatprep.subr.mxu0 0.0
    %4264 = vmatpush1.msra.mxu0 %v4114
    %4265 = vmatprep.subr.mxu0 0.0
    %4266 = vmatpush1.msra.mxu0 %v4115
    %4267 = vmatprep.subr.mxu0 0.0
    %4268 = vmatpush1.msra.mxu0 %v4116
    %4269 = vmatprep.subr.mxu0 0.0
    %4270 = vmatpush1.msra.mxu0 %v4117
    %4271 = vmatprep.subr.mxu0 0.0
    %4272 = vmatpush1.msra.mxu0 %v4118
    %4273 = vmatprep.subr.mxu0 0.0
    %4274 = vmatpush1.msra.mxu0 %v4119
    %4275 = vmatprep.subr.mxu0 0.0
    %4276 = vmatpush1.msra.mxu0 %v4120
    %4277 = vmatprep.subr.mxu0 0.0
    %4278 = vmatpush1.msra.mxu0 %v4121
    %4279 = vmatprep.subr.mxu0 0.0
    %4280 = vmatpush1.msra.mxu0 %v4122
    %4281 = vmatprep.subr.mxu0 0.0
    %4282 = vmatpush1.msra.mxu0 %v4123
    %4283 = vmatprep.subr.mxu0 0.0
    %4284 = vmatpush1.msra.mxu0 %v4124
    %4285 = vmatprep.subr.mxu0 0.0
    %4286 = vmatpush1.msra.mxu0 %v4125
    %4287 = vmatprep.subr.mxu0 0.0
    %4288 = vmatpush1.msra.mxu0 %v4126
    %4289 = vmatprep.subr.mxu0 0.0
    %4290 = vmatpush1.msra.mxu0 %v4127
    %4291 = vmatprep.subr.mxu0 0.0
    %4292 = vmatpush1.msra.mxu0 %v4128
    %4293 = vmatprep.subr.mxu0 0.0
    %4294 = vmatpush1.msra.mxu0 %v4129
    %4295 = vmatprep.subr.mxu0 0.0
    %4296 = vmatpush1.msra.mxu0 %v4130
    %4297 = vmatprep.subr.mxu0 0.0
    %4298 = vmatpush1.msra.mxu0 %v4131
    %4299 = vmatprep.subr.mxu0 0.0
    %4300 = vmatpush1.msra.mxu0 %v4132
    %4301 = vmatprep.subr.mxu0 0.0
    %4302 = vmatpush1.msra.mxu0 %v4133
    %4303 = vmatprep.subr.mxu0 0.0
    %4304 = vmatpush1.msra.mxu0 %v4134
    %4305 = vmatprep.subr.mxu0 0.0
    %4306 = vmatpush1.msra.mxu0 %v4135
    %4307 = vmatprep.subr.mxu0 0.0
    %4308 = vmatpush1.msra.mxu0 %v4136
    %4309 = vmatprep.subr.mxu0 0.0
    %4310 = vmatpush1.msra.mxu0 %v4137
    %4311 = vmatprep.mubr.f32.mxu0 %v4221
    %4312 = vmatmul.mubr.f32.gmra.mrb[0].mxu0 %v4213
    %v4313 = vpop.f32.mrb[0].mxu0
    %v4314 = vadd.f32 0.0, %v4313
    %v4315 = vpop.f32.mrb[0].mxu0
    %4316 = vdwg.mxu0
    %4317 = vmatprep.subr.mxu0 0.0
    %4318 = vmatpush1.msra.mxu0 %v4138
    %4319 = vmatprep.subr.mxu0 0.0
    %4320 = vmatpush1.msra.mxu0 %v4139
    %4321 = vmatprep.subr.mxu0 0.0
    %4322 = vmatpush1.msra.mxu0 %v4140
    %4323 = vmatprep.subr.mxu0 0.0
    %4324 = vmatpush1.msra.mxu0 %v4141
    %4325 = vmatprep.subr.mxu0 0.0
    %4326 = vmatpush1.msra.mxu0 %v4142
    %4327 = vmatprep.subr.mxu0 0.0
    %4328 = vmatpush1.msra.mxu0 %v4143
    %4329 = vmatprep.subr.mxu0 0.0
    %4330 = vmatpush1.msra.mxu0 %v4144
    %4331 = vmatprep.subr.mxu0 0.0
    %4332 = vmatpush1.msra.mxu0 %v4145
    %4333 = vmatprep.subr.mxu0 0.0
    %4334 = vmatpush1.msra.mxu0 %v4146
    %4335 = vmatprep.subr.mxu0 0.0
    %4336 = vmatpush1.msra.mxu0 %v4147
    %4337 = vmatprep.subr.mxu0 0.0
    %4338 = vmatpush1.msra.mxu0 %v4148
    %4339 = vmatprep.subr.mxu0 0.0
    %4340 = vmatpush1.msra.mxu0 %v4149
    %4341 = vmatprep.subr.mxu0 0.0
    %4342 = vmatpush1.msra.mxu0 %v4150
    %4343 = vmatprep.subr.mxu0 0.0
    %4344 = vmatpush1.msra.mxu0 %v4151
    %4345 = vmatprep.subr.mxu0 0.0
    %4346 = vmatpush1.msra.mxu0 %v4152
    %4347 = vmatprep.subr.mxu0 0.0
    %4348 = vmatpush1.msra.mxu0 %v4153
    %4349 = vmatprep.subr.mxu0 0.0
    %4350 = vmatpush1.msra.mxu0 %v4154
    %4351 = vmatprep.subr.mxu0 0.0
    %4352 = vmatpush1.msra.mxu0 %v4155
    %4353 = vmatprep.subr.mxu0 0.0
    %4354 = vmatpush1.msra.mxu0 %v4156
    %4355 = vmatprep.subr.mxu0 0.0
    %4356 = vmatpush1.msra.mxu0 %v4157
    %4357 = vmatprep.subr.mxu0 0.0
    %4358 = vmatpush1.msra.mxu0 %v4158
    %4359 = vmatprep.subr.mxu0 0.0
    %4360 = vmatpush1.msra.mxu0 %v4159
    %4361 = vmatprep.subr.mxu0 0.0
    %4362 = vmatpush1.msra.mxu0 %v4160
    %4363 = vmatprep.subr.mxu0 0.0
    %4364 = vmatpush1.msra.mxu0 %v4161
    %4365 = vmatprep.subr.mxu0 0.0
    %4366 = vmatpush1.msra.mxu0 %v4162
    %4367 = vmatprep.subr.mxu0 0.0
    %4368 = vmatpush1.msra.mxu0 %v4163
    %4369 = vmatprep.subr.mxu0 0.0
    %4370 = vmatpush1.msra.mxu0 %v4164
    %4371 = vmatprep.subr.mxu0 0.0
    %4372 = vmatpush1.msra.mxu0 %v4165
    %4373 = vmatprep.subr.mxu0 0.0
    %4374 = vmatpush1.msra.mxu0 %v4166
    %4375 = vmatprep.subr.mxu0 0.0
    %4376 = vmatpush1.msra.mxu0 %v4167
    %4377 = vmatprep.subr.mxu0 0.0
    %4378 = vmatpush1.msra.mxu0 %v4168
    %4379 = vmatprep.subr.mxu0 0.0
    %4380 = vmatpush1.msra.mxu0 %v4169
    %4381 = vmatprep.mubr.f32.mxu0 %v4222
    %4382 = vmatmul.mubr.f32.gmra.mrb[0].mxu0 %v4220
    %v4383 = vpop.f32.mrb[0].mxu0
    %v4384 = vadd.f32 %v4314, %v4383
    %v4385 = vpop.f32.mrb[0].mxu0
    %4386 = vdwg.mxu0
    %4387 = vmatprep.subr.mxu0 0.0
    %4388 = vmatpush1.msra.mxu0 %v4170
    %4389 = vmatprep.subr.mxu0 0.0
    %4390 = vmatpush1.msra.mxu0 %v4171
    %4391 = vmatprep.subr.mxu0 0.0
    %4392 = vmatpush1.msra.mxu0 %v4172
    %4393 = vmatprep.subr.mxu0 0.0
    %4394 = vmatpush1.msra.mxu0 %v4173
    %4395 = vmatprep.subr.mxu0 0.0
    %4396 = vmatpush1.msra.mxu0 %v4174
    %4397 = vmatprep.subr.mxu0 0.0
    %4398 = vmatpush1.msra.mxu0 %v4175
    %4399 = vmatprep.subr.mxu0 0.0
    %4400 = vmatpush1.msra.mxu0 %v4176
    %4401 = vmatprep.subr.mxu0 0.0
    %4402 = vmatpush1.msra.mxu0 %v4177
    %4403 = vmatprep.subr.mxu0 0.0
    %4404 = vmatpush1.msra.mxu0 %v4178
    %4405 = vmatprep.subr.mxu0 0.0
    %4406 = vmatpush1.msra.mxu0 %v4179
    %4407 = vmatprep.subr.mxu0 0.0
    %4408 = vmatpush1.msra.mxu0 %v4180
    %4409 = vmatprep.subr.mxu0 0.0
    %4410 = vmatpush1.msra.mxu0 %v4181
    %4411 = vmatprep.subr.mxu0 0.0
    %4412 = vmatpush1.msra.mxu0 %v4182
    %4413 = vmatprep.subr.mxu0 0.0
    %4414 = vmatpush1.msra.mxu0 %v4183
    %4415 = vmatprep.subr.mxu0 0.0
    %4416 = vmatpush1.msra.mxu0 %v4184
    %4417 = vmatprep.subr.mxu0 0.0
    %4418 = vmatpush1.msra.mxu0 %v4185
    %4419 = vmatprep.subr.mxu0 0.0
    %4420 = vmatpush1.msra.mxu0 %v4186
    %4421 = vmatprep.subr.mxu0 0.0
    %4422 = vmatpush1.msra.mxu0 %v4187
    %4423 = vmatprep.subr.mxu0 0.0
    %4424 = vmatpush1.msra.mxu0 %v4188
    %4425 = vmatprep.subr.mxu0 0.0
    %4426 = vmatpush1.msra.mxu0 %v4189
    %4427 = vmatprep.subr.mxu0 0.0
    %4428 = vmatpush1.msra.mxu0 %v4190
    %4429 = vmatprep.subr.mxu0 0.0
    %4430 = vmatpush1.msra.mxu0 %v4191
    %4431 = vmatprep.subr.mxu0 0.0
    %4432 = vmatpush1.msra.mxu0 %v4192
    %4433 = vmatprep.subr.mxu0 0.0
    %4434 = vmatpush1.msra.mxu0 %v4193
    %4435 = vmatprep.subr.mxu0 0.0
    %4436 = vmatpush1.msra.mxu0 %v4194
    %4437 = vmatprep.subr.mxu0 0.0
    %4438 = vmatpush1.msra.mxu0 %v4195
    %4439 = vmatprep.subr.mxu0 0.0
    %4440 = vmatpush1.msra.mxu0 %v4196
    %4441 = vmatprep.subr.mxu0 0.0
    %4442 = vmatpush1.msra.mxu0 %v4197
    %4443 = vmatprep.subr.mxu0 0.0
    %4444 = vmatpush1.msra.mxu0 %v4198
    %4445 = vmatprep.subr.mxu0 0.0
    %4446 = vmatpush1.msra.mxu0 %v4199
    %4447 = vmatprep.subr.mxu0 0.0
    %4448 = vmatpush1.msra.mxu0 %v4200
    %4449 = vmatprep.subr.mxu0 0.0
    %4450 = vmatpush1.msra.mxu0 %v4201
    %4451 = vmatprep.mubr.f32.mxu0 %v4238
    %4452 = vmatmul.mubr.f32.gmra.mrb[0].mxu0 %v4230
    %v4453 = vpop.f32.mrb[0].mxu0
    %v4454 = vadd.f32 %v4384, %v4453
    %v4455 = vpop.f32.mrb[0].mxu0
    %4456 = vdwg.mxu0
    %4457 = vmatprep.subr.mxu0 0.0
    %4458 = vmatpush1.msra.mxu0 %v4202
    %4459 = vmatprep.subr.mxu0 0.0
    %4460 = vmatpush1.msra.mxu0 %v4203
    %4461 = vmatprep.subr.mxu0 0.0
    %4462 = vmatpush1.msra.mxu0 0.0
    %4463 = vmatprep.subr.mxu0 0.0
    %4464 = vmatpush1.msra.mxu0 0.0
    %4465 = vmatprep.subr.mxu0 0.0
    %4466 = vmatpush1.msra.mxu0 0.0
    %4467 = vmatprep.subr.mxu0 0.0
    %4468 = vmatpush1.msra.mxu0 0.0
    %4469 = vmatprep.subr.mxu0 0.0
    %4470 = vmatpush1.msra.mxu0 0.0
    %4471 = vmatprep.subr.mxu0 0.0
    %4472 = vmatpush1.msra.mxu0 0.0
    %4473 = vmatprep.subr.mxu0 0.0
    %4474 = vmatpush1.msra.mxu0 0.0
    %4475 = vmatprep.subr.mxu0 0.0
    %4476 = vmatpush1.msra.mxu0 0.0
    %4477 = vmatprep.subr.mxu0 0.0
    %4478 = vmatpush1.msra.mxu0 0.0
    %4479 = vmatprep.subr.mxu0 0.0
    %4480 = vmatpush1.msra.mxu0 0.0
    %4481 = vmatprep.subr.mxu0 0.0
    %4482 = vmatpush1.msra.mxu0 0.0
    %4483 = vmatprep.subr.mxu0 0.0
    %4484 = vmatpush1.msra.mxu0 0.0
    %4485 = vmatprep.subr.mxu0 0.0
    %4486 = vmatpush1.msra.mxu0 0.0
    %4487 = vmatprep.subr.mxu0 0.0
    %4488 = vmatpush1.msra.mxu0 0.0
    %4489 = vmatprep.subr.mxu0 0.0
    %4490 = vmatpush1.msra.mxu0 0.0
    %4491 = vmatprep.subr.mxu0 0.0
    %4492 = vmatpush1.msra.mxu0 0.0
    %4493 = vmatprep.subr.mxu0 0.0
    %4494 = vmatpush1.msra.mxu0 0.0
    %4495 = vmatprep.subr.mxu0 0.0
    %4496 = vmatpush1.msra.mxu0 0.0
    %4497 = vmatprep.subr.mxu0 0.0
    %4498 = vmatpush1.msra.mxu0 0.0
    %4499 = vmatprep.subr.mxu0 0.0
    %4500 = vmatpush1.msra.mxu0 0.0
    %4501 = vmatprep.subr.mxu0 0.0
    %4502 = vmatpush1.msra.mxu0 0.0
    %4503 = vmatprep.subr.mxu0 0.0
    %4504 = vmatpush1.msra.mxu0 0.0
    %4505 = vmatprep.subr.mxu0 0.0
    %4506 = vmatpush1.msra.mxu0 0.0
    %4507 = vmatprep.subr.mxu0 0.0
    %4508 = vmatpush1.msra.mxu0 0.0
    %4509 = vmatprep.subr.mxu0 0.0
    %4510 = vmatpush1.msra.mxu0 0.0
    %4511 = vmatprep.subr.mxu0 0.0
    %4512 = vmatpush1.msra.mxu0 0.0
    %4513 = vmatprep.subr.mxu0 0.0
    %4514 = vmatpush1.msra.mxu0 0.0
    %4515 = vmatprep.subr.mxu0 0.0
    %4516 = vmatpush1.msra.mxu0 0.0
    %4517 = vmatprep.subr.mxu0 0.0
    %4518 = vmatpush1.msra.mxu0 0.0
    %4519 = vmatprep.subr.mxu0 0.0
    %4520 = vmatpush1.msra.mxu0 0.0
    %4521 = vmatprep.mubr.f32.mxu0 0.0
    %4522 = vmatmul.mubr.f32.gmra.mrb[0].mxu0 %v4245
    %v4523 = vpop.f32.mrb[0].mxu0
    %v4524 = vadd.f32 %v4454, %v4523
    %v4525 = vpop.f32.mrb[0].mxu0
    %4526 = vdwg.mxu0
    %v4527 = vadd.f32 %v4046, %v4524
    %s4528 = sld [smem:[#allocation3 + $0x48]]
    %v4529 = vstv %s4528
    %v4530 = vmul.f32 %v4529, %v665
    %v4531 = vmul.f32 %v4529, %v666
    %s4532 = sld [smem:[#allocation3 + $0x49]]
    %v4533 = vstv %s4532
    %v4534 = vmul.f32 %v4533, %v671
    %v4535 = vmul.f32 %v4533, %v672
    %v4536 = vadd.f32 %v4530, %v4534
    %v4537 = vadd.f32 %v4531, %v4535
    %s4538 = sld [smem:[#allocation3 + $0x4a]]
    %v4539 = vstv %s4538
    %v4540 = vmul.f32 %v4539, %v679
    %v4541 = vmul.f32 %v4539, %v680
    %v4542 = vadd.f32 %v4536, %v4540
    %v4543 = vadd.f32 %v4537, %v4541
    %s4544 = sld [smem:[#allocation3 + $0x4b]]
    %v4545 = vstv %s4544
    %v4546 = vmul.f32 %v4545, %v687
    %v4547 = vmul.f32 %v4545, %v688
    %v4548 = vadd.f32 %v4542, %v4546
    %v4549 = vadd.f32 %v4543, %v4547
    %s4550 = sld [smem:[#allocation3 + $0x4c]]
    %v4551 = vstv %s4550
    %v4552 = vmul.f32 %v4551, %v695
    %v4553 = vmul.f32 %v4551, %v696
    %v4554 = vadd.f32 %v4548, %v4552
    %v4555 = vadd.f32 %v4549, %v4553
    %s4556 = sld [smem:[#allocation3 + $0x4d]]
    %v4557 = vstv %s4556
    %v4558 = vmul.f32 %v4557, %v703
    %v4559 = vmul.f32 %v4557, %v704
    %v4560 = vadd.f32 %v4554, %v4558
    %v4561 = vadd.f32 %v4555, %v4559
    %s4562 = sld [smem:[#allocation3 + $0x4e]]
    %v4563 = vstv %s4562
    %v4564 = vmul.f32 %v4563, %v711
    %v4565 = vmul.f32 %v4563, %v712
    %v4566 = vadd.f32 %v4560, %v4564
    %v4567 = vadd.f32 %v4561, %v4565
    %s4568 = sld [smem:[#allocation3 + $0x4f]]
    %v4569 = vstv %s4568
    %v4570 = vmul.f32 %v4569, %v719
    %v4571 = vmul.f32 %v4569, %v720
    %v4572 = vadd.f32 %v4566, %v4570
    %v4573 = vadd.f32 %v4567, %v4571
    %s4574 = sld [smem:[#allocation3 + $0x50]]
    %v4575 = vstv %s4574
    %v4576 = vmul.f32 %v4575, %v727
    %v4577 = vmul.f32 %v4575, %v728
    %v4578 = vadd.f32 %v4572, %v4576
    %v4579 = vadd.f32 %v4573, %v4577
    %s4580 = sld [smem:[#allocation6 + $0x8]]
    %v4581 = vstv %s4580
    %v4582 = vadd.f32 %v4578, %v4581
    %v4583 = vadd.f32 %v4579, %v4581
    %v4584 = vmax.f32 %v4582, 0.0
    %v4585 = vmax.f32 %v4583, 0.0
    %s4586 = scalar_lea.vmem %s4, 6272
    %v4587 = vld [vmem:[%s4586] sm:$0xff]
    %v4588 = vld [vmem:[%s4586 + $0x8] sm:$0xff]
    %v4589 = vld [vmem:[%s4586 + $0x10] sm:$0xff]
    %v4590 = vld [vmem:[%s4586 + $0x18] sm:$0xff]
    %v4591 = vld [vmem:[%s4586 + $0x20] sm:$0xff]
    %v4592 = vld [vmem:[%s4586 + $0x28] sm:$0xff]
    %v4593 = vld [vmem:[%s4586 + $0x30] sm:$0xff]
    %v4594 = vld [vmem:[%s4586 + $0x38] sm:$0xff]
    %v4595 = vld [vmem:[%s4586 + $0x40] sm:$0xff]
    %v4596 = vld [vmem:[%s4586 + $0x48] sm:$0xff]
    %v4597 = vld [vmem:[%s4586 + $0x50] sm:$0xff]
    %v4598 = vld [vmem:[%s4586 + $0x58] sm:$0xff]
    %v4599 = vld [vmem:[%s4586 + $0x60] sm:$0xff]
    %v4600 = vld [vmem:[%s4586 + $0x68] sm:$0xff]
    %v4601 = vld [vmem:[%s4586 + $0x70] sm:$0xff]
    %v4602 = vld [vmem:[%s4586 + $0x78] sm:$0xff]
    %v4603 = vld [vmem:[%s4586 + $0x80] sm:$0xff]
    %v4604 = vld [vmem:[%s4586 + $0x88] sm:$0xff]
    %v4605 = vld [vmem:[%s4586 + $0x90] sm:$0xff]
    %v4606 = vld [vmem:[%s4586 + $0x98] sm:$0xff]
    %v4607 = vld [vmem:[%s4586 + $0xa0] sm:$0xff]
    %v4608 = vld [vmem:[%s4586 + $0xa8] sm:$0xff]
    %v4609 = vld [vmem:[%s4586 + $0xb0] sm:$0xff]
    %v4610 = vld [vmem:[%s4586 + $0xb8] sm:$0xff]
    %v4611 = vld [vmem:[%s4586 + $0xc0] sm:$0xff]
    %v4612 = vld [vmem:[%s4586 + $0xc8] sm:$0xff]
    %v4613 = vld [vmem:[%s4586 + $0xd0] sm:$0xff]
    %v4614 = vld [vmem:[%s4586 + $0xd8] sm:$0xff]
    %v4615 = vld [vmem:[%s4586 + $0xe0] sm:$0xff]
    %v4616 = vld [vmem:[%s4586 + $0xe8] sm:$0xff]
    %v4617 = vld [vmem:[%s4586 + $0xf0] sm:$0xff]
    %v4618 = vld [vmem:[%s4586 + $0xf8] sm:$0xff]
    %v4619 = vld [vmem:[%s4586 + $0x100] sm:$0xff]
    %v4620 = vld [vmem:[%s4586 + $0x108] sm:$0xff]
    %v4621 = vld [vmem:[%s4586 + $0x110] sm:$0xff]
    %v4622 = vld [vmem:[%s4586 + $0x118] sm:$0xff]
    %v4623 = vld [vmem:[%s4586 + $0x120] sm:$0xff]
    %v4624 = vld [vmem:[%s4586 + $0x128] sm:$0xff]
    %v4625 = vld [vmem:[%s4586 + $0x130] sm:$0xff]
    %v4626 = vld [vmem:[%s4586 + $0x138] sm:$0xff]
    %v4627 = vld [vmem:[%s4586 + $0x140] sm:$0xff]
    %v4628 = vld [vmem:[%s4586 + $0x148] sm:$0xff]
    %v4629 = vld [vmem:[%s4586 + $0x150] sm:$0xff]
    %v4630 = vld [vmem:[%s4586 + $0x158] sm:$0xff]
    %v4631 = vld [vmem:[%s4586 + $0x160] sm:$0xff]
    %v4632 = vld [vmem:[%s4586 + $0x168] sm:$0xff]
    %v4633 = vld [vmem:[%s4586 + $0x170] sm:$0xff]
    %v4634 = vld [vmem:[%s4586 + $0x178] sm:$0xff]
    %v4635 = vld [vmem:[%s4586 + $0x180] sm:$0xff]
    %v4636 = vld [vmem:[%s4586 + $0x188] sm:$0xff]
    %v4637 = vld [vmem:[%s4586 + $0x190] sm:$0xff]
    %v4638 = vld [vmem:[%s4586 + $0x198] sm:$0xff]
    %v4639 = vld [vmem:[%s4586 + $0x1a0] sm:$0xff]
    %v4640 = vld [vmem:[%s4586 + $0x1a8] sm:$0xff]
    %v4641 = vld [vmem:[%s4586 + $0x1b0] sm:$0xff]
    %v4642 = vld [vmem:[%s4586 + $0x1b8] sm:$0xff]
    %v4643 = vld [vmem:[%s4586 + $0x1c0] sm:$0xff]
    %v4644 = vld [vmem:[%s4586 + $0x1c8] sm:$0xff]
    %v4645 = vld [vmem:[%s4586 + $0x1d0] sm:$0xff]
    %v4646 = vld [vmem:[%s4586 + $0x1d8] sm:$0xff]
    %v4647 = vld [vmem:[%s4586 + $0x1e0] sm:$0xff]
    %v4648 = vld [vmem:[%s4586 + $0x1e8] sm:$0xff]
    %v4649 = vld [vmem:[%s4586 + $0x1f0] sm:$0xff]
    %v4650 = vld [vmem:[%s4586 + $0x1f8] sm:$0xff]
    %v4651 = vld [vmem:[%s4586 + $0x200] sm:$0xff]
    %v4652 = vld [vmem:[%s4586 + $0x208] sm:$0xff]
    %v4653 = vld [vmem:[%s4586 + $0x210] sm:$0xff]
    %v4654 = vld [vmem:[%s4586 + $0x218] sm:$0xff]
    %v4655 = vld [vmem:[%s4586 + $0x220] sm:$0xff]
    %v4656 = vld [vmem:[%s4586 + $0x228] sm:$0xff]
    %v4657 = vld [vmem:[%s4586 + $0x230] sm:$0xff]
    %v4658 = vld [vmem:[%s4586 + $0x238] sm:$0xff]
    %v4659 = vld [vmem:[%s4586 + $0x240] sm:$0xff]
    %v4660 = vld [vmem:[%s4586 + $0x248] sm:$0xff]
    %v4661 = vld [vmem:[%s4586 + $0x250] sm:$0xff]
    %v4662 = vld [vmem:[%s4586 + $0x258] sm:$0xff]
    %v4663 = vld [vmem:[%s4586 + $0x260] sm:$0xff]
    %v4664 = vld [vmem:[%s4586 + $0x268] sm:$0xff]
    %v4665 = vld [vmem:[%s4586 + $0x270] sm:$0xff]
    %v4666 = vld [vmem:[%s4586 + $0x278] sm:$0xff]
    %v4667 = vld [vmem:[%s4586 + $0x280] sm:$0xff]
    %v4668 = vld [vmem:[%s4586 + $0x288] sm:$0xff]
    %v4669 = vld [vmem:[%s4586 + $0x290] sm:$0xff]
    %v4670 = vld [vmem:[%s4586 + $0x298] sm:$0xff]
    %v4671 = vld [vmem:[%s4586 + $0x2a0] sm:$0xff]
    %v4672 = vld [vmem:[%s4586 + $0x2a8] sm:$0xff]
    %v4673 = vld [vmem:[%s4586 + $0x2b0] sm:$0xff]
    %v4674 = vld [vmem:[%s4586 + $0x2b8] sm:$0xff]
    %v4675 = vld [vmem:[%s4586 + $0x2c0] sm:$0xff]
    %v4676 = vld [vmem:[%s4586 + $0x2c8] sm:$0xff]
    %v4677 = vld [vmem:[%s4586 + $0x2d0] sm:$0xff]
    %v4678 = vld [vmem:[%s4586 + $0x2d8] sm:$0xff]
    %v4679 = vld [vmem:[%s4586 + $0x2e0] sm:$0xff]
    %v4680 = vld [vmem:[%s4586 + $0x2e8] sm:$0xff]
    %v4681 = vld [vmem:[%s4586 + $0x2f0] sm:$0xff]
    %v4682 = vld [vmem:[%s4586 + $0x2f8] sm:$0xff]
    %v4683 = vld [vmem:[%s4586 + $0x300] sm:$0xff]
    %v4684 = vld [vmem:[%s4586 + $0x308] sm:$0xff]
    %v4687 = vcombine.high %v4584, %v4584
    %v4689 = vunpack.c.l.s4 1983009808
    %v4690 = vunpack.c.0.s8 %v4689
    %v4691 = vlaneseq
    %v4692 = vshrl.u32 %v4691, 7
    %v4693 = vsub.s32 %v4690, %v4692
    %v4694 = vrot.slane %v4584, %v4693
    %v4696 = vunpack.c.l.s4 1983009808
    %v4697 = vunpack.c.0.s8 %v4696
    %v4698 = vlaneseq
    %v4699 = vshrl.u32 %v4698, 7
    %v4700 = vsub.s32 %v4697, %v4699
    %v4701 = vrot.slane %v4687, %v4700
    %v4702 = vcombine.high %v4694, %v4694
    %v4703 = vcombine.high %v4701, %v4701
    %v4704 = vcombine.high %v4585, %v4585
    %v4706 = vunpack.c.l.s4 1983009808
    %v4707 = vunpack.c.0.s8 %v4706
    %v4708 = vlaneseq
    %v4709 = vshrl.u32 %v4708, 7
    %v4710 = vsub.s32 %v4707, %v4709
    %v4711 = vrot.slane %v4585, %v4710
    %v4713 = vunpack.c.l.s4 1983009808
    %v4714 = vunpack.c.0.s8 %v4713
    %v4715 = vlaneseq
    %v4716 = vshrl.u32 %v4715, 7
    %v4717 = vsub.s32 %v4714, %v4716
    %v4718 = vrot.slane %v4704, %v4717
    %v4719 = vcombine.high %v4711, %v4711
    %v4726 = vsel %vm1036, %v4718, 0
    %4728 = vmatprep.subr.mxu0 0.0
    %4729 = vmatpush1.msra.mxu0 %v4587
    %4730 = vmatprep.subr.mxu0 0.0
    %4731 = vmatpush1.msra.mxu0 %v4588
    %4732 = vmatprep.subr.mxu0 0.0
    %4733 = vmatpush1.msra.mxu0 %v4589
    %4734 = vmatprep.subr.mxu0 0.0
    %4735 = vmatpush1.msra.mxu0 %v4590
    %4736 = vmatprep.subr.mxu0 0.0
    %4737 = vmatpush1.msra.mxu0 %v4591
    %4738 = vmatprep.subr.mxu0 0.0
    %4739 = vmatpush1.msra.mxu0 %v4592
    %4740 = vmatprep.subr.mxu0 0.0
    %4741 = vmatpush1.msra.mxu0 %v4593
    %4742 = vmatprep.subr.mxu0 0.0
    %4743 = vmatpush1.msra.mxu0 %v4594
    %4744 = vmatprep.subr.mxu0 0.0
    %4745 = vmatpush1.msra.mxu0 %v4595
    %4746 = vmatprep.subr.mxu0 0.0
    %4747 = vmatpush1.msra.mxu0 %v4596
    %4748 = vmatprep.subr.mxu0 0.0
    %4749 = vmatpush1.msra.mxu0 %v4597
    %4750 = vmatprep.subr.mxu0 0.0
    %4751 = vmatpush1.msra.mxu0 %v4598
    %4752 = vmatprep.subr.mxu0 0.0
    %4753 = vmatpush1.msra.mxu0 %v4599
    %4754 = vmatprep.subr.mxu0 0.0
    %4755 = vmatpush1.msra.mxu0 %v4600
    %4756 = vmatprep.subr.mxu0 0.0
    %4757 = vmatpush1.msra.mxu0 %v4601
    %4758 = vmatprep.subr.mxu0 0.0
    %4759 = vmatpush1.msra.mxu0 %v4602
    %4760 = vmatprep.subr.mxu0 0.0
    %4761 = vmatpush1.msra.mxu0 %v4603
    %4762 = vmatprep.subr.mxu0 0.0
    %4763 = vmatpush1.msra.mxu0 %v4604
    %4764 = vmatprep.subr.mxu0 0.0
    %4765 = vmatpush1.msra.mxu0 %v4605
    %4766 = vmatprep.subr.mxu0 0.0
    %4767 = vmatpush1.msra.mxu0 %v4606
    %4768 = vmatprep.subr.mxu0 0.0
    %4769 = vmatpush1.msra.mxu0 %v4607
    %4770 = vmatprep.subr.mxu0 0.0
    %4771 = vmatpush1.msra.mxu0 %v4608
    %4772 = vmatprep.subr.mxu0 0.0
    %4773 = vmatpush1.msra.mxu0 %v4609
    %4774 = vmatprep.subr.mxu0 0.0
    %4775 = vmatpush1.msra.mxu0 %v4610
    %4776 = vmatprep.subr.mxu0 0.0
    %4777 = vmatpush1.msra.mxu0 %v4611
    %4778 = vmatprep.subr.mxu0 0.0
    %4779 = vmatpush1.msra.mxu0 %v4612
    %4780 = vmatprep.subr.mxu0 0.0
    %4781 = vmatpush1.msra.mxu0 %v4613
    %4782 = vmatprep.subr.mxu0 0.0
    %4783 = vmatpush1.msra.mxu0 %v4614
    %4784 = vmatprep.subr.mxu0 0.0
    %4785 = vmatpush1.msra.mxu0 %v4615
    %4786 = vmatprep.subr.mxu0 0.0
    %4787 = vmatpush1.msra.mxu0 %v4616
    %4788 = vmatprep.subr.mxu0 0.0
    %4789 = vmatpush1.msra.mxu0 %v4617
    %4790 = vmatprep.subr.mxu0 0.0
    %4791 = vmatpush1.msra.mxu0 %v4618
    %4792 = vmatprep.mubr.f32.mxu0 %v4702
    %4793 = vmatmul.mubr.f32.gmra.mrb[0].mxu0 %v4694
    %v4794 = vpop.f32.mrb[0].mxu0
    %v4795 = vadd.f32 0.0, %v4794
    %v4796 = vpop.f32.mrb[0].mxu0
    %4797 = vdwg.mxu0
    %4798 = vmatprep.subr.mxu0 0.0
    %4799 = vmatpush1.msra.mxu0 %v4619
    %4800 = vmatprep.subr.mxu0 0.0
    %4801 = vmatpush1.msra.mxu0 %v4620
    %4802 = vmatprep.subr.mxu0 0.0
    %4803 = vmatpush1.msra.mxu0 %v4621
    %4804 = vmatprep.subr.mxu0 0.0
    %4805 = vmatpush1.msra.mxu0 %v4622
    %4806 = vmatprep.subr.mxu0 0.0
    %4807 = vmatpush1.msra.mxu0 %v4623
    %4808 = vmatprep.subr.mxu0 0.0
    %4809 = vmatpush1.msra.mxu0 %v4624
    %4810 = vmatprep.subr.mxu0 0.0
    %4811 = vmatpush1.msra.mxu0 %v4625
    %4812 = vmatprep.subr.mxu0 0.0
    %4813 = vmatpush1.msra.mxu0 %v4626
    %4814 = vmatprep.subr.mxu0 0.0
    %4815 = vmatpush1.msra.mxu0 %v4627
    %4816 = vmatprep.subr.mxu0 0.0
    %4817 = vmatpush1.msra.mxu0 %v4628
    %4818 = vmatprep.subr.mxu0 0.0
    %4819 = vmatpush1.msra.mxu0 %v4629
    %4820 = vmatprep.subr.mxu0 0.0
    %4821 = vmatpush1.msra.mxu0 %v4630
    %4822 = vmatprep.subr.mxu0 0.0
    %4823 = vmatpush1.msra.mxu0 %v4631
    %4824 = vmatprep.subr.mxu0 0.0
    %4825 = vmatpush1.msra.mxu0 %v4632
    %4826 = vmatprep.subr.mxu0 0.0
    %4827 = vmatpush1.msra.mxu0 %v4633
    %4828 = vmatprep.subr.mxu0 0.0
    %4829 = vmatpush1.msra.mxu0 %v4634
    %4830 = vmatprep.subr.mxu0 0.0
    %4831 = vmatpush1.msra.mxu0 %v4635
    %4832 = vmatprep.subr.mxu0 0.0
    %4833 = vmatpush1.msra.mxu0 %v4636
    %4834 = vmatprep.subr.mxu0 0.0
    %4835 = vmatpush1.msra.mxu0 %v4637
    %4836 = vmatprep.subr.mxu0 0.0
    %4837 = vmatpush1.msra.mxu0 %v4638
    %4838 = vmatprep.subr.mxu0 0.0
    %4839 = vmatpush1.msra.mxu0 %v4639
    %4840 = vmatprep.subr.mxu0 0.0
    %4841 = vmatpush1.msra.mxu0 %v4640
    %4842 = vmatprep.subr.mxu0 0.0
    %4843 = vmatpush1.msra.mxu0 %v4641
    %4844 = vmatprep.subr.mxu0 0.0
    %4845 = vmatpush1.msra.mxu0 %v4642
    %4846 = vmatprep.subr.mxu0 0.0
    %4847 = vmatpush1.msra.mxu0 %v4643
    %4848 = vmatprep.subr.mxu0 0.0
    %4849 = vmatpush1.msra.mxu0 %v4644
    %4850 = vmatprep.subr.mxu0 0.0
    %4851 = vmatpush1.msra.mxu0 %v4645
    %4852 = vmatprep.subr.mxu0 0.0
    %4853 = vmatpush1.msra.mxu0 %v4646
    %4854 = vmatprep.subr.mxu0 0.0
    %4855 = vmatpush1.msra.mxu0 %v4647
    %4856 = vmatprep.subr.mxu0 0.0
    %4857 = vmatpush1.msra.mxu0 %v4648
    %4858 = vmatprep.subr.mxu0 0.0
    %4859 = vmatpush1.msra.mxu0 %v4649
    %4860 = vmatprep.subr.mxu0 0.0
    %4861 = vmatpush1.msra.mxu0 %v4650
    %4862 = vmatprep.mubr.f32.mxu0 %v4703
    %4863 = vmatmul.mubr.f32.gmra.mrb[0].mxu0 %v4701
    %v4864 = vpop.f32.mrb[0].mxu0
    %v4865 = vadd.f32 %v4795, %v4864
    %v4866 = vpop.f32.mrb[0].mxu0
    %4867 = vdwg.mxu0
    %4868 = vmatprep.subr.mxu0 0.0
    %4869 = vmatpush1.msra.mxu0 %v4651
    %4870 = vmatprep.subr.mxu0 0.0
    %4871 = vmatpush1.msra.mxu0 %v4652
    %4872 = vmatprep.subr.mxu0 0.0
    %4873 = vmatpush1.msra.mxu0 %v4653
    %4874 = vmatprep.subr.mxu0 0.0
    %4875 = vmatpush1.msra.mxu0 %v4654
    %4876 = vmatprep.subr.mxu0 0.0
    %4877 = vmatpush1.msra.mxu0 %v4655
    %4878 = vmatprep.subr.mxu0 0.0
    %4879 = vmatpush1.msra.mxu0 %v4656
    %4880 = vmatprep.subr.mxu0 0.0
    %4881 = vmatpush1.msra.mxu0 %v4657
    %4882 = vmatprep.subr.mxu0 0.0
    %4883 = vmatpush1.msra.mxu0 %v4658
    %4884 = vmatprep.subr.mxu0 0.0
    %4885 = vmatpush1.msra.mxu0 %v4659
    %4886 = vmatprep.subr.mxu0 0.0
    %4887 = vmatpush1.msra.mxu0 %v4660
    %4888 = vmatprep.subr.mxu0 0.0
    %4889 = vmatpush1.msra.mxu0 %v4661
    %4890 = vmatprep.subr.mxu0 0.0
    %4891 = vmatpush1.msra.mxu0 %v4662
    %4892 = vmatprep.subr.mxu0 0.0
    %4893 = vmatpush1.msra.mxu0 %v4663
    %4894 = vmatprep.subr.mxu0 0.0
    %4895 = vmatpush1.msra.mxu0 %v4664
    %4896 = vmatprep.subr.mxu0 0.0
    %4897 = vmatpush1.msra.mxu0 %v4665
    %4898 = vmatprep.subr.mxu0 0.0
    %4899 = vmatpush1.msra.mxu0 %v4666
    %4900 = vmatprep.subr.mxu0 0.0
    %4901 = vmatpush1.msra.mxu0 %v4667
    %4902 = vmatprep.subr.mxu0 0.0
    %4903 = vmatpush1.msra.mxu0 %v4668
    %4904 = vmatprep.subr.mxu0 0.0
    %4905 = vmatpush1.msra.mxu0 %v4669
    %4906 = vmatprep.subr.mxu0 0.0
    %4907 = vmatpush1.msra.mxu0 %v4670
    %4908 = vmatprep.subr.mxu0 0.0
    %4909 = vmatpush1.msra.mxu0 %v4671
    %4910 = vmatprep.subr.mxu0 0.0
    %4911 = vmatpush1.msra.mxu0 %v4672
    %4912 = vmatprep.subr.mxu0 0.0
    %4913 = vmatpush1.msra.mxu0 %v4673
    %4914 = vmatprep.subr.mxu0 0.0
    %4915 = vmatpush1.msra.mxu0 %v4674
    %4916 = vmatprep.subr.mxu0 0.0
    %4917 = vmatpush1.msra.mxu0 %v4675
    %4918 = vmatprep.subr.mxu0 0.0
    %4919 = vmatpush1.msra.mxu0 %v4676
    %4920 = vmatprep.subr.mxu0 0.0
    %4921 = vmatpush1.msra.mxu0 %v4677
    %4922 = vmatprep.subr.mxu0 0.0
    %4923 = vmatpush1.msra.mxu0 %v4678
    %4924 = vmatprep.subr.mxu0 0.0
    %4925 = vmatpush1.msra.mxu0 %v4679
    %4926 = vmatprep.subr.mxu0 0.0
    %4927 = vmatpush1.msra.mxu0 %v4680
    %4928 = vmatprep.subr.mxu0 0.0
    %4929 = vmatpush1.msra.mxu0 %v4681
    %4930 = vmatprep.subr.mxu0 0.0
    %4931 = vmatpush1.msra.mxu0 %v4682
    %4932 = vmatprep.mubr.f32.mxu0 %v4719
    %4933 = vmatmul.mubr.f32.gmra.mrb[0].mxu0 %v4711
    %v4934 = vpop.f32.mrb[0].mxu0
    %v4935 = vadd.f32 %v4865, %v4934
    %v4936 = vpop.f32.mrb[0].mxu0
    %4937 = vdwg.mxu0
    %4938 = vmatprep.subr.mxu0 0.0
    %4939 = vmatpush1.msra.mxu0 %v4683
    %4940 = vmatprep.subr.mxu0 0.0
    %4941 = vmatpush1.msra.mxu0 %v4684
    %4942 = vmatprep.subr.mxu0 0.0
    %4943 = vmatpush1.msra.mxu0 0.0
    %4944 = vmatprep.subr.mxu0 0.0
    %4945 = vmatpush1.msra.mxu0 0.0
    %4946 = vmatprep.subr.mxu0 0.0
    %4947 = vmatpush1.msra.mxu0 0.0
    %4948 = vmatprep.subr.mxu0 0.0
    %4949 = vmatpush1.msra.mxu0 0.0
    %4950 = vmatprep.subr.mxu0 0.0
    %4951 = vmatpush1.msra.mxu0 0.0
    %4952 = vmatprep.subr.mxu0 0.0
    %4953 = vmatpush1.msra.mxu0 0.0
    %4954 = vmatprep.subr.mxu0 0.0
    %4955 = vmatpush1.msra.mxu0 0.0
    %4956 = vmatprep.subr.mxu0 0.0
    %4957 = vmatpush1.msra.mxu0 0.0
    %4958 = vmatprep.subr.mxu0 0.0
    %4959 = vmatpush1.msra.mxu0 0.0
    %4960 = vmatprep.subr.mxu0 0.0
    %4961 = vmatpush1.msra.mxu0 0.0
    %4962 = vmatprep.subr.mxu0 0.0
    %4963 = vmatpush1.msra.mxu0 0.0
    %4964 = vmatprep.subr.mxu0 0.0
    %4965 = vmatpush1.msra.mxu0 0.0
    %4966 = vmatprep.subr.mxu0 0.0
    %4967 = vmatpush1.msra.mxu0 0.0
    %4968 = vmatprep.subr.mxu0 0.0
    %4969 = vmatpush1.msra.mxu0 0.0
    %4970 = vmatprep.subr.mxu0 0.0
    %4971 = vmatpush1.msra.mxu0 0.0
    %4972 = vmatprep.subr.mxu0 0.0
    %4973 = vmatpush1.msra.mxu0 0.0
    %4974 = vmatprep.subr.mxu0 0.0
    %4975 = vmatpush1.msra.mxu0 0.0
    %4976 = vmatprep.subr.mxu0 0.0
    %4977 = vmatpush1.msra.mxu0 0.0
    %4978 = vmatprep.subr.mxu0 0.0
    %4979 = vmatpush1.msra.mxu0 0.0
    %4980 = vmatprep.subr.mxu0 0.0
    %4981 = vmatpush1.msra.mxu0 0.0
    %4982 = vmatprep.subr.mxu0 0.0
    %4983 = vmatpush1.msra.mxu0 0.0
    %4984 = vmatprep.subr.mxu0 0.0
    %4985 = vmatpush1.msra.mxu0 0.0
    %4986 = vmatprep.subr.mxu0 0.0
    %4987 = vmatpush1.msra.mxu0 0.0
    %4988 = vmatprep.subr.mxu0 0.0
    %4989 = vmatpush1.msra.mxu0 0.0
    %4990 = vmatprep.subr.mxu0 0.0
    %4991 = vmatpush1.msra.mxu0 0.0
    %4992 = vmatprep.subr.mxu0 0.0
    %4993 = vmatpush1.msra.mxu0 0.0
    %4994 = vmatprep.subr.mxu0 0.0
    %4995 = vmatpush1.msra.mxu0 0.0
    %4996 = vmatprep.subr.mxu0 0.0
    %4997 = vmatpush1.msra.mxu0 0.0
    %4998 = vmatprep.subr.mxu0 0.0
    %4999 = vmatpush1.msra.mxu0 0.0
    %5000 = vmatprep.subr.mxu0 0.0
    %5001 = vmatpush1.msra.mxu0 0.0
    %5002 = vmatprep.mubr.f32.mxu0 0.0
    %5003 = vmatmul.mubr.f32.gmra.mrb[0].mxu0 %v4726
    %v5004 = vpop.f32.mrb[0].mxu0
    %v5005 = vadd.f32 %v4935, %v5004
    %v5006 = vpop.f32.mrb[0].mxu0
    %5007 = vdwg.mxu0
    %v5008 = vadd.f32 %v4527, %v5005
    %s5009 = sld [smem:[#allocation3 + $0x51]]
    %v5010 = vstv %s5009
    %v5011 = vmul.f32 %v5010, %v665
    %v5012 = vmul.f32 %v5010, %v666
    %s5013 = sld [smem:[#allocation3 + $0x52]]
    %v5014 = vstv %s5013
    %v5015 = vmul.f32 %v5014, %v671
    %v5016 = vmul.f32 %v5014, %v672
    %v5017 = vadd.f32 %v5011, %v5015
    %v5018 = vadd.f32 %v5012, %v5016
    %s5019 = sld [smem:[#allocation3 + $0x53]]
    %v5020 = vstv %s5019
    %v5021 = vmul.f32 %v5020, %v679
    %v5022 = vmul.f32 %v5020, %v680
    %v5023 = vadd.f32 %v5017, %v5021
    %v5024 = vadd.f32 %v5018, %v5022
    %s5025 = sld [smem:[#allocation3 + $0x54]]
    %v5026 = vstv %s5025
    %v5027 = vmul.f32 %v5026, %v687
    %v5028 = vmul.f32 %v5026, %v688
    %v5029 = vadd.f32 %v5023, %v5027
    %v5030 = vadd.f32 %v5024, %v5028
    %s5031 = sld [smem:[#allocation3 + $0x55]]
    %v5032 = vstv %s5031
    %v5033 = vmul.f32 %v5032, %v695
    %v5034 = vmul.f32 %v5032, %v696
    %v5035 = vadd.f32 %v5029, %v5033
    %v5036 = vadd.f32 %v5030, %v5034
    %s5037 = sld [smem:[#allocation3 + $0x56]]
    %v5038 = vstv %s5037
    %v5039 = vmul.f32 %v5038, %v703
    %v5040 = vmul.f32 %v5038, %v704
    %v5041 = vadd.f32 %v5035, %v5039
    %v5042 = vadd.f32 %v5036, %v5040
    %s5043 = sld [smem:[#allocation3 + $0x57]]
    %v5044 = vstv %s5043
    %v5045 = vmul.f32 %v5044, %v711
    %v5046 = vmul.f32 %v5044, %v712
    %v5047 = vadd.f32 %v5041, %v5045
    %v5048 = vadd.f32 %v5042, %v5046
    %s5049 = sld [smem:[#allocation3 + $0x58]]
    %v5050 = vstv %s5049
    %v5051 = vmul.f32 %v5050, %v719
    %v5052 = vmul.f32 %v5050, %v720
    %v5053 = vadd.f32 %v5047, %v5051
    %v5054 = vadd.f32 %v5048, %v5052
    %s5055 = sld [smem:[#allocation3 + $0x59]]
    %v5056 = vstv %s5055
    %v5057 = vmul.f32 %v5056, %v727
    %v5058 = vmul.f32 %v5056, %v728
    %v5059 = vadd.f32 %v5053, %v5057
    %v5060 = vadd.f32 %v5054, %v5058
    %s5061 = sld [smem:[#allocation6 + $0x9]]
    %v5062 = vstv %s5061
    %v5063 = vadd.f32 %v5059, %v5062
    %v5064 = vadd.f32 %v5060, %v5062
    %v5065 = vmax.f32 %v5063, 0.0
    %v5066 = vmax.f32 %v5064, 0.0
    %s5067 = scalar_lea.vmem %s4, 7056
    %v5068 = vld [vmem:[%s5067] sm:$0xff]
    %v5069 = vld [vmem:[%s5067 + $0x8] sm:$0xff]
    %v5070 = vld [vmem:[%s5067 + $0x10] sm:$0xff]
    %v5071 = vld [vmem:[%s5067 + $0x18] sm:$0xff]
    %v5072 = vld [vmem:[%s5067 + $0x20] sm:$0xff]
    %v5073 = vld [vmem:[%s5067 + $0x28] sm:$0xff]
    %v5074 = vld [vmem:[%s5067 + $0x30] sm:$0xff]
    %v5075 = vld [vmem:[%s5067 + $0x38] sm:$0xff]
    %v5076 = vld [vmem:[%s5067 + $0x40] sm:$0xff]
    %v5077 = vld [vmem:[%s5067 + $0x48] sm:$0xff]
    %v5078 = vld [vmem:[%s5067 + $0x50] sm:$0xff]
    %v5079 = vld [vmem:[%s5067 + $0x58] sm:$0xff]
    %v5080 = vld [vmem:[%s5067 + $0x60] sm:$0xff]
    %v5081 = vld [vmem:[%s5067 + $0x68] sm:$0xff]
    %v5082 = vld [vmem:[%s5067 + $0x70] sm:$0xff]
    %v5083 = vld [vmem:[%s5067 + $0x78] sm:$0xff]
    %v5084 = vld [vmem:[%s5067 + $0x80] sm:$0xff]
    %v5085 = vld [vmem:[%s5067 + $0x88] sm:$0xff]
    %v5086 = vld [vmem:[%s5067 + $0x90] sm:$0xff]
    %v5087 = vld [vmem:[%s5067 + $0x98] sm:$0xff]
    %v5088 = vld [vmem:[%s5067 + $0xa0] sm:$0xff]
    %v5089 = vld [vmem:[%s5067 + $0xa8] sm:$0xff]
    %v5090 = vld [vmem:[%s5067 + $0xb0] sm:$0xff]
    %v5091 = vld [vmem:[%s5067 + $0xb8] sm:$0xff]
    %v5092 = vld [vmem:[%s5067 + $0xc0] sm:$0xff]
    %v5093 = vld [vmem:[%s5067 + $0xc8] sm:$0xff]
    %v5094 = vld [vmem:[%s5067 + $0xd0] sm:$0xff]
    %v5095 = vld [vmem:[%s5067 + $0xd8] sm:$0xff]
    %v5096 = vld [vmem:[%s5067 + $0xe0] sm:$0xff]
    %v5097 = vld [vmem:[%s5067 + $0xe8] sm:$0xff]
    %v5098 = vld [vmem:[%s5067 + $0xf0] sm:$0xff]
    %v5099 = vld [vmem:[%s5067 + $0xf8] sm:$0xff]
    %v5100 = vld [vmem:[%s5067 + $0x100] sm:$0xff]
    %v5101 = vld [vmem:[%s5067 + $0x108] sm:$0xff]
    %v5102 = vld [vmem:[%s5067 + $0x110] sm:$0xff]
    %v5103 = vld [vmem:[%s5067 + $0x118] sm:$0xff]
    %v5104 = vld [vmem:[%s5067 + $0x120] sm:$0xff]
    %v5105 = vld [vmem:[%s5067 + $0x128] sm:$0xff]
    %v5106 = vld [vmem:[%s5067 + $0x130] sm:$0xff]
    %v5107 = vld [vmem:[%s5067 + $0x138] sm:$0xff]
    %v5108 = vld [vmem:[%s5067 + $0x140] sm:$0xff]
    %v5109 = vld [vmem:[%s5067 + $0x148] sm:$0xff]
    %v5110 = vld [vmem:[%s5067 + $0x150] sm:$0xff]
    %v5111 = vld [vmem:[%s5067 + $0x158] sm:$0xff]
    %v5112 = vld [vmem:[%s5067 + $0x160] sm:$0xff]
    %v5113 = vld [vmem:[%s5067 + $0x168] sm:$0xff]
    %v5114 = vld [vmem:[%s5067 + $0x170] sm:$0xff]
    %v5115 = vld [vmem:[%s5067 + $0x178] sm:$0xff]
    %v5116 = vld [vmem:[%s5067 + $0x180] sm:$0xff]
    %v5117 = vld [vmem:[%s5067 + $0x188] sm:$0xff]
    %v5118 = vld [vmem:[%s5067 + $0x190] sm:$0xff]
    %v5119 = vld [vmem:[%s5067 + $0x198] sm:$0xff]
    %v5120 = vld [vmem:[%s5067 + $0x1a0] sm:$0xff]
    %v5121 = vld [vmem:[%s5067 + $0x1a8] sm:$0xff]
    %v5122 = vld [vmem:[%s5067 + $0x1b0] sm:$0xff]
    %v5123 = vld [vmem:[%s5067 + $0x1b8] sm:$0xff]
    %v5124 = vld [vmem:[%s5067 + $0x1c0] sm:$0xff]
    %v5125 = vld [vmem:[%s5067 + $0x1c8] sm:$0xff]
    %v5126 = vld [vmem:[%s5067 + $0x1d0] sm:$0xff]
    %v5127 = vld [vmem:[%s5067 + $0x1d8] sm:$0xff]
    %v5128 = vld [vmem:[%s5067 + $0x1e0] sm:$0xff]
    %v5129 = vld [vmem:[%s5067 + $0x1e8] sm:$0xff]
    %v5130 = vld [vmem:[%s5067 + $0x1f0] sm:$0xff]
    %v5131 = vld [vmem:[%s5067 + $0x1f8] sm:$0xff]
    %v5132 = vld [vmem:[%s5067 + $0x200] sm:$0xff]
    %v5133 = vld [vmem:[%s5067 + $0x208] sm:$0xff]
    %v5134 = vld [vmem:[%s5067 + $0x210] sm:$0xff]
    %v5135 = vld [vmem:[%s5067 + $0x218] sm:$0xff]
    %v5136 = vld [vmem:[%s5067 + $0x220] sm:$0xff]
    %v5137 = vld [vmem:[%s5067 + $0x228] sm:$0xff]
    %v5138 = vld [vmem:[%s5067 + $0x230] sm:$0xff]
    %v5139 = vld [vmem:[%s5067 + $0x238] sm:$0xff]
    %v5140 = vld [vmem:[%s5067 + $0x240] sm:$0xff]
    %v5141 = vld [vmem:[%s5067 + $0x248] sm:$0xff]
    %v5142 = vld [vmem:[%s5067 + $0x250] sm:$0xff]
    %v5143 = vld [vmem:[%s5067 + $0x258] sm:$0xff]
    %v5144 = vld [vmem:[%s5067 + $0x260] sm:$0xff]
    %v5145 = vld [vmem:[%s5067 + $0x268] sm:$0xff]
    %v5146 = vld [vmem:[%s5067 + $0x270] sm:$0xff]
    %v5147 = vld [vmem:[%s5067 + $0x278] sm:$0xff]
    %v5148 = vld [vmem:[%s5067 + $0x280] sm:$0xff]
    %v5149 = vld [vmem:[%s5067 + $0x288] sm:$0xff]
    %v5150 = vld [vmem:[%s5067 + $0x290] sm:$0xff]
    %v5151 = vld [vmem:[%s5067 + $0x298] sm:$0xff]
    %v5152 = vld [vmem:[%s5067 + $0x2a0] sm:$0xff]
    %v5153 = vld [vmem:[%s5067 + $0x2a8] sm:$0xff]
    %v5154 = vld [vmem:[%s5067 + $0x2b0] sm:$0xff]
    %v5155 = vld [vmem:[%s5067 + $0x2b8] sm:$0xff]
    %v5156 = vld [vmem:[%s5067 + $0x2c0] sm:$0xff]
    %v5157 = vld [vmem:[%s5067 + $0x2c8] sm:$0xff]
    %v5158 = vld [vmem:[%s5067 + $0x2d0] sm:$0xff]
    %v5159 = vld [vmem:[%s5067 + $0x2d8] sm:$0xff]
    %v5160 = vld [vmem:[%s5067 + $0x2e0] sm:$0xff]
    %v5161 = vld [vmem:[%s5067 + $0x2e8] sm:$0xff]
    %v5162 = vld [vmem:[%s5067 + $0x2f0] sm:$0xff]
    %v5163 = vld [vmem:[%s5067 + $0x2f8] sm:$0xff]
    %v5164 = vld [vmem:[%s5067 + $0x300] sm:$0xff]
    %v5165 = vld [vmem:[%s5067 + $0x308] sm:$0xff]
    %v5168 = vcombine.high %v5065, %v5065
    %v5170 = vunpack.c.l.s4 1983009808
    %v5171 = vunpack.c.0.s8 %v5170
    %v5172 = vlaneseq
    %v5173 = vshrl.u32 %v5172, 7
    %v5174 = vsub.s32 %v5171, %v5173
    %v5175 = vrot.slane %v5065, %v5174
    %v5177 = vunpack.c.l.s4 1983009808
    %v5178 = vunpack.c.0.s8 %v5177
    %v5179 = vlaneseq
    %v5180 = vshrl.u32 %v5179, 7
    %v5181 = vsub.s32 %v5178, %v5180
    %v5182 = vrot.slane %v5168, %v5181
    %v5183 = vcombine.high %v5175, %v5175
    %v5184 = vcombine.high %v5182, %v5182
    %v5185 = vcombine.high %v5066, %v5066
    %v5187 = vunpack.c.l.s4 1983009808
    %v5188 = vunpack.c.0.s8 %v5187
    %v5189 = vlaneseq
    %v5190 = vshrl.u32 %v5189, 7
    %v5191 = vsub.s32 %v5188, %v5190
    %v5192 = vrot.slane %v5066, %v5191
    %v5194 = vunpack.c.l.s4 1983009808
    %v5195 = vunpack.c.0.s8 %v5194
    %v5196 = vlaneseq
    %v5197 = vshrl.u32 %v5196, 7
    %v5198 = vsub.s32 %v5195, %v5197
    %v5199 = vrot.slane %v5185, %v5198
    %v5200 = vcombine.high %v5192, %v5192
    %v5207 = vsel %vm1036, %v5199, 0
    %5209 = vmatprep.subr.mxu0 0.0
    %5210 = vmatpush1.msra.mxu0 %v5068
    %5211 = vmatprep.subr.mxu0 0.0
    %5212 = vmatpush1.msra.mxu0 %v5069
    %5213 = vmatprep.subr.mxu0 0.0
    %5214 = vmatpush1.msra.mxu0 %v5070
    %5215 = vmatprep.subr.mxu0 0.0
    %5216 = vmatpush1.msra.mxu0 %v5071
    %5217 = vmatprep.subr.mxu0 0.0
    %5218 = vmatpush1.msra.mxu0 %v5072
    %5219 = vmatprep.subr.mxu0 0.0
    %5220 = vmatpush1.msra.mxu0 %v5073
    %5221 = vmatprep.subr.mxu0 0.0
    %5222 = vmatpush1.msra.mxu0 %v5074
    %5223 = vmatprep.subr.mxu0 0.0
    %5224 = vmatpush1.msra.mxu0 %v5075
    %5225 = vmatprep.subr.mxu0 0.0
    %5226 = vmatpush1.msra.mxu0 %v5076
    %5227 = vmatprep.subr.mxu0 0.0
    %5228 = vmatpush1.msra.mxu0 %v5077
    %5229 = vmatprep.subr.mxu0 0.0
    %5230 = vmatpush1.msra.mxu0 %v5078
    %5231 = vmatprep.subr.mxu0 0.0
    %5232 = vmatpush1.msra.mxu0 %v5079
    %5233 = vmatprep.subr.mxu0 0.0
    %5234 = vmatpush1.msra.mxu0 %v5080
    %5235 = vmatprep.subr.mxu0 0.0
    %5236 = vmatpush1.msra.mxu0 %v5081
    %5237 = vmatprep.subr.mxu0 0.0
    %5238 = vmatpush1.msra.mxu0 %v5082
    %5239 = vmatprep.subr.mxu0 0.0
    %5240 = vmatpush1.msra.mxu0 %v5083
    %5241 = vmatprep.subr.mxu0 0.0
    %5242 = vmatpush1.msra.mxu0 %v5084
    %5243 = vmatprep.subr.mxu0 0.0
    %5244 = vmatpush1.msra.mxu0 %v5085
    %5245 = vmatprep.subr.mxu0 0.0
    %5246 = vmatpush1.msra.mxu0 %v5086
    %5247 = vmatprep.subr.mxu0 0.0
    %5248 = vmatpush1.msra.mxu0 %v5087
    %5249 = vmatprep.subr.mxu0 0.0
    %5250 = vmatpush1.msra.mxu0 %v5088
    %5251 = vmatprep.subr.mxu0 0.0
    %5252 = vmatpush1.msra.mxu0 %v5089
    %5253 = vmatprep.subr.mxu0 0.0
    %5254 = vmatpush1.msra.mxu0 %v5090
    %5255 = vmatprep.subr.mxu0 0.0
    %5256 = vmatpush1.msra.mxu0 %v5091
    %5257 = vmatprep.subr.mxu0 0.0
    %5258 = vmatpush1.msra.mxu0 %v5092
    %5259 = vmatprep.subr.mxu0 0.0
    %5260 = vmatpush1.msra.mxu0 %v5093
    %5261 = vmatprep.subr.mxu0 0.0
    %5262 = vmatpush1.msra.mxu0 %v5094
    %5263 = vmatprep.subr.mxu0 0.0
    %5264 = vmatpush1.msra.mxu0 %v5095
    %5265 = vmatprep.subr.mxu0 0.0
    %5266 = vmatpush1.msra.mxu0 %v5096
    %5267 = vmatprep.subr.mxu0 0.0
    %5268 = vmatpush1.msra.mxu0 %v5097
    %5269 = vmatprep.subr.mxu0 0.0
    %5270 = vmatpush1.msra.mxu0 %v5098
    %5271 = vmatprep.subr.mxu0 0.0
    %5272 = vmatpush1.msra.mxu0 %v5099
    %5273 = vmatprep.mubr.f32.mxu0 %v5183
    %5274 = vmatmul.mubr.f32.gmra.mrb[0].mxu0 %v5175
    %v5275 = vpop.f32.mrb[0].mxu0
    %v5276 = vadd.f32 0.0, %v5275
    %v5277 = vpop.f32.mrb[0].mxu0
    %5278 = vdwg.mxu0
    %5279 = vmatprep.subr.mxu0 0.0
    %5280 = vmatpush1.msra.mxu0 %v5100
    %5281 = vmatprep.subr.mxu0 0.0
    %5282 = vmatpush1.msra.mxu0 %v5101
    %5283 = vmatprep.subr.mxu0 0.0
    %5284 = vmatpush1.msra.mxu0 %v5102
    %5285 = vmatprep.subr.mxu0 0.0
    %5286 = vmatpush1.msra.mxu0 %v5103
    %5287 = vmatprep.subr.mxu0 0.0
    %5288 = vmatpush1.msra.mxu0 %v5104
    %5289 = vmatprep.subr.mxu0 0.0
    %5290 = vmatpush1.msra.mxu0 %v5105
    %5291 = vmatprep.subr.mxu0 0.0
    %5292 = vmatpush1.msra.mxu0 %v5106
    %5293 = vmatprep.subr.mxu0 0.0
    %5294 = vmatpush1.msra.mxu0 %v5107
    %5295 = vmatprep.subr.mxu0 0.0
    %5296 = vmatpush1.msra.mxu0 %v5108
    %5297 = vmatprep.subr.mxu0 0.0
    %5298 = vmatpush1.msra.mxu0 %v5109
    %5299 = vmatprep.subr.mxu0 0.0
    %5300 = vmatpush1.msra.mxu0 %v5110
    %5301 = vmatprep.subr.mxu0 0.0
    %5302 = vmatpush1.msra.mxu0 %v5111
    %5303 = vmatprep.subr.mxu0 0.0
    %5304 = vmatpush1.msra.mxu0 %v5112
    %5305 = vmatprep.subr.mxu0 0.0
    %5306 = vmatpush1.msra.mxu0 %v5113
    %5307 = vmatprep.subr.mxu0 0.0
    %5308 = vmatpush1.msra.mxu0 %v5114
    %5309 = vmatprep.subr.mxu0 0.0
    %5310 = vmatpush1.msra.mxu0 %v5115
    %5311 = vmatprep.subr.mxu0 0.0
    %5312 = vmatpush1.msra.mxu0 %v5116
    %5313 = vmatprep.subr.mxu0 0.0
    %5314 = vmatpush1.msra.mxu0 %v5117
    %5315 = vmatprep.subr.mxu0 0.0
    %5316 = vmatpush1.msra.mxu0 %v5118
    %5317 = vmatprep.subr.mxu0 0.0
    %5318 = vmatpush1.msra.mxu0 %v5119
    %5319 = vmatprep.subr.mxu0 0.0
    %5320 = vmatpush1.msra.mxu0 %v5120
    %5321 = vmatprep.subr.mxu0 0.0
    %5322 = vmatpush1.msra.mxu0 %v5121
    %5323 = vmatprep.subr.mxu0 0.0
    %5324 = vmatpush1.msra.mxu0 %v5122
    %5325 = vmatprep.subr.mxu0 0.0
    %5326 = vmatpush1.msra.mxu0 %v5123
    %5327 = vmatprep.subr.mxu0 0.0
    %5328 = vmatpush1.msra.mxu0 %v5124
    %5329 = vmatprep.subr.mxu0 0.0
    %5330 = vmatpush1.msra.mxu0 %v5125
    %5331 = vmatprep.subr.mxu0 0.0
    %5332 = vmatpush1.msra.mxu0 %v5126
    %5333 = vmatprep.subr.mxu0 0.0
    %5334 = vmatpush1.msra.mxu0 %v5127
    %5335 = vmatprep.subr.mxu0 0.0
    %5336 = vmatpush1.msra.mxu0 %v5128
    %5337 = vmatprep.subr.mxu0 0.0
    %5338 = vmatpush1.msra.mxu0 %v5129
    %5339 = vmatprep.subr.mxu0 0.0
    %5340 = vmatpush1.msra.mxu0 %v5130
    %5341 = vmatprep.subr.mxu0 0.0
    %5342 = vmatpush1.msra.mxu0 %v5131
    %5343 = vmatprep.mubr.f32.mxu0 %v5184
    %5344 = vmatmul.mubr.f32.gmra.mrb[0].mxu0 %v5182
    %v5345 = vpop.f32.mrb[0].mxu0
    %v5346 = vadd.f32 %v5276, %v5345
    %v5347 = vpop.f32.mrb[0].mxu0
    %5348 = vdwg.mxu0
    %5349 = vmatprep.subr.mxu0 0.0
    %5350 = vmatpush1.msra.mxu0 %v5132
    %5351 = vmatprep.subr.mxu0 0.0
    %5352 = vmatpush1.msra.mxu0 %v5133
    %5353 = vmatprep.subr.mxu0 0.0
    %5354 = vmatpush1.msra.mxu0 %v5134
    %5355 = vmatprep.subr.mxu0 0.0
    %5356 = vmatpush1.msra.mxu0 %v5135
    %5357 = vmatprep.subr.mxu0 0.0
    %5358 = vmatpush1.msra.mxu0 %v5136
    %5359 = vmatprep.subr.mxu0 0.0
    %5360 = vmatpush1.msra.mxu0 %v5137
    %5361 = vmatprep.subr.mxu0 0.0
    %5362 = vmatpush1.msra.mxu0 %v5138
    %5363 = vmatprep.subr.mxu0 0.0
    %5364 = vmatpush1.msra.mxu0 %v5139
    %5365 = vmatprep.subr.mxu0 0.0
    %5366 = vmatpush1.msra.mxu0 %v5140
    %5367 = vmatprep.subr.mxu0 0.0
    %5368 = vmatpush1.msra.mxu0 %v5141
    %5369 = vmatprep.subr.mxu0 0.0
    %5370 = vmatpush1.msra.mxu0 %v5142
    %5371 = vmatprep.subr.mxu0 0.0
    %5372 = vmatpush1.msra.mxu0 %v5143
    %5373 = vmatprep.subr.mxu0 0.0
    %5374 = vmatpush1.msra.mxu0 %v5144
    %5375 = vmatprep.subr.mxu0 0.0
    %5376 = vmatpush1.msra.mxu0 %v5145
    %5377 = vmatprep.subr.mxu0 0.0
    %5378 = vmatpush1.msra.mxu0 %v5146
    %5379 = vmatprep.subr.mxu0 0.0
    %5380 = vmatpush1.msra.mxu0 %v5147
    %5381 = vmatprep.subr.mxu0 0.0
    %5382 = vmatpush1.msra.mxu0 %v5148
    %5383 = vmatprep.subr.mxu0 0.0
    %5384 = vmatpush1.msra.mxu0 %v5149
    %5385 = vmatprep.subr.mxu0 0.0
    %5386 = vmatpush1.msra.mxu0 %v5150
    %5387 = vmatprep.subr.mxu0 0.0
    %5388 = vmatpush1.msra.mxu0 %v5151
    %5389 = vmatprep.subr.mxu0 0.0
    %5390 = vmatpush1.msra.mxu0 %v5152
    %5391 = vmatprep.subr.mxu0 0.0
    %5392 = vmatpush1.msra.mxu0 %v5153
    %5393 = vmatprep.subr.mxu0 0.0
    %5394 = vmatpush1.msra.mxu0 %v5154
    %5395 = vmatprep.subr.mxu0 0.0
    %5396 = vmatpush1.msra.mxu0 %v5155
    %5397 = vmatprep.subr.mxu0 0.0
    %5398 = vmatpush1.msra.mxu0 %v5156
    %5399 = vmatprep.subr.mxu0 0.0
    %5400 = vmatpush1.msra.mxu0 %v5157
    %5401 = vmatprep.subr.mxu0 0.0
    %5402 = vmatpush1.msra.mxu0 %v5158
    %5403 = vmatprep.subr.mxu0 0.0
    %5404 = vmatpush1.msra.mxu0 %v5159
    %5405 = vmatprep.subr.mxu0 0.0
    %5406 = vmatpush1.msra.mxu0 %v5160
    %5407 = vmatprep.subr.mxu0 0.0
    %5408 = vmatpush1.msra.mxu0 %v5161
    %5409 = vmatprep.subr.mxu0 0.0
    %5410 = vmatpush1.msra.mxu0 %v5162
    %5411 = vmatprep.subr.mxu0 0.0
    %5412 = vmatpush1.msra.mxu0 %v5163
    %5413 = vmatprep.mubr.f32.mxu0 %v5200
    %5414 = vmatmul.mubr.f32.gmra.mrb[0].mxu0 %v5192
    %v5415 = vpop.f32.mrb[0].mxu0
    %v5416 = vadd.f32 %v5346, %v5415
    %v5417 = vpop.f32.mrb[0].mxu0
    %5418 = vdwg.mxu0
    %5419 = vmatprep.subr.mxu0 0.0
    %5420 = vmatpush1.msra.mxu0 %v5164
    %5421 = vmatprep.subr.mxu0 0.0
    %5422 = vmatpush1.msra.mxu0 %v5165
    %5423 = vmatprep.subr.mxu0 0.0
    %5424 = vmatpush1.msra.mxu0 0.0
    %5425 = vmatprep.subr.mxu0 0.0
    %5426 = vmatpush1.msra.mxu0 0.0
    %5427 = vmatprep.subr.mxu0 0.0
    %5428 = vmatpush1.msra.mxu0 0.0
    %5429 = vmatprep.subr.mxu0 0.0
    %5430 = vmatpush1.msra.mxu0 0.0
    %5431 = vmatprep.subr.mxu0 0.0
    %5432 = vmatpush1.msra.mxu0 0.0
    %5433 = vmatprep.subr.mxu0 0.0
    %5434 = vmatpush1.msra.mxu0 0.0
    %5435 = vmatprep.subr.mxu0 0.0
    %5436 = vmatpush1.msra.mxu0 0.0
    %5437 = vmatprep.subr.mxu0 0.0
    %5438 = vmatpush1.msra.mxu0 0.0
    %5439 = vmatprep.subr.mxu0 0.0
    %5440 = vmatpush1.msra.mxu0 0.0
    %5441 = vmatprep.subr.mxu0 0.0
    %5442 = vmatpush1.msra.mxu0 0.0
    %5443 = vmatprep.subr.mxu0 0.0
    %5444 = vmatpush1.msra.mxu0 0.0
    %5445 = vmatprep.subr.mxu0 0.0
    %5446 = vmatpush1.msra.mxu0 0.0
    %5447 = vmatprep.subr.mxu0 0.0
    %5448 = vmatpush1.msra.mxu0 0.0
    %5449 = vmatprep.subr.mxu0 0.0
    %5450 = vmatpush1.msra.mxu0 0.0
    %5451 = vmatprep.subr.mxu0 0.0
    %5452 = vmatpush1.msra.mxu0 0.0
    %5453 = vmatprep.subr.mxu0 0.0
    %5454 = vmatpush1.msra.mxu0 0.0
    %5455 = vmatprep.subr.mxu0 0.0
    %5456 = vmatpush1.msra.mxu0 0.0
    %5457 = vmatprep.subr.mxu0 0.0
    %5458 = vmatpush1.msra.mxu0 0.0
    %5459 = vmatprep.subr.mxu0 0.0
    %5460 = vmatpush1.msra.mxu0 0.0
    %5461 = vmatprep.subr.mxu0 0.0
    %5462 = vmatpush1.msra.mxu0 0.0
    %5463 = vmatprep.subr.mxu0 0.0
    %5464 = vmatpush1.msra.mxu0 0.0
    %5465 = vmatprep.subr.mxu0 0.0
    %5466 = vmatpush1.msra.mxu0 0.0
    %5467 = vmatprep.subr.mxu0 0.0
    %5468 = vmatpush1.msra.mxu0 0.0
    %5469 = vmatprep.subr.mxu0 0.0
    %5470 = vmatpush1.msra.mxu0 0.0
    %5471 = vmatprep.subr.mxu0 0.0
    %5472 = vmatpush1.msra.mxu0 0.0
    %5473 = vmatprep.subr.mxu0 0.0
    %5474 = vmatpush1.msra.mxu0 0.0
    %5475 = vmatprep.subr.mxu0 0.0
    %5476 = vmatpush1.msra.mxu0 0.0
    %5477 = vmatprep.subr.mxu0 0.0
    %5478 = vmatpush1.msra.mxu0 0.0
    %5479 = vmatprep.subr.mxu0 0.0
    %5480 = vmatpush1.msra.mxu0 0.0
    %5481 = vmatprep.subr.mxu0 0.0
    %5482 = vmatpush1.msra.mxu0 0.0
    %5483 = vmatprep.mubr.f32.mxu0 0.0
    %5484 = vmatmul.mubr.f32.gmra.mrb[0].mxu0 %v5207
    %v5485 = vpop.f32.mrb[0].mxu0
    %v5486 = vadd.f32 %v5416, %v5485
    %v5487 = vpop.f32.mrb[0].mxu0
    %5488 = vdwg.mxu0
    %v5489 = vadd.f32 %v5008, %v5486
    %s5490 = sld [smem:[#allocation3 + $0x5a]]
    %v5491 = vstv %s5490
    %v5492 = vmul.f32 %v5491, %v665
    %v5493 = vmul.f32 %v5491, %v666
    %s5494 = sld [smem:[#allocation3 + $0x5b]]
    %v5495 = vstv %s5494
    %v5496 = vmul.f32 %v5495, %v671
    %v5497 = vmul.f32 %v5495, %v672
    %v5498 = vadd.f32 %v5492, %v5496
    %v5499 = vadd.f32 %v5493, %v5497
    %s5500 = sld [smem:[#allocation3 + $0x5c]]
    %v5501 = vstv %s5500
    %v5502 = vmul.f32 %v5501, %v679
    %v5503 = vmul.f32 %v5501, %v680
    %v5504 = vadd.f32 %v5498, %v5502
    %v5505 = vadd.f32 %v5499, %v5503
    %s5506 = sld [smem:[#allocation3 + $0x5d]]
    %v5507 = vstv %s5506
    %v5508 = vmul.f32 %v5507, %v687
    %v5509 = vmul.f32 %v5507, %v688
    %v5510 = vadd.f32 %v5504, %v5508
    %v5511 = vadd.f32 %v5505, %v5509
    %s5512 = sld [smem:[#allocation3 + $0x5e]]
    %v5513 = vstv %s5512
    %v5514 = vmul.f32 %v5513, %v695
    %v5515 = vmul.f32 %v5513, %v696
    %v5516 = vadd.f32 %v5510, %v5514
    %v5517 = vadd.f32 %v5511, %v5515
    %s5518 = sld [smem:[#allocation3 + $0x5f]]
    %v5519 = vstv %s5518
    %v5520 = vmul.f32 %v5519, %v703
    %v5521 = vmul.f32 %v5519, %v704
    %v5522 = vadd.f32 %v5516, %v5520
    %v5523 = vadd.f32 %v5517, %v5521
    %s5524 = sld [smem:[#allocation3 + $0x60]]
    %v5525 = vstv %s5524
    %v5526 = vmul.f32 %v5525, %v711
    %v5527 = vmul.f32 %v5525, %v712
    %v5528 = vadd.f32 %v5522, %v5526
    %v5529 = vadd.f32 %v5523, %v5527
    %s5530 = sld [smem:[#allocation3 + $0x61]]
    %v5531 = vstv %s5530
    %v5532 = vmul.f32 %v5531, %v719
    %v5533 = vmul.f32 %v5531, %v720
    %v5534 = vadd.f32 %v5528, %v5532
    %v5535 = vadd.f32 %v5529, %v5533
    %s5536 = sld [smem:[#allocation3 + $0x62]]
    %v5537 = vstv %s5536
    %v5538 = vmul.f32 %v5537, %v727
    %v5539 = vmul.f32 %v5537, %v728
    %v5540 = vadd.f32 %v5534, %v5538
    %v5541 = vadd.f32 %v5535, %v5539
    %s5542 = sld [smem:[#allocation6 + $0xa]]
    %v5543 = vstv %s5542
    %v5544 = vadd.f32 %v5540, %v5543
    %v5545 = vadd.f32 %v5541, %v5543
    %v5546 = vmax.f32 %v5544, 0.0
    %v5547 = vmax.f32 %v5545, 0.0
    %s5548 = scalar_lea.vmem %s4, 7840
    %v5549 = vld [vmem:[%s5548] sm:$0xff]
    %v5550 = vld [vmem:[%s5548 + $0x8] sm:$0xff]
    %v5551 = vld [vmem:[%s5548 + $0x10] sm:$0xff]
    %v5552 = vld [vmem:[%s5548 + $0x18] sm:$0xff]
    %v5553 = vld [vmem:[%s5548 + $0x20] sm:$0xff]
    %v5554 = vld [vmem:[%s5548 + $0x28] sm:$0xff]
    %v5555 = vld [vmem:[%s5548 + $0x30] sm:$0xff]
    %v5556 = vld [vmem:[%s5548 + $0x38] sm:$0xff]
    %v5557 = vld [vmem:[%s5548 + $0x40] sm:$0xff]
    %v5558 = vld [vmem:[%s5548 + $0x48] sm:$0xff]
    %v5559 = vld [vmem:[%s5548 + $0x50] sm:$0xff]
    %v5560 = vld [vmem:[%s5548 + $0x58] sm:$0xff]
    %v5561 = vld [vmem:[%s5548 + $0x60] sm:$0xff]
    %v5562 = vld [vmem:[%s5548 + $0x68] sm:$0xff]
    %v5563 = vld [vmem:[%s5548 + $0x70] sm:$0xff]
    %v5564 = vld [vmem:[%s5548 + $0x78] sm:$0xff]
    %v5565 = vld [vmem:[%s5548 + $0x80] sm:$0xff]
    %v5566 = vld [vmem:[%s5548 + $0x88] sm:$0xff]
    %v5567 = vld [vmem:[%s5548 + $0x90] sm:$0xff]
    %v5568 = vld [vmem:[%s5548 + $0x98] sm:$0xff]
    %v5569 = vld [vmem:[%s5548 + $0xa0] sm:$0xff]
    %v5570 = vld [vmem:[%s5548 + $0xa8] sm:$0xff]
    %v5571 = vld [vmem:[%s5548 + $0xb0] sm:$0xff]
    %v5572 = vld [vmem:[%s5548 + $0xb8] sm:$0xff]
    %v5573 = vld [vmem:[%s5548 + $0xc0] sm:$0xff]
    %v5574 = vld [vmem:[%s5548 + $0xc8] sm:$0xff]
    %v5575 = vld [vmem:[%s5548 + $0xd0] sm:$0xff]
    %v5576 = vld [vmem:[%s5548 + $0xd8] sm:$0xff]
    %v5577 = vld [vmem:[%s5548 + $0xe0] sm:$0xff]
    %v5578 = vld [vmem:[%s5548 + $0xe8] sm:$0xff]
    %v5579 = vld [vmem:[%s5548 + $0xf0] sm:$0xff]
    %v5580 = vld [vmem:[%s5548 + $0xf8] sm:$0xff]
    %v5581 = vld [vmem:[%s5548 + $0x100] sm:$0xff]
    %v5582 = vld [vmem:[%s5548 + $0x108] sm:$0xff]
    %v5583 = vld [vmem:[%s5548 + $0x110] sm:$0xff]
    %v5584 = vld [vmem:[%s5548 + $0x118] sm:$0xff]
    %v5585 = vld [vmem:[%s5548 + $0x120] sm:$0xff]
    %v5586 = vld [vmem:[%s5548 + $0x128] sm:$0xff]
    %v5587 = vld [vmem:[%s5548 + $0x130] sm:$0xff]
    %v5588 = vld [vmem:[%s5548 + $0x138] sm:$0xff]
    %v5589 = vld [vmem:[%s5548 + $0x140] sm:$0xff]
    %v5590 = vld [vmem:[%s5548 + $0x148] sm:$0xff]
    %v5591 = vld [vmem:[%s5548 + $0x150] sm:$0xff]
    %v5592 = vld [vmem:[%s5548 + $0x158] sm:$0xff]
    %v5593 = vld [vmem:[%s5548 + $0x160] sm:$0xff]
    %v5594 = vld [vmem:[%s5548 + $0x168] sm:$0xff]
    %v5595 = vld [vmem:[%s5548 + $0x170] sm:$0xff]
    %v5596 = vld [vmem:[%s5548 + $0x178] sm:$0xff]
    %v5597 = vld [vmem:[%s5548 + $0x180] sm:$0xff]
    %v5598 = vld [vmem:[%s5548 + $0x188] sm:$0xff]
    %v5599 = vld [vmem:[%s5548 + $0x190] sm:$0xff]
    %v5600 = vld [vmem:[%s5548 + $0x198] sm:$0xff]
    %v5601 = vld [vmem:[%s5548 + $0x1a0] sm:$0xff]
    %v5602 = vld [vmem:[%s5548 + $0x1a8] sm:$0xff]
    %v5603 = vld [vmem:[%s5548 + $0x1b0] sm:$0xff]
    %v5604 = vld [vmem:[%s5548 + $0x1b8] sm:$0xff]
    %v5605 = vld [vmem:[%s5548 + $0x1c0] sm:$0xff]
    %v5606 = vld [vmem:[%s5548 + $0x1c8] sm:$0xff]
    %v5607 = vld [vmem:[%s5548 + $0x1d0] sm:$0xff]
    %v5608 = vld [vmem:[%s5548 + $0x1d8] sm:$0xff]
    %v5609 = vld [vmem:[%s5548 + $0x1e0] sm:$0xff]
    %v5610 = vld [vmem:[%s5548 + $0x1e8] sm:$0xff]
    %v5611 = vld [vmem:[%s5548 + $0x1f0] sm:$0xff]
    %v5612 = vld [vmem:[%s5548 + $0x1f8] sm:$0xff]
    %v5613 = vld [vmem:[%s5548 + $0x200] sm:$0xff]
    %v5614 = vld [vmem:[%s5548 + $0x208] sm:$0xff]
    %v5615 = vld [vmem:[%s5548 + $0x210] sm:$0xff]
    %v5616 = vld [vmem:[%s5548 + $0x218] sm:$0xff]
    %v5617 = vld [vmem:[%s5548 + $0x220] sm:$0xff]
    %v5618 = vld [vmem:[%s5548 + $0x228] sm:$0xff]
    %v5619 = vld [vmem:[%s5548 + $0x230] sm:$0xff]
    %v5620 = vld [vmem:[%s5548 + $0x238] sm:$0xff]
    %v5621 = vld [vmem:[%s5548 + $0x240] sm:$0xff]
    %v5622 = vld [vmem:[%s5548 + $0x248] sm:$0xff]
    %v5623 = vld [vmem:[%s5548 + $0x250] sm:$0xff]
    %v5624 = vld [vmem:[%s5548 + $0x258] sm:$0xff]
    %v5625 = vld [vmem:[%s5548 + $0x260] sm:$0xff]
    %v5626 = vld [vmem:[%s5548 + $0x268] sm:$0xff]
    %v5627 = vld [vmem:[%s5548 + $0x270] sm:$0xff]
    %v5628 = vld [vmem:[%s5548 + $0x278] sm:$0xff]
    %v5629 = vld [vmem:[%s5548 + $0x280] sm:$0xff]
    %v5630 = vld [vmem:[%s5548 + $0x288] sm:$0xff]
    %v5631 = vld [vmem:[%s5548 + $0x290] sm:$0xff]
    %v5632 = vld [vmem:[%s5548 + $0x298] sm:$0xff]
    %v5633 = vld [vmem:[%s5548 + $0x2a0] sm:$0xff]
    %v5634 = vld [vmem:[%s5548 + $0x2a8] sm:$0xff]
    %v5635 = vld [vmem:[%s5548 + $0x2b0] sm:$0xff]
    %v5636 = vld [vmem:[%s5548 + $0x2b8] sm:$0xff]
    %v5637 = vld [vmem:[%s5548 + $0x2c0] sm:$0xff]
    %v5638 = vld [vmem:[%s5548 + $0x2c8] sm:$0xff]
    %v5639 = vld [vmem:[%s5548 + $0x2d0] sm:$0xff]
    %v5640 = vld [vmem:[%s5548 + $0x2d8] sm:$0xff]
    %v5641 = vld [vmem:[%s5548 + $0x2e0] sm:$0xff]
    %v5642 = vld [vmem:[%s5548 + $0x2e8] sm:$0xff]
    %v5643 = vld [vmem:[%s5548 + $0x2f0] sm:$0xff]
    %v5644 = vld [vmem:[%s5548 + $0x2f8] sm:$0xff]
    %v5645 = vld [vmem:[%s5548 + $0x300] sm:$0xff]
    %v5646 = vld [vmem:[%s5548 + $0x308] sm:$0xff]
    %v5649 = vcombine.high %v5546, %v5546
    %v5651 = vunpack.c.l.s4 1983009808
    %v5652 = vunpack.c.0.s8 %v5651
    %v5653 = vlaneseq
    %v5654 = vshrl.u32 %v5653, 7
    %v5655 = vsub.s32 %v5652, %v5654
    %v5656 = vrot.slane %v5546, %v5655
    %v5658 = vunpack.c.l.s4 1983009808
    %v5659 = vunpack.c.0.s8 %v5658
    %v5660 = vlaneseq
    %v5661 = vshrl.u32 %v5660, 7
    %v5662 = vsub.s32 %v5659, %v5661
    %v5663 = vrot.slane %v5649, %v5662
    %v5664 = vcombine.high %v5656, %v5656
    %v5665 = vcombine.high %v5663, %v5663
    %v5666 = vcombine.high %v5547, %v5547
    %v5668 = vunpack.c.l.s4 1983009808
    %v5669 = vunpack.c.0.s8 %v5668
    %v5670 = vlaneseq
    %v5671 = vshrl.u32 %v5670, 7
    %v5672 = vsub.s32 %v5669, %v5671
    %v5673 = vrot.slane %v5547, %v5672
    %v5675 = vunpack.c.l.s4 1983009808
    %v5676 = vunpack.c.0.s8 %v5675
    %v5677 = vlaneseq
    %v5678 = vshrl.u32 %v5677, 7
    %v5679 = vsub.s32 %v5676, %v5678
    %v5680 = vrot.slane %v5666, %v5679
    %v5681 = vcombine.high %v5673, %v5673
    %v5688 = vsel %vm1036, %v5680, 0
    %5690 = vmatprep.subr.mxu0 0.0
    %5691 = vmatpush1.msra.mxu0 %v5549
    %5692 = vmatprep.subr.mxu0 0.0
    %5693 = vmatpush1.msra.mxu0 %v5550
    %5694 = vmatprep.subr.mxu0 0.0
    %5695 = vmatpush1.msra.mxu0 %v5551
    %5696 = vmatprep.subr.mxu0 0.0
    %5697 = vmatpush1.msra.mxu0 %v5552
    %5698 = vmatprep.subr.mxu0 0.0
    %5699 = vmatpush1.msra.mxu0 %v5553
    %5700 = vmatprep.subr.mxu0 0.0
    %5701 = vmatpush1.msra.mxu0 %v5554
    %5702 = vmatprep.subr.mxu0 0.0
    %5703 = vmatpush1.msra.mxu0 %v5555
    %5704 = vmatprep.subr.mxu0 0.0
    %5705 = vmatpush1.msra.mxu0 %v5556
    %5706 = vmatprep.subr.mxu0 0.0
    %5707 = vmatpush1.msra.mxu0 %v5557
    %5708 = vmatprep.subr.mxu0 0.0
    %5709 = vmatpush1.msra.mxu0 %v5558
    %5710 = vmatprep.subr.mxu0 0.0
    %5711 = vmatpush1.msra.mxu0 %v5559
    %5712 = vmatprep.subr.mxu0 0.0
    %5713 = vmatpush1.msra.mxu0 %v5560
    %5714 = vmatprep.subr.mxu0 0.0
    %5715 = vmatpush1.msra.mxu0 %v5561
    %5716 = vmatprep.subr.mxu0 0.0
    %5717 = vmatpush1.msra.mxu0 %v5562
    %5718 = vmatprep.subr.mxu0 0.0
    %5719 = vmatpush1.msra.mxu0 %v5563
    %5720 = vmatprep.subr.mxu0 0.0
    %5721 = vmatpush1.msra.mxu0 %v5564
    %5722 = vmatprep.subr.mxu0 0.0
    %5723 = vmatpush1.msra.mxu0 %v5565
    %5724 = vmatprep.subr.mxu0 0.0
    %5725 = vmatpush1.msra.mxu0 %v5566
    %5726 = vmatprep.subr.mxu0 0.0
    %5727 = vmatpush1.msra.mxu0 %v5567
    %5728 = vmatprep.subr.mxu0 0.0
    %5729 = vmatpush1.msra.mxu0 %v5568
    %5730 = vmatprep.subr.mxu0 0.0
    %5731 = vmatpush1.msra.mxu0 %v5569
    %5732 = vmatprep.subr.mxu0 0.0
    %5733 = vmatpush1.msra.mxu0 %v5570
    %5734 = vmatprep.subr.mxu0 0.0
    %5735 = vmatpush1.msra.mxu0 %v5571
    %5736 = vmatprep.subr.mxu0 0.0
    %5737 = vmatpush1.msra.mxu0 %v5572
    %5738 = vmatprep.subr.mxu0 0.0
    %5739 = vmatpush1.msra.mxu0 %v5573
    %5740 = vmatprep.subr.mxu0 0.0
    %5741 = vmatpush1.msra.mxu0 %v5574
    %5742 = vmatprep.subr.mxu0 0.0
    %5743 = vmatpush1.msra.mxu0 %v5575
    %5744 = vmatprep.subr.mxu0 0.0
    %5745 = vmatpush1.msra.mxu0 %v5576
    %5746 = vmatprep.subr.mxu0 0.0
    %5747 = vmatpush1.msra.mxu0 %v5577
    %5748 = vmatprep.subr.mxu0 0.0
    %5749 = vmatpush1.msra.mxu0 %v5578
    %5750 = vmatprep.subr.mxu0 0.0
    %5751 = vmatpush1.msra.mxu0 %v5579
    %5752 = vmatprep.subr.mxu0 0.0
    %5753 = vmatpush1.msra.mxu0 %v5580
    %5754 = vmatprep.mubr.f32.mxu0 %v5664
    %5755 = vmatmul.mubr.f32.gmra.mrb[0].mxu0 %v5656
    %v5756 = vpop.f32.mrb[0].mxu0
    %v5757 = vadd.f32 0.0, %v5756
    %v5758 = vpop.f32.mrb[0].mxu0
    %5759 = vdwg.mxu0
    %5760 = vmatprep.subr.mxu0 0.0
    %5761 = vmatpush1.msra.mxu0 %v5581
    %5762 = vmatprep.subr.mxu0 0.0
    %5763 = vmatpush1.msra.mxu0 %v5582
    %5764 = vmatprep.subr.mxu0 0.0
    %5765 = vmatpush1.msra.mxu0 %v5583
    %5766 = vmatprep.subr.mxu0 0.0
    %5767 = vmatpush1.msra.mxu0 %v5584
    %5768 = vmatprep.subr.mxu0 0.0
    %5769 = vmatpush1.msra.mxu0 %v5585
    %5770 = vmatprep.subr.mxu0 0.0
    %5771 = vmatpush1.msra.mxu0 %v5586
    %5772 = vmatprep.subr.mxu0 0.0
    %5773 = vmatpush1.msra.mxu0 %v5587
    %5774 = vmatprep.subr.mxu0 0.0
    %5775 = vmatpush1.msra.mxu0 %v5588
    %5776 = vmatprep.subr.mxu0 0.0
    %5777 = vmatpush1.msra.mxu0 %v5589
    %5778 = vmatprep.subr.mxu0 0.0
    %5779 = vmatpush1.msra.mxu0 %v5590
    %5780 = vmatprep.subr.mxu0 0.0
    %5781 = vmatpush1.msra.mxu0 %v5591
    %5782 = vmatprep.subr.mxu0 0.0
    %5783 = vmatpush1.msra.mxu0 %v5592
    %5784 = vmatprep.subr.mxu0 0.0
    %5785 = vmatpush1.msra.mxu0 %v5593
    %5786 = vmatprep.subr.mxu0 0.0
    %5787 = vmatpush1.msra.mxu0 %v5594
    %5788 = vmatprep.subr.mxu0 0.0
    %5789 = vmatpush1.msra.mxu0 %v5595
    %5790 = vmatprep.subr.mxu0 0.0
    %5791 = vmatpush1.msra.mxu0 %v5596
    %5792 = vmatprep.subr.mxu0 0.0
    %5793 = vmatpush1.msra.mxu0 %v5597
    %5794 = vmatprep.subr.mxu0 0.0
    %5795 = vmatpush1.msra.mxu0 %v5598
    %5796 = vmatprep.subr.mxu0 0.0
    %5797 = vmatpush1.msra.mxu0 %v5599
    %5798 = vmatprep.subr.mxu0 0.0
    %5799 = vmatpush1.msra.mxu0 %v5600
    %5800 = vmatprep.subr.mxu0 0.0
    %5801 = vmatpush1.msra.mxu0 %v5601
    %5802 = vmatprep.subr.mxu0 0.0
    %5803 = vmatpush1.msra.mxu0 %v5602
    %5804 = vmatprep.subr.mxu0 0.0
    %5805 = vmatpush1.msra.mxu0 %v5603
    %5806 = vmatprep.subr.mxu0 0.0
    %5807 = vmatpush1.msra.mxu0 %v5604
    %5808 = vmatprep.subr.mxu0 0.0
    %5809 = vmatpush1.msra.mxu0 %v5605
    %5810 = vmatprep.subr.mxu0 0.0
    %5811 = vmatpush1.msra.mxu0 %v5606
    %5812 = vmatprep.subr.mxu0 0.0
    %5813 = vmatpush1.msra.mxu0 %v5607
    %5814 = vmatprep.subr.mxu0 0.0
    %5815 = vmatpush1.msra.mxu0 %v5608
    %5816 = vmatprep.subr.mxu0 0.0
    %5817 = vmatpush1.msra.mxu0 %v5609
    %5818 = vmatprep.subr.mxu0 0.0
    %5819 = vmatpush1.msra.mxu0 %v5610
    %5820 = vmatprep.subr.mxu0 0.0
    %5821 = vmatpush1.msra.mxu0 %v5611
    %5822 = vmatprep.subr.mxu0 0.0
    %5823 = vmatpush1.msra.mxu0 %v5612
    %5824 = vmatprep.mubr.f32.mxu0 %v5665
    %5825 = vmatmul.mubr.f32.gmra.mrb[0].mxu0 %v5663
    %v5826 = vpop.f32.mrb[0].mxu0
    %v5827 = vadd.f32 %v5757, %v5826
    %v5828 = vpop.f32.mrb[0].mxu0
    %5829 = vdwg.mxu0
    %5830 = vmatprep.subr.mxu0 0.0
    %5831 = vmatpush1.msra.mxu0 %v5613
    %5832 = vmatprep.subr.mxu0 0.0
    %5833 = vmatpush1.msra.mxu0 %v5614
    %5834 = vmatprep.subr.mxu0 0.0
    %5835 = vmatpush1.msra.mxu0 %v5615
    %5836 = vmatprep.subr.mxu0 0.0
    %5837 = vmatpush1.msra.mxu0 %v5616
    %5838 = vmatprep.subr.mxu0 0.0
    %5839 = vmatpush1.msra.mxu0 %v5617
    %5840 = vmatprep.subr.mxu0 0.0
    %5841 = vmatpush1.msra.mxu0 %v5618
    %5842 = vmatprep.subr.mxu0 0.0
    %5843 = vmatpush1.msra.mxu0 %v5619
    %5844 = vmatprep.subr.mxu0 0.0
    %5845 = vmatpush1.msra.mxu0 %v5620
    %5846 = vmatprep.subr.mxu0 0.0
    %5847 = vmatpush1.msra.mxu0 %v5621
    %5848 = vmatprep.subr.mxu0 0.0
    %5849 = vmatpush1.msra.mxu0 %v5622
    %5850 = vmatprep.subr.mxu0 0.0
    %5851 = vmatpush1.msra.mxu0 %v5623
    %5852 = vmatprep.subr.mxu0 0.0
    %5853 = vmatpush1.msra.mxu0 %v5624
    %5854 = vmatprep.subr.mxu0 0.0
    %5855 = vmatpush1.msra.mxu0 %v5625
    %5856 = vmatprep.subr.mxu0 0.0
    %5857 = vmatpush1.msra.mxu0 %v5626
    %5858 = vmatprep.subr.mxu0 0.0
    %5859 = vmatpush1.msra.mxu0 %v5627
    %5860 = vmatprep.subr.mxu0 0.0
    %5861 = vmatpush1.msra.mxu0 %v5628
    %5862 = vmatprep.subr.mxu0 0.0
    %5863 = vmatpush1.msra.mxu0 %v5629
    %5864 = vmatprep.subr.mxu0 0.0
    %5865 = vmatpush1.msra.mxu0 %v5630
    %5866 = vmatprep.subr.mxu0 0.0
    %5867 = vmatpush1.msra.mxu0 %v5631
    %5868 = vmatprep.subr.mxu0 0.0
    %5869 = vmatpush1.msra.mxu0 %v5632
    %5870 = vmatprep.subr.mxu0 0.0
    %5871 = vmatpush1.msra.mxu0 %v5633
    %5872 = vmatprep.subr.mxu0 0.0
    %5873 = vmatpush1.msra.mxu0 %v5634
    %5874 = vmatprep.subr.mxu0 0.0
    %5875 = vmatpush1.msra.mxu0 %v5635
    %5876 = vmatprep.subr.mxu0 0.0
    %5877 = vmatpush1.msra.mxu0 %v5636
    %5878 = vmatprep.subr.mxu0 0.0
    %5879 = vmatpush1.msra.mxu0 %v5637
    %5880 = vmatprep.subr.mxu0 0.0
    %5881 = vmatpush1.msra.mxu0 %v5638
    %5882 = vmatprep.subr.mxu0 0.0
    %5883 = vmatpush1.msra.mxu0 %v5639
    %5884 = vmatprep.subr.mxu0 0.0
    %5885 = vmatpush1.msra.mxu0 %v5640
    %5886 = vmatprep.subr.mxu0 0.0
    %5887 = vmatpush1.msra.mxu0 %v5641
    %5888 = vmatprep.subr.mxu0 0.0
    %5889 = vmatpush1.msra.mxu0 %v5642
    %5890 = vmatprep.subr.mxu0 0.0
    %5891 = vmatpush1.msra.mxu0 %v5643
    %5892 = vmatprep.subr.mxu0 0.0
    %5893 = vmatpush1.msra.mxu0 %v5644
    %5894 = vmatprep.mubr.f32.mxu0 %v5681
    %5895 = vmatmul.mubr.f32.gmra.mrb[0].mxu0 %v5673
    %v5896 = vpop.f32.mrb[0].mxu0
    %v5897 = vadd.f32 %v5827, %v5896
    %v5898 = vpop.f32.mrb[0].mxu0
    %5899 = vdwg.mxu0
    %5900 = vmatprep.subr.mxu0 0.0
    %5901 = vmatpush1.msra.mxu0 %v5645
    %5902 = vmatprep.subr.mxu0 0.0
    %5903 = vmatpush1.msra.mxu0 %v5646
    %5904 = vmatprep.subr.mxu0 0.0
    %5905 = vmatpush1.msra.mxu0 0.0
    %5906 = vmatprep.subr.mxu0 0.0
    %5907 = vmatpush1.msra.mxu0 0.0
    %5908 = vmatprep.subr.mxu0 0.0
    %5909 = vmatpush1.msra.mxu0 0.0
    %5910 = vmatprep.subr.mxu0 0.0
    %5911 = vmatpush1.msra.mxu0 0.0
    %5912 = vmatprep.subr.mxu0 0.0
    %5913 = vmatpush1.msra.mxu0 0.0
    %5914 = vmatprep.subr.mxu0 0.0
    %5915 = vmatpush1.msra.mxu0 0.0
    %5916 = vmatprep.subr.mxu0 0.0
    %5917 = vmatpush1.msra.mxu0 0.0
    %5918 = vmatprep.subr.mxu0 0.0
    %5919 = vmatpush1.msra.mxu0 0.0
    %5920 = vmatprep.subr.mxu0 0.0
    %5921 = vmatpush1.msra.mxu0 0.0
    %5922 = vmatprep.subr.mxu0 0.0
    %5923 = vmatpush1.msra.mxu0 0.0
    %5924 = vmatprep.subr.mxu0 0.0
    %5925 = vmatpush1.msra.mxu0 0.0
    %5926 = vmatprep.subr.mxu0 0.0
    %5927 = vmatpush1.msra.mxu0 0.0
    %5928 = vmatprep.subr.mxu0 0.0
    %5929 = vmatpush1.msra.mxu0 0.0
    %5930 = vmatprep.subr.mxu0 0.0
    %5931 = vmatpush1.msra.mxu0 0.0
    %5932 = vmatprep.subr.mxu0 0.0
    %5933 = vmatpush1.msra.mxu0 0.0
    %5934 = vmatprep.subr.mxu0 0.0
    %5935 = vmatpush1.msra.mxu0 0.0
    %5936 = vmatprep.subr.mxu0 0.0
    %5937 = vmatpush1.msra.mxu0 0.0
    %5938 = vmatprep.subr.mxu0 0.0
    %5939 = vmatpush1.msra.mxu0 0.0
    %5940 = vmatprep.subr.mxu0 0.0
    %5941 = vmatpush1.msra.mxu0 0.0
    %5942 = vmatprep.subr.mxu0 0.0
    %5943 = vmatpush1.msra.mxu0 0.0
    %5944 = vmatprep.subr.mxu0 0.0
    %5945 = vmatpush1.msra.mxu0 0.0
    %5946 = vmatprep.subr.mxu0 0.0
    %5947 = vmatpush1.msra.mxu0 0.0
    %5948 = vmatprep.subr.mxu0 0.0
    %5949 = vmatpush1.msra.mxu0 0.0
    %5950 = vmatprep.subr.mxu0 0.0
    %5951 = vmatpush1.msra.mxu0 0.0
    %5952 = vmatprep.subr.mxu0 0.0
    %5953 = vmatpush1.msra.mxu0 0.0
    %5954 = vmatprep.subr.mxu0 0.0
    %5955 = vmatpush1.msra.mxu0 0.0
    %5956 = vmatprep.subr.mxu0 0.0
    %5957 = vmatpush1.msra.mxu0 0.0
    %5958 = vmatprep.subr.mxu0 0.0
    %5959 = vmatpush1.msra.mxu0 0.0
    %5960 = vmatprep.subr.mxu0 0.0
    %5961 = vmatpush1.msra.mxu0 0.0
    %5962 = vmatprep.subr.mxu0 0.0
    %5963 = vmatpush1.msra.mxu0 0.0
    %5964 = vmatprep.mubr.f32.mxu0 0.0
    %5965 = vmatmul.mubr.f32.gmra.mrb[0].mxu0 %v5688
    %v5966 = vpop.f32.mrb[0].mxu0
    %v5967 = vadd.f32 %v5897, %v5966
    %v5968 = vpop.f32.mrb[0].mxu0
    %5969 = vdwg.mxu0
    %v5970 = vadd.f32 %v5489, %v5967
    %s5971 = sld [smem:[#allocation3 + $0x63]]
    %v5972 = vstv %s5971
    %v5973 = vmul.f32 %v5972, %v665
    %v5974 = vmul.f32 %v5972, %v666
    %s5975 = sld [smem:[#allocation3 + $0x64]]
    %v5976 = vstv %s5975
    %v5977 = vmul.f32 %v5976, %v671
    %v5978 = vmul.f32 %v5976, %v672
    %v5979 = vadd.f32 %v5973, %v5977
    %v5980 = vadd.f32 %v5974, %v5978
    %s5981 = sld [smem:[#allocation3 + $0x65]]
    %v5982 = vstv %s5981
    %v5983 = vmul.f32 %v5982, %v679
    %v5984 = vmul.f32 %v5982, %v680
    %v5985 = vadd.f32 %v5979, %v5983
    %v5986 = vadd.f32 %v5980, %v5984
    %s5987 = sld [smem:[#allocation3 + $0x66]]
    %v5988 = vstv %s5987
    %v5989 = vmul.f32 %v5988, %v687
    %v5990 = vmul.f32 %v5988, %v688
    %v5991 = vadd.f32 %v5985, %v5989
    %v5992 = vadd.f32 %v5986, %v5990
    %s5993 = sld [smem:[#allocation3 + $0x67]]
    %v5994 = vstv %s5993
    %v5995 = vmul.f32 %v5994, %v695
    %v5996 = vmul.f32 %v5994, %v696
    %v5997 = vadd.f32 %v5991, %v5995
    %v5998 = vadd.f32 %v5992, %v5996
    %s5999 = sld [smem:[#allocation3 + $0x68]]
    %v6000 = vstv %s5999
    %v6001 = vmul.f32 %v6000, %v703
    %v6002 = vmul.f32 %v6000, %v704
    %v6003 = vadd.f32 %v5997, %v6001
    %v6004 = vadd.f32 %v5998, %v6002
    %s6005 = sld [smem:[#allocation3 + $0x69]]
    %v6006 = vstv %s6005
    %v6007 = vmul.f32 %v6006, %v711
    %v6008 = vmul.f32 %v6006, %v712
    %v6009 = vadd.f32 %v6003, %v6007
    %v6010 = vadd.f32 %v6004, %v6008
    %s6011 = sld [smem:[#allocation3 + $0x6a]]
    %v6012 = vstv %s6011
    %v6013 = vmul.f32 %v6012, %v719
    %v6014 = vmul.f32 %v6012, %v720
    %v6015 = vadd.f32 %v6009, %v6013
    %v6016 = vadd.f32 %v6010, %v6014
    %s6017 = sld [smem:[#allocation3 + $0x6b]]
    %v6018 = vstv %s6017
    %v6019 = vmul.f32 %v6018, %v727
    %v6020 = vmul.f32 %v6018, %v728
    %v6021 = vadd.f32 %v6015, %v6019
    %v6022 = vadd.f32 %v6016, %v6020
    %s6023 = sld [smem:[#allocation6 + $0xb]]
    %v6024 = vstv %s6023
    %v6025 = vadd.f32 %v6021, %v6024
    %v6026 = vadd.f32 %v6022, %v6024
    %v6027 = vmax.f32 %v6025, 0.0
    %v6028 = vmax.f32 %v6026, 0.0
    %s6029 = scalar_lea.vmem %s4, 8624
    %v6030 = vld [vmem:[%s6029] sm:$0xff]
    %v6031 = vld [vmem:[%s6029 + $0x8] sm:$0xff]
    %v6032 = vld [vmem:[%s6029 + $0x10] sm:$0xff]
    %v6033 = vld [vmem:[%s6029 + $0x18] sm:$0xff]
    %v6034 = vld [vmem:[%s6029 + $0x20] sm:$0xff]
    %v6035 = vld [vmem:[%s6029 + $0x28] sm:$0xff]
    %v6036 = vld [vmem:[%s6029 + $0x30] sm:$0xff]
    %v6037 = vld [vmem:[%s6029 + $0x38] sm:$0xff]
    %v6038 = vld [vmem:[%s6029 + $0x40] sm:$0xff]
    %v6039 = vld [vmem:[%s6029 + $0x48] sm:$0xff]
    %v6040 = vld [vmem:[%s6029 + $0x50] sm:$0xff]
    %v6041 = vld [vmem:[%s6029 + $0x58] sm:$0xff]
    %v6042 = vld [vmem:[%s6029 + $0x60] sm:$0xff]
    %v6043 = vld [vmem:[%s6029 + $0x68] sm:$0xff]
    %v6044 = vld [vmem:[%s6029 + $0x70] sm:$0xff]
    %v6045 = vld [vmem:[%s6029 + $0x78] sm:$0xff]
    %v6046 = vld [vmem:[%s6029 + $0x80] sm:$0xff]
    %v6047 = vld [vmem:[%s6029 + $0x88] sm:$0xff]
    %v6048 = vld [vmem:[%s6029 + $0x90] sm:$0xff]
    %v6049 = vld [vmem:[%s6029 + $0x98] sm:$0xff]
    %v6050 = vld [vmem:[%s6029 + $0xa0] sm:$0xff]
    %v6051 = vld [vmem:[%s6029 + $0xa8] sm:$0xff]
    %v6052 = vld [vmem:[%s6029 + $0xb0] sm:$0xff]
    %v6053 = vld [vmem:[%s6029 + $0xb8] sm:$0xff]
    %v6054 = vld [vmem:[%s6029 + $0xc0] sm:$0xff]
    %v6055 = vld [vmem:[%s6029 + $0xc8] sm:$0xff]
    %v6056 = vld [vmem:[%s6029 + $0xd0] sm:$0xff]
    %v6057 = vld [vmem:[%s6029 + $0xd8] sm:$0xff]
    %v6058 = vld [vmem:[%s6029 + $0xe0] sm:$0xff]
    %v6059 = vld [vmem:[%s6029 + $0xe8] sm:$0xff]
    %v6060 = vld [vmem:[%s6029 + $0xf0] sm:$0xff]
    %v6061 = vld [vmem:[%s6029 + $0xf8] sm:$0xff]
    %v6062 = vld [vmem:[%s6029 + $0x100] sm:$0xff]
    %v6063 = vld [vmem:[%s6029 + $0x108] sm:$0xff]
    %v6064 = vld [vmem:[%s6029 + $0x110] sm:$0xff]
    %v6065 = vld [vmem:[%s6029 + $0x118] sm:$0xff]
    %v6066 = vld [vmem:[%s6029 + $0x120] sm:$0xff]
    %v6067 = vld [vmem:[%s6029 + $0x128] sm:$0xff]
    %v6068 = vld [vmem:[%s6029 + $0x130] sm:$0xff]
    %v6069 = vld [vmem:[%s6029 + $0x138] sm:$0xff]
    %v6070 = vld [vmem:[%s6029 + $0x140] sm:$0xff]
    %v6071 = vld [vmem:[%s6029 + $0x148] sm:$0xff]
    %v6072 = vld [vmem:[%s6029 + $0x150] sm:$0xff]
    %v6073 = vld [vmem:[%s6029 + $0x158] sm:$0xff]
    %v6074 = vld [vmem:[%s6029 + $0x160] sm:$0xff]
    %v6075 = vld [vmem:[%s6029 + $0x168] sm:$0xff]
    %v6076 = vld [vmem:[%s6029 + $0x170] sm:$0xff]
    %v6077 = vld [vmem:[%s6029 + $0x178] sm:$0xff]
    %v6078 = vld [vmem:[%s6029 + $0x180] sm:$0xff]
    %v6079 = vld [vmem:[%s6029 + $0x188] sm:$0xff]
    %v6080 = vld [vmem:[%s6029 + $0x190] sm:$0xff]
    %v6081 = vld [vmem:[%s6029 + $0x198] sm:$0xff]
    %v6082 = vld [vmem:[%s6029 + $0x1a0] sm:$0xff]
    %v6083 = vld [vmem:[%s6029 + $0x1a8] sm:$0xff]
    %v6084 = vld [vmem:[%s6029 + $0x1b0] sm:$0xff]
    %v6085 = vld [vmem:[%s6029 + $0x1b8] sm:$0xff]
    %v6086 = vld [vmem:[%s6029 + $0x1c0] sm:$0xff]
    %v6087 = vld [vmem:[%s6029 + $0x1c8] sm:$0xff]
    %v6088 = vld [vmem:[%s6029 + $0x1d0] sm:$0xff]
    %v6089 = vld [vmem:[%s6029 + $0x1d8] sm:$0xff]
    %v6090 = vld [vmem:[%s6029 + $0x1e0] sm:$0xff]
    %v6091 = vld [vmem:[%s6029 + $0x1e8] sm:$0xff]
    %v6092 = vld [vmem:[%s6029 + $0x1f0] sm:$0xff]
    %v6093 = vld [vmem:[%s6029 + $0x1f8] sm:$0xff]
    %v6094 = vld [vmem:[%s6029 + $0x200] sm:$0xff]
    %v6095 = vld [vmem:[%s6029 + $0x208] sm:$0xff]
    %v6096 = vld [vmem:[%s6029 + $0x210] sm:$0xff]
    %v6097 = vld [vmem:[%s6029 + $0x218] sm:$0xff]
    %v6098 = vld [vmem:[%s6029 + $0x220] sm:$0xff]
    %v6099 = vld [vmem:[%s6029 + $0x228] sm:$0xff]
    %v6100 = vld [vmem:[%s6029 + $0x230] sm:$0xff]
    %v6101 = vld [vmem:[%s6029 + $0x238] sm:$0xff]
    %v6102 = vld [vmem:[%s6029 + $0x240] sm:$0xff]
    %v6103 = vld [vmem:[%s6029 + $0x248] sm:$0xff]
    %v6104 = vld [vmem:[%s6029 + $0x250] sm:$0xff]
    %v6105 = vld [vmem:[%s6029 + $0x258] sm:$0xff]
    %v6106 = vld [vmem:[%s6029 + $0x260] sm:$0xff]
    %v6107 = vld [vmem:[%s6029 + $0x268] sm:$0xff]
    %v6108 = vld [vmem:[%s6029 + $0x270] sm:$0xff]
    %v6109 = vld [vmem:[%s6029 + $0x278] sm:$0xff]
    %v6110 = vld [vmem:[%s6029 + $0x280] sm:$0xff]
    %v6111 = vld [vmem:[%s6029 + $0x288] sm:$0xff]
    %v6112 = vld [vmem:[%s6029 + $0x290] sm:$0xff]
    %v6113 = vld [vmem:[%s6029 + $0x298] sm:$0xff]
    %v6114 = vld [vmem:[%s6029 + $0x2a0] sm:$0xff]
    %v6115 = vld [vmem:[%s6029 + $0x2a8] sm:$0xff]
    %v6116 = vld [vmem:[%s6029 + $0x2b0] sm:$0xff]
    %v6117 = vld [vmem:[%s6029 + $0x2b8] sm:$0xff]
    %v6118 = vld [vmem:[%s6029 + $0x2c0] sm:$0xff]
    %v6119 = vld [vmem:[%s6029 + $0x2c8] sm:$0xff]
    %v6120 = vld [vmem:[%s6029 + $0x2d0] sm:$0xff]
    %v6121 = vld [vmem:[%s6029 + $0x2d8] sm:$0xff]
    %v6122 = vld [vmem:[%s6029 + $0x2e0] sm:$0xff]
    %v6123 = vld [vmem:[%s6029 + $0x2e8] sm:$0xff]
    %v6124 = vld [vmem:[%s6029 + $0x2f0] sm:$0xff]
    %v6125 = vld [vmem:[%s6029 + $0x2f8] sm:$0xff]
    %v6126 = vld [vmem:[%s6029 + $0x300] sm:$0xff]
    %v6127 = vld [vmem:[%s6029 + $0x308] sm:$0xff]
    %v6130 = vcombine.high %v6027, %v6027
    %v6132 = vunpack.c.l.s4 1983009808
    %v6133 = vunpack.c.0.s8 %v6132
    %v6134 = vlaneseq
    %v6135 = vshrl.u32 %v6134, 7
    %v6136 = vsub.s32 %v6133, %v6135
    %v6137 = vrot.slane %v6027, %v6136
    %v6139 = vunpack.c.l.s4 1983009808
    %v6140 = vunpack.c.0.s8 %v6139
    %v6141 = vlaneseq
    %v6142 = vshrl.u32 %v6141, 7
    %v6143 = vsub.s32 %v6140, %v6142
    %v6144 = vrot.slane %v6130, %v6143
    %v6145 = vcombine.high %v6137, %v6137
    %v6146 = vcombine.high %v6144, %v6144
    %v6147 = vcombine.high %v6028, %v6028
    %v6149 = vunpack.c.l.s4 1983009808
    %v6150 = vunpack.c.0.s8 %v6149
    %v6151 = vlaneseq
    %v6152 = vshrl.u32 %v6151, 7
    %v6153 = vsub.s32 %v6150, %v6152
    %v6154 = vrot.slane %v6028, %v6153
    %v6156 = vunpack.c.l.s4 1983009808
    %v6157 = vunpack.c.0.s8 %v6156
    %v6158 = vlaneseq
    %v6159 = vshrl.u32 %v6158, 7
    %v6160 = vsub.s32 %v6157, %v6159
    %v6161 = vrot.slane %v6147, %v6160
    %v6162 = vcombine.high %v6154, %v6154
    %v6169 = vsel %vm1036, %v6161, 0
    %6171 = vmatprep.subr.mxu0 0.0
    %6172 = vmatpush1.msra.mxu0 %v6030
    %6173 = vmatprep.subr.mxu0 0.0
    %6174 = vmatpush1.msra.mxu0 %v6031
    %6175 = vmatprep.subr.mxu0 0.0
    %6176 = vmatpush1.msra.mxu0 %v6032
    %6177 = vmatprep.subr.mxu0 0.0
    %6178 = vmatpush1.msra.mxu0 %v6033
    %6179 = vmatprep.subr.mxu0 0.0
    %6180 = vmatpush1.msra.mxu0 %v6034
    %6181 = vmatprep.subr.mxu0 0.0
    %6182 = vmatpush1.msra.mxu0 %v6035
    %6183 = vmatprep.subr.mxu0 0.0
    %6184 = vmatpush1.msra.mxu0 %v6036
    %6185 = vmatprep.subr.mxu0 0.0
    %6186 = vmatpush1.msra.mxu0 %v6037
    %6187 = vmatprep.subr.mxu0 0.0
    %6188 = vmatpush1.msra.mxu0 %v6038
    %6189 = vmatprep.subr.mxu0 0.0
    %6190 = vmatpush1.msra.mxu0 %v6039
    %6191 = vmatprep.subr.mxu0 0.0
    %6192 = vmatpush1.msra.mxu0 %v6040
    %6193 = vmatprep.subr.mxu0 0.0
    %6194 = vmatpush1.msra.mxu0 %v6041
    %6195 = vmatprep.subr.mxu0 0.0
    %6196 = vmatpush1.msra.mxu0 %v6042
    %6197 = vmatprep.subr.mxu0 0.0
    %6198 = vmatpush1.msra.mxu0 %v6043
    %6199 = vmatprep.subr.mxu0 0.0
    %6200 = vmatpush1.msra.mxu0 %v6044
    %6201 = vmatprep.subr.mxu0 0.0
    %6202 = vmatpush1.msra.mxu0 %v6045
    %6203 = vmatprep.subr.mxu0 0.0
    %6204 = vmatpush1.msra.mxu0 %v6046
    %6205 = vmatprep.subr.mxu0 0.0
    %6206 = vmatpush1.msra.mxu0 %v6047
    %6207 = vmatprep.subr.mxu0 0.0
    %6208 = vmatpush1.msra.mxu0 %v6048
    %6209 = vmatprep.subr.mxu0 0.0
    %6210 = vmatpush1.msra.mxu0 %v6049
    %6211 = vmatprep.subr.mxu0 0.0
    %6212 = vmatpush1.msra.mxu0 %v6050
    %6213 = vmatprep.subr.mxu0 0.0
    %6214 = vmatpush1.msra.mxu0 %v6051
    %6215 = vmatprep.subr.mxu0 0.0
    %6216 = vmatpush1.msra.mxu0 %v6052
    %6217 = vmatprep.subr.mxu0 0.0
    %6218 = vmatpush1.msra.mxu0 %v6053
    %6219 = vmatprep.subr.mxu0 0.0
    %6220 = vmatpush1.msra.mxu0 %v6054
    %6221 = vmatprep.subr.mxu0 0.0
    %6222 = vmatpush1.msra.mxu0 %v6055
    %6223 = vmatprep.subr.mxu0 0.0
    %6224 = vmatpush1.msra.mxu0 %v6056
    %6225 = vmatprep.subr.mxu0 0.0
    %6226 = vmatpush1.msra.mxu0 %v6057
    %6227 = vmatprep.subr.mxu0 0.0
    %6228 = vmatpush1.msra.mxu0 %v6058
    %6229 = vmatprep.subr.mxu0 0.0
    %6230 = vmatpush1.msra.mxu0 %v6059
    %6231 = vmatprep.subr.mxu0 0.0
    %6232 = vmatpush1.msra.mxu0 %v6060
    %6233 = vmatprep.subr.mxu0 0.0
    %6234 = vmatpush1.msra.mxu0 %v6061
    %6235 = vmatprep.mubr.f32.mxu0 %v6145
    %6236 = vmatmul.mubr.f32.gmra.mrb[0].mxu0 %v6137
    %v6237 = vpop.f32.mrb[0].mxu0
    %v6238 = vadd.f32 0.0, %v6237
    %v6239 = vpop.f32.mrb[0].mxu0
    %6240 = vdwg.mxu0
    %6241 = vmatprep.subr.mxu0 0.0
    %6242 = vmatpush1.msra.mxu0 %v6062
    %6243 = vmatprep.subr.mxu0 0.0
    %6244 = vmatpush1.msra.mxu0 %v6063
    %6245 = vmatprep.subr.mxu0 0.0
    %6246 = vmatpush1.msra.mxu0 %v6064
    %6247 = vmatprep.subr.mxu0 0.0
    %6248 = vmatpush1.msra.mxu0 %v6065
    %6249 = vmatprep.subr.mxu0 0.0
    %6250 = vmatpush1.msra.mxu0 %v6066
    %6251 = vmatprep.subr.mxu0 0.0
    %6252 = vmatpush1.msra.mxu0 %v6067
    %6253 = vmatprep.subr.mxu0 0.0
    %6254 = vmatpush1.msra.mxu0 %v6068
    %6255 = vmatprep.subr.mxu0 0.0
    %6256 = vmatpush1.msra.mxu0 %v6069
    %6257 = vmatprep.subr.mxu0 0.0
    %6258 = vmatpush1.msra.mxu0 %v6070
    %6259 = vmatprep.subr.mxu0 0.0
    %6260 = vmatpush1.msra.mxu0 %v6071
    %6261 = vmatprep.subr.mxu0 0.0
    %6262 = vmatpush1.msra.mxu0 %v6072
    %6263 = vmatprep.subr.mxu0 0.0
    %6264 = vmatpush1.msra.mxu0 %v6073
    %6265 = vmatprep.subr.mxu0 0.0
    %6266 = vmatpush1.msra.mxu0 %v6074
    %6267 = vmatprep.subr.mxu0 0.0
    %6268 = vmatpush1.msra.mxu0 %v6075
    %6269 = vmatprep.subr.mxu0 0.0
    %6270 = vmatpush1.msra.mxu0 %v6076
    %6271 = vmatprep.subr.mxu0 0.0
    %6272 = vmatpush1.msra.mxu0 %v6077
    %6273 = vmatprep.subr.mxu0 0.0
    %6274 = vmatpush1.msra.mxu0 %v6078
    %6275 = vmatprep.subr.mxu0 0.0
    %6276 = vmatpush1.msra.mxu0 %v6079
    %6277 = vmatprep.subr.mxu0 0.0
    %6278 = vmatpush1.msra.mxu0 %v6080
    %6279 = vmatprep.subr.mxu0 0.0
    %6280 = vmatpush1.msra.mxu0 %v6081
    %6281 = vmatprep.subr.mxu0 0.0
    %6282 = vmatpush1.msra.mxu0 %v6082
    %6283 = vmatprep.subr.mxu0 0.0
    %6284 = vmatpush1.msra.mxu0 %v6083
    %6285 = vmatprep.subr.mxu0 0.0
    %6286 = vmatpush1.msra.mxu0 %v6084
    %6287 = vmatprep.subr.mxu0 0.0
    %6288 = vmatpush1.msra.mxu0 %v6085
    %6289 = vmatprep.subr.mxu0 0.0
    %6290 = vmatpush1.msra.mxu0 %v6086
    %6291 = vmatprep.subr.mxu0 0.0
    %6292 = vmatpush1.msra.mxu0 %v6087
    %6293 = vmatprep.subr.mxu0 0.0
    %6294 = vmatpush1.msra.mxu0 %v6088
    %6295 = vmatprep.subr.mxu0 0.0
    %6296 = vmatpush1.msra.mxu0 %v6089
    %6297 = vmatprep.subr.mxu0 0.0
    %6298 = vmatpush1.msra.mxu0 %v6090
    %6299 = vmatprep.subr.mxu0 0.0
    %6300 = vmatpush1.msra.mxu0 %v6091
    %6301 = vmatprep.subr.mxu0 0.0
    %6302 = vmatpush1.msra.mxu0 %v6092
    %6303 = vmatprep.subr.mxu0 0.0
    %6304 = vmatpush1.msra.mxu0 %v6093
    %6305 = vmatprep.mubr.f32.mxu0 %v6146
    %6306 = vmatmul.mubr.f32.gmra.mrb[0].mxu0 %v6144
    %v6307 = vpop.f32.mrb[0].mxu0
    %v6308 = vadd.f32 %v6238, %v6307
    %v6309 = vpop.f32.mrb[0].mxu0
    %6310 = vdwg.mxu0
    %6311 = vmatprep.subr.mxu0 0.0
    %6312 = vmatpush1.msra.mxu0 %v6094
    %6313 = vmatprep.subr.mxu0 0.0
    %6314 = vmatpush1.msra.mxu0 %v6095
    %6315 = vmatprep.subr.mxu0 0.0
    %6316 = vmatpush1.msra.mxu0 %v6096
    %6317 = vmatprep.subr.mxu0 0.0
    %6318 = vmatpush1.msra.mxu0 %v6097
    %6319 = vmatprep.subr.mxu0 0.0
    %6320 = vmatpush1.msra.mxu0 %v6098
    %6321 = vmatprep.subr.mxu0 0.0
    %6322 = vmatpush1.msra.mxu0 %v6099
    %6323 = vmatprep.subr.mxu0 0.0
    %6324 = vmatpush1.msra.mxu0 %v6100
    %6325 = vmatprep.subr.mxu0 0.0
    %6326 = vmatpush1.msra.mxu0 %v6101
    %6327 = vmatprep.subr.mxu0 0.0
    %6328 = vmatpush1.msra.mxu0 %v6102
    %6329 = vmatprep.subr.mxu0 0.0
    %6330 = vmatpush1.msra.mxu0 %v6103
    %6331 = vmatprep.subr.mxu0 0.0
    %6332 = vmatpush1.msra.mxu0 %v6104
    %6333 = vmatprep.subr.mxu0 0.0
    %6334 = vmatpush1.msra.mxu0 %v6105
    %6335 = vmatprep.subr.mxu0 0.0
    %6336 = vmatpush1.msra.mxu0 %v6106
    %6337 = vmatprep.subr.mxu0 0.0
    %6338 = vmatpush1.msra.mxu0 %v6107
    %6339 = vmatprep.subr.mxu0 0.0
    %6340 = vmatpush1.msra.mxu0 %v6108
    %6341 = vmatprep.subr.mxu0 0.0
    %6342 = vmatpush1.msra.mxu0 %v6109
    %6343 = vmatprep.subr.mxu0 0.0
    %6344 = vmatpush1.msra.mxu0 %v6110
    %6345 = vmatprep.subr.mxu0 0.0
    %6346 = vmatpush1.msra.mxu0 %v6111
    %6347 = vmatprep.subr.mxu0 0.0
    %6348 = vmatpush1.msra.mxu0 %v6112
    %6349 = vmatprep.subr.mxu0 0.0
    %6350 = vmatpush1.msra.mxu0 %v6113
    %6351 = vmatprep.subr.mxu0 0.0
    %6352 = vmatpush1.msra.mxu0 %v6114
    %6353 = vmatprep.subr.mxu0 0.0
    %6354 = vmatpush1.msra.mxu0 %v6115
    %6355 = vmatprep.subr.mxu0 0.0
    %6356 = vmatpush1.msra.mxu0 %v6116
    %6357 = vmatprep.subr.mxu0 0.0
    %6358 = vmatpush1.msra.mxu0 %v6117
    %6359 = vmatprep.subr.mxu0 0.0
    %6360 = vmatpush1.msra.mxu0 %v6118
    %6361 = vmatprep.subr.mxu0 0.0
    %6362 = vmatpush1.msra.mxu0 %v6119
    %6363 = vmatprep.subr.mxu0 0.0
    %6364 = vmatpush1.msra.mxu0 %v6120
    %6365 = vmatprep.subr.mxu0 0.0
    %6366 = vmatpush1.msra.mxu0 %v6121
    %6367 = vmatprep.subr.mxu0 0.0
    %6368 = vmatpush1.msra.mxu0 %v6122
    %6369 = vmatprep.subr.mxu0 0.0
    %6370 = vmatpush1.msra.mxu0 %v6123
    %6371 = vmatprep.subr.mxu0 0.0
    %6372 = vmatpush1.msra.mxu0 %v6124
    %6373 = vmatprep.subr.mxu0 0.0
    %6374 = vmatpush1.msra.mxu0 %v6125
    %6375 = vmatprep.mubr.f32.mxu0 %v6162
    %6376 = vmatmul.mubr.f32.gmra.mrb[0].mxu0 %v6154
    %v6377 = vpop.f32.mrb[0].mxu0
    %v6378 = vadd.f32 %v6308, %v6377
    %v6379 = vpop.f32.mrb[0].mxu0
    %6380 = vdwg.mxu0
    %6381 = vmatprep.subr.mxu0 0.0
    %6382 = vmatpush1.msra.mxu0 %v6126
    %6383 = vmatprep.subr.mxu0 0.0
    %6384 = vmatpush1.msra.mxu0 %v6127
    %6385 = vmatprep.subr.mxu0 0.0
    %6386 = vmatpush1.msra.mxu0 0.0
    %6387 = vmatprep.subr.mxu0 0.0
    %6388 = vmatpush1.msra.mxu0 0.0
    %6389 = vmatprep.subr.mxu0 0.0
    %6390 = vmatpush1.msra.mxu0 0.0
    %6391 = vmatprep.subr.mxu0 0.0
    %6392 = vmatpush1.msra.mxu0 0.0
    %6393 = vmatprep.subr.mxu0 0.0
    %6394 = vmatpush1.msra.mxu0 0.0
    %6395 = vmatprep.subr.mxu0 0.0
    %6396 = vmatpush1.msra.mxu0 0.0
    %6397 = vmatprep.subr.mxu0 0.0
    %6398 = vmatpush1.msra.mxu0 0.0
    %6399 = vmatprep.subr.mxu0 0.0
    %6400 = vmatpush1.msra.mxu0 0.0
    %6401 = vmatprep.subr.mxu0 0.0
    %6402 = vmatpush1.msra.mxu0 0.0
    %6403 = vmatprep.subr.mxu0 0.0
    %6404 = vmatpush1.msra.mxu0 0.0
    %6405 = vmatprep.subr.mxu0 0.0
    %6406 = vmatpush1.msra.mxu0 0.0
    %6407 = vmatprep.subr.mxu0 0.0
    %6408 = vmatpush1.msra.mxu0 0.0
    %6409 = vmatprep.subr.mxu0 0.0
    %6410 = vmatpush1.msra.mxu0 0.0
    %6411 = vmatprep.subr.mxu0 0.0
    %6412 = vmatpush1.msra.mxu0 0.0
    %6413 = vmatprep.subr.mxu0 0.0
    %6414 = vmatpush1.msra.mxu0 0.0
    %6415 = vmatprep.subr.mxu0 0.0
    %6416 = vmatpush1.msra.mxu0 0.0
    %6417 = vmatprep.subr.mxu0 0.0
    %6418 = vmatpush1.msra.mxu0 0.0
    %6419 = vmatprep.subr.mxu0 0.0
    %6420 = vmatpush1.msra.mxu0 0.0
    %6421 = vmatprep.subr.mxu0 0.0
    %6422 = vmatpush1.msra.mxu0 0.0
    %6423 = vmatprep.subr.mxu0 0.0
    %6424 = vmatpush1.msra.mxu0 0.0
    %6425 = vmatprep.subr.mxu0 0.0
    %6426 = vmatpush1.msra.mxu0 0.0
    %6427 = vmatprep.subr.mxu0 0.0
    %6428 = vmatpush1.msra.mxu0 0.0
    %6429 = vmatprep.subr.mxu0 0.0
    %6430 = vmatpush1.msra.mxu0 0.0
    %6431 = vmatprep.subr.mxu0 0.0
    %6432 = vmatpush1.msra.mxu0 0.0
    %6433 = vmatprep.subr.mxu0 0.0
    %6434 = vmatpush1.msra.mxu0 0.0
    %6435 = vmatprep.subr.mxu0 0.0
    %6436 = vmatpush1.msra.mxu0 0.0
    %6437 = vmatprep.subr.mxu0 0.0
    %6438 = vmatpush1.msra.mxu0 0.0
    %6439 = vmatprep.subr.mxu0 0.0
    %6440 = vmatpush1.msra.mxu0 0.0
    %6441 = vmatprep.subr.mxu0 0.0
    %6442 = vmatpush1.msra.mxu0 0.0
    %6443 = vmatprep.subr.mxu0 0.0
    %6444 = vmatpush1.msra.mxu0 0.0
    %6445 = vmatprep.mubr.f32.mxu0 0.0
    %6446 = vmatmul.mubr.f32.gmra.mrb[0].mxu0 %v6169
    %v6447 = vpop.f32.mrb[0].mxu0
    %v6448 = vadd.f32 %v6378, %v6447
    %v6449 = vpop.f32.mrb[0].mxu0
    %6450 = vdwg.mxu0
    %v6451 = vadd.f32 %v5970, %v6448
    %s6452 = sld [smem:[#allocation3 + $0x6c]]
    %v6453 = vstv %s6452
    %v6454 = vmul.f32 %v6453, %v665
    %v6455 = vmul.f32 %v6453, %v666
    %s6456 = sld [smem:[#allocation3 + $0x6d]]
    %v6457 = vstv %s6456
    %v6458 = vmul.f32 %v6457, %v671
    %v6459 = vmul.f32 %v6457, %v672
    %v6460 = vadd.f32 %v6454, %v6458
    %v6461 = vadd.f32 %v6455, %v6459
    %s6462 = sld [smem:[#allocation3 + $0x6e]]
    %v6463 = vstv %s6462
    %v6464 = vmul.f32 %v6463, %v679
    %v6465 = vmul.f32 %v6463, %v680
    %v6466 = vadd.f32 %v6460, %v6464
    %v6467 = vadd.f32 %v6461, %v6465
    %s6468 = sld [smem:[#allocation3 + $0x6f]]
    %v6469 = vstv %s6468
    %v6470 = vmul.f32 %v6469, %v687
    %v6471 = vmul.f32 %v6469, %v688
    %v6472 = vadd.f32 %v6466, %v6470
    %v6473 = vadd.f32 %v6467, %v6471
    %s6474 = sld [smem:[#allocation3 + $0x70]]
    %v6475 = vstv %s6474
    %v6476 = vmul.f32 %v6475, %v695
    %v6477 = vmul.f32 %v6475, %v696
    %v6478 = vadd.f32 %v6472, %v6476
    %v6479 = vadd.f32 %v6473, %v6477
    %s6480 = sld [smem:[#allocation3 + $0x71]]
    %v6481 = vstv %s6480
    %v6482 = vmul.f32 %v6481, %v703
    %v6483 = vmul.f32 %v6481, %v704
    %v6484 = vadd.f32 %v6478, %v6482
    %v6485 = vadd.f32 %v6479, %v6483
    %s6486 = sld [smem:[#allocation3 + $0x72]]
    %v6487 = vstv %s6486
    %v6488 = vmul.f32 %v6487, %v711
    %v6489 = vmul.f32 %v6487, %v712
    %v6490 = vadd.f32 %v6484, %v6488
    %v6491 = vadd.f32 %v6485, %v6489
    %s6492 = sld [smem:[#allocation3 + $0x73]]
    %v6493 = vstv %s6492
    %v6494 = vmul.f32 %v6493, %v719
    %v6495 = vmul.f32 %v6493, %v720
    %v6496 = vadd.f32 %v6490, %v6494
    %v6497 = vadd.f32 %v6491, %v6495
    %s6498 = sld [smem:[#allocation3 + $0x74]]
    %v6499 = vstv %s6498
    %v6500 = vmul.f32 %v6499, %v727
    %v6501 = vmul.f32 %v6499, %v728
    %v6502 = vadd.f32 %v6496, %v6500
    %v6503 = vadd.f32 %v6497, %v6501
    %s6504 = sld [smem:[#allocation6 + $0xc]]
    %v6505 = vstv %s6504
    %v6506 = vadd.f32 %v6502, %v6505
    %v6507 = vadd.f32 %v6503, %v6505
    %v6508 = vmax.f32 %v6506, 0.0
    %v6509 = vmax.f32 %v6507, 0.0
    %s6510 = scalar_lea.vmem %s4, 9408
    %v6511 = vld [vmem:[%s6510] sm:$0xff]
    %v6512 = vld [vmem:[%s6510 + $0x8] sm:$0xff]
    %v6513 = vld [vmem:[%s6510 + $0x10] sm:$0xff]
    %v6514 = vld [vmem:[%s6510 + $0x18] sm:$0xff]
    %v6515 = vld [vmem:[%s6510 + $0x20] sm:$0xff]
    %v6516 = vld [vmem:[%s6510 + $0x28] sm:$0xff]
    %v6517 = vld [vmem:[%s6510 + $0x30] sm:$0xff]
    %v6518 = vld [vmem:[%s6510 + $0x38] sm:$0xff]
    %v6519 = vld [vmem:[%s6510 + $0x40] sm:$0xff]
    %v6520 = vld [vmem:[%s6510 + $0x48] sm:$0xff]
    %v6521 = vld [vmem:[%s6510 + $0x50] sm:$0xff]
    %v6522 = vld [vmem:[%s6510 + $0x58] sm:$0xff]
    %v6523 = vld [vmem:[%s6510 + $0x60] sm:$0xff]
    %v6524 = vld [vmem:[%s6510 + $0x68] sm:$0xff]
    %v6525 = vld [vmem:[%s6510 + $0x70] sm:$0xff]
    %v6526 = vld [vmem:[%s6510 + $0x78] sm:$0xff]
    %v6527 = vld [vmem:[%s6510 + $0x80] sm:$0xff]
    %v6528 = vld [vmem:[%s6510 + $0x88] sm:$0xff]
    %v6529 = vld [vmem:[%s6510 + $0x90] sm:$0xff]
    %v6530 = vld [vmem:[%s6510 + $0x98] sm:$0xff]
    %v6531 = vld [vmem:[%s6510 + $0xa0] sm:$0xff]
    %v6532 = vld [vmem:[%s6510 + $0xa8] sm:$0xff]
    %v6533 = vld [vmem:[%s6510 + $0xb0] sm:$0xff]
    %v6534 = vld [vmem:[%s6510 + $0xb8] sm:$0xff]
    %v6535 = vld [vmem:[%s6510 + $0xc0] sm:$0xff]
    %v6536 = vld [vmem:[%s6510 + $0xc8] sm:$0xff]
    %v6537 = vld [vmem:[%s6510 + $0xd0] sm:$0xff]
    %v6538 = vld [vmem:[%s6510 + $0xd8] sm:$0xff]
    %v6539 = vld [vmem:[%s6510 + $0xe0] sm:$0xff]
    %v6540 = vld [vmem:[%s6510 + $0xe8] sm:$0xff]
    %v6541 = vld [vmem:[%s6510 + $0xf0] sm:$0xff]
    %v6542 = vld [vmem:[%s6510 + $0xf8] sm:$0xff]
    %v6543 = vld [vmem:[%s6510 + $0x100] sm:$0xff]
    %v6544 = vld [vmem:[%s6510 + $0x108] sm:$0xff]
    %v6545 = vld [vmem:[%s6510 + $0x110] sm:$0xff]
    %v6546 = vld [vmem:[%s6510 + $0x118] sm:$0xff]
    %v6547 = vld [vmem:[%s6510 + $0x120] sm:$0xff]
    %v6548 = vld [vmem:[%s6510 + $0x128] sm:$0xff]
    %v6549 = vld [vmem:[%s6510 + $0x130] sm:$0xff]
    %v6550 = vld [vmem:[%s6510 + $0x138] sm:$0xff]
    %v6551 = vld [vmem:[%s6510 + $0x140] sm:$0xff]
    %v6552 = vld [vmem:[%s6510 + $0x148] sm:$0xff]
    %v6553 = vld [vmem:[%s6510 + $0x150] sm:$0xff]
    %v6554 = vld [vmem:[%s6510 + $0x158] sm:$0xff]
    %v6555 = vld [vmem:[%s6510 + $0x160] sm:$0xff]
    %v6556 = vld [vmem:[%s6510 + $0x168] sm:$0xff]
    %v6557 = vld [vmem:[%s6510 + $0x170] sm:$0xff]
    %v6558 = vld [vmem:[%s6510 + $0x178] sm:$0xff]
    %v6559 = vld [vmem:[%s6510 + $0x180] sm:$0xff]
    %v6560 = vld [vmem:[%s6510 + $0x188] sm:$0xff]
    %v6561 = vld [vmem:[%s6510 + $0x190] sm:$0xff]
    %v6562 = vld [vmem:[%s6510 + $0x198] sm:$0xff]
    %v6563 = vld [vmem:[%s6510 + $0x1a0] sm:$0xff]
    %v6564 = vld [vmem:[%s6510 + $0x1a8] sm:$0xff]
    %v6565 = vld [vmem:[%s6510 + $0x1b0] sm:$0xff]
    %v6566 = vld [vmem:[%s6510 + $0x1b8] sm:$0xff]
    %v6567 = vld [vmem:[%s6510 + $0x1c0] sm:$0xff]
    %v6568 = vld [vmem:[%s6510 + $0x1c8] sm:$0xff]
    %v6569 = vld [vmem:[%s6510 + $0x1d0] sm:$0xff]
    %v6570 = vld [vmem:[%s6510 + $0x1d8] sm:$0xff]
    %v6571 = vld [vmem:[%s6510 + $0x1e0] sm:$0xff]
    %v6572 = vld [vmem:[%s6510 + $0x1e8] sm:$0xff]
    %v6573 = vld [vmem:[%s6510 + $0x1f0] sm:$0xff]
    %v6574 = vld [vmem:[%s6510 + $0x1f8] sm:$0xff]
    %v6575 = vld [vmem:[%s6510 + $0x200] sm:$0xff]
    %v6576 = vld [vmem:[%s6510 + $0x208] sm:$0xff]
    %v6577 = vld [vmem:[%s6510 + $0x210] sm:$0xff]
    %v6578 = vld [vmem:[%s6510 + $0x218] sm:$0xff]
    %v6579 = vld [vmem:[%s6510 + $0x220] sm:$0xff]
    %v6580 = vld [vmem:[%s6510 + $0x228] sm:$0xff]
    %v6581 = vld [vmem:[%s6510 + $0x230] sm:$0xff]
    %v6582 = vld [vmem:[%s6510 + $0x238] sm:$0xff]
    %v6583 = vld [vmem:[%s6510 + $0x240] sm:$0xff]
    %v6584 = vld [vmem:[%s6510 + $0x248] sm:$0xff]
    %v6585 = vld [vmem:[%s6510 + $0x250] sm:$0xff]
    %v6586 = vld [vmem:[%s6510 + $0x258] sm:$0xff]
    %v6587 = vld [vmem:[%s6510 + $0x260] sm:$0xff]
    %v6588 = vld [vmem:[%s6510 + $0x268] sm:$0xff]
    %v6589 = vld [vmem:[%s6510 + $0x270] sm:$0xff]
    %v6590 = vld [vmem:[%s6510 + $0x278] sm:$0xff]
    %v6591 = vld [vmem:[%s6510 + $0x280] sm:$0xff]
    %v6592 = vld [vmem:[%s6510 + $0x288] sm:$0xff]
    %v6593 = vld [vmem:[%s6510 + $0x290] sm:$0xff]
    %v6594 = vld [vmem:[%s6510 + $0x298] sm:$0xff]
    %v6595 = vld [vmem:[%s6510 + $0x2a0] sm:$0xff]
    %v6596 = vld [vmem:[%s6510 + $0x2a8] sm:$0xff]
    %v6597 = vld [vmem:[%s6510 + $0x2b0] sm:$0xff]
    %v6598 = vld [vmem:[%s6510 + $0x2b8] sm:$0xff]
    %v6599 = vld [vmem:[%s6510 + $0x2c0] sm:$0xff]
    %v6600 = vld [vmem:[%s6510 + $0x2c8] sm:$0xff]
    %v6601 = vld [vmem:[%s6510 + $0x2d0] sm:$0xff]
    %v6602 = vld [vmem:[%s6510 + $0x2d8] sm:$0xff]
    %v6603 = vld [vmem:[%s6510 + $0x2e0] sm:$0xff]
    %v6604 = vld [vmem:[%s6510 + $0x2e8] sm:$0xff]
    %v6605 = vld [vmem:[%s6510 + $0x2f0] sm:$0xff]
    %v6606 = vld [vmem:[%s6510 + $0x2f8] sm:$0xff]
    %v6607 = vld [vmem:[%s6510 + $0x300] sm:$0xff]
    %v6608 = vld [vmem:[%s6510 + $0x308] sm:$0xff]
    %v6611 = vcombine.high %v6508, %v6508
    %v6613 = vunpack.c.l.s4 1983009808
    %v6614 = vunpack.c.0.s8 %v6613
    %v6615 = vlaneseq
    %v6616 = vshrl.u32 %v6615, 7
    %v6617 = vsub.s32 %v6614, %v6616
    %v6618 = vrot.slane %v6508, %v6617
    %v6620 = vunpack.c.l.s4 1983009808
    %v6621 = vunpack.c.0.s8 %v6620
    %v6622 = vlaneseq
    %v6623 = vshrl.u32 %v6622, 7
    %v6624 = vsub.s32 %v6621, %v6623
    %v6625 = vrot.slane %v6611, %v6624
    %v6626 = vcombine.high %v6618, %v6618
    %v6627 = vcombine.high %v6625, %v6625
    %v6628 = vcombine.high %v6509, %v6509
    %v6630 = vunpack.c.l.s4 1983009808
    %v6631 = vunpack.c.0.s8 %v6630
    %v6632 = vlaneseq
    %v6633 = vshrl.u32 %v6632, 7
    %v6634 = vsub.s32 %v6631, %v6633
    %v6635 = vrot.slane %v6509, %v6634
    %v6637 = vunpack.c.l.s4 1983009808
    %v6638 = vunpack.c.0.s8 %v6637
    %v6639 = vlaneseq
    %v6640 = vshrl.u32 %v6639, 7
    %v6641 = vsub.s32 %v6638, %v6640
    %v6642 = vrot.slane %v6628, %v6641
    %v6643 = vcombine.high %v6635, %v6635
    %v6650 = vsel %vm1036, %v6642, 0
    %6652 = vmatprep.subr.mxu0 0.0
    %6653 = vmatpush1.msra.mxu0 %v6511
    %6654 = vmatprep.subr.mxu0 0.0
    %6655 = vmatpush1.msra.mxu0 %v6512
    %6656 = vmatprep.subr.mxu0 0.0
    %6657 = vmatpush1.msra.mxu0 %v6513
    %6658 = vmatprep.subr.mxu0 0.0
    %6659 = vmatpush1.msra.mxu0 %v6514
    %6660 = vmatprep.subr.mxu0 0.0
    %6661 = vmatpush1.msra.mxu0 %v6515
    %6662 = vmatprep.subr.mxu0 0.0
    %6663 = vmatpush1.msra.mxu0 %v6516
    %6664 = vmatprep.subr.mxu0 0.0
    %6665 = vmatpush1.msra.mxu0 %v6517
    %6666 = vmatprep.subr.mxu0 0.0
    %6667 = vmatpush1.msra.mxu0 %v6518
    %6668 = vmatprep.subr.mxu0 0.0
    %6669 = vmatpush1.msra.mxu0 %v6519
    %6670 = vmatprep.subr.mxu0 0.0
    %6671 = vmatpush1.msra.mxu0 %v6520
    %6672 = vmatprep.subr.mxu0 0.0
    %6673 = vmatpush1.msra.mxu0 %v6521
    %6674 = vmatprep.subr.mxu0 0.0
    %6675 = vmatpush1.msra.mxu0 %v6522
    %6676 = vmatprep.subr.mxu0 0.0
    %6677 = vmatpush1.msra.mxu0 %v6523
    %6678 = vmatprep.subr.mxu0 0.0
    %6679 = vmatpush1.msra.mxu0 %v6524
    %6680 = vmatprep.subr.mxu0 0.0
    %6681 = vmatpush1.msra.mxu0 %v6525
    %6682 = vmatprep.subr.mxu0 0.0
    %6683 = vmatpush1.msra.mxu0 %v6526
    %6684 = vmatprep.subr.mxu0 0.0
    %6685 = vmatpush1.msra.mxu0 %v6527
    %6686 = vmatprep.subr.mxu0 0.0
    %6687 = vmatpush1.msra.mxu0 %v6528
    %6688 = vmatprep.subr.mxu0 0.0
    %6689 = vmatpush1.msra.mxu0 %v6529
    %6690 = vmatprep.subr.mxu0 0.0
    %6691 = vmatpush1.msra.mxu0 %v6530
    %6692 = vmatprep.subr.mxu0 0.0
    %6693 = vmatpush1.msra.mxu0 %v6531
    %6694 = vmatprep.subr.mxu0 0.0
    %6695 = vmatpush1.msra.mxu0 %v6532
    %6696 = vmatprep.subr.mxu0 0.0
    %6697 = vmatpush1.msra.mxu0 %v6533
    %6698 = vmatprep.subr.mxu0 0.0
    %6699 = vmatpush1.msra.mxu0 %v6534
    %6700 = vmatprep.subr.mxu0 0.0
    %6701 = vmatpush1.msra.mxu0 %v6535
    %6702 = vmatprep.subr.mxu0 0.0
    %6703 = vmatpush1.msra.mxu0 %v6536
    %6704 = vmatprep.subr.mxu0 0.0
    %6705 = vmatpush1.msra.mxu0 %v6537
    %6706 = vmatprep.subr.mxu0 0.0
    %6707 = vmatpush1.msra.mxu0 %v6538
    %6708 = vmatprep.subr.mxu0 0.0
    %6709 = vmatpush1.msra.mxu0 %v6539
    %6710 = vmatprep.subr.mxu0 0.0
    %6711 = vmatpush1.msra.mxu0 %v6540
    %6712 = vmatprep.subr.mxu0 0.0
    %6713 = vmatpush1.msra.mxu0 %v6541
    %6714 = vmatprep.subr.mxu0 0.0
    %6715 = vmatpush1.msra.mxu0 %v6542
    %6716 = vmatprep.mubr.f32.mxu0 %v6626
    %6717 = vmatmul.mubr.f32.gmra.mrb[0].mxu0 %v6618
    %v6718 = vpop.f32.mrb[0].mxu0
    %v6719 = vadd.f32 0.0, %v6718
    %v6720 = vpop.f32.mrb[0].mxu0
    %6721 = vdwg.mxu0
    %6722 = vmatprep.subr.mxu0 0.0
    %6723 = vmatpush1.msra.mxu0 %v6543
    %6724 = vmatprep.subr.mxu0 0.0
    %6725 = vmatpush1.msra.mxu0 %v6544
    %6726 = vmatprep.subr.mxu0 0.0
    %6727 = vmatpush1.msra.mxu0 %v6545
    %6728 = vmatprep.subr.mxu0 0.0
    %6729 = vmatpush1.msra.mxu0 %v6546
    %6730 = vmatprep.subr.mxu0 0.0
    %6731 = vmatpush1.msra.mxu0 %v6547
    %6732 = vmatprep.subr.mxu0 0.0
    %6733 = vmatpush1.msra.mxu0 %v6548
    %6734 = vmatprep.subr.mxu0 0.0
    %6735 = vmatpush1.msra.mxu0 %v6549
    %6736 = vmatprep.subr.mxu0 0.0
    %6737 = vmatpush1.msra.mxu0 %v6550
    %6738 = vmatprep.subr.mxu0 0.0
    %6739 = vmatpush1.msra.mxu0 %v6551
    %6740 = vmatprep.subr.mxu0 0.0
    %6741 = vmatpush1.msra.mxu0 %v6552
    %6742 = vmatprep.subr.mxu0 0.0
    %6743 = vmatpush1.msra.mxu0 %v6553
    %6744 = vmatprep.subr.mxu0 0.0
    %6745 = vmatpush1.msra.mxu0 %v6554
    %6746 = vmatprep.subr.mxu0 0.0
    %6747 = vmatpush1.msra.mxu0 %v6555
    %6748 = vmatprep.subr.mxu0 0.0
    %6749 = vmatpush1.msra.mxu0 %v6556
    %6750 = vmatprep.subr.mxu0 0.0
    %6751 = vmatpush1.msra.mxu0 %v6557
    %6752 = vmatprep.subr.mxu0 0.0
    %6753 = vmatpush1.msra.mxu0 %v6558
    %6754 = vmatprep.subr.mxu0 0.0
    %6755 = vmatpush1.msra.mxu0 %v6559
    %6756 = vmatprep.subr.mxu0 0.0
    %6757 = vmatpush1.msra.mxu0 %v6560
    %6758 = vmatprep.subr.mxu0 0.0
    %6759 = vmatpush1.msra.mxu0 %v6561
    %6760 = vmatprep.subr.mxu0 0.0
    %6761 = vmatpush1.msra.mxu0 %v6562
    %6762 = vmatprep.subr.mxu0 0.0
    %6763 = vmatpush1.msra.mxu0 %v6563
    %6764 = vmatprep.subr.mxu0 0.0
    %6765 = vmatpush1.msra.mxu0 %v6564
    %6766 = vmatprep.subr.mxu0 0.0
    %6767 = vmatpush1.msra.mxu0 %v6565
    %6768 = vmatprep.subr.mxu0 0.0
    %6769 = vmatpush1.msra.mxu0 %v6566
    %6770 = vmatprep.subr.mxu0 0.0
    %6771 = vmatpush1.msra.mxu0 %v6567
    %6772 = vmatprep.subr.mxu0 0.0
    %6773 = vmatpush1.msra.mxu0 %v6568
    %6774 = vmatprep.subr.mxu0 0.0
    %6775 = vmatpush1.msra.mxu0 %v6569
    %6776 = vmatprep.subr.mxu0 0.0
    %6777 = vmatpush1.msra.mxu0 %v6570
    %6778 = vmatprep.subr.mxu0 0.0
    %6779 = vmatpush1.msra.mxu0 %v6571
    %6780 = vmatprep.subr.mxu0 0.0
    %6781 = vmatpush1.msra.mxu0 %v6572
    %6782 = vmatprep.subr.mxu0 0.0
    %6783 = vmatpush1.msra.mxu0 %v6573
    %6784 = vmatprep.subr.mxu0 0.0
    %6785 = vmatpush1.msra.mxu0 %v6574
    %6786 = vmatprep.mubr.f32.mxu0 %v6627
    %6787 = vmatmul.mubr.f32.gmra.mrb[0].mxu0 %v6625
    %v6788 = vpop.f32.mrb[0].mxu0
    %v6789 = vadd.f32 %v6719, %v6788
    %v6790 = vpop.f32.mrb[0].mxu0
    %6791 = vdwg.mxu0
    %6792 = vmatprep.subr.mxu0 0.0
    %6793 = vmatpush1.msra.mxu0 %v6575
    %6794 = vmatprep.subr.mxu0 0.0
    %6795 = vmatpush1.msra.mxu0 %v6576
    %6796 = vmatprep.subr.mxu0 0.0
    %6797 = vmatpush1.msra.mxu0 %v6577
    %6798 = vmatprep.subr.mxu0 0.0
    %6799 = vmatpush1.msra.mxu0 %v6578
    %6800 = vmatprep.subr.mxu0 0.0
    %6801 = vmatpush1.msra.mxu0 %v6579
    %6802 = vmatprep.subr.mxu0 0.0
    %6803 = vmatpush1.msra.mxu0 %v6580
    %6804 = vmatprep.subr.mxu0 0.0
    %6805 = vmatpush1.msra.mxu0 %v6581
    %6806 = vmatprep.subr.mxu0 0.0
    %6807 = vmatpush1.msra.mxu0 %v6582
    %6808 = vmatprep.subr.mxu0 0.0
    %6809 = vmatpush1.msra.mxu0 %v6583
    %6810 = vmatprep.subr.mxu0 0.0
    %6811 = vmatpush1.msra.mxu0 %v6584
    %6812 = vmatprep.subr.mxu0 0.0
    %6813 = vmatpush1.msra.mxu0 %v6585
    %6814 = vmatprep.subr.mxu0 0.0
    %6815 = vmatpush1.msra.mxu0 %v6586
    %6816 = vmatprep.subr.mxu0 0.0
    %6817 = vmatpush1.msra.mxu0 %v6587
    %6818 = vmatprep.subr.mxu0 0.0
    %6819 = vmatpush1.msra.mxu0 %v6588
    %6820 = vmatprep.subr.mxu0 0.0
    %6821 = vmatpush1.msra.mxu0 %v6589
    %6822 = vmatprep.subr.mxu0 0.0
    %6823 = vmatpush1.msra.mxu0 %v6590
    %6824 = vmatprep.subr.mxu0 0.0
    %6825 = vmatpush1.msra.mxu0 %v6591
    %6826 = vmatprep.subr.mxu0 0.0
    %6827 = vmatpush1.msra.mxu0 %v6592
    %6828 = vmatprep.subr.mxu0 0.0
    %6829 = vmatpush1.msra.mxu0 %v6593
    %6830 = vmatprep.subr.mxu0 0.0
    %6831 = vmatpush1.msra.mxu0 %v6594
    %6832 = vmatprep.subr.mxu0 0.0
    %6833 = vmatpush1.msra.mxu0 %v6595
    %6834 = vmatprep.subr.mxu0 0.0
    %6835 = vmatpush1.msra.mxu0 %v6596
    %6836 = vmatprep.subr.mxu0 0.0
    %6837 = vmatpush1.msra.mxu0 %v6597
    %6838 = vmatprep.subr.mxu0 0.0
    %6839 = vmatpush1.msra.mxu0 %v6598
    %6840 = vmatprep.subr.mxu0 0.0
    %6841 = vmatpush1.msra.mxu0 %v6599
    %6842 = vmatprep.subr.mxu0 0.0
    %6843 = vmatpush1.msra.mxu0 %v6600
    %6844 = vmatprep.subr.mxu0 0.0
    %6845 = vmatpush1.msra.mxu0 %v6601
    %6846 = vmatprep.subr.mxu0 0.0
    %6847 = vmatpush1.msra.mxu0 %v6602
    %6848 = vmatprep.subr.mxu0 0.0
    %6849 = vmatpush1.msra.mxu0 %v6603
    %6850 = vmatprep.subr.mxu0 0.0
    %6851 = vmatpush1.msra.mxu0 %v6604
    %6852 = vmatprep.subr.mxu0 0.0
    %6853 = vmatpush1.msra.mxu0 %v6605
    %6854 = vmatprep.subr.mxu0 0.0
    %6855 = vmatpush1.msra.mxu0 %v6606
    %6856 = vmatprep.mubr.f32.mxu0 %v6643
    %6857 = vmatmul.mubr.f32.gmra.mrb[0].mxu0 %v6635
    %v6858 = vpop.f32.mrb[0].mxu0
    %v6859 = vadd.f32 %v6789, %v6858
    %v6860 = vpop.f32.mrb[0].mxu0
    %6861 = vdwg.mxu0
    %6862 = vmatprep.subr.mxu0 0.0
    %6863 = vmatpush1.msra.mxu0 %v6607
    %6864 = vmatprep.subr.mxu0 0.0
    %6865 = vmatpush1.msra.mxu0 %v6608
    %6866 = vmatprep.subr.mxu0 0.0
    %6867 = vmatpush1.msra.mxu0 0.0
    %6868 = vmatprep.subr.mxu0 0.0
    %6869 = vmatpush1.msra.mxu0 0.0
    %6870 = vmatprep.subr.mxu0 0.0
    %6871 = vmatpush1.msra.mxu0 0.0
    %6872 = vmatprep.subr.mxu0 0.0
    %6873 = vmatpush1.msra.mxu0 0.0
    %6874 = vmatprep.subr.mxu0 0.0
    %6875 = vmatpush1.msra.mxu0 0.0
    %6876 = vmatprep.subr.mxu0 0.0
    %6877 = vmatpush1.msra.mxu0 0.0
    %6878 = vmatprep.subr.mxu0 0.0
    %6879 = vmatpush1.msra.mxu0 0.0
    %6880 = vmatprep.subr.mxu0 0.0
    %6881 = vmatpush1.msra.mxu0 0.0
    %6882 = vmatprep.subr.mxu0 0.0
    %6883 = vmatpush1.msra.mxu0 0.0
    %6884 = vmatprep.subr.mxu0 0.0
    %6885 = vmatpush1.msra.mxu0 0.0
    %6886 = vmatprep.subr.mxu0 0.0
    %6887 = vmatpush1.msra.mxu0 0.0
    %6888 = vmatprep.subr.mxu0 0.0
    %6889 = vmatpush1.msra.mxu0 0.0
    %6890 = vmatprep.subr.mxu0 0.0
    %6891 = vmatpush1.msra.mxu0 0.0
    %6892 = vmatprep.subr.mxu0 0.0
    %6893 = vmatpush1.msra.mxu0 0.0
    %6894 = vmatprep.subr.mxu0 0.0
    %6895 = vmatpush1.msra.mxu0 0.0
    %6896 = vmatprep.subr.mxu0 0.0
    %6897 = vmatpush1.msra.mxu0 0.0
    %6898 = vmatprep.subr.mxu0 0.0
    %6899 = vmatpush1.msra.mxu0 0.0
    %6900 = vmatprep.subr.mxu0 0.0
    %6901 = vmatpush1.msra.mxu0 0.0
    %6902 = vmatprep.subr.mxu0 0.0
    %6903 = vmatpush1.msra.mxu0 0.0
    %6904 = vmatprep.subr.mxu0 0.0
    %6905 = vmatpush1.msra.mxu0 0.0
    %6906 = vmatprep.subr.mxu0 0.0
    %6907 = vmatpush1.msra.mxu0 0.0
    %6908 = vmatprep.subr.mxu0 0.0
    %6909 = vmatpush1.msra.mxu0 0.0
    %6910 = vmatprep.subr.mxu0 0.0
    %6911 = vmatpush1.msra.mxu0 0.0
    %6912 = vmatprep.subr.mxu0 0.0
    %6913 = vmatpush1.msra.mxu0 0.0
    %6914 = vmatprep.subr.mxu0 0.0
    %6915 = vmatpush1.msra.mxu0 0.0
    %6916 = vmatprep.subr.mxu0 0.0
    %6917 = vmatpush1.msra.mxu0 0.0
    %6918 = vmatprep.subr.mxu0 0.0
    %6919 = vmatpush1.msra.mxu0 0.0
    %6920 = vmatprep.subr.mxu0 0.0
    %6921 = vmatpush1.msra.mxu0 0.0
    %6922 = vmatprep.subr.mxu0 0.0
    %6923 = vmatpush1.msra.mxu0 0.0
    %6924 = vmatprep.subr.mxu0 0.0
    %6925 = vmatpush1.msra.mxu0 0.0
    %6926 = vmatprep.mubr.f32.mxu0 0.0
    %6927 = vmatmul.mubr.f32.gmra.mrb[0].mxu0 %v6650
    %v6928 = vpop.f32.mrb[0].mxu0
    %v6929 = vadd.f32 %v6859, %v6928
    %v6930 = vpop.f32.mrb[0].mxu0
    %6931 = vdwg.mxu0
    %v6932 = vadd.f32 %v6451, %v6929
    %s6933 = sld [smem:[#allocation3 + $0x75]]
    %v6934 = vstv %s6933
    %v6935 = vmul.f32 %v6934, %v665
    %v6936 = vmul.f32 %v6934, %v666
    %s6937 = sld [smem:[#allocation3 + $0x76]]
    %v6938 = vstv %s6937
    %v6939 = vmul.f32 %v6938, %v671
    %v6940 = vmul.f32 %v6938, %v672
    %v6941 = vadd.f32 %v6935, %v6939
    %v6942 = vadd.f32 %v6936, %v6940
    %s6943 = sld [smem:[#allocation3 + $0x77]]
    %v6944 = vstv %s6943
    %v6945 = vmul.f32 %v6944, %v679
    %v6946 = vmul.f32 %v6944, %v680
    %v6947 = vadd.f32 %v6941, %v6945
    %v6948 = vadd.f32 %v6942, %v6946
    %s6949 = sld [smem:[#allocation3 + $0x78]]
    %v6950 = vstv %s6949
    %v6951 = vmul.f32 %v6950, %v687
    %v6952 = vmul.f32 %v6950, %v688
    %v6953 = vadd.f32 %v6947, %v6951
    %v6954 = vadd.f32 %v6948, %v6952
    %s6955 = sld [smem:[#allocation3 + $0x79]]
    %v6956 = vstv %s6955
    %v6957 = vmul.f32 %v6956, %v695
    %v6958 = vmul.f32 %v6956, %v696
    %v6959 = vadd.f32 %v6953, %v6957
    %v6960 = vadd.f32 %v6954, %v6958
    %s6961 = sld [smem:[#allocation3 + $0x7a]]
    %v6962 = vstv %s6961
    %v6963 = vmul.f32 %v6962, %v703
    %v6964 = vmul.f32 %v6962, %v704
    %v6965 = vadd.f32 %v6959, %v6963
    %v6966 = vadd.f32 %v6960, %v6964
    %s6967 = sld [smem:[#allocation3 + $0x7b]]
    %v6968 = vstv %s6967
    %v6969 = vmul.f32 %v6968, %v711
    %v6970 = vmul.f32 %v6968, %v712
    %v6971 = vadd.f32 %v6965, %v6969
    %v6972 = vadd.f32 %v6966, %v6970
    %s6973 = sld [smem:[#allocation3 + $0x7c]]
    %v6974 = vstv %s6973
    %v6975 = vmul.f32 %v6974, %v719
    %v6976 = vmul.f32 %v6974, %v720
    %v6977 = vadd.f32 %v6971, %v6975
    %v6978 = vadd.f32 %v6972, %v6976
    %s6979 = sld [smem:[#allocation3 + $0x7d]]
    %v6980 = vstv %s6979
    %v6981 = vmul.f32 %v6980, %v727
    %v6982 = vmul.f32 %v6980, %v728
    %v6983 = vadd.f32 %v6977, %v6981
    %v6984 = vadd.f32 %v6978, %v6982
    %s6985 = sld [smem:[#allocation6 + $0xd]]
    %v6986 = vstv %s6985
    %v6987 = vadd.f32 %v6983, %v6986
    %v6988 = vadd.f32 %v6984, %v6986
    %v6989 = vmax.f32 %v6987, 0.0
    %v6990 = vmax.f32 %v6988, 0.0
    %s6991 = scalar_lea.vmem %s4, 10192
    %v6992 = vld [vmem:[%s6991] sm:$0xff]
    %v6993 = vld [vmem:[%s6991 + $0x8] sm:$0xff]
    %v6994 = vld [vmem:[%s6991 + $0x10] sm:$0xff]
    %v6995 = vld [vmem:[%s6991 + $0x18] sm:$0xff]
    %v6996 = vld [vmem:[%s6991 + $0x20] sm:$0xff]
    %v6997 = vld [vmem:[%s6991 + $0x28] sm:$0xff]
    %v6998 = vld [vmem:[%s6991 + $0x30] sm:$0xff]
    %v6999 = vld [vmem:[%s6991 + $0x38] sm:$0xff]
    %v7000 = vld [vmem:[%s6991 + $0x40] sm:$0xff]
    %v7001 = vld [vmem:[%s6991 + $0x48] sm:$0xff]
    %v7002 = vld [vmem:[%s6991 + $0x50] sm:$0xff]
    %v7003 = vld [vmem:[%s6991 + $0x58] sm:$0xff]
    %v7004 = vld [vmem:[%s6991 + $0x60] sm:$0xff]
    %v7005 = vld [vmem:[%s6991 + $0x68] sm:$0xff]
    %v7006 = vld [vmem:[%s6991 + $0x70] sm:$0xff]
    %v7007 = vld [vmem:[%s6991 + $0x78] sm:$0xff]
    %v7008 = vld [vmem:[%s6991 + $0x80] sm:$0xff]
    %v7009 = vld [vmem:[%s6991 + $0x88] sm:$0xff]
    %v7010 = vld [vmem:[%s6991 + $0x90] sm:$0xff]
    %v7011 = vld [vmem:[%s6991 + $0x98] sm:$0xff]
    %v7012 = vld [vmem:[%s6991 + $0xa0] sm:$0xff]
    %v7013 = vld [vmem:[%s6991 + $0xa8] sm:$0xff]
    %v7014 = vld [vmem:[%s6991 + $0xb0] sm:$0xff]
    %v7015 = vld [vmem:[%s6991 + $0xb8] sm:$0xff]
    %v7016 = vld [vmem:[%s6991 + $0xc0] sm:$0xff]
    %v7017 = vld [vmem:[%s6991 + $0xc8] sm:$0xff]
    %v7018 = vld [vmem:[%s6991 + $0xd0] sm:$0xff]
    %v7019 = vld [vmem:[%s6991 + $0xd8] sm:$0xff]
    %v7020 = vld [vmem:[%s6991 + $0xe0] sm:$0xff]
    %v7021 = vld [vmem:[%s6991 + $0xe8] sm:$0xff]
    %v7022 = vld [vmem:[%s6991 + $0xf0] sm:$0xff]
    %v7023 = vld [vmem:[%s6991 + $0xf8] sm:$0xff]
    %v7024 = vld [vmem:[%s6991 + $0x100] sm:$0xff]
    %v7025 = vld [vmem:[%s6991 + $0x108] sm:$0xff]
    %v7026 = vld [vmem:[%s6991 + $0x110] sm:$0xff]
    %v7027 = vld [vmem:[%s6991 + $0x118] sm:$0xff]
    %v7028 = vld [vmem:[%s6991 + $0x120] sm:$0xff]
    %v7029 = vld [vmem:[%s6991 + $0x128] sm:$0xff]
    %v7030 = vld [vmem:[%s6991 + $0x130] sm:$0xff]
    %v7031 = vld [vmem:[%s6991 + $0x138] sm:$0xff]
    %v7032 = vld [vmem:[%s6991 + $0x140] sm:$0xff]
    %v7033 = vld [vmem:[%s6991 + $0x148] sm:$0xff]
    %v7034 = vld [vmem:[%s6991 + $0x150] sm:$0xff]
    %v7035 = vld [vmem:[%s6991 + $0x158] sm:$0xff]
    %v7036 = vld [vmem:[%s6991 + $0x160] sm:$0xff]
    %v7037 = vld [vmem:[%s6991 + $0x168] sm:$0xff]
    %v7038 = vld [vmem:[%s6991 + $0x170] sm:$0xff]
    %v7039 = vld [vmem:[%s6991 + $0x178] sm:$0xff]
    %v7040 = vld [vmem:[%s6991 + $0x180] sm:$0xff]
    %v7041 = vld [vmem:[%s6991 + $0x188] sm:$0xff]
    %v7042 = vld [vmem:[%s6991 + $0x190] sm:$0xff]
    %v7043 = vld [vmem:[%s6991 + $0x198] sm:$0xff]
    %v7044 = vld [vmem:[%s6991 + $0x1a0] sm:$0xff]
    %v7045 = vld [vmem:[%s6991 + $0x1a8] sm:$0xff]
    %v7046 = vld [vmem:[%s6991 + $0x1b0] sm:$0xff]
    %v7047 = vld [vmem:[%s6991 + $0x1b8] sm:$0xff]
    %v7048 = vld [vmem:[%s6991 + $0x1c0] sm:$0xff]
    %v7049 = vld [vmem:[%s6991 + $0x1c8] sm:$0xff]
    %v7050 = vld [vmem:[%s6991 + $0x1d0] sm:$0xff]
    %v7051 = vld [vmem:[%s6991 + $0x1d8] sm:$0xff]
    %v7052 = vld [vmem:[%s6991 + $0x1e0] sm:$0xff]
    %v7053 = vld [vmem:[%s6991 + $0x1e8] sm:$0xff]
    %v7054 = vld [vmem:[%s6991 + $0x1f0] sm:$0xff]
    %v7055 = vld [vmem:[%s6991 + $0x1f8] sm:$0xff]
    %v7056 = vld [vmem:[%s6991 + $0x200] sm:$0xff]
    %v7057 = vld [vmem:[%s6991 + $0x208] sm:$0xff]
    %v7058 = vld [vmem:[%s6991 + $0x210] sm:$0xff]
    %v7059 = vld [vmem:[%s6991 + $0x218] sm:$0xff]
    %v7060 = vld [vmem:[%s6991 + $0x220] sm:$0xff]
    %v7061 = vld [vmem:[%s6991 + $0x228] sm:$0xff]
    %v7062 = vld [vmem:[%s6991 + $0x230] sm:$0xff]
    %v7063 = vld [vmem:[%s6991 + $0x238] sm:$0xff]
    %v7064 = vld [vmem:[%s6991 + $0x240] sm:$0xff]
    %v7065 = vld [vmem:[%s6991 + $0x248] sm:$0xff]
    %v7066 = vld [vmem:[%s6991 + $0x250] sm:$0xff]
    %v7067 = vld [vmem:[%s6991 + $0x258] sm:$0xff]
    %v7068 = vld [vmem:[%s6991 + $0x260] sm:$0xff]
    %v7069 = vld [vmem:[%s6991 + $0x268] sm:$0xff]
    %v7070 = vld [vmem:[%s6991 + $0x270] sm:$0xff]
    %v7071 = vld [vmem:[%s6991 + $0x278] sm:$0xff]
    %v7072 = vld [vmem:[%s6991 + $0x280] sm:$0xff]
    %v7073 = vld [vmem:[%s6991 + $0x288] sm:$0xff]
    %v7074 = vld [vmem:[%s6991 + $0x290] sm:$0xff]
    %v7075 = vld [vmem:[%s6991 + $0x298] sm:$0xff]
    %v7076 = vld [vmem:[%s6991 + $0x2a0] sm:$0xff]
    %v7077 = vld [vmem:[%s6991 + $0x2a8] sm:$0xff]
    %v7078 = vld [vmem:[%s6991 + $0x2b0] sm:$0xff]
    %v7079 = vld [vmem:[%s6991 + $0x2b8] sm:$0xff]
    %v7080 = vld [vmem:[%s6991 + $0x2c0] sm:$0xff]
    %v7081 = vld [vmem:[%s6991 + $0x2c8] sm:$0xff]
    %v7082 = vld [vmem:[%s6991 + $0x2d0] sm:$0xff]
    %v7083 = vld [vmem:[%s6991 + $0x2d8] sm:$0xff]
    %v7084 = vld [vmem:[%s6991 + $0x2e0] sm:$0xff]
    %v7085 = vld [vmem:[%s6991 + $0x2e8] sm:$0xff]
    %v7086 = vld [vmem:[%s6991 + $0x2f0] sm:$0xff]
    %v7087 = vld [vmem:[%s6991 + $0x2f8] sm:$0xff]
    %v7088 = vld [vmem:[%s6991 + $0x300] sm:$0xff]
    %v7089 = vld [vmem:[%s6991 + $0x308] sm:$0xff]
    %v7092 = vcombine.high %v6989, %v6989
    %v7094 = vunpack.c.l.s4 1983009808
    %v7095 = vunpack.c.0.s8 %v7094
    %v7096 = vlaneseq
    %v7097 = vshrl.u32 %v7096, 7
    %v7098 = vsub.s32 %v7095, %v7097
    %v7099 = vrot.slane %v6989, %v7098
    %v7101 = vunpack.c.l.s4 1983009808
    %v7102 = vunpack.c.0.s8 %v7101
    %v7103 = vlaneseq
    %v7104 = vshrl.u32 %v7103, 7
    %v7105 = vsub.s32 %v7102, %v7104
    %v7106 = vrot.slane %v7092, %v7105
    %v7107 = vcombine.high %v7099, %v7099
    %v7108 = vcombine.high %v7106, %v7106
    %v7109 = vcombine.high %v6990, %v6990
    %v7111 = vunpack.c.l.s4 1983009808
    %v7112 = vunpack.c.0.s8 %v7111
    %v7113 = vlaneseq
    %v7114 = vshrl.u32 %v7113, 7
    %v7115 = vsub.s32 %v7112, %v7114
    %v7116 = vrot.slane %v6990, %v7115
    %v7118 = vunpack.c.l.s4 1983009808
    %v7119 = vunpack.c.0.s8 %v7118
    %v7120 = vlaneseq
    %v7121 = vshrl.u32 %v7120, 7
    %v7122 = vsub.s32 %v7119, %v7121
    %v7123 = vrot.slane %v7109, %v7122
    %v7124 = vcombine.high %v7116, %v7116
    %v7131 = vsel %vm1036, %v7123, 0
    %7133 = vmatprep.subr.mxu0 0.0
    %7134 = vmatpush1.msra.mxu0 %v6992
    %7135 = vmatprep.subr.mxu0 0.0
    %7136 = vmatpush1.msra.mxu0 %v6993
    %7137 = vmatprep.subr.mxu0 0.0
    %7138 = vmatpush1.msra.mxu0 %v6994
    %7139 = vmatprep.subr.mxu0 0.0
    %7140 = vmatpush1.msra.mxu0 %v6995
    %7141 = vmatprep.subr.mxu0 0.0
    %7142 = vmatpush1.msra.mxu0 %v6996
    %7143 = vmatprep.subr.mxu0 0.0
    %7144 = vmatpush1.msra.mxu0 %v6997
    %7145 = vmatprep.subr.mxu0 0.0
    %7146 = vmatpush1.msra.mxu0 %v6998
    %7147 = vmatprep.subr.mxu0 0.0
    %7148 = vmatpush1.msra.mxu0 %v6999
    %7149 = vmatprep.subr.mxu0 0.0
    %7150 = vmatpush1.msra.mxu0 %v7000
    %7151 = vmatprep.subr.mxu0 0.0
    %7152 = vmatpush1.msra.mxu0 %v7001
    %7153 = vmatprep.subr.mxu0 0.0
    %7154 = vmatpush1.msra.mxu0 %v7002
    %7155 = vmatprep.subr.mxu0 0.0
    %7156 = vmatpush1.msra.mxu0 %v7003
    %7157 = vmatprep.subr.mxu0 0.0
    %7158 = vmatpush1.msra.mxu0 %v7004
    %7159 = vmatprep.subr.mxu0 0.0
    %7160 = vmatpush1.msra.mxu0 %v7005
    %7161 = vmatprep.subr.mxu0 0.0
    %7162 = vmatpush1.msra.mxu0 %v7006
    %7163 = vmatprep.subr.mxu0 0.0
    %7164 = vmatpush1.msra.mxu0 %v7007
    %7165 = vmatprep.subr.mxu0 0.0
    %7166 = vmatpush1.msra.mxu0 %v7008
    %7167 = vmatprep.subr.mxu0 0.0
    %7168 = vmatpush1.msra.mxu0 %v7009
    %7169 = vmatprep.subr.mxu0 0.0
    %7170 = vmatpush1.msra.mxu0 %v7010
    %7171 = vmatprep.subr.mxu0 0.0
    %7172 = vmatpush1.msra.mxu0 %v7011
    %7173 = vmatprep.subr.mxu0 0.0
    %7174 = vmatpush1.msra.mxu0 %v7012
    %7175 = vmatprep.subr.mxu0 0.0
    %7176 = vmatpush1.msra.mxu0 %v7013
    %7177 = vmatprep.subr.mxu0 0.0
    %7178 = vmatpush1.msra.mxu0 %v7014
    %7179 = vmatprep.subr.mxu0 0.0
    %7180 = vmatpush1.msra.mxu0 %v7015
    %7181 = vmatprep.subr.mxu0 0.0
    %7182 = vmatpush1.msra.mxu0 %v7016
    %7183 = vmatprep.subr.mxu0 0.0
    %7184 = vmatpush1.msra.mxu0 %v7017
    %7185 = vmatprep.subr.mxu0 0.0
    %7186 = vmatpush1.msra.mxu0 %v7018
    %7187 = vmatprep.subr.mxu0 0.0
    %7188 = vmatpush1.msra.mxu0 %v7019
    %7189 = vmatprep.subr.mxu0 0.0
    %7190 = vmatpush1.msra.mxu0 %v7020
    %7191 = vmatprep.subr.mxu0 0.0
    %7192 = vmatpush1.msra.mxu0 %v7021
    %7193 = vmatprep.subr.mxu0 0.0
    %7194 = vmatpush1.msra.mxu0 %v7022
    %7195 = vmatprep.subr.mxu0 0.0
    %7196 = vmatpush1.msra.mxu0 %v7023
    %7197 = vmatprep.mubr.f32.mxu0 %v7107
    %7198 = vmatmul.mubr.f32.gmra.mrb[0].mxu0 %v7099
    %v7199 = vpop.f32.mrb[0].mxu0
    %v7200 = vadd.f32 0.0, %v7199
    %v7201 = vpop.f32.mrb[0].mxu0
    %7202 = vdwg.mxu0
    %7203 = vmatprep.subr.mxu0 0.0
    %7204 = vmatpush1.msra.mxu0 %v7024
    %7205 = vmatprep.subr.mxu0 0.0
    %7206 = vmatpush1.msra.mxu0 %v7025
    %7207 = vmatprep.subr.mxu0 0.0
    %7208 = vmatpush1.msra.mxu0 %v7026
    %7209 = vmatprep.subr.mxu0 0.0
    %7210 = vmatpush1.msra.mxu0 %v7027
    %7211 = vmatprep.subr.mxu0 0.0
    %7212 = vmatpush1.msra.mxu0 %v7028
    %7213 = vmatprep.subr.mxu0 0.0
    %7214 = vmatpush1.msra.mxu0 %v7029
    %7215 = vmatprep.subr.mxu0 0.0
    %7216 = vmatpush1.msra.mxu0 %v7030
    %7217 = vmatprep.subr.mxu0 0.0
    %7218 = vmatpush1.msra.mxu0 %v7031
    %7219 = vmatprep.subr.mxu0 0.0
    %7220 = vmatpush1.msra.mxu0 %v7032
    %7221 = vmatprep.subr.mxu0 0.0
    %7222 = vmatpush1.msra.mxu0 %v7033
    %7223 = vmatprep.subr.mxu0 0.0
    %7224 = vmatpush1.msra.mxu0 %v7034
    %7225 = vmatprep.subr.mxu0 0.0
    %7226 = vmatpush1.msra.mxu0 %v7035
    %7227 = vmatprep.subr.mxu0 0.0
    %7228 = vmatpush1.msra.mxu0 %v7036
    %7229 = vmatprep.subr.mxu0 0.0
    %7230 = vmatpush1.msra.mxu0 %v7037
    %7231 = vmatprep.subr.mxu0 0.0
    %7232 = vmatpush1.msra.mxu0 %v7038
    %7233 = vmatprep.subr.mxu0 0.0
    %7234 = vmatpush1.msra.mxu0 %v7039
    %7235 = vmatprep.subr.mxu0 0.0
    %7236 = vmatpush1.msra.mxu0 %v7040
    %7237 = vmatprep.subr.mxu0 0.0
    %7238 = vmatpush1.msra.mxu0 %v7041
    %7239 = vmatprep.subr.mxu0 0.0
    %7240 = vmatpush1.msra.mxu0 %v7042
    %7241 = vmatprep.subr.mxu0 0.0
    %7242 = vmatpush1.msra.mxu0 %v7043
    %7243 = vmatprep.subr.mxu0 0.0
    %7244 = vmatpush1.msra.mxu0 %v7044
    %7245 = vmatprep.subr.mxu0 0.0
    %7246 = vmatpush1.msra.mxu0 %v7045
    %7247 = vmatprep.subr.mxu0 0.0
    %7248 = vmatpush1.msra.mxu0 %v7046
    %7249 = vmatprep.subr.mxu0 0.0
    %7250 = vmatpush1.msra.mxu0 %v7047
    %7251 = vmatprep.subr.mxu0 0.0
    %7252 = vmatpush1.msra.mxu0 %v7048
    %7253 = vmatprep.subr.mxu0 0.0
    %7254 = vmatpush1.msra.mxu0 %v7049
    %7255 = vmatprep.subr.mxu0 0.0
    %7256 = vmatpush1.msra.mxu0 %v7050
    %7257 = vmatprep.subr.mxu0 0.0
    %7258 = vmatpush1.msra.mxu0 %v7051
    %7259 = vmatprep.subr.mxu0 0.0
    %7260 = vmatpush1.msra.mxu0 %v7052
    %7261 = vmatprep.subr.mxu0 0.0
    %7262 = vmatpush1.msra.mxu0 %v7053
    %7263 = vmatprep.subr.mxu0 0.0
    %7264 = vmatpush1.msra.mxu0 %v7054
    %7265 = vmatprep.subr.mxu0 0.0
    %7266 = vmatpush1.msra.mxu0 %v7055
    %7267 = vmatprep.mubr.f32.mxu0 %v7108
    %7268 = vmatmul.mubr.f32.gmra.mrb[0].mxu0 %v7106
    %v7269 = vpop.f32.mrb[0].mxu0
    %v7270 = vadd.f32 %v7200, %v7269
    %v7271 = vpop.f32.mrb[0].mxu0
    %7272 = vdwg.mxu0
    %7273 = vmatprep.subr.mxu0 0.0
    %7274 = vmatpush1.msra.mxu0 %v7056
    %7275 = vmatprep.subr.mxu0 0.0
    %7276 = vmatpush1.msra.mxu0 %v7057
    %7277 = vmatprep.subr.mxu0 0.0
    %7278 = vmatpush1.msra.mxu0 %v7058
    %7279 = vmatprep.subr.mxu0 0.0
    %7280 = vmatpush1.msra.mxu0 %v7059
    %7281 = vmatprep.subr.mxu0 0.0
    %7282 = vmatpush1.msra.mxu0 %v7060
    %7283 = vmatprep.subr.mxu0 0.0
    %7284 = vmatpush1.msra.mxu0 %v7061
    %7285 = vmatprep.subr.mxu0 0.0
    %7286 = vmatpush1.msra.mxu0 %v7062
    %7287 = vmatprep.subr.mxu0 0.0
    %7288 = vmatpush1.msra.mxu0 %v7063
    %7289 = vmatprep.subr.mxu0 0.0
    %7290 = vmatpush1.msra.mxu0 %v7064
    %7291 = vmatprep.subr.mxu0 0.0
    %7292 = vmatpush1.msra.mxu0 %v7065
    %7293 = vmatprep.subr.mxu0 0.0
    %7294 = vmatpush1.msra.mxu0 %v7066
    %7295 = vmatprep.subr.mxu0 0.0
    %7296 = vmatpush1.msra.mxu0 %v7067
    %7297 = vmatprep.subr.mxu0 0.0
    %7298 = vmatpush1.msra.mxu0 %v7068
    %7299 = vmatprep.subr.mxu0 0.0
    %7300 = vmatpush1.msra.mxu0 %v7069
    %7301 = vmatprep.subr.mxu0 0.0
    %7302 = vmatpush1.msra.mxu0 %v7070
    %7303 = vmatprep.subr.mxu0 0.0
    %7304 = vmatpush1.msra.mxu0 %v7071
    %7305 = vmatprep.subr.mxu0 0.0
    %7306 = vmatpush1.msra.mxu0 %v7072
    %7307 = vmatprep.subr.mxu0 0.0
    %7308 = vmatpush1.msra.mxu0 %v7073
    %7309 = vmatprep.subr.mxu0 0.0
    %7310 = vmatpush1.msra.mxu0 %v7074
    %7311 = vmatprep.subr.mxu0 0.0
    %7312 = vmatpush1.msra.mxu0 %v7075
    %7313 = vmatprep.subr.mxu0 0.0
    %7314 = vmatpush1.msra.mxu0 %v7076
    %7315 = vmatprep.subr.mxu0 0.0
    %7316 = vmatpush1.msra.mxu0 %v7077
    %7317 = vmatprep.subr.mxu0 0.0
    %7318 = vmatpush1.msra.mxu0 %v7078
    %7319 = vmatprep.subr.mxu0 0.0
    %7320 = vmatpush1.msra.mxu0 %v7079
    %7321 = vmatprep.subr.mxu0 0.0
    %7322 = vmatpush1.msra.mxu0 %v7080
    %7323 = vmatprep.subr.mxu0 0.0
    %7324 = vmatpush1.msra.mxu0 %v7081
    %7325 = vmatprep.subr.mxu0 0.0
    %7326 = vmatpush1.msra.mxu0 %v7082
    %7327 = vmatprep.subr.mxu0 0.0
    %7328 = vmatpush1.msra.mxu0 %v7083
    %7329 = vmatprep.subr.mxu0 0.0
    %7330 = vmatpush1.msra.mxu0 %v7084
    %7331 = vmatprep.subr.mxu0 0.0
    %7332 = vmatpush1.msra.mxu0 %v7085
    %7333 = vmatprep.subr.mxu0 0.0
    %7334 = vmatpush1.msra.mxu0 %v7086
    %7335 = vmatprep.subr.mxu0 0.0
    %7336 = vmatpush1.msra.mxu0 %v7087
    %7337 = vmatprep.mubr.f32.mxu0 %v7124
    %7338 = vmatmul.mubr.f32.gmra.mrb[0].mxu0 %v7116
    %v7339 = vpop.f32.mrb[0].mxu0
    %v7340 = vadd.f32 %v7270, %v7339
    %v7341 = vpop.f32.mrb[0].mxu0
    %7342 = vdwg.mxu0
    %7343 = vmatprep.subr.mxu0 0.0
    %7344 = vmatpush1.msra.mxu0 %v7088
    %7345 = vmatprep.subr.mxu0 0.0
    %7346 = vmatpush1.msra.mxu0 %v7089
    %7347 = vmatprep.subr.mxu0 0.0
    %7348 = vmatpush1.msra.mxu0 0.0
    %7349 = vmatprep.subr.mxu0 0.0
    %7350 = vmatpush1.msra.mxu0 0.0
    %7351 = vmatprep.subr.mxu0 0.0
    %7352 = vmatpush1.msra.mxu0 0.0
    %7353 = vmatprep.subr.mxu0 0.0
    %7354 = vmatpush1.msra.mxu0 0.0
    %7355 = vmatprep.subr.mxu0 0.0
    %7356 = vmatpush1.msra.mxu0 0.0
    %7357 = vmatprep.subr.mxu0 0.0
    %7358 = vmatpush1.msra.mxu0 0.0
    %7359 = vmatprep.subr.mxu0 0.0
    %7360 = vmatpush1.msra.mxu0 0.0
    %7361 = vmatprep.subr.mxu0 0.0
    %7362 = vmatpush1.msra.mxu0 0.0
    %7363 = vmatprep.subr.mxu0 0.0
    %7364 = vmatpush1.msra.mxu0 0.0
    %7365 = vmatprep.subr.mxu0 0.0
    %7366 = vmatpush1.msra.mxu0 0.0
    %7367 = vmatprep.subr.mxu0 0.0
    %7368 = vmatpush1.msra.mxu0 0.0
    %7369 = vmatprep.subr.mxu0 0.0
    %7370 = vmatpush1.msra.mxu0 0.0
    %7371 = vmatprep.subr.mxu0 0.0
    %7372 = vmatpush1.msra.mxu0 0.0
    %7373 = vmatprep.subr.mxu0 0.0
    %7374 = vmatpush1.msra.mxu0 0.0
    %7375 = vmatprep.subr.mxu0 0.0
    %7376 = vmatpush1.msra.mxu0 0.0
    %7377 = vmatprep.subr.mxu0 0.0
    %7378 = vmatpush1.msra.mxu0 0.0
    %7379 = vmatprep.subr.mxu0 0.0
    %7380 = vmatpush1.msra.mxu0 0.0
    %7381 = vmatprep.subr.mxu0 0.0
    %7382 = vmatpush1.msra.mxu0 0.0
    %7383 = vmatprep.subr.mxu0 0.0
    %7384 = vmatpush1.msra.mxu0 0.0
    %7385 = vmatprep.subr.mxu0 0.0
    %7386 = vmatpush1.msra.mxu0 0.0
    %7387 = vmatprep.subr.mxu0 0.0
    %7388 = vmatpush1.msra.mxu0 0.0
    %7389 = vmatprep.subr.mxu0 0.0
    %7390 = vmatpush1.msra.mxu0 0.0
    %7391 = vmatprep.subr.mxu0 0.0
    %7392 = vmatpush1.msra.mxu0 0.0
    %7393 = vmatprep.subr.mxu0 0.0
    %7394 = vmatpush1.msra.mxu0 0.0
    %7395 = vmatprep.subr.mxu0 0.0
    %7396 = vmatpush1.msra.mxu0 0.0
    %7397 = vmatprep.subr.mxu0 0.0
    %7398 = vmatpush1.msra.mxu0 0.0
    %7399 = vmatprep.subr.mxu0 0.0
    %7400 = vmatpush1.msra.mxu0 0.0
    %7401 = vmatprep.subr.mxu0 0.0
    %7402 = vmatpush1.msra.mxu0 0.0
    %7403 = vmatprep.subr.mxu0 0.0
    %7404 = vmatpush1.msra.mxu0 0.0
    %7405 = vmatprep.subr.mxu0 0.0
    %7406 = vmatpush1.msra.mxu0 0.0
    %7407 = vmatprep.mubr.f32.mxu0 0.0
    %7408 = vmatmul.mubr.f32.gmra.mrb[0].mxu0 %v7131
    %v7409 = vpop.f32.mrb[0].mxu0
    %v7410 = vadd.f32 %v7340, %v7409
    %v7411 = vpop.f32.mrb[0].mxu0
    %7412 = vdwg.mxu0
    %v7413 = vadd.f32 %v6932, %v7410
    %s7414 = sld [smem:[#allocation3 + $0x7e]]
    %v7415 = vstv %s7414
    %v7416 = vmul.f32 %v7415, %v665
    %v7417 = vmul.f32 %v7415, %v666
    %s7418 = sld [smem:[#allocation3 + $0x7f]]
    %v7419 = vstv %s7418
    %v7420 = vmul.f32 %v7419, %v671
    %v7421 = vmul.f32 %v7419, %v672
    %v7422 = vadd.f32 %v7416, %v7420
    %v7423 = vadd.f32 %v7417, %v7421
    %s7424 = sld [smem:[#allocation3 + $0x80]]
    %v7425 = vstv %s7424
    %v7426 = vmul.f32 %v7425, %v679
    %v7427 = vmul.f32 %v7425, %v680
    %v7428 = vadd.f32 %v7422, %v7426
    %v7429 = vadd.f32 %v7423, %v7427
    %s7430 = sld [smem:[#allocation3 + $0x81]]
    %v7431 = vstv %s7430
    %v7432 = vmul.f32 %v7431, %v687
    %v7433 = vmul.f32 %v7431, %v688
    %v7434 = vadd.f32 %v7428, %v7432
    %v7435 = vadd.f32 %v7429, %v7433
    %s7436 = sld [smem:[#allocation3 + $0x82]]
    %v7437 = vstv %s7436
    %v7438 = vmul.f32 %v7437, %v695
    %v7439 = vmul.f32 %v7437, %v696
    %v7440 = vadd.f32 %v7434, %v7438
    %v7441 = vadd.f32 %v7435, %v7439
    %s7442 = sld [smem:[#allocation3 + $0x83]]
    %v7443 = vstv %s7442
    %v7444 = vmul.f32 %v7443, %v703
    %v7445 = vmul.f32 %v7443, %v704
    %v7446 = vadd.f32 %v7440, %v7444
    %v7447 = vadd.f32 %v7441, %v7445
    %s7448 = sld [smem:[#allocation3 + $0x84]]
    %v7449 = vstv %s7448
    %v7450 = vmul.f32 %v7449, %v711
    %v7451 = vmul.f32 %v7449, %v712
    %v7452 = vadd.f32 %v7446, %v7450
    %v7453 = vadd.f32 %v7447, %v7451
    %s7454 = sld [smem:[#allocation3 + $0x85]]
    %v7455 = vstv %s7454
    %v7456 = vmul.f32 %v7455, %v719
    %v7457 = vmul.f32 %v7455, %v720
    %v7458 = vadd.f32 %v7452, %v7456
    %v7459 = vadd.f32 %v7453, %v7457
    %s7460 = sld [smem:[#allocation3 + $0x86]]
    %v7461 = vstv %s7460
    %v7462 = vmul.f32 %v7461, %v727
    %v7463 = vmul.f32 %v7461, %v728
    %v7464 = vadd.f32 %v7458, %v7462
    %v7465 = vadd.f32 %v7459, %v7463
    %s7466 = sld [smem:[#allocation6 + $0xe]]
    %v7467 = vstv %s7466
    %v7468 = vadd.f32 %v7464, %v7467
    %v7469 = vadd.f32 %v7465, %v7467
    %v7470 = vmax.f32 %v7468, 0.0
    %v7471 = vmax.f32 %v7469, 0.0
    %s7472 = scalar_lea.vmem %s4, 10976
    %v7473 = vld [vmem:[%s7472] sm:$0xff]
    %v7474 = vld [vmem:[%s7472 + $0x8] sm:$0xff]
    %v7475 = vld [vmem:[%s7472 + $0x10] sm:$0xff]
    %v7476 = vld [vmem:[%s7472 + $0x18] sm:$0xff]
    %v7477 = vld [vmem:[%s7472 + $0x20] sm:$0xff]
    %v7478 = vld [vmem:[%s7472 + $0x28] sm:$0xff]
    %v7479 = vld [vmem:[%s7472 + $0x30] sm:$0xff]
    %v7480 = vld [vmem:[%s7472 + $0x38] sm:$0xff]
    %v7481 = vld [vmem:[%s7472 + $0x40] sm:$0xff]
    %v7482 = vld [vmem:[%s7472 + $0x48] sm:$0xff]
    %v7483 = vld [vmem:[%s7472 + $0x50] sm:$0xff]
    %v7484 = vld [vmem:[%s7472 + $0x58] sm:$0xff]
    %v7485 = vld [vmem:[%s7472 + $0x60] sm:$0xff]
    %v7486 = vld [vmem:[%s7472 + $0x68] sm:$0xff]
    %v7487 = vld [vmem:[%s7472 + $0x70] sm:$0xff]
    %v7488 = vld [vmem:[%s7472 + $0x78] sm:$0xff]
    %v7489 = vld [vmem:[%s7472 + $0x80] sm:$0xff]
    %v7490 = vld [vmem:[%s7472 + $0x88] sm:$0xff]
    %v7491 = vld [vmem:[%s7472 + $0x90] sm:$0xff]
    %v7492 = vld [vmem:[%s7472 + $0x98] sm:$0xff]
    %v7493 = vld [vmem:[%s7472 + $0xa0] sm:$0xff]
    %v7494 = vld [vmem:[%s7472 + $0xa8] sm:$0xff]
    %v7495 = vld [vmem:[%s7472 + $0xb0] sm:$0xff]
    %v7496 = vld [vmem:[%s7472 + $0xb8] sm:$0xff]
    %v7497 = vld [vmem:[%s7472 + $0xc0] sm:$0xff]
    %v7498 = vld [vmem:[%s7472 + $0xc8] sm:$0xff]
    %v7499 = vld [vmem:[%s7472 + $0xd0] sm:$0xff]
    %v7500 = vld [vmem:[%s7472 + $0xd8] sm:$0xff]
    %v7501 = vld [vmem:[%s7472 + $0xe0] sm:$0xff]
    %v7502 = vld [vmem:[%s7472 + $0xe8] sm:$0xff]
    %v7503 = vld [vmem:[%s7472 + $0xf0] sm:$0xff]
    %v7504 = vld [vmem:[%s7472 + $0xf8] sm:$0xff]
    %v7505 = vld [vmem:[%s7472 + $0x100] sm:$0xff]
    %v7506 = vld [vmem:[%s7472 + $0x108] sm:$0xff]
    %v7507 = vld [vmem:[%s7472 + $0x110] sm:$0xff]
    %v7508 = vld [vmem:[%s7472 + $0x118] sm:$0xff]
    %v7509 = vld [vmem:[%s7472 + $0x120] sm:$0xff]
    %v7510 = vld [vmem:[%s7472 + $0x128] sm:$0xff]
    %v7511 = vld [vmem:[%s7472 + $0x130] sm:$0xff]
    %v7512 = vld [vmem:[%s7472 + $0x138] sm:$0xff]
    %v7513 = vld [vmem:[%s7472 + $0x140] sm:$0xff]
    %v7514 = vld [vmem:[%s7472 + $0x148] sm:$0xff]
    %v7515 = vld [vmem:[%s7472 + $0x150] sm:$0xff]
    %v7516 = vld [vmem:[%s7472 + $0x158] sm:$0xff]
    %v7517 = vld [vmem:[%s7472 + $0x160] sm:$0xff]
    %v7518 = vld [vmem:[%s7472 + $0x168] sm:$0xff]
    %v7519 = vld [vmem:[%s7472 + $0x170] sm:$0xff]
    %v7520 = vld [vmem:[%s7472 + $0x178] sm:$0xff]
    %v7521 = vld [vmem:[%s7472 + $0x180] sm:$0xff]
    %v7522 = vld [vmem:[%s7472 + $0x188] sm:$0xff]
    %v7523 = vld [vmem:[%s7472 + $0x190] sm:$0xff]
    %v7524 = vld [vmem:[%s7472 + $0x198] sm:$0xff]
    %v7525 = vld [vmem:[%s7472 + $0x1a0] sm:$0xff]
    %v7526 = vld [vmem:[%s7472 + $0x1a8] sm:$0xff]
    %v7527 = vld [vmem:[%s7472 + $0x1b0] sm:$0xff]
    %v7528 = vld [vmem:[%s7472 + $0x1b8] sm:$0xff]
    %v7529 = vld [vmem:[%s7472 + $0x1c0] sm:$0xff]
    %v7530 = vld [vmem:[%s7472 + $0x1c8] sm:$0xff]
    %v7531 = vld [vmem:[%s7472 + $0x1d0] sm:$0xff]
    %v7532 = vld [vmem:[%s7472 + $0x1d8] sm:$0xff]
    %v7533 = vld [vmem:[%s7472 + $0x1e0] sm:$0xff]
    %v7534 = vld [vmem:[%s7472 + $0x1e8] sm:$0xff]
    %v7535 = vld [vmem:[%s7472 + $0x1f0] sm:$0xff]
    %v7536 = vld [vmem:[%s7472 + $0x1f8] sm:$0xff]
    %v7537 = vld [vmem:[%s7472 + $0x200] sm:$0xff]
    %v7538 = vld [vmem:[%s7472 + $0x208] sm:$0xff]
    %v7539 = vld [vmem:[%s7472 + $0x210] sm:$0xff]
    %v7540 = vld [vmem:[%s7472 + $0x218] sm:$0xff]
    %v7541 = vld [vmem:[%s7472 + $0x220] sm:$0xff]
    %v7542 = vld [vmem:[%s7472 + $0x228] sm:$0xff]
    %v7543 = vld [vmem:[%s7472 + $0x230] sm:$0xff]
    %v7544 = vld [vmem:[%s7472 + $0x238] sm:$0xff]
    %v7545 = vld [vmem:[%s7472 + $0x240] sm:$0xff]
    %v7546 = vld [vmem:[%s7472 + $0x248] sm:$0xff]
    %v7547 = vld [vmem:[%s7472 + $0x250] sm:$0xff]
    %v7548 = vld [vmem:[%s7472 + $0x258] sm:$0xff]
    %v7549 = vld [vmem:[%s7472 + $0x260] sm:$0xff]
    %v7550 = vld [vmem:[%s7472 + $0x268] sm:$0xff]
    %v7551 = vld [vmem:[%s7472 + $0x270] sm:$0xff]
    %v7552 = vld [vmem:[%s7472 + $0x278] sm:$0xff]
    %v7553 = vld [vmem:[%s7472 + $0x280] sm:$0xff]
    %v7554 = vld [vmem:[%s7472 + $0x288] sm:$0xff]
    %v7555 = vld [vmem:[%s7472 + $0x290] sm:$0xff]
    %v7556 = vld [vmem:[%s7472 + $0x298] sm:$0xff]
    %v7557 = vld [vmem:[%s7472 + $0x2a0] sm:$0xff]
    %v7558 = vld [vmem:[%s7472 + $0x2a8] sm:$0xff]
    %v7559 = vld [vmem:[%s7472 + $0x2b0] sm:$0xff]
    %v7560 = vld [vmem:[%s7472 + $0x2b8] sm:$0xff]
    %v7561 = vld [vmem:[%s7472 + $0x2c0] sm:$0xff]
    %v7562 = vld [vmem:[%s7472 + $0x2c8] sm:$0xff]
    %v7563 = vld [vmem:[%s7472 + $0x2d0] sm:$0xff]
    %v7564 = vld [vmem:[%s7472 + $0x2d8] sm:$0xff]
    %v7565 = vld [vmem:[%s7472 + $0x2e0] sm:$0xff]
    %v7566 = vld [vmem:[%s7472 + $0x2e8] sm:$0xff]
    %v7567 = vld [vmem:[%s7472 + $0x2f0] sm:$0xff]
    %v7568 = vld [vmem:[%s7472 + $0x2f8] sm:$0xff]
    %v7569 = vld [vmem:[%s7472 + $0x300] sm:$0xff]
    %v7570 = vld [vmem:[%s7472 + $0x308] sm:$0xff]
    %v7573 = vcombine.high %v7470, %v7470
    %v7575 = vunpack.c.l.s4 1983009808
    %v7576 = vunpack.c.0.s8 %v7575
    %v7577 = vlaneseq
    %v7578 = vshrl.u32 %v7577, 7
    %v7579 = vsub.s32 %v7576, %v7578
    %v7580 = vrot.slane %v7470, %v7579
    %v7582 = vunpack.c.l.s4 1983009808
    %v7583 = vunpack.c.0.s8 %v7582
    %v7584 = vlaneseq
    %v7585 = vshrl.u32 %v7584, 7
    %v7586 = vsub.s32 %v7583, %v7585
    %v7587 = vrot.slane %v7573, %v7586
    %v7588 = vcombine.high %v7580, %v7580
    %v7589 = vcombine.high %v7587, %v7587
    %v7590 = vcombine.high %v7471, %v7471
    %v7592 = vunpack.c.l.s4 1983009808
    %v7593 = vunpack.c.0.s8 %v7592
    %v7594 = vlaneseq
    %v7595 = vshrl.u32 %v7594, 7
    %v7596 = vsub.s32 %v7593, %v7595
    %v7597 = vrot.slane %v7471, %v7596
    %v7599 = vunpack.c.l.s4 1983009808
    %v7600 = vunpack.c.0.s8 %v7599
    %v7601 = vlaneseq
    %v7602 = vshrl.u32 %v7601, 7
    %v7603 = vsub.s32 %v7600, %v7602
    %v7604 = vrot.slane %v7590, %v7603
    %v7605 = vcombine.high %v7597, %v7597
    %v7612 = vsel %vm1036, %v7604, 0
    %7614 = vmatprep.subr.mxu0 0.0
    %7615 = vmatpush1.msra.mxu0 %v7473
    %7616 = vmatprep.subr.mxu0 0.0
    %7617 = vmatpush1.msra.mxu0 %v7474
    %7618 = vmatprep.subr.mxu0 0.0
    %7619 = vmatpush1.msra.mxu0 %v7475
    %7620 = vmatprep.subr.mxu0 0.0
    %7621 = vmatpush1.msra.mxu0 %v7476
    %7622 = vmatprep.subr.mxu0 0.0
    %7623 = vmatpush1.msra.mxu0 %v7477
    %7624 = vmatprep.subr.mxu0 0.0
    %7625 = vmatpush1.msra.mxu0 %v7478
    %7626 = vmatprep.subr.mxu0 0.0
    %7627 = vmatpush1.msra.mxu0 %v7479
    %7628 = vmatprep.subr.mxu0 0.0
    %7629 = vmatpush1.msra.mxu0 %v7480
    %7630 = vmatprep.subr.mxu0 0.0
    %7631 = vmatpush1.msra.mxu0 %v7481
    %7632 = vmatprep.subr.mxu0 0.0
    %7633 = vmatpush1.msra.mxu0 %v7482
    %7634 = vmatprep.subr.mxu0 0.0
    %7635 = vmatpush1.msra.mxu0 %v7483
    %7636 = vmatprep.subr.mxu0 0.0
    %7637 = vmatpush1.msra.mxu0 %v7484
    %7638 = vmatprep.subr.mxu0 0.0
    %7639 = vmatpush1.msra.mxu0 %v7485
    %7640 = vmatprep.subr.mxu0 0.0
    %7641 = vmatpush1.msra.mxu0 %v7486
    %7642 = vmatprep.subr.mxu0 0.0
    %7643 = vmatpush1.msra.mxu0 %v7487
    %7644 = vmatprep.subr.mxu0 0.0
    %7645 = vmatpush1.msra.mxu0 %v7488
    %7646 = vmatprep.subr.mxu0 0.0
    %7647 = vmatpush1.msra.mxu0 %v7489
    %7648 = vmatprep.subr.mxu0 0.0
    %7649 = vmatpush1.msra.mxu0 %v7490
    %7650 = vmatprep.subr.mxu0 0.0
    %7651 = vmatpush1.msra.mxu0 %v7491
    %7652 = vmatprep.subr.mxu0 0.0
    %7653 = vmatpush1.msra.mxu0 %v7492
    %7654 = vmatprep.subr.mxu0 0.0
    %7655 = vmatpush1.msra.mxu0 %v7493
    %7656 = vmatprep.subr.mxu0 0.0
    %7657 = vmatpush1.msra.mxu0 %v7494
    %7658 = vmatprep.subr.mxu0 0.0
    %7659 = vmatpush1.msra.mxu0 %v7495
    %7660 = vmatprep.subr.mxu0 0.0
    %7661 = vmatpush1.msra.mxu0 %v7496
    %7662 = vmatprep.subr.mxu0 0.0
    %7663 = vmatpush1.msra.mxu0 %v7497
    %7664 = vmatprep.subr.mxu0 0.0
    %7665 = vmatpush1.msra.mxu0 %v7498
    %7666 = vmatprep.subr.mxu0 0.0
    %7667 = vmatpush1.msra.mxu0 %v7499
    %7668 = vmatprep.subr.mxu0 0.0
    %7669 = vmatpush1.msra.mxu0 %v7500
    %7670 = vmatprep.subr.mxu0 0.0
    %7671 = vmatpush1.msra.mxu0 %v7501
    %7672 = vmatprep.subr.mxu0 0.0
    %7673 = vmatpush1.msra.mxu0 %v7502
    %7674 = vmatprep.subr.mxu0 0.0
    %7675 = vmatpush1.msra.mxu0 %v7503
    %7676 = vmatprep.subr.mxu0 0.0
    %7677 = vmatpush1.msra.mxu0 %v7504
    %7678 = vmatprep.mubr.f32.mxu0 %v7588
    %7679 = vmatmul.mubr.f32.gmra.mrb[0].mxu0 %v7580
    %v7680 = vpop.f32.mrb[0].mxu0
    %v7681 = vadd.f32 0.0, %v7680
    %v7682 = vpop.f32.mrb[0].mxu0
    %7683 = vdwg.mxu0
    %7684 = vmatprep.subr.mxu0 0.0
    %7685 = vmatpush1.msra.mxu0 %v7505
    %7686 = vmatprep.subr.mxu0 0.0
    %7687 = vmatpush1.msra.mxu0 %v7506
    %7688 = vmatprep.subr.mxu0 0.0
    %7689 = vmatpush1.msra.mxu0 %v7507
    %7690 = vmatprep.subr.mxu0 0.0
    %7691 = vmatpush1.msra.mxu0 %v7508
    %7692 = vmatprep.subr.mxu0 0.0
    %7693 = vmatpush1.msra.mxu0 %v7509
    %7694 = vmatprep.subr.mxu0 0.0
    %7695 = vmatpush1.msra.mxu0 %v7510
    %7696 = vmatprep.subr.mxu0 0.0
    %7697 = vmatpush1.msra.mxu0 %v7511
    %7698 = vmatprep.subr.mxu0 0.0
    %7699 = vmatpush1.msra.mxu0 %v7512
    %7700 = vmatprep.subr.mxu0 0.0
    %7701 = vmatpush1.msra.mxu0 %v7513
    %7702 = vmatprep.subr.mxu0 0.0
    %7703 = vmatpush1.msra.mxu0 %v7514
    %7704 = vmatprep.subr.mxu0 0.0
    %7705 = vmatpush1.msra.mxu0 %v7515
    %7706 = vmatprep.subr.mxu0 0.0
    %7707 = vmatpush1.msra.mxu0 %v7516
    %7708 = vmatprep.subr.mxu0 0.0
    %7709 = vmatpush1.msra.mxu0 %v7517
    %7710 = vmatprep.subr.mxu0 0.0
    %7711 = vmatpush1.msra.mxu0 %v7518
    %7712 = vmatprep.subr.mxu0 0.0
    %7713 = vmatpush1.msra.mxu0 %v7519
    %7714 = vmatprep.subr.mxu0 0.0
    %7715 = vmatpush1.msra.mxu0 %v7520
    %7716 = vmatprep.subr.mxu0 0.0
    %7717 = vmatpush1.msra.mxu0 %v7521
    %7718 = vmatprep.subr.mxu0 0.0
    %7719 = vmatpush1.msra.mxu0 %v7522
    %7720 = vmatprep.subr.mxu0 0.0
    %7721 = vmatpush1.msra.mxu0 %v7523
    %7722 = vmatprep.subr.mxu0 0.0
    %7723 = vmatpush1.msra.mxu0 %v7524
    %7724 = vmatprep.subr.mxu0 0.0
    %7725 = vmatpush1.msra.mxu0 %v7525
    %7726 = vmatprep.subr.mxu0 0.0
    %7727 = vmatpush1.msra.mxu0 %v7526
    %7728 = vmatprep.subr.mxu0 0.0
    %7729 = vmatpush1.msra.mxu0 %v7527
    %7730 = vmatprep.subr.mxu0 0.0
    %7731 = vmatpush1.msra.mxu0 %v7528
    %7732 = vmatprep.subr.mxu0 0.0
    %7733 = vmatpush1.msra.mxu0 %v7529
    %7734 = vmatprep.subr.mxu0 0.0
    %7735 = vmatpush1.msra.mxu0 %v7530
    %7736 = vmatprep.subr.mxu0 0.0
    %7737 = vmatpush1.msra.mxu0 %v7531
    %7738 = vmatprep.subr.mxu0 0.0
    %7739 = vmatpush1.msra.mxu0 %v7532
    %7740 = vmatprep.subr.mxu0 0.0
    %7741 = vmatpush1.msra.mxu0 %v7533
    %7742 = vmatprep.subr.mxu0 0.0
    %7743 = vmatpush1.msra.mxu0 %v7534
    %7744 = vmatprep.subr.mxu0 0.0
    %7745 = vmatpush1.msra.mxu0 %v7535
    %7746 = vmatprep.subr.mxu0 0.0
    %7747 = vmatpush1.msra.mxu0 %v7536
    %7748 = vmatprep.mubr.f32.mxu0 %v7589
    %7749 = vmatmul.mubr.f32.gmra.mrb[0].mxu0 %v7587
    %v7750 = vpop.f32.mrb[0].mxu0
    %v7751 = vadd.f32 %v7681, %v7750
    %v7752 = vpop.f32.mrb[0].mxu0
    %7753 = vdwg.mxu0
    %7754 = vmatprep.subr.mxu0 0.0
    %7755 = vmatpush1.msra.mxu0 %v7537
    %7756 = vmatprep.subr.mxu0 0.0
    %7757 = vmatpush1.msra.mxu0 %v7538
    %7758 = vmatprep.subr.mxu0 0.0
    %7759 = vmatpush1.msra.mxu0 %v7539
    %7760 = vmatprep.subr.mxu0 0.0
    %7761 = vmatpush1.msra.mxu0 %v7540
    %7762 = vmatprep.subr.mxu0 0.0
    %7763 = vmatpush1.msra.mxu0 %v7541
    %7764 = vmatprep.subr.mxu0 0.0
    %7765 = vmatpush1.msra.mxu0 %v7542
    %7766 = vmatprep.subr.mxu0 0.0
    %7767 = vmatpush1.msra.mxu0 %v7543
    %7768 = vmatprep.subr.mxu0 0.0
    %7769 = vmatpush1.msra.mxu0 %v7544
    %7770 = vmatprep.subr.mxu0 0.0
    %7771 = vmatpush1.msra.mxu0 %v7545
    %7772 = vmatprep.subr.mxu0 0.0
    %7773 = vmatpush1.msra.mxu0 %v7546
    %7774 = vmatprep.subr.mxu0 0.0
    %7775 = vmatpush1.msra.mxu0 %v7547
    %7776 = vmatprep.subr.mxu0 0.0
    %7777 = vmatpush1.msra.mxu0 %v7548
    %7778 = vmatprep.subr.mxu0 0.0
    %7779 = vmatpush1.msra.mxu0 %v7549
    %7780 = vmatprep.subr.mxu0 0.0
    %7781 = vmatpush1.msra.mxu0 %v7550
    %7782 = vmatprep.subr.mxu0 0.0
    %7783 = vmatpush1.msra.mxu0 %v7551
    %7784 = vmatprep.subr.mxu0 0.0
    %7785 = vmatpush1.msra.mxu0 %v7552
    %7786 = vmatprep.subr.mxu0 0.0
    %7787 = vmatpush1.msra.mxu0 %v7553
    %7788 = vmatprep.subr.mxu0 0.0
    %7789 = vmatpush1.msra.mxu0 %v7554
    %7790 = vmatprep.subr.mxu0 0.0
    %7791 = vmatpush1.msra.mxu0 %v7555
    %7792 = vmatprep.subr.mxu0 0.0
    %7793 = vmatpush1.msra.mxu0 %v7556
    %7794 = vmatprep.subr.mxu0 0.0
    %7795 = vmatpush1.msra.mxu0 %v7557
    %7796 = vmatprep.subr.mxu0 0.0
    %7797 = vmatpush1.msra.mxu0 %v7558
    %7798 = vmatprep.subr.mxu0 0.0
    %7799 = vmatpush1.msra.mxu0 %v7559
    %7800 = vmatprep.subr.mxu0 0.0
    %7801 = vmatpush1.msra.mxu0 %v7560
    %7802 = vmatprep.subr.mxu0 0.0
    %7803 = vmatpush1.msra.mxu0 %v7561
    %7804 = vmatprep.subr.mxu0 0.0
    %7805 = vmatpush1.msra.mxu0 %v7562
    %7806 = vmatprep.subr.mxu0 0.0
    %7807 = vmatpush1.msra.mxu0 %v7563
    %7808 = vmatprep.subr.mxu0 0.0
    %7809 = vmatpush1.msra.mxu0 %v7564
    %7810 = vmatprep.subr.mxu0 0.0
    %7811 = vmatpush1.msra.mxu0 %v7565
    %7812 = vmatprep.subr.mxu0 0.0
    %7813 = vmatpush1.msra.mxu0 %v7566
    %7814 = vmatprep.subr.mxu0 0.0
    %7815 = vmatpush1.msra.mxu0 %v7567
    %7816 = vmatprep.subr.mxu0 0.0
    %7817 = vmatpush1.msra.mxu0 %v7568
    %7818 = vmatprep.mubr.f32.mxu0 %v7605
    %7819 = vmatmul.mubr.f32.gmra.mrb[0].mxu0 %v7597
    %v7820 = vpop.f32.mrb[0].mxu0
    %v7821 = vadd.f32 %v7751, %v7820
    %v7822 = vpop.f32.mrb[0].mxu0
    %7823 = vdwg.mxu0
    %7824 = vmatprep.subr.mxu0 0.0
    %7825 = vmatpush1.msra.mxu0 %v7569
    %7826 = vmatprep.subr.mxu0 0.0
    %7827 = vmatpush1.msra.mxu0 %v7570
    %7828 = vmatprep.subr.mxu0 0.0
    %7829 = vmatpush1.msra.mxu0 0.0
    %7830 = vmatprep.subr.mxu0 0.0
    %7831 = vmatpush1.msra.mxu0 0.0
    %7832 = vmatprep.subr.mxu0 0.0
    %7833 = vmatpush1.msra.mxu0 0.0
    %7834 = vmatprep.subr.mxu0 0.0
    %7835 = vmatpush1.msra.mxu0 0.0
    %7836 = vmatprep.subr.mxu0 0.0
    %7837 = vmatpush1.msra.mxu0 0.0
    %7838 = vmatprep.subr.mxu0 0.0
    %7839 = vmatpush1.msra.mxu0 0.0
    %7840 = vmatprep.subr.mxu0 0.0
    %7841 = vmatpush1.msra.mxu0 0.0
    %7842 = vmatprep.subr.mxu0 0.0
    %7843 = vmatpush1.msra.mxu0 0.0
    %7844 = vmatprep.subr.mxu0 0.0
    %7845 = vmatpush1.msra.mxu0 0.0
    %7846 = vmatprep.subr.mxu0 0.0
    %7847 = vmatpush1.msra.mxu0 0.0
    %7848 = vmatprep.subr.mxu0 0.0
    %7849 = vmatpush1.msra.mxu0 0.0
    %7850 = vmatprep.subr.mxu0 0.0
    %7851 = vmatpush1.msra.mxu0 0.0
    %7852 = vmatprep.subr.mxu0 0.0
    %7853 = vmatpush1.msra.mxu0 0.0
    %7854 = vmatprep.subr.mxu0 0.0
    %7855 = vmatpush1.msra.mxu0 0.0
    %7856 = vmatprep.subr.mxu0 0.0
    %7857 = vmatpush1.msra.mxu0 0.0
    %7858 = vmatprep.subr.mxu0 0.0
    %7859 = vmatpush1.msra.mxu0 0.0
    %7860 = vmatprep.subr.mxu0 0.0
    %7861 = vmatpush1.msra.mxu0 0.0
    %7862 = vmatprep.subr.mxu0 0.0
    %7863 = vmatpush1.msra.mxu0 0.0
    %7864 = vmatprep.subr.mxu0 0.0
    %7865 = vmatpush1.msra.mxu0 0.0
    %7866 = vmatprep.subr.mxu0 0.0
    %7867 = vmatpush1.msra.mxu0 0.0
    %7868 = vmatprep.subr.mxu0 0.0
    %7869 = vmatpush1.msra.mxu0 0.0
    %7870 = vmatprep.subr.mxu0 0.0
    %7871 = vmatpush1.msra.mxu0 0.0
    %7872 = vmatprep.subr.mxu0 0.0
    %7873 = vmatpush1.msra.mxu0 0.0
    %7874 = vmatprep.subr.mxu0 0.0
    %7875 = vmatpush1.msra.mxu0 0.0
    %7876 = vmatprep.subr.mxu0 0.0
    %7877 = vmatpush1.msra.mxu0 0.0
    %7878 = vmatprep.subr.mxu0 0.0
    %7879 = vmatpush1.msra.mxu0 0.0
    %7880 = vmatprep.subr.mxu0 0.0
    %7881 = vmatpush1.msra.mxu0 0.0
    %7882 = vmatprep.subr.mxu0 0.0
    %7883 = vmatpush1.msra.mxu0 0.0
    %7884 = vmatprep.subr.mxu0 0.0
    %7885 = vmatpush1.msra.mxu0 0.0
    %7886 = vmatprep.subr.mxu0 0.0
    %7887 = vmatpush1.msra.mxu0 0.0
    %7888 = vmatprep.mubr.f32.mxu0 0.0
    %7889 = vmatmul.mubr.f32.gmra.mrb[0].mxu0 %v7612
    %v7890 = vpop.f32.mrb[0].mxu0
    %v7891 = vadd.f32 %v7821, %v7890
    %v7892 = vpop.f32.mrb[0].mxu0
    %7893 = vdwg.mxu0
    %v7894 = vadd.f32 %v7413, %v7891
    %s7895 = sld [smem:[#allocation3 + $0x87]]
    %v7896 = vstv %s7895
    %v7897 = vmul.f32 %v7896, %v665
    %v7898 = vmul.f32 %v7896, %v666
    %s7899 = sld [smem:[#allocation3 + $0x88]]
    %v7900 = vstv %s7899
    %v7901 = vmul.f32 %v7900, %v671
    %v7902 = vmul.f32 %v7900, %v672
    %v7903 = vadd.f32 %v7897, %v7901
    %v7904 = vadd.f32 %v7898, %v7902
    %s7905 = sld [smem:[#allocation3 + $0x89]]
    %v7906 = vstv %s7905
    %v7907 = vmul.f32 %v7906, %v679
    %v7908 = vmul.f32 %v7906, %v680
    %v7909 = vadd.f32 %v7903, %v7907
    %v7910 = vadd.f32 %v7904, %v7908
    %s7911 = sld [smem:[#allocation3 + $0x8a]]
    %v7912 = vstv %s7911
    %v7913 = vmul.f32 %v7912, %v687
    %v7914 = vmul.f32 %v7912, %v688
    %v7915 = vadd.f32 %v7909, %v7913
    %v7916 = vadd.f32 %v7910, %v7914
    %s7917 = sld [smem:[#allocation3 + $0x8b]]
    %v7918 = vstv %s7917
    %v7919 = vmul.f32 %v7918, %v695
    %v7920 = vmul.f32 %v7918, %v696
    %v7921 = vadd.f32 %v7915, %v7919
    %v7922 = vadd.f32 %v7916, %v7920
    %s7923 = sld [smem:[#allocation3 + $0x8c]]
    %v7924 = vstv %s7923
    %v7925 = vmul.f32 %v7924, %v703
    %v7926 = vmul.f32 %v7924, %v704
    %v7927 = vadd.f32 %v7921, %v7925
    %v7928 = vadd.f32 %v7922, %v7926
    %s7929 = sld [smem:[#allocation3 + $0x8d]]
    %v7930 = vstv %s7929
    %v7931 = vmul.f32 %v7930, %v711
    %v7932 = vmul.f32 %v7930, %v712
    %v7933 = vadd.f32 %v7927, %v7931
    %v7934 = vadd.f32 %v7928, %v7932
    %s7935 = sld [smem:[#allocation3 + $0x8e]]
    %v7936 = vstv %s7935
    %v7937 = vmul.f32 %v7936, %v719
    %v7938 = vmul.f32 %v7936, %v720
    %v7939 = vadd.f32 %v7933, %v7937
    %v7940 = vadd.f32 %v7934, %v7938
    %s7941 = sld [smem:[#allocation3 + $0x8f]]
    %v7942 = vstv %s7941
    %v7943 = vmul.f32 %v7942, %v727
    %v7944 = vmul.f32 %v7942, %v728
    %v7945 = vadd.f32 %v7939, %v7943
    %v7946 = vadd.f32 %v7940, %v7944
    %s7947 = sld [smem:[#allocation6 + $0xf]]
    %v7948 = vstv %s7947
    %v7949 = vadd.f32 %v7945, %v7948
    %v7950 = vadd.f32 %v7946, %v7948
    %v7951 = vmax.f32 %v7949, 0.0
    %v7952 = vmax.f32 %v7950, 0.0
    %s7953 = scalar_lea.vmem %s4, 11760
    %v7954 = vld [vmem:[%s7953] sm:$0xff]
    %v7955 = vld [vmem:[%s7953 + $0x8] sm:$0xff]
    %v7956 = vld [vmem:[%s7953 + $0x10] sm:$0xff]
    %v7957 = vld [vmem:[%s7953 + $0x18] sm:$0xff]
    %v7958 = vld [vmem:[%s7953 + $0x20] sm:$0xff]
    %v7959 = vld [vmem:[%s7953 + $0x28] sm:$0xff]
    %v7960 = vld [vmem:[%s7953 + $0x30] sm:$0xff]
    %v7961 = vld [vmem:[%s7953 + $0x38] sm:$0xff]
    %v7962 = vld [vmem:[%s7953 + $0x40] sm:$0xff]
    %v7963 = vld [vmem:[%s7953 + $0x48] sm:$0xff]
    %v7964 = vld [vmem:[%s7953 + $0x50] sm:$0xff]
    %v7965 = vld [vmem:[%s7953 + $0x58] sm:$0xff]
    %v7966 = vld [vmem:[%s7953 + $0x60] sm:$0xff]
    %v7967 = vld [vmem:[%s7953 + $0x68] sm:$0xff]
    %v7968 = vld [vmem:[%s7953 + $0x70] sm:$0xff]
    %v7969 = vld [vmem:[%s7953 + $0x78] sm:$0xff]
    %v7970 = vld [vmem:[%s7953 + $0x80] sm:$0xff]
    %v7971 = vld [vmem:[%s7953 + $0x88] sm:$0xff]
    %v7972 = vld [vmem:[%s7953 + $0x90] sm:$0xff]
    %v7973 = vld [vmem:[%s7953 + $0x98] sm:$0xff]
    %v7974 = vld [vmem:[%s7953 + $0xa0] sm:$0xff]
    %v7975 = vld [vmem:[%s7953 + $0xa8] sm:$0xff]
    %v7976 = vld [vmem:[%s7953 + $0xb0] sm:$0xff]
    %v7977 = vld [vmem:[%s7953 + $0xb8] sm:$0xff]
    %v7978 = vld [vmem:[%s7953 + $0xc0] sm:$0xff]
    %v7979 = vld [vmem:[%s7953 + $0xc8] sm:$0xff]
    %v7980 = vld [vmem:[%s7953 + $0xd0] sm:$0xff]
    %v7981 = vld [vmem:[%s7953 + $0xd8] sm:$0xff]
    %v7982 = vld [vmem:[%s7953 + $0xe0] sm:$0xff]
    %v7983 = vld [vmem:[%s7953 + $0xe8] sm:$0xff]
    %v7984 = vld [vmem:[%s7953 + $0xf0] sm:$0xff]
    %v7985 = vld [vmem:[%s7953 + $0xf8] sm:$0xff]
    %v7986 = vld [vmem:[%s7953 + $0x100] sm:$0xff]
    %v7987 = vld [vmem:[%s7953 + $0x108] sm:$0xff]
    %v7988 = vld [vmem:[%s7953 + $0x110] sm:$0xff]
    %v7989 = vld [vmem:[%s7953 + $0x118] sm:$0xff]
    %v7990 = vld [vmem:[%s7953 + $0x120] sm:$0xff]
    %v7991 = vld [vmem:[%s7953 + $0x128] sm:$0xff]
    %v7992 = vld [vmem:[%s7953 + $0x130] sm:$0xff]
    %v7993 = vld [vmem:[%s7953 + $0x138] sm:$0xff]
    %v7994 = vld [vmem:[%s7953 + $0x140] sm:$0xff]
    %v7995 = vld [vmem:[%s7953 + $0x148] sm:$0xff]
    %v7996 = vld [vmem:[%s7953 + $0x150] sm:$0xff]
    %v7997 = vld [vmem:[%s7953 + $0x158] sm:$0xff]
    %v7998 = vld [vmem:[%s7953 + $0x160] sm:$0xff]
    %v7999 = vld [vmem:[%s7953 + $0x168] sm:$0xff]
    %v8000 = vld [vmem:[%s7953 + $0x170] sm:$0xff]
    %v8001 = vld [vmem:[%s7953 + $0x178] sm:$0xff]
    %v8002 = vld [vmem:[%s7953 + $0x180] sm:$0xff]
    %v8003 = vld [vmem:[%s7953 + $0x188] sm:$0xff]
    %v8004 = vld [vmem:[%s7953 + $0x190] sm:$0xff]
    %v8005 = vld [vmem:[%s7953 + $0x198] sm:$0xff]
    %v8006 = vld [vmem:[%s7953 + $0x1a0] sm:$0xff]
    %v8007 = vld [vmem:[%s7953 + $0x1a8] sm:$0xff]
    %v8008 = vld [vmem:[%s7953 + $0x1b0] sm:$0xff]
    %v8009 = vld [vmem:[%s7953 + $0x1b8] sm:$0xff]
    %v8010 = vld [vmem:[%s7953 + $0x1c0] sm:$0xff]
    %v8011 = vld [vmem:[%s7953 + $0x1c8] sm:$0xff]
    %v8012 = vld [vmem:[%s7953 + $0x1d0] sm:$0xff]
    %v8013 = vld [vmem:[%s7953 + $0x1d8] sm:$0xff]
    %v8014 = vld [vmem:[%s7953 + $0x1e0] sm:$0xff]
    %v8015 = vld [vmem:[%s7953 + $0x1e8] sm:$0xff]
    %v8016 = vld [vmem:[%s7953 + $0x1f0] sm:$0xff]
    %v8017 = vld [vmem:[%s7953 + $0x1f8] sm:$0xff]
    %v8018 = vld [vmem:[%s7953 + $0x200] sm:$0xff]
    %v8019 = vld [vmem:[%s7953 + $0x208] sm:$0xff]
    %v8020 = vld [vmem:[%s7953 + $0x210] sm:$0xff]
    %v8021 = vld [vmem:[%s7953 + $0x218] sm:$0xff]
    %v8022 = vld [vmem:[%s7953 + $0x220] sm:$0xff]
    %v8023 = vld [vmem:[%s7953 + $0x228] sm:$0xff]
    %v8024 = vld [vmem:[%s7953 + $0x230] sm:$0xff]
    %v8025 = vld [vmem:[%s7953 + $0x238] sm:$0xff]
    %v8026 = vld [vmem:[%s7953 + $0x240] sm:$0xff]
    %v8027 = vld [vmem:[%s7953 + $0x248] sm:$0xff]
    %v8028 = vld [vmem:[%s7953 + $0x250] sm:$0xff]
    %v8029 = vld [vmem:[%s7953 + $0x258] sm:$0xff]
    %v8030 = vld [vmem:[%s7953 + $0x260] sm:$0xff]
    %v8031 = vld [vmem:[%s7953 + $0x268] sm:$0xff]
    %v8032 = vld [vmem:[%s7953 + $0x270] sm:$0xff]
    %v8033 = vld [vmem:[%s7953 + $0x278] sm:$0xff]
    %v8034 = vld [vmem:[%s7953 + $0x280] sm:$0xff]
    %v8035 = vld [vmem:[%s7953 + $0x288] sm:$0xff]
    %v8036 = vld [vmem:[%s7953 + $0x290] sm:$0xff]
    %v8037 = vld [vmem:[%s7953 + $0x298] sm:$0xff]
    %v8038 = vld [vmem:[%s7953 + $0x2a0] sm:$0xff]
    %v8039 = vld [vmem:[%s7953 + $0x2a8] sm:$0xff]
    %v8040 = vld [vmem:[%s7953 + $0x2b0] sm:$0xff]
    %v8041 = vld [vmem:[%s7953 + $0x2b8] sm:$0xff]
    %v8042 = vld [vmem:[%s7953 + $0x2c0] sm:$0xff]
    %v8043 = vld [vmem:[%s7953 + $0x2c8] sm:$0xff]
    %v8044 = vld [vmem:[%s7953 + $0x2d0] sm:$0xff]
    %v8045 = vld [vmem:[%s7953 + $0x2d8] sm:$0xff]
    %v8046 = vld [vmem:[%s7953 + $0x2e0] sm:$0xff]
    %v8047 = vld [vmem:[%s7953 + $0x2e8] sm:$0xff]
    %v8048 = vld [vmem:[%s7953 + $0x2f0] sm:$0xff]
    %v8049 = vld [vmem:[%s7953 + $0x2f8] sm:$0xff]
    %v8050 = vld [vmem:[%s7953 + $0x300] sm:$0xff]
    %v8051 = vld [vmem:[%s7953 + $0x308] sm:$0xff]
    %v8054 = vcombine.high %v7951, %v7951
    %v8056 = vunpack.c.l.s4 1983009808
    %v8057 = vunpack.c.0.s8 %v8056
    %v8058 = vlaneseq
    %v8059 = vshrl.u32 %v8058, 7
    %v8060 = vsub.s32 %v8057, %v8059
    %v8061 = vrot.slane %v7951, %v8060
    %v8063 = vunpack.c.l.s4 1983009808
    %v8064 = vunpack.c.0.s8 %v8063
    %v8065 = vlaneseq
    %v8066 = vshrl.u32 %v8065, 7
    %v8067 = vsub.s32 %v8064, %v8066
    %v8068 = vrot.slane %v8054, %v8067
    %v8069 = vcombine.high %v8061, %v8061
    %v8070 = vcombine.high %v8068, %v8068
    %v8071 = vcombine.high %v7952, %v7952
    %v8073 = vunpack.c.l.s4 1983009808
    %v8074 = vunpack.c.0.s8 %v8073
    %v8075 = vlaneseq
    %v8076 = vshrl.u32 %v8075, 7
    %v8077 = vsub.s32 %v8074, %v8076
    %v8078 = vrot.slane %v7952, %v8077
    %v8080 = vunpack.c.l.s4 1983009808
    %v8081 = vunpack.c.0.s8 %v8080
    %v8082 = vlaneseq
    %v8083 = vshrl.u32 %v8082, 7
    %v8084 = vsub.s32 %v8081, %v8083
    %v8085 = vrot.slane %v8071, %v8084
    %v8086 = vcombine.high %v8078, %v8078
    %v8093 = vsel %vm1036, %v8085, 0
    %8095 = vmatprep.subr.mxu0 0.0
    %8096 = vmatpush1.msra.mxu0 %v7954
    %8097 = vmatprep.subr.mxu0 0.0
    %8098 = vmatpush1.msra.mxu0 %v7955
    %8099 = vmatprep.subr.mxu0 0.0
    %8100 = vmatpush1.msra.mxu0 %v7956
    %8101 = vmatprep.subr.mxu0 0.0
    %8102 = vmatpush1.msra.mxu0 %v7957
    %8103 = vmatprep.subr.mxu0 0.0
    %8104 = vmatpush1.msra.mxu0 %v7958
    %8105 = vmatprep.subr.mxu0 0.0
    %8106 = vmatpush1.msra.mxu0 %v7959
    %8107 = vmatprep.subr.mxu0 0.0
    %8108 = vmatpush1.msra.mxu0 %v7960
    %8109 = vmatprep.subr.mxu0 0.0
    %8110 = vmatpush1.msra.mxu0 %v7961
    %8111 = vmatprep.subr.mxu0 0.0
    %8112 = vmatpush1.msra.mxu0 %v7962
    %8113 = vmatprep.subr.mxu0 0.0
    %8114 = vmatpush1.msra.mxu0 %v7963
    %8115 = vmatprep.subr.mxu0 0.0
    %8116 = vmatpush1.msra.mxu0 %v7964
    %8117 = vmatprep.subr.mxu0 0.0
    %8118 = vmatpush1.msra.mxu0 %v7965
    %8119 = vmatprep.subr.mxu0 0.0
    %8120 = vmatpush1.msra.mxu0 %v7966
    %8121 = vmatprep.subr.mxu0 0.0
    %8122 = vmatpush1.msra.mxu0 %v7967
    %8123 = vmatprep.subr.mxu0 0.0
    %8124 = vmatpush1.msra.mxu0 %v7968
    %8125 = vmatprep.subr.mxu0 0.0
    %8126 = vmatpush1.msra.mxu0 %v7969
    %8127 = vmatprep.subr.mxu0 0.0
    %8128 = vmatpush1.msra.mxu0 %v7970
    %8129 = vmatprep.subr.mxu0 0.0
    %8130 = vmatpush1.msra.mxu0 %v7971
    %8131 = vmatprep.subr.mxu0 0.0
    %8132 = vmatpush1.msra.mxu0 %v7972
    %8133 = vmatprep.subr.mxu0 0.0
    %8134 = vmatpush1.msra.mxu0 %v7973
    %8135 = vmatprep.subr.mxu0 0.0
    %8136 = vmatpush1.msra.mxu0 %v7974
    %8137 = vmatprep.subr.mxu0 0.0
    %8138 = vmatpush1.msra.mxu0 %v7975
    %8139 = vmatprep.subr.mxu0 0.0
    %8140 = vmatpush1.msra.mxu0 %v7976
    %8141 = vmatprep.subr.mxu0 0.0
    %8142 = vmatpush1.msra.mxu0 %v7977
    %8143 = vmatprep.subr.mxu0 0.0
    %8144 = vmatpush1.msra.mxu0 %v7978
    %8145 = vmatprep.subr.mxu0 0.0
    %8146 = vmatpush1.msra.mxu0 %v7979
    %8147 = vmatprep.subr.mxu0 0.0
    %8148 = vmatpush1.msra.mxu0 %v7980
    %8149 = vmatprep.subr.mxu0 0.0
    %8150 = vmatpush1.msra.mxu0 %v7981
    %8151 = vmatprep.subr.mxu0 0.0
    %8152 = vmatpush1.msra.mxu0 %v7982
    %8153 = vmatprep.subr.mxu0 0.0
    %8154 = vmatpush1.msra.mxu0 %v7983
    %8155 = vmatprep.subr.mxu0 0.0
    %8156 = vmatpush1.msra.mxu0 %v7984
    %8157 = vmatprep.subr.mxu0 0.0
    %8158 = vmatpush1.msra.mxu0 %v7985
    %8159 = vmatprep.mubr.f32.mxu0 %v8069
    %8160 = vmatmul.mubr.f32.gmra.mrb[0].mxu0 %v8061
    %v8161 = vpop.f32.mrb[0].mxu0
    %v8162 = vadd.f32 0.0, %v8161
    %v8163 = vpop.f32.mrb[0].mxu0
    %8164 = vdwg.mxu0
    %8165 = vmatprep.subr.mxu0 0.0
    %8166 = vmatpush1.msra.mxu0 %v7986
    %8167 = vmatprep.subr.mxu0 0.0
    %8168 = vmatpush1.msra.mxu0 %v7987
    %8169 = vmatprep.subr.mxu0 0.0
    %8170 = vmatpush1.msra.mxu0 %v7988
    %8171 = vmatprep.subr.mxu0 0.0
    %8172 = vmatpush1.msra.mxu0 %v7989
    %8173 = vmatprep.subr.mxu0 0.0
    %8174 = vmatpush1.msra.mxu0 %v7990
    %8175 = vmatprep.subr.mxu0 0.0
    %8176 = vmatpush1.msra.mxu0 %v7991
    %8177 = vmatprep.subr.mxu0 0.0
    %8178 = vmatpush1.msra.mxu0 %v7992
    %8179 = vmatprep.subr.mxu0 0.0
    %8180 = vmatpush1.msra.mxu0 %v7993
    %8181 = vmatprep.subr.mxu0 0.0
    %8182 = vmatpush1.msra.mxu0 %v7994
    %8183 = vmatprep.subr.mxu0 0.0
    %8184 = vmatpush1.msra.mxu0 %v7995
    %8185 = vmatprep.subr.mxu0 0.0
    %8186 = vmatpush1.msra.mxu0 %v7996
    %8187 = vmatprep.subr.mxu0 0.0
    %8188 = vmatpush1.msra.mxu0 %v7997
    %8189 = vmatprep.subr.mxu0 0.0
    %8190 = vmatpush1.msra.mxu0 %v7998
    %8191 = vmatprep.subr.mxu0 0.0
    %8192 = vmatpush1.msra.mxu0 %v7999
    %8193 = vmatprep.subr.mxu0 0.0
    %8194 = vmatpush1.msra.mxu0 %v8000
    %8195 = vmatprep.subr.mxu0 0.0
    %8196 = vmatpush1.msra.mxu0 %v8001
    %8197 = vmatprep.subr.mxu0 0.0
    %8198 = vmatpush1.msra.mxu0 %v8002
    %8199 = vmatprep.subr.mxu0 0.0
    %8200 = vmatpush1.msra.mxu0 %v8003
    %8201 = vmatprep.subr.mxu0 0.0
    %8202 = vmatpush1.msra.mxu0 %v8004
    %8203 = vmatprep.subr.mxu0 0.0
    %8204 = vmatpush1.msra.mxu0 %v8005
    %8205 = vmatprep.subr.mxu0 0.0
    %8206 = vmatpush1.msra.mxu0 %v8006
    %8207 = vmatprep.subr.mxu0 0.0
    %8208 = vmatpush1.msra.mxu0 %v8007
    %8209 = vmatprep.subr.mxu0 0.0
    %8210 = vmatpush1.msra.mxu0 %v8008
    %8211 = vmatprep.subr.mxu0 0.0
    %8212 = vmatpush1.msra.mxu0 %v8009
    %8213 = vmatprep.subr.mxu0 0.0
    %8214 = vmatpush1.msra.mxu0 %v8010
    %8215 = vmatprep.subr.mxu0 0.0
    %8216 = vmatpush1.msra.mxu0 %v8011
    %8217 = vmatprep.subr.mxu0 0.0
    %8218 = vmatpush1.msra.mxu0 %v8012
    %8219 = vmatprep.subr.mxu0 0.0
    %8220 = vmatpush1.msra.mxu0 %v8013
    %8221 = vmatprep.subr.mxu0 0.0
    %8222 = vmatpush1.msra.mxu0 %v8014
    %8223 = vmatprep.subr.mxu0 0.0
    %8224 = vmatpush1.msra.mxu0 %v8015
    %8225 = vmatprep.subr.mxu0 0.0
    %8226 = vmatpush1.msra.mxu0 %v8016
    %8227 = vmatprep.subr.mxu0 0.0
    %8228 = vmatpush1.msra.mxu0 %v8017
    %8229 = vmatprep.mubr.f32.mxu0 %v8070
    %8230 = vmatmul.mubr.f32.gmra.mrb[0].mxu0 %v8068
    %v8231 = vpop.f32.mrb[0].mxu0
    %v8232 = vadd.f32 %v8162, %v8231
    %v8233 = vpop.f32.mrb[0].mxu0
    %8234 = vdwg.mxu0
    %8235 = vmatprep.subr.mxu0 0.0
    %8236 = vmatpush1.msra.mxu0 %v8018
    %8237 = vmatprep.subr.mxu0 0.0
    %8238 = vmatpush1.msra.mxu0 %v8019
    %8239 = vmatprep.subr.mxu0 0.0
    %8240 = vmatpush1.msra.mxu0 %v8020
    %8241 = vmatprep.subr.mxu0 0.0
    %8242 = vmatpush1.msra.mxu0 %v8021
    %8243 = vmatprep.subr.mxu0 0.0
    %8244 = vmatpush1.msra.mxu0 %v8022
    %8245 = vmatprep.subr.mxu0 0.0
    %8246 = vmatpush1.msra.mxu0 %v8023
    %8247 = vmatprep.subr.mxu0 0.0
    %8248 = vmatpush1.msra.mxu0 %v8024
    %8249 = vmatprep.subr.mxu0 0.0
    %8250 = vmatpush1.msra.mxu0 %v8025
    %8251 = vmatprep.subr.mxu0 0.0
    %8252 = vmatpush1.msra.mxu0 %v8026
    %8253 = vmatprep.subr.mxu0 0.0
    %8254 = vmatpush1.msra.mxu0 %v8027
    %8255 = vmatprep.subr.mxu0 0.0
    %8256 = vmatpush1.msra.mxu0 %v8028
    %8257 = vmatprep.subr.mxu0 0.0
    %8258 = vmatpush1.msra.mxu0 %v8029
    %8259 = vmatprep.subr.mxu0 0.0
    %8260 = vmatpush1.msra.mxu0 %v8030
    %8261 = vmatprep.subr.mxu0 0.0
    %8262 = vmatpush1.msra.mxu0 %v8031
    %8263 = vmatprep.subr.mxu0 0.0
    %8264 = vmatpush1.msra.mxu0 %v8032
    %8265 = vmatprep.subr.mxu0 0.0
    %8266 = vmatpush1.msra.mxu0 %v8033
    %8267 = vmatprep.subr.mxu0 0.0
    %8268 = vmatpush1.msra.mxu0 %v8034
    %8269 = vmatprep.subr.mxu0 0.0
    %8270 = vmatpush1.msra.mxu0 %v8035
    %8271 = vmatprep.subr.mxu0 0.0
    %8272 = vmatpush1.msra.mxu0 %v8036
    %8273 = vmatprep.subr.mxu0 0.0
    %8274 = vmatpush1.msra.mxu0 %v8037
    %8275 = vmatprep.subr.mxu0 0.0
    %8276 = vmatpush1.msra.mxu0 %v8038
    %8277 = vmatprep.subr.mxu0 0.0
    %8278 = vmatpush1.msra.mxu0 %v8039
    %8279 = vmatprep.subr.mxu0 0.0
    %8280 = vmatpush1.msra.mxu0 %v8040
    %8281 = vmatprep.subr.mxu0 0.0
    %8282 = vmatpush1.msra.mxu0 %v8041
    %8283 = vmatprep.subr.mxu0 0.0
    %8284 = vmatpush1.msra.mxu0 %v8042
    %8285 = vmatprep.subr.mxu0 0.0
    %8286 = vmatpush1.msra.mxu0 %v8043
    %8287 = vmatprep.subr.mxu0 0.0
    %8288 = vmatpush1.msra.mxu0 %v8044
    %8289 = vmatprep.subr.mxu0 0.0
    %8290 = vmatpush1.msra.mxu0 %v8045
    %8291 = vmatprep.subr.mxu0 0.0
    %8292 = vmatpush1.msra.mxu0 %v8046
    %8293 = vmatprep.subr.mxu0 0.0
    %8294 = vmatpush1.msra.mxu0 %v8047
    %8295 = vmatprep.subr.mxu0 0.0
    %8296 = vmatpush1.msra.mxu0 %v8048
    %8297 = vmatprep.subr.mxu0 0.0
    %8298 = vmatpush1.msra.mxu0 %v8049
    %8299 = vmatprep.mubr.f32.mxu0 %v8086
    %8300 = vmatmul.mubr.f32.gmra.mrb[0].mxu0 %v8078
    %v8301 = vpop.f32.mrb[0].mxu0
    %v8302 = vadd.f32 %v8232, %v8301
    %v8303 = vpop.f32.mrb[0].mxu0
    %8304 = vdwg.mxu0
    %8305 = vmatprep.subr.mxu0 0.0
    %8306 = vmatpush1.msra.mxu0 %v8050
    %8307 = vmatprep.subr.mxu0 0.0
    %8308 = vmatpush1.msra.mxu0 %v8051
    %8309 = vmatprep.subr.mxu0 0.0
    %8310 = vmatpush1.msra.mxu0 0.0
    %8311 = vmatprep.subr.mxu0 0.0
    %8312 = vmatpush1.msra.mxu0 0.0
    %8313 = vmatprep.subr.mxu0 0.0
    %8314 = vmatpush1.msra.mxu0 0.0
    %8315 = vmatprep.subr.mxu0 0.0
    %8316 = vmatpush1.msra.mxu0 0.0
    %8317 = vmatprep.subr.mxu0 0.0
    %8318 = vmatpush1.msra.mxu0 0.0
    %8319 = vmatprep.subr.mxu0 0.0
    %8320 = vmatpush1.msra.mxu0 0.0
    %8321 = vmatprep.subr.mxu0 0.0
    %8322 = vmatpush1.msra.mxu0 0.0
    %8323 = vmatprep.subr.mxu0 0.0
    %8324 = vmatpush1.msra.mxu0 0.0
    %8325 = vmatprep.subr.mxu0 0.0
    %8326 = vmatpush1.msra.mxu0 0.0
    %8327 = vmatprep.subr.mxu0 0.0
    %8328 = vmatpush1.msra.mxu0 0.0
    %8329 = vmatprep.subr.mxu0 0.0
    %8330 = vmatpush1.msra.mxu0 0.0
    %8331 = vmatprep.subr.mxu0 0.0
    %8332 = vmatpush1.msra.mxu0 0.0
    %8333 = vmatprep.subr.mxu0 0.0
    %8334 = vmatpush1.msra.mxu0 0.0
    %8335 = vmatprep.subr.mxu0 0.0
    %8336 = vmatpush1.msra.mxu0 0.0
    %8337 = vmatprep.subr.mxu0 0.0
    %8338 = vmatpush1.msra.mxu0 0.0
    %8339 = vmatprep.subr.mxu0 0.0
    %8340 = vmatpush1.msra.mxu0 0.0
    %8341 = vmatprep.subr.mxu0 0.0
    %8342 = vmatpush1.msra.mxu0 0.0
    %8343 = vmatprep.subr.mxu0 0.0
    %8344 = vmatpush1.msra.mxu0 0.0
    %8345 = vmatprep.subr.mxu0 0.0
    %8346 = vmatpush1.msra.mxu0 0.0
    %8347 = vmatprep.subr.mxu0 0.0
    %8348 = vmatpush1.msra.mxu0 0.0
    %8349 = vmatprep.subr.mxu0 0.0
    %8350 = vmatpush1.msra.mxu0 0.0
    %8351 = vmatprep.subr.mxu0 0.0
    %8352 = vmatpush1.msra.mxu0 0.0
    %8353 = vmatprep.subr.mxu0 0.0
    %8354 = vmatpush1.msra.mxu0 0.0
    %8355 = vmatprep.subr.mxu0 0.0
    %8356 = vmatpush1.msra.mxu0 0.0
    %8357 = vmatprep.subr.mxu0 0.0
    %8358 = vmatpush1.msra.mxu0 0.0
    %8359 = vmatprep.subr.mxu0 0.0
    %8360 = vmatpush1.msra.mxu0 0.0
    %8361 = vmatprep.subr.mxu0 0.0
    %8362 = vmatpush1.msra.mxu0 0.0
    %8363 = vmatprep.subr.mxu0 0.0
    %8364 = vmatpush1.msra.mxu0 0.0
    %8365 = vmatprep.subr.mxu0 0.0
    %8366 = vmatpush1.msra.mxu0 0.0
    %8367 = vmatprep.subr.mxu0 0.0
    %8368 = vmatpush1.msra.mxu0 0.0
    %8369 = vmatprep.mubr.f32.mxu0 0.0
    %8370 = vmatmul.mubr.f32.gmra.mrb[0].mxu0 %v8093
    %v8371 = vpop.f32.mrb[0].mxu0
    %v8372 = vadd.f32 %v8302, %v8371
    %v8373 = vpop.f32.mrb[0].mxu0
    %8374 = vdwg.mxu0
    %v8375 = vadd.f32 %v7894, %v8372
    %v8376 = vld [vmem:[%s5] sm:$0x1]
    %v8378 = vlaneseq
    %v8379 = vshrl.u32 %v8378, 7
    %v8380 = vsub.s32 0, %v8379
    %v8381 = vrot.slane %v8376, %v8380
    %v8383 = vadd.f32 %v8375, %v8381
    %8384 = vst [vmem:[#allocation8] sm:$0x3] %v8383
    // Predicated region
    $region34: #{simple_net.1} parent=1 // pred_check
      _
    $region35: #{simple_net.1} parent=1 // pred_check_branch
      %8386 = sbr.rel (0) target = $region37
    $region36: #{simple_net.1} parent=1 // pred_region
      %s8388 = ssub.s32 32, 32
      %8389 = vsyncadd [#allocation4], %s8388
      %s8391 = sshll.u32 [#allocation8], 4
      %s8392 = int_to_ptr.vmem [resolvable:$true] %s8391
      %8394 = dma.vmem_to_hbm [thread:$0]  %s8392, 32, %s6, [#allocation4]
    $region37: #{simple_net.1} parent=1 // pred_fallthru
      _
    // Predicated region
    $region38: #{simple_net.1} parent=1 // pred_check
      _
    $region39: #{simple_net.1} parent=1 // pred_check_branch
      %8396 = sbr.rel (0) target = $region41
    $region40: #{simple_net.1} parent=1 // pred_region
      %8397 = dma.done [#allocation4], 32
    $region41: #{simple_net.1} parent=1 // pred_fallthru
      _
    %8398 = vsyncpa [#allocation4], 1
    %8399 = vsyncpa [#allocation5], 1
    %8400 = vsyncpa [#allocation7], 1

</llo_original>
